<compile_context>
chip_gen: v7x
topology: tpu7x:2x2x1
jax: 0.10.0
libtpu: 0.0.40
codegen_flags: <defaults>
</compile_context>

<pallas_src>
import functools
import numpy as np
import jax
import jax.numpy as jnp
from jax.experimental import pallas as pl
from jax.experimental.pallas import tpu as pltpu

# ---------------- small synthetic instantiation of the module config ----------
IN_CH = 4          # input image channels
STEM_CH = 16       # backbone stem channels
FEAT_CH = 32       # backbone output channels (fed to ASPP head)
ASPP_CH = 16       # ASPP head "channels"
DILATIONS = (1, 2, 3)
NUM_CLASSES = 2
BN_EPS = 1e-5
ALIGN_CORNERS = False

_LANE = 128                 # TPU lane width
_BF16_SUBLANE = 16          # bf16 sublane packing -> M rounded to 16


def _round_up(x, m):
    return (x + m - 1) // m * m


# ========== Pallas kernel 1: single-pass bf16 matmul + folded BN + epilogue ===
def _matmul_bn_act_kernel(*refs, relu_mode, has_residual):
    """One MXU pass over the whole (padded) K, fused f32 epilogue:
    per-channel scale/bias (folded eval BN), optional residual add,
    ReLU on all / none / a per-column-masked subset of the output channels."""
    x_ref, w_ref, s_ref, b_ref = refs[:4]
    i = 4
    m_ref = None
    if relu_mode == "mask":
        m_ref = refs[i]; i += 1
    r_ref = None
    if has_residual:
        r_ref = refs[i]; i += 1
    o_ref = refs[i]

    acc = jnp.dot(x_ref[...], w_ref[...], preferred_element_type=jnp.float32)
    acc = acc * s_ref[...] + b_ref[...]                    # folded eval-mode BN
    if has_residual:
        acc = acc + r_ref[...].astype(jnp.float32)         # fused residual add
    if relu_mode == "all":
        acc = jnp.maximum(acc, 0.0)
    elif relu_mode == "mask":
        m = m_ref[...]                                     # (1, tn) 1.0 = relu
        acc = jnp.maximum(acc, 0.0) * m + acc * (1.0 - m)
    o_ref[...] = acc.astype(o_ref.dtype)


def pallas_matmul_bn_act(patches, w, scale, bias, *, relu=True, residual=None,
                         relu_mask=None, out_dtype=jnp.bfloat16):
    """bf16 (M,Kp)@(Kp,Np) on the MXU with f32 accumulation in ONE K pass.
    `w`/`scale`/`bias`/`relu_mask` are pre-padded static params; only the
    activation patches (and residual) are padded here. Returns padded (Mp,Np)."""
    M, K = patches.shape
    Kp, Np = w.shape
    assert K <= Kp

    Mp = _round_up(M, _BF16_SUBLANE)
    tm = Mp if Mp <= 256 else 256
    Mp = _round_up(Mp, tm)
    if Np <= 256:
        tn = Np
    elif Np % 256 == 0:
        tn = 256
    else:
        tn = _LANE

    xp = patches.astype(jnp.bfloat16)
    if (Mp, Kp) != (M, K):
        xp = jnp.pad(xp, ((0, Mp - M), (0, Kp - K)))

    relu_mode = "mask" if relu_mask is not None else ("all" if relu else "none")

    in_specs = [
        pl.BlockSpec((tm, Kp), lambda i, j: (i, 0)),   # whole K in one tile
        pl.BlockSpec((Kp, tn), lambda i, j: (0, j)),
        pl.BlockSpec((1, tn), lambda i, j: (0, j)),
        pl.BlockSpec((1, tn), lambda i, j: (0, j)),
    ]
    args = [xp, w, scale, bias]
    if relu_mode == "mask":
        in_specs.append(pl.BlockSpec((1, tn), lambda i, j: (0, j)))
        args.append(relu_mask)
    if residual is not None:
        rp = residual.astype(jnp.bfloat16)
        if rp.shape != (Mp, Np):
            rp = jnp.pad(rp, ((0, Mp - rp.shape[0]), (0, Np - rp.shape[1])))
        in_specs.append(pl.BlockSpec((tm, tn), lambda i, j: (i, j)))
        args.append(rp)

    out = pl.pallas_call(
        functools.partial(_matmul_bn_act_kernel, relu_mode=relu_mode,
                          has_residual=residual is not None),
        grid=(Mp // tm, Np // tn),
        in_specs=in_specs,
        out_specs=pl.BlockSpec((tm, tn), lambda i, j: (i, j)),
        out_shape=jax.ShapeDtypeStruct((Mp, Np), out_dtype),
        compiler_params=pltpu.CompilerParams(
            dimension_semantics=("parallel", "parallel")),
    )(*args)
    return out


# ========== Pallas kernel 2: bottleneck conv + cls + sigmoid + resize =========
def _bottleneck_cls_resize_kernel(x_ref, w_ref, s_ref, b_ref,
                                  wcls_ref, bcls_ref, kron_ref, o_ref):
    # bottleneck 3x3 conv (one MXU pass) + folded BN + ReLU
    acc = jnp.dot(x_ref[...], w_ref[...], preferred_element_type=jnp.float32)
    bott = jnp.maximum(acc * s_ref[...] + b_ref[...], 0.0)            # (M, Cb)
    # cls_seg 1x1 conv with bias (dropout is identity in eval)
    logits = jnp.dot(bott.astype(jnp.bfloat16), wcls_ref[...],
                     preferred_element_type=jnp.float32) + bcls_ref[...]
    probs = jax.nn.sigmoid(logits)                                     # (M, Cc)
    # bilinear up-sample of every (batch, class) plane: block-diag kron(Wh,Ww)
    o_ref[...] = jnp.dot(kron_ref[...], probs,
                         preferred_element_type=jnp.float32)           # (R, Cc)


def _bilinear_matrix(out_size, in_size, align_corners):
    """Row o contains the two bilinear taps for output pixel o (PyTorch semantics)."""
    m = np.zeros((out_size, in_size), np.float32)
    for o in range(out_size):
        if align_corners and out_size > 1:
            src = o * (in_size - 1) / (out_size - 1)
        else:
            src = (o + 0.5) * in_size / out_size - 0.5
            src = max(src, 0.0)
        i0 = min(int(np.floor(src)), in_size - 1)
        i1 = min(i0 + 1, in_size - 1)
        lam = src - i0
        m[o, i0] += 1.0 - lam
        m[o, i1] += lam
    return m


def fused_bottleneck_cls_resize(patches, params, N, Hf, Wf, Hout, Wout,
                                align_corners):
    """bottleneck conv + BN + ReLU + cls 1x1 + sigmoid + bilinear resize in one
    pallas_call. Output rows are ordered (n, h_out, w_out), columns = classes."""
    pb, pc = params["bottleneck"], params["cls"]
    M, K = patches.shape                     # M = N*Hf*Wf
    Kp, Cb = pb["w"].shape
    _, Cc = pc["w"].shape

    Mp = _round_up(M, _BF16_SUBLANE)
    xp = patches.astype(jnp.bfloat16)
    if (Mp, Kp) != (M, K):
        xp = jnp.pad(xp, ((0, Mp - M), (0, Kp - K)))

    # block-diagonal kron(Wh, Ww), one (Hout*Wout, Hf*Wf) block per batch elem;
    # padded columns (M..Mp) are zero so padded conv rows never contribute.
    wh = _bilinear_matrix(Hout, Hf, align_corners)
    ww = _bilinear_matrix(Wout, Wf, align_corners)
    kr = np.kron(wh, ww)
    R = N * Hout * Wout
    Rp = _round_up(R, 8)
    big = np.zeros((Rp, Mp), np.float32)
    for n in range(N):
        big[n * Hout * Wout:(n + 1) * Hout * Wout,
            n * Hf * Wf:(n + 1) * Hf * Wf] = kr
    bigk = jnp.asarray(big)

    out = pl.pallas_call(
        _bottleneck_cls_resize_kernel,
        grid=(1,),
        in_specs=[pl.BlockSpec((Mp, Kp), lambda i: (0, 0)),
                  pl.BlockSpec((Kp, Cb), lambda i: (0, 0)),
                  pl.BlockSpec((1, Cb), lambda i: (0, 0)),
                  pl.BlockSpec((1, Cb), lambda i: (0, 0)),
                  pl.BlockSpec((Cb, Cc), lambda i: (0, 0)),
                  pl.BlockSpec((1, Cc), lambda i: (0, 0)),
                  pl.BlockSpec((Rp, Mp), lambda i: (0, 0))],
        out_specs=pl.BlockSpec((Rp, Cc), lambda i: (0, 0)),
        out_shape=jax.ShapeDtypeStruct((Rp, Cc), jnp.float32),
        compiler_params=pltpu.CompilerParams(
            dimension_semantics=("arbitrary",)),
    )(xp, pb["w"], pb["scale"], pb["bias"], pc["w"], pc["bias"], bigk)

    out = out[:R, :NUM_CLASSES].reshape(N, Hout, Wout, NUM_CLASSES)
    return jnp.transpose(out, (0, 3, 1, 2))                 # NHWC -> NCHW


# ================= conv = im2col (glue) + Pallas matmul =======================
def _im2col(x, k, stride, dilation, padding):
    """x: NHWC -> patches (N*Ho*Wo, k*k*C) ordered (kh, kw, cin)."""
    # TODO(synk): for realistic H,W move patch extraction into the kernel
    # (halo reads via index_map) to avoid the k*k HBM inflation; at 16x16 the
    # XLA-side im2col is negligible.
    N, H, W, C = x.shape
    if padding:
        x = jnp.pad(x, ((0, 0), (padding, padding), (padding, padding), (0, 0)))
    Ho = (H + 2 * padding - dilation * (k - 1) - 1) // stride + 1
    Wo = (W + 2 * padding - dilation * (k - 1) - 1) // stride + 1
    cols = []
    for di in range(k):
        for dj in range(k):
            cols.append(
                x[:, di * dilation: di * dilation + (Ho - 1) * stride + 1: stride,
                     dj * dilation: dj * dilation + (Wo - 1) * stride + 1: stride, :])
    patches = jnp.concatenate(cols, axis=-1)
    return patches.reshape(N * Ho * Wo, k * k * C), (N, Ho, Wo)


def conv_bn_act(x, p, stride=1, dilation=1, padding=0, relu=True, residual=None,
                out_dtype=jnp.bfloat16):
    patches, (N, Ho, Wo) = _im2col(x, p["k"], stride, dilation, padding)
    M = N * Ho * Wo
    res2d = None
    if residual is not None:
        res2d = residual.reshape(M, residual.shape[-1])
    out = pallas_matmul_bn_act(patches, p["w"], p["scale"], p["bias"],
                               relu=relu, residual=res2d,
                               relu_mask=p.get("relu_mask"),
                               out_dtype=out_dtype)
    return out[:M, :p["cout"]].reshape(N, Ho, Wo, p["cout"])


# ================= deterministic parameter construction =======================
def _fold_bn(key, cout):
    kg, kb, km, kv = jax.random.split(key, 4)
    gamma = 1.0 + 0.1 * jax.random.normal(kg, (cout,), jnp.float32)
    beta = 0.1 * jax.random.normal(kb, (cout,), jnp.float32)
    mean = 0.1 * jax.random.normal(km, (cout,), jnp.float32)
    var = 1.0 + 0.1 * jax.random.uniform(kv, (cout,), jnp.float32)
    scale = gamma / jnp.sqrt(var + BN_EPS)
    bias = beta - mean * scale
    return scale, bias


def _make_conv_raw(key, cin, cout, k):
    kw, kbn = jax.random.split(key)
    w = jax.random.normal(kw, (cout, cin, k, k), jnp.float32) / np.sqrt(cin * k * k)
    w_mat = jnp.transpose(w, (2, 3, 1, 0)).reshape(k * k * cin, cout)  # (kh,kw,cin) rows
    scale, bias = _fold_bn(kbn, cout)
    return dict(w=w_mat, scale=scale, bias=bias, k=k)


def _make_cls_raw(key, cin, cout):
    kw, kb = jax.random.split(key)
    w = jax.random.normal(kw, (cout, cin, 1, 1), jnp.float32) / np.sqrt(cin)
    w_mat = jnp.transpose(w, (2, 3, 1, 0)).reshape(cin, cout)
    b = 0.1 * jax.random.normal(kb, (cout,), jnp.float32)
    return dict(w=w_mat, bias=b)


def _merge_1x1_into_3x3(p1x1, p3x3, cin):
    """Fold a 1x1 branch into the centre tap of a (dilated) 3x3 branch so both
    ASPP branches come from one matmul; output channels = [1x1 outs, 3x3 outs]."""
    c0 = p1x1["w"].shape[1]
    w = jnp.zeros((9 * cin, c0 + p3x3["w"].shape[1]), jnp.float32)
    w = w.at[4 * cin:5 * cin, :c0].set(p1x1["w"])   # centre tap == unshifted pixel
    w = w.at[:, c0:].set(p3x3["w"])
    return dict(w=w,
                scale=jnp.concatenate([p1x1["scale"], p3x3["scale"]]),
                bias=jnp.concatenate([p1x1["bias"], p3x3["bias"]]),
                k=3)


def _merge_stride2_main_and_shortcut(p3, p1, cin):
    """Fold the 1x1 stride-2 shortcut conv into the centre tap of the 3x3
    stride-2 pad-1 main conv (both read pixel (2ho, 2wo)), so main + shortcut
    come from one matmul. Columns: [main (relu), shortcut (no relu)]."""
    K3, N3 = p3["w"].shape
    _, N1 = p1["w"].shape
    w = jnp.zeros((K3, N3 + N1), jnp.float32)
    w = w.at[:, :N3].set(p3["w"])
    w = w.at[4 * cin:5 * cin, N3:].set(p1["w"])
    mask = jnp.concatenate([jnp.ones((N3,), jnp.float32),
                            jnp.zeros((N1,), jnp.float32)])
    return dict(w=w,
                scale=jnp.concatenate([p3["scale"], p1["scale"]]),
                bias=jnp.concatenate([p3["bias"], p1["bias"]]),
                k=3, relu_mask=mask)


def _blockdiag_merge(p_a, p_b):
    """K-concatenated patches + block-diagonal weight -> both (same-k) conv
    branches in one matmul; output channels = [p_a outs, p_b outs]."""
    Ka, Na = p_a["w"].shape
    Kb, Nb = p_b["w"].shape
    w = jnp.zeros((Ka + Kb, Na + Nb), jnp.float32)
    w = w.at[:Ka, :Na].set(p_a["w"])
    w = w.at[Ka:, Na:].set(p_b["w"])
    return dict(w=w,
                scale=jnp.concatenate([p_a["scale"], p_b["scale"]]),
                bias=jnp.concatenate([p_a["bias"], p_b["bias"]]),
                k=p_a["k"])


def _finalize_conv(raw):
    """Pre-pad static weights / folded BN (and relu mask) once; bf16 weights."""
    w, scale, bias = raw["w"], raw["scale"], raw["bias"]
    K, N = w.shape
    Kp, Np = _round_up(K, _LANE), _round_up(N, _LANE)
    wp = jnp.zeros((Kp, Np), jnp.bfloat16).at[:K, :N].set(w.astype(jnp.bfloat16))
    sp = jnp.zeros((1, Np), jnp.float32).at[0, :N].set(scale)
    bp = jnp.zeros((1, Np), jnp.float32).at[0, :N].set(bias)
    out = dict(w=wp, scale=sp, bias=bp, k=raw["k"], cout=N)
    if "relu_mask" in raw:
        out["relu_mask"] = jnp.zeros((1, Np), jnp.float32).at[0, :N].set(raw["relu_mask"])
    return out


def _finalize_cls(raw, kp):
    """cls 1x1 conv padded so its K matches the bottleneck's padded out-channels."""
    w, bias = raw["w"], raw["bias"]
    K, N = w.shape
    Np = _round_up(N, _LANE)
    wp = jnp.zeros((kp, Np), jnp.bfloat16).at[:K, :N].set(w.astype(jnp.bfloat16))
    bp = jnp.zeros((1, Np), jnp.float32).at[0, :N].set(bias)
    return dict(w=wp, bias=bp, cout=N)


def build_params(key):
    ks = jax.random.split(key, 12)
    raw = {}
    # mini-ResNet backbone
    raw["stem"] = _make_conv_raw(ks[0], IN_CH, STEM_CH, 3)
    raw["b1c1"] = _make_conv_raw(ks[1], STEM_CH, STEM_CH, 3)
    raw["b1c2"] = _make_conv_raw(ks[2], STEM_CH, STEM_CH, 3)
    b2c1 = _make_conv_raw(ks[3], STEM_CH, FEAT_CH, 3)
    raw["b2c2"] = _make_conv_raw(ks[4], FEAT_CH, FEAT_CH, 3)
    b2ds = _make_conv_raw(ks[5], STEM_CH, FEAT_CH, 1)
    raw["b2merged"] = _merge_stride2_main_and_shortcut(b2c1, b2ds, STEM_CH)
    # ASPP decode head
    raw["aspp_pool"] = _make_conv_raw(ks[6], FEAT_CH, ASPP_CH, 1)
    aspp0 = _make_conv_raw(ks[7], FEAT_CH, ASPP_CH, 1)           # dilation 1 -> 1x1
    aspp1 = _make_conv_raw(ks[8], FEAT_CH, ASPP_CH, 3)           # dilation 2
    aspp01 = _merge_1x1_into_3x3(aspp0, aspp1, FEAT_CH)
    aspp2 = _make_conv_raw(ks[9], FEAT_CH, ASPP_CH, 3)           # dilation 3
    raw["aspp_fused"] = _blockdiag_merge(aspp01, aspp2)          # all branches, one matmul
    raw["bottleneck"] = _make_conv_raw(ks[10], ASPP_CH * (len(DILATIONS) + 1), ASPP_CH, 3)
    cls_raw = _make_cls_raw(ks[11], ASPP_CH, NUM_CLASSES)

    params = {name: _finalize_conv(p) for name, p in raw.items()}
    params["cls"] = _finalize_cls(cls_raw, params["bottleneck"]["w"].shape[1])
    return params


# ================= forward (eval / inference path) ============================
def deeplabv3_forward(x_nchw, params, align_corners=ALIGN_CORNERS):
    # TODO(synk): training branch of the PyTorch module (returns (dh_out, ah_out)
    # with the FCN auxiliary head) is not implemented — eval path only.
    # TODO(synk): at this toy size the whole forward (<1 MiB live activations)
    # could be fused into ONE pallas_call with VMEM-resident activations and
    # in-kernel patch extraction; kept as separate fused stages for clarity.
    x = jnp.transpose(x_nchw, (0, 2, 3, 1)).astype(jnp.float32)   # NCHW -> NHWC
    Hin, Win = x_nchw.shape[2], x_nchw.shape[3]

    # ---- backbone (eval BN folded; residual add + ReLU fused into epilogues) --
    x = conv_bn_act(x, params["stem"], padding=1)
    y = conv_bn_act(x, params["b1c1"], padding=1)
    x = conv_bn_act(y, params["b1c2"], padding=1, relu=True, residual=x)
    ysc = conv_bn_act(x, params["b2merged"], stride=2, padding=1)  # [main|shortcut]
    y, sc = ysc[..., :FEAT_CH], ysc[..., FEAT_CH:2 * FEAT_CH]
    feat = conv_bn_act(y, params["b2c2"], padding=1, relu=True, residual=sc)

    # ---- ASPP decode head ----
    N, Hf, Wf, _ = feat.shape
    pooled = jnp.mean(feat.astype(jnp.float32), axis=(1, 2), keepdims=True)
    img = conv_bn_act(pooled, params["aspp_pool"])                 # (N,1,1,ASPP_CH)
    img = jnp.broadcast_to(img, (N, Hf, Wf, ASPP_CH))              # up of 1x1 == broadcast
    # all three conv branches (1x1, dil-2 3x3, dil-3 3x3) from ONE matmul
    pd2, _ = _im2col(feat, 3, 1, DILATIONS[1], DILATIONS[1])
    pd3, _ = _im2col(feat, 3, 1, DILATIONS[2], DILATIONS[2])
    aspp_patch = jnp.concatenate([pd2, pd3], axis=1)
    pa = params["aspp_fused"]
    Ma = N * Hf * Wf
    a012 = pallas_matmul_bn_act(aspp_patch, pa["w"], pa["scale"], pa["bias"],
                                relu=True)[:Ma, :pa["cout"]]
    a012 = a012.reshape(N, Hf, Wf, pa["cout"])                     # [aspp0|aspp1|aspp2]
    cat = jnp.concatenate([img, a012], axis=-1)                    # [img, a0, a1, a2]

    # ---- bottleneck + cls_seg + sigmoid + bilinear resize: ONE kernel ----
    bpatch, _ = _im2col(cat, 3, 1, 1, 1)                           # (N*Hf*Wf, 9*64)
    return fused_bottleneck_cls_resize(bpatch, params, N, Hf, Wf,
                                       Hin, Win, align_corners)


# ================= main =======================================================
if __name__ == "__main__":
    key = jax.random.PRNGKey(0)
    kx, kp = jax.random.split(key)
    x = jax.random.normal(kx, (2, IN_CH, 16, 16), jnp.float32)     # NCHW input
    params = build_params(kp)

    fwd = jax.jit(lambda inp: deeplabv3_forward(inp, params))
    out = fwd(x)
    out = jax.block_until_ready(out)

    assert out.shape == (2, NUM_CLASSES, 16, 16), out.shape
    assert bool(jnp.all(jnp.isfinite(out)))
    assert bool(jnp.all((out >= 0.0) & (out <= 1.0)))              # sigmoid outputs
    print("KERNEL_OK")
</pallas_src>

<mosaic_0001>
module attributes {stable_mosaic.version = 11 : i64} {
  func.func @_matmul_bn_act_kernel(%arg0: i32, %arg1: i32, %arg2: memref<256x128xbf16, #tpu.memory_space<vmem>>, %arg3: memref<128x128xbf16, #tpu.memory_space<vmem>>, %arg4: memref<1x128xf32, #tpu.memory_space<vmem>>, %arg5: memref<1x128xf32, #tpu.memory_space<vmem>>, %arg6: memref<256x128xbf16, #tpu.memory_space<vmem>>) attributes {dimension_semantics = [#tpu.dimension_semantics<parallel>, #tpu.dimension_semantics<parallel>], iteration_bounds = array<i64: 2, 1>, scalar_prefetch = 0 : i64, scratch_operands = 0 : i64, tpu.core_type = #tpu.core_type<tc>, window_params = [{transform_indices = @transform_0, window_bounds = array<i64: 256, 128>}, {transform_indices = @transform_1, window_bounds = array<i64: 128, 128>}, {transform_indices = @transform_2, window_bounds = array<i64: 1, 128>}, {transform_indices = @transform_3, window_bounds = array<i64: 1, 128>}, {transform_indices = @transform_4, window_bounds = array<i64: 256, 128>}]} {
    %c0 = arith.constant 0 : index
    %c0_0 = arith.constant 0 : index
    %0 = vector.load %arg2[%c0, %c0_0] : memref<256x128xbf16, #tpu.memory_space<vmem>>, vector<256x128xbf16>
    %c0_1 = arith.constant 0 : index
    %c0_2 = arith.constant 0 : index
    %1 = vector.load %arg3[%c0_1, %c0_2] : memref<128x128xbf16, #tpu.memory_space<vmem>>, vector<128x128xbf16>
    %cst = arith.constant dense<0.000000e+00> : vector<256x128xf32>
    %2 = tpu.matmul %0, %1, %cst {dimension_numbers = #tpu.dot_dimension_numbers<[1], [0], [0], [1], [0, 0, 1, 1], [], []>} : vector<256x128xbf16>, vector<128x128xbf16>, vector<256x128xf32> -> vector<256x128xf32>
    %c0_3 = arith.constant 0 : index
    %c0_4 = arith.constant 0 : index
    %3 = vector.load %arg4[%c0_3, %c0_4] : memref<1x128xf32, #tpu.memory_space<vmem>>, vector<1x128xf32>
    %4 = vector.broadcast %3 : vector<1x128xf32> to vector<256x128xf32>
    %5 = arith.mulf %2, %4 : vector<256x128xf32>
    %c0_5 = arith.constant 0 : index
    %c0_6 = arith.constant 0 : index
    %6 = vector.load %arg5[%c0_5, %c0_6] : memref<1x128xf32, #tpu.memory_space<vmem>>, vector<1x128xf32>
    %7 = vector.broadcast %6 : vector<1x128xf32> to vector<256x128xf32>
    %8 = arith.addf %5, %7 : vector<256x128xf32>
    %cst_7 = arith.constant 0.000000e+00 : f32
    %9 = vector.broadcast %cst_7 : f32 to vector<256x128xf32>
    %10 = arith.maximumf %8, %9 : vector<256x128xf32>
    %11 = arith.truncf %10 : vector<256x128xf32> to vector<256x128xbf16>
    %c0_8 = arith.constant 0 : index
    %c0_9 = arith.constant 0 : index
    %12 = vector.load %arg6[%c0_8, %c0_9] : memref<256x128xbf16, #tpu.memory_space<vmem>>, vector<256x128xbf16>
    tpu.vector_store %arg6[%c0_8, %c0_9], %11 {strides = array<i32>} : memref<256x128xbf16, #tpu.memory_space<vmem>>, vector<256x128xbf16>,
    return
  }
  func.func @transform_0(%arg0: i32, %arg1: i32) -> (i32, i32) {
    %c0_i32 = arith.constant 0 : i32
    %c0_i32_0 = arith.constant 0 : i32
    return %arg0, %c0_i32 : i32, i32
  }
  func.func @transform_1(%arg0: i32, %arg1: i32) -> (i32, i32) {
    %c0_i32 = arith.constant 0 : i32
    %c0_i32_0 = arith.constant 0 : i32
    return %c0_i32, %arg1 : i32, i32
  }
  func.func @transform_2(%arg0: i32, %arg1: i32) -> (i32, i32) {
    %c0_i32 = arith.constant 0 : i32
    %c0_i32_0 = arith.constant 0 : i32
    return %c0_i32, %arg1 : i32, i32
  }
  func.func @transform_3(%arg0: i32, %arg1: i32) -> (i32, i32) {
    %c0_i32 = arith.constant 0 : i32
    %c0_i32_0 = arith.constant 0 : i32
    return %c0_i32, %arg1 : i32, i32
  }
  func.func @transform_4(%arg0: i32, %arg1: i32) -> (i32, i32) {
    %c0_i32 = arith.constant 0 : i32
    return %arg0, %arg1 : i32, i32
  }
}

module attributes {stable_mosaic.version = 11 : i64} {
  func.func @_matmul_bn_act_kernel(%arg0: i32, %arg1: i32, %arg2: memref<256x256xbf16, #tpu.memory_space<vmem>>, %arg3: memref<256x128xbf16, #tpu.memory_space<vmem>>, %arg4: memref<1x128xf32, #tpu.memory_space<vmem>>, %arg5: memref<1x128xf32, #tpu.memory_space<vmem>>, %arg6: memref<256x128xbf16, #tpu.memory_space<vmem>>) attributes {dimension_semantics = [#tpu.dimension_semantics<parallel>, #tpu.dimension_semantics<parallel>], iteration_bounds = array<i64: 2, 1>, scalar_prefetch = 0 : i64, scratch_operands = 0 : i64, tpu.core_type = #tpu.core_type<tc>, window_params = [{transform_indices = @transform_0, window_bounds = array<i64: 256, 256>}, {transform_indices = @transform_1, window_bounds = array<i64: 256, 128>}, {transform_indices = @transform_2, window_bounds = array<i64: 1, 128>}, {transform_indices = @transform_3, window_bounds = array<i64: 1, 128>}, {transform_indices = @transform_4, window_bounds = array<i64: 256, 128>}]} {
    %c0 = arith.constant 0 : index
    %c0_0 = arith.constant 0 : index
    %0 = vector.load %arg2[%c0, %c0_0] : memref<256x256xbf16, #tpu.memory_space<vmem>>, vector<256x256xbf16>
    %c0_1 = arith.constant 0 : index
    %c0_2 = arith.constant 0 : index
    %1 = vector.load %arg3[%c0_1, %c0_2] : memref<256x128xbf16, #tpu.memory_space<vmem>>, vector<256x128xbf16>
    %cst = arith.constant dense<0.000000e+00> : vector<256x128xf32>
    %2 = tpu.matmul %0, %1, %cst {dimension_numbers = #tpu.dot_dimension_numbers<[1], [0], [0], [1], [0, 0, 1, 1], [], []>} : vector<256x256xbf16>, vector<256x128xbf16>, vector<256x128xf32> -> vector<256x128xf32>
    %c0_3 = arith.constant 0 : index
    %c0_4 = arith.constant 0 : index
    %3 = vector.load %arg4[%c0_3, %c0_4] : memref<1x128xf32, #tpu.memory_space<vmem>>, vector<1x128xf32>
    %4 = vector.broadcast %3 : vector<1x128xf32> to vector<256x128xf32>
    %5 = arith.mulf %2, %4 : vector<256x128xf32>
    %c0_5 = arith.constant 0 : index
    %c0_6 = arith.constant 0 : index
    %6 = vector.load %arg5[%c0_5, %c0_6] : memref<1x128xf32, #tpu.memory_space<vmem>>, vector<1x128xf32>
    %7 = vector.broadcast %6 : vector<1x128xf32> to vector<256x128xf32>
    %8 = arith.addf %5, %7 : vector<256x128xf32>
    %cst_7 = arith.constant 0.000000e+00 : f32
    %9 = vector.broadcast %cst_7 : f32 to vector<256x128xf32>
    %10 = arith.maximumf %8, %9 : vector<256x128xf32>
    %11 = arith.truncf %10 : vector<256x128xf32> to vector<256x128xbf16>
    %c0_8 = arith.constant 0 : index
    %c0_9 = arith.constant 0 : index
    %12 = vector.load %arg6[%c0_8, %c0_9] : memref<256x128xbf16, #tpu.memory_space<vmem>>, vector<256x128xbf16>
    tpu.vector_store %arg6[%c0_8, %c0_9], %11 {strides = array<i32>} : memref<256x128xbf16, #tpu.memory_space<vmem>>, vector<256x128xbf16>,
    return
  }
  func.func @transform_0(%arg0: i32, %arg1: i32) -> (i32, i32) {
    %c0_i32 = arith.constant 0 : i32
    %c0_i32_0 = arith.constant 0 : i32
    return %arg0, %c0_i32 : i32, i32
  }
  func.func @transform_1(%arg0: i32, %arg1: i32) -> (i32, i32) {
    %c0_i32 = arith.constant 0 : i32
    %c0_i32_0 = arith.constant 0 : i32
    return %c0_i32, %arg1 : i32, i32
  }
  func.func @transform_2(%arg0: i32, %arg1: i32) -> (i32, i32) {
    %c0_i32 = arith.constant 0 : i32
    %c0_i32_0 = arith.constant 0 : i32
    return %c0_i32, %arg1 : i32, i32
  }
  func.func @transform_3(%arg0: i32, %arg1: i32) -> (i32, i32) {
    %c0_i32 = arith.constant 0 : i32
    %c0_i32_0 = arith.constant 0 : i32
    return %c0_i32, %arg1 : i32, i32
  }
  func.func @transform_4(%arg0: i32, %arg1: i32) -> (i32, i32) {
    %c0_i32 = arith.constant 0 : i32
    return %arg0, %arg1 : i32, i32
  }
}

module attributes {stable_mosaic.version = 11 : i64} {
  func.func @_matmul_bn_act_kernel(%arg0: i32, %arg1: i32, %arg2: memref<256x256xbf16, #tpu.memory_space<vmem>>, %arg3: memref<256x128xbf16, #tpu.memory_space<vmem>>, %arg4: memref<1x128xf32, #tpu.memory_space<vmem>>, %arg5: memref<1x128xf32, #tpu.memory_space<vmem>>, %arg6: memref<256x128xbf16, #tpu.memory_space<vmem>>, %arg7: memref<256x128xbf16, #tpu.memory_space<vmem>>) attributes {dimension_semantics = [#tpu.dimension_semantics<parallel>, #tpu.dimension_semantics<parallel>], iteration_bounds = array<i64: 2, 1>, scalar_prefetch = 0 : i64, scratch_operands = 0 : i64, tpu.core_type = #tpu.core_type<tc>, window_params = [{transform_indices = @transform_0, window_bounds = array<i64: 256, 256>}, {transform_indices = @transform_1, window_bounds = array<i64: 256, 128>}, {transform_indices = @transform_2, window_bounds = array<i64: 1, 128>}, {transform_indices = @transform_3, window_bounds = array<i64: 1, 128>}, {transform_indices = @transform_4, window_bounds = array<i64: 256, 128>}, {transform_indices = @transform_5, window_bounds = array<i64: 256, 128>}]} {
    %c0 = arith.constant 0 : index
    %c0_0 = arith.constant 0 : index
    %0 = vector.load %arg2[%c0, %c0_0] : memref<256x256xbf16, #tpu.memory_space<vmem>>, vector<256x256xbf16>
    %c0_1 = arith.constant 0 : index
    %c0_2 = arith.constant 0 : index
    %1 = vector.load %arg3[%c0_1, %c0_2] : memref<256x128xbf16, #tpu.memory_space<vmem>>, vector<256x128xbf16>
    %cst = arith.constant dense<0.000000e+00> : vector<256x128xf32>
    %2 = tpu.matmul %0, %1, %cst {dimension_numbers = #tpu.dot_dimension_numbers<[1], [0], [0], [1], [0, 0, 1, 1], [], []>} : vector<256x256xbf16>, vector<256x128xbf16>, vector<256x128xf32> -> vector<256x128xf32>
    %c0_3 = arith.constant 0 : index
    %c0_4 = arith.constant 0 : index
    %3 = vector.load %arg4[%c0_3, %c0_4] : memref<1x128xf32, #tpu.memory_space<vmem>>, vector<1x128xf32>
    %4 = vector.broadcast %3 : vector<1x128xf32> to vector<256x128xf32>
    %5 = arith.mulf %2, %4 : vector<256x128xf32>
    %c0_5 = arith.constant 0 : index
    %c0_6 = arith.constant 0 : index
    %6 = vector.load %arg5[%c0_5, %c0_6] : memref<1x128xf32, #tpu.memory_space<vmem>>, vector<1x128xf32>
    %7 = vector.broadcast %6 : vector<1x128xf32> to vector<256x128xf32>
    %8 = arith.addf %5, %7 : vector<256x128xf32>
    %c0_7 = arith.constant 0 : index
    %c0_8 = arith.constant 0 : index
    %9 = vector.load %arg6[%c0_7, %c0_8] : memref<256x128xbf16, #tpu.memory_space<vmem>>, vector<256x128xbf16>
    %10 = arith.extf %9 : vector<256x128xbf16> to vector<256x128xf32>
    %11 = arith.addf %8, %10 : vector<256x128xf32>
    %cst_9 = arith.constant 0.000000e+00 : f32
    %12 = vector.broadcast %cst_9 : f32 to vector<256x128xf32>
    %13 = arith.maximumf %11, %12 : vector<256x128xf32>
    %14 = arith.truncf %13 : vector<256x128xf32> to vector<256x128xbf16>
    %c0_10 = arith.constant 0 : index
    %c0_11 = arith.constant 0 : index
    %15 = vector.load %arg7[%c0_10, %c0_11] : memref<256x128xbf16, #tpu.memory_space<vmem>>, vector<256x128xbf16>
    tpu.vector_store %arg7[%c0_10, %c0_11], %14 {strides = array<i32>} : memref<256x128xbf16, #tpu.memory_space<vmem>>, vector<256x128xbf16>,
    return
  }
  func.func @transform_0(%arg0: i32, %arg1: i32) -> (i32, i32) {
    %c0_i32 = arith.constant 0 : i32
    %c0_i32_0 = arith.constant 0 : i32
    return %arg0, %c0_i32 : i32, i32
  }
  func.func @transform_1(%arg0: i32, %arg1: i32) -> (i32, i32) {
    %c0_i32 = arith.constant 0 : i32
    %c0_i32_0 = arith.constant 0 : i32
    return %c0_i32, %arg1 : i32, i32
  }
  func.func @transform_2(%arg0: i32, %arg1: i32) -> (i32, i32) {
    %c0_i32 = arith.constant 0 : i32
    %c0_i32_0 = arith.constant 0 : i32
    return %c0_i32, %arg1 : i32, i32
  }
  func.func @transform_3(%arg0: i32, %arg1: i32) -> (i32, i32) {
    %c0_i32 = arith.constant 0 : i32
    %c0_i32_0 = arith.constant 0 : i32
    return %c0_i32, %arg1 : i32, i32
  }
  func.func @transform_4(%arg0: i32, %arg1: i32) -> (i32, i32) {
    %c0_i32 = arith.constant 0 : i32
    return %arg0, %arg1 : i32, i32
  }
  func.func @transform_5(%arg0: i32, %arg1: i32) -> (i32, i32) {
    %c0_i32 = arith.constant 0 : i32
    return %arg0, %arg1 : i32, i32
  }
}

module attributes {stable_mosaic.version = 11 : i64} {
  func.func @_matmul_bn_act_kernel(%arg0: i32, %arg1: i32, %arg2: memref<128x256xbf16, #tpu.memory_space<vmem>>, %arg3: memref<256x128xbf16, #tpu.memory_space<vmem>>, %arg4: memref<1x128xf32, #tpu.memory_space<vmem>>, %arg5: memref<1x128xf32, #tpu.memory_space<vmem>>, %arg6: memref<1x128xf32, #tpu.memory_space<vmem>>, %arg7: memref<128x128xbf16, #tpu.memory_space<vmem>>) attributes {dimension_semantics = [#tpu.dimension_semantics<parallel>, #tpu.dimension_semantics<parallel>], iteration_bounds = array<i64: 1, 1>, scalar_prefetch = 0 : i64, scratch_operands = 0 : i64, tpu.core_type = #tpu.core_type<tc>, window_params = [{transform_indices = @transform_0, window_bounds = array<i64: 128, 256>}, {transform_indices = @transform_1, window_bounds = array<i64: 256, 128>}, {transform_indices = @transform_2, window_bounds = array<i64: 1, 128>}, {transform_indices = @transform_3, window_bounds = array<i64: 1, 128>}, {transform_indices = @transform_4, window_bounds = array<i64: 1, 128>}, {transform_indices = @transform_5, window_bounds = array<i64: 128, 128>}]} {
    %c0 = arith.constant 0 : index
    %c0_0 = arith.constant 0 : index
    %0 = vector.load %arg2[%c0, %c0_0] : memref<128x256xbf16, #tpu.memory_space<vmem>>, vector<128x256xbf16>
    %c0_1 = arith.constant 0 : index
    %c0_2 = arith.constant 0 : index
    %1 = vector.load %arg3[%c0_1, %c0_2] : memref<256x128xbf16, #tpu.memory_space<vmem>>, vector<256x128xbf16>
    %cst = arith.constant dense<0.000000e+00> : vector<128x128xf32>
    %2 = tpu.matmul %0, %1, %cst {dimension_numbers = #tpu.dot_dimension_numbers<[1], [0], [0], [1], [0, 0, 1, 1], [], []>} : vector<128x256xbf16>, vector<256x128xbf16>, vector<128x128xf32> -> vector<128x128xf32>
    %c0_3 = arith.constant 0 : index
    %c0_4 = arith.constant 0 : index
    %3 = vector.load %arg4[%c0_3, %c0_4] : memref<1x128xf32, #tpu.memory_space<vmem>>, vector<1x128xf32>
    %4 = vector.broadcast %3 : vector<1x128xf32> to vector<128x128xf32>
    %5 = arith.mulf %2, %4 : vector<128x128xf32>
    %c0_5 = arith.constant 0 : index
    %c0_6 = arith.constant 0 : index
    %6 = vector.load %arg5[%c0_5, %c0_6] : memref<1x128xf32, #tpu.memory_space<vmem>>, vector<1x128xf32>
    %7 = vector.broadcast %6 : vector<1x128xf32> to vector<128x128xf32>
    %8 = arith.addf %5, %7 : vector<128x128xf32>
    %c0_7 = arith.constant 0 : index
    %c0_8 = arith.constant 0 : index
    %9 = vector.load %arg6[%c0_7, %c0_8] : memref<1x128xf32, #tpu.memory_space<vmem>>, vector<1x128xf32>
    %cst_9 = arith.constant 0.000000e+00 : f32
    %10 = vector.broadcast %cst_9 : f32 to vector<128x128xf32>
    %11 = arith.maximumf %8, %10 : vector<128x128xf32>
    %12 = vector.broadcast %9 : vector<1x128xf32> to vector<128x128xf32>
    %13 = arith.mulf %11, %12 : vector<128x128xf32>
    %cst_10 = arith.constant 1.000000e+00 : f32
    %14 = vector.broadcast %cst_10 : f32 to vector<1x128xf32>
    %15 = arith.subf %14, %9 : vector<1x128xf32>
    %16 = vector.broadcast %15 : vector<1x128xf32> to vector<128x128xf32>
    %17 = arith.mulf %8, %16 : vector<128x128xf32>
    %18 = arith.addf %13, %17 : vector<128x128xf32>
    %19 = arith.truncf %18 : vector<128x128xf32> to vector<128x128xbf16>
    %c0_11 = arith.constant 0 : index
    %c0_12 = arith.constant 0 : index
    %20 = vector.load %arg7[%c0_11, %c0_12] : memref<128x128xbf16, #tpu.memory_space<vmem>>, vector<128x128xbf16>
    tpu.vector_store %arg7[%c0_11, %c0_12], %19 {strides = array<i32>} : memref<128x128xbf16, #tpu.memory_space<vmem>>, vector<128x128xbf16>,
    return
  }
  func.func @transform_0(%arg0: i32, %arg1: i32) -> (i32, i32) {
    %c0_i32 = arith.constant 0 : i32
    %c0_i32_0 = arith.constant 0 : i32
    return %arg0, %c0_i32 : i32, i32
  }
  func.func @transform_1(%arg0: i32, %arg1: i32) -> (i32, i32) {
    %c0_i32 = arith.constant 0 : i32
    %c0_i32_0 = arith.constant 0 : i32
    return %c0_i32, %arg1 : i32, i32
  }
  func.func @transform_2(%arg0: i32, %arg1: i32) -> (i32, i32) {
    %c0_i32 = arith.constant 0 : i32
    %c0_i32_0 = arith.constant 0 : i32
    return %c0_i32, %arg1 : i32, i32
  }
  func.func @transform_3(%arg0: i32, %arg1: i32) -> (i32, i32) {
    %c0_i32 = arith.constant 0 : i32
    %c0_i32_0 = arith.constant 0 : i32
    return %c0_i32, %arg1 : i32, i32
  }
  func.func @transform_4(%arg0: i32, %arg1: i32) -> (i32, i32) {
    %c0_i32 = arith.constant 0 : i32
    %c0_i32_0 = arith.constant 0 : i32
    return %c0_i32, %arg1 : i32, i32
  }
  func.func @transform_5(%arg0: i32, %arg1: i32) -> (i32, i32) {
    %c0_i32 = arith.constant 0 : i32
    return %arg0, %arg1 : i32, i32
  }
}

module attributes {stable_mosaic.version = 11 : i64} {
  func.func @_matmul_bn_act_kernel(%arg0: i32, %arg1: i32, %arg2: memref<128x384xbf16, #tpu.memory_space<vmem>>, %arg3: memref<384x128xbf16, #tpu.memory_space<vmem>>, %arg4: memref<1x128xf32, #tpu.memory_space<vmem>>, %arg5: memref<1x128xf32, #tpu.memory_space<vmem>>, %arg6: memref<128x128xbf16, #tpu.memory_space<vmem>>, %arg7: memref<128x128xbf16, #tpu.memory_space<vmem>>) attributes {dimension_semantics = [#tpu.dimension_semantics<parallel>, #tpu.dimension_semantics<parallel>], iteration_bounds = array<i64: 1, 1>, scalar_prefetch = 0 : i64, scratch_operands = 0 : i64, tpu.core_type = #tpu.core_type<tc>, window_params = [{transform_indices = @transform_0, window_bounds = array<i64: 128, 384>}, {transform_indices = @transform_1, window_bounds = array<i64: 384, 128>}, {transform_indices = @transform_2, window_bounds = array<i64: 1, 128>}, {transform_indices = @transform_3, window_bounds = array<i64: 1, 128>}, {transform_indices = @transform_4, window_bounds = array<i64: 128, 128>}, {transform_indices = @transform_5, window_bounds = array<i64: 128, 128>}]} {
    %c0 = arith.constant 0 : index
    %c0_0 = arith.constant 0 : index
    %0 = vector.load %arg2[%c0, %c0_0] : memref<128x384xbf16, #tpu.memory_space<vmem>>, vector<128x384xbf16>
    %c0_1 = arith.constant 0 : index
    %c0_2 = arith.constant 0 : index
    %1 = vector.load %arg3[%c0_1, %c0_2] : memref<384x128xbf16, #tpu.memory_space<vmem>>, vector<384x128xbf16>
    %cst = arith.constant dense<0.000000e+00> : vector<128x128xf32>
    %2 = tpu.matmul %0, %1, %cst {dimension_numbers = #tpu.dot_dimension_numbers<[1], [0], [0], [1], [0, 0, 1, 1], [], []>} : vector<128x384xbf16>, vector<384x128xbf16>, vector<128x128xf32> -> vector<128x128xf32>
    %c0_3 = arith.constant 0 : index
    %c0_4 = arith.constant 0 : index
    %3 = vector.load %arg4[%c0_3, %c0_4] : memref<1x128xf32, #tpu.memory_space<vmem>>, vector<1x128xf32>
    %4 = vector.broadcast %3 : vector<1x128xf32> to vector<128x128xf32>
    %5 = arith.mulf %2, %4 : vector<128x128xf32>
    %c0_5 = arith.constant 0 : index
    %c0_6 = arith.constant 0 : index
    %6 = vector.load %arg5[%c0_5, %c0_6] : memref<1x128xf32, #tpu.memory_space<vmem>>, vector<1x128xf32>
    %7 = vector.broadcast %6 : vector<1x128xf32> to vector<128x128xf32>
    %8 = arith.addf %5, %7 : vector<128x128xf32>
    %c0_7 = arith.constant 0 : index
    %c0_8 = arith.constant 0 : index
    %9 = vector.load %arg6[%c0_7, %c0_8] : memref<128x128xbf16, #tpu.memory_space<vmem>>, vector<128x128xbf16>
    %10 = arith.extf %9 : vector<128x128xbf16> to vector<128x128xf32>
    %11 = arith.addf %8, %10 : vector<128x128xf32>
    %cst_9 = arith.constant 0.000000e+00 : f32
    %12 = vector.broadcast %cst_9 : f32 to vector<128x128xf32>
    %13 = arith.maximumf %11, %12 : vector<128x128xf32>
    %14 = arith.truncf %13 : vector<128x128xf32> to vector<128x128xbf16>
    %c0_10 = arith.constant 0 : index
    %c0_11 = arith.constant 0 : index
    %15 = vector.load %arg7[%c0_10, %c0_11] : memref<128x128xbf16, #tpu.memory_space<vmem>>, vector<128x128xbf16>
    tpu.vector_store %arg7[%c0_10, %c0_11], %14 {strides = array<i32>} : memref<128x128xbf16, #tpu.memory_space<vmem>>, vector<128x128xbf16>,
    return
  }
  func.func @transform_0(%arg0: i32, %arg1: i32) -> (i32, i32) {
    %c0_i32 = arith.constant 0 : i32
    %c0_i32_0 = arith.constant 0 : i32
    return %arg0, %c0_i32 : i32, i32
  }
  func.func @transform_1(%arg0: i32, %arg1: i32) -> (i32, i32) {
    %c0_i32 = arith.constant 0 : i32
    %c0_i32_0 = arith.constant 0 : i32
    return %c0_i32, %arg1 : i32, i32
  }
  func.func @transform_2(%arg0: i32, %arg1: i32) -> (i32, i32) {
    %c0_i32 = arith.constant 0 : i32
    %c0_i32_0 = arith.constant 0 : i32
    return %c0_i32, %arg1 : i32, i32
  }
  func.func @transform_3(%arg0: i32, %arg1: i32) -> (i32, i32) {
    %c0_i32 = arith.constant 0 : i32
    %c0_i32_0 = arith.constant 0 : i32
    return %c0_i32, %arg1 : i32, i32
  }
  func.func @transform_4(%arg0: i32, %arg1: i32) -> (i32, i32) {
    %c0_i32 = arith.constant 0 : i32
    return %arg0, %arg1 : i32, i32
  }
  func.func @transform_5(%arg0: i32, %arg1: i32) -> (i32, i32) {
    %c0_i32 = arith.constant 0 : i32
    return %arg0, %arg1 : i32, i32
  }
}

module attributes {stable_mosaic.version = 11 : i64} {
  func.func @_matmul_bn_act_kernel(%arg0: i32, %arg1: i32, %arg2: memref<16x128xbf16, #tpu.memory_space<vmem>>, %arg3: memref<128x128xbf16, #tpu.memory_space<vmem>>, %arg4: memref<1x128xf32, #tpu.memory_space<vmem>>, %arg5: memref<1x128xf32, #tpu.memory_space<vmem>>, %arg6: memref<16x128xbf16, #tpu.memory_space<vmem>>) attributes {dimension_semantics = [#tpu.dimension_semantics<parallel>, #tpu.dimension_semantics<parallel>], iteration_bounds = array<i64: 1, 1>, scalar_prefetch = 0 : i64, scratch_operands = 0 : i64, tpu.core_type = #tpu.core_type<tc>, window_params = [{transform_indices = @transform_0, window_bounds = array<i64: 16, 128>}, {transform_indices = @transform_1, window_bounds = array<i64: 128, 128>}, {transform_indices = @transform_2, window_bounds = array<i64: 1, 128>}, {transform_indices = @transform_3, window_bounds = array<i64: 1, 128>}, {transform_indices = @transform_4, window_bounds = array<i64: 16, 128>}]} {
    %c0 = arith.constant 0 : index
    %c0_0 = arith.constant 0 : index
    %0 = vector.load %arg2[%c0, %c0_0] : memref<16x128xbf16, #tpu.memory_space<vmem>>, vector<16x128xbf16>
    %c0_1 = arith.constant 0 : index
    %c0_2 = arith.constant 0 : index
    %1 = vector.load %arg3[%c0_1, %c0_2] : memref<128x128xbf16, #tpu.memory_space<vmem>>, vector<128x128xbf16>
    %cst = arith.constant dense<0.000000e+00> : vector<16x128xf32>
    %2 = tpu.matmul %0, %1, %cst {dimension_numbers = #tpu.dot_dimension_numbers<[1], [0], [0], [1], [0, 0, 1, 1], [], []>} : vector<16x128xbf16>, vector<128x128xbf16>, vector<16x128xf32> -> vector<16x128xf32>
    %c0_3 = arith.constant 0 : index
    %c0_4 = arith.constant 0 : index
    %3 = vector.load %arg4[%c0_3, %c0_4] : memref<1x128xf32, #tpu.memory_space<vmem>>, vector<1x128xf32>
    %4 = vector.broadcast %3 : vector<1x128xf32> to vector<16x128xf32>
    %5 = arith.mulf %2, %4 : vector<16x128xf32>
    %c0_5 = arith.constant 0 : index
    %c0_6 = arith.constant 0 : index
    %6 = vector.load %arg5[%c0_5, %c0_6] : memref<1x128xf32, #tpu.memory_space<vmem>>, vector<1x128xf32>
    %7 = vector.broadcast %6 : vector<1x128xf32> to vector<16x128xf32>
    %8 = arith.addf %5, %7 : vector<16x128xf32>
    %cst_7 = arith.constant 0.000000e+00 : f32
    %9 = vector.broadcast %cst_7 : f32 to vector<16x128xf32>
    %10 = arith.maximumf %8, %9 : vector<16x128xf32>
    %11 = arith.truncf %10 : vector<16x128xf32> to vector<16x128xbf16>
    %c0_8 = arith.constant 0 : index
    %c0_9 = arith.constant 0 : index
    %12 = vector.load %arg6[%c0_8, %c0_9] : memref<16x128xbf16, #tpu.memory_space<vmem>>, vector<16x128xbf16>
    tpu.vector_store %arg6[%c0_8, %c0_9], %11 {strides = array<i32>} : memref<16x128xbf16, #tpu.memory_space<vmem>>, vector<16x128xbf16>,
    return
  }
  func.func @transform_0(%arg0: i32, %arg1: i32) -> (i32, i32) {
    %c0_i32 = arith.constant 0 : i32
    %c0_i32_0 = arith.constant 0 : i32
    return %arg0, %c0_i32 : i32, i32
  }
  func.func @transform_1(%arg0: i32, %arg1: i32) -> (i32, i32) {
    %c0_i32 = arith.constant 0 : i32
    %c0_i32_0 = arith.constant 0 : i32
    return %c0_i32, %arg1 : i32, i32
  }
  func.func @transform_2(%arg0: i32, %arg1: i32) -> (i32, i32) {
    %c0_i32 = arith.constant 0 : i32
    %c0_i32_0 = arith.constant 0 : i32
    return %c0_i32, %arg1 : i32, i32
  }
  func.func @transform_3(%arg0: i32, %arg1: i32) -> (i32, i32) {
    %c0_i32 = arith.constant 0 : i32
    %c0_i32_0 = arith.constant 0 : i32
    return %c0_i32, %arg1 : i32, i32
  }
  func.func @transform_4(%arg0: i32, %arg1: i32) -> (i32, i32) {
    %c0_i32 = arith.constant 0 : i32
    return %arg0, %arg1 : i32, i32
  }
}

module attributes {stable_mosaic.version = 11 : i64} {
  func.func @_matmul_bn_act_kernel(%arg0: i32, %arg1: i32, %arg2: memref<128x640xbf16, #tpu.memory_space<vmem>>, %arg3: memref<640x128xbf16, #tpu.memory_space<vmem>>, %arg4: memref<1x128xf32, #tpu.memory_space<vmem>>, %arg5: memref<1x128xf32, #tpu.memory_space<vmem>>, %arg6: memref<128x128xbf16, #tpu.memory_space<vmem>>) attributes {dimension_semantics = [#tpu.dimension_semantics<parallel>, #tpu.dimension_semantics<parallel>], iteration_bounds = array<i64: 1, 1>, scalar_prefetch = 0 : i64, scratch_operands = 0 : i64, tpu.core_type = #tpu.core_type<tc>, window_params = [{transform_indices = @transform_0, window_bounds = array<i64: 128, 640>}, {transform_indices = @transform_1, window_bounds = array<i64: 640, 128>}, {transform_indices = @transform_2, window_bounds = array<i64: 1, 128>}, {transform_indices = @transform_3, window_bounds = array<i64: 1, 128>}, {transform_indices = @transform_4, window_bounds = array<i64: 128, 128>}]} {
    %c0 = arith.constant 0 : index
    %c0_0 = arith.constant 0 : index
    %0 = vector.load %arg2[%c0, %c0_0] : memref<128x640xbf16, #tpu.memory_space<vmem>>, vector<128x640xbf16>
    %c0_1 = arith.constant 0 : index
    %c0_2 = arith.constant 0 : index
    %1 = vector.load %arg3[%c0_1, %c0_2] : memref<640x128xbf16, #tpu.memory_space<vmem>>, vector<640x128xbf16>
    %cst = arith.constant dense<0.000000e+00> : vector<128x128xf32>
    %2 = tpu.matmul %0, %1, %cst {dimension_numbers = #tpu.dot_dimension_numbers<[1], [0], [0], [1], [0, 0, 1, 1], [], []>} : vector<128x640xbf16>, vector<640x128xbf16>, vector<128x128xf32> -> vector<128x128xf32>
    %c0_3 = arith.constant 0 : index
    %c0_4 = arith.constant 0 : index
    %3 = vector.load %arg4[%c0_3, %c0_4] : memref<1x128xf32, #tpu.memory_space<vmem>>, vector<1x128xf32>
    %4 = vector.broadcast %3 : vector<1x128xf32> to vector<128x128xf32>
    %5 = arith.mulf %2, %4 : vector<128x128xf32>
    %c0_5 = arith.constant 0 : index
    %c0_6 = arith.constant 0 : index
    %6 = vector.load %arg5[%c0_5, %c0_6] : memref<1x128xf32, #tpu.memory_space<vmem>>, vector<1x128xf32>
    %7 = vector.broadcast %6 : vector<1x128xf32> to vector<128x128xf32>
    %8 = arith.addf %5, %7 : vector<128x128xf32>
    %cst_7 = arith.constant 0.000000e+00 : f32
    %9 = vector.broadcast %cst_7 : f32 to vector<128x128xf32>
    %10 = arith.maximumf %8, %9 : vector<128x128xf32>
    %11 = arith.truncf %10 : vector<128x128xf32> to vector<128x128xbf16>
    %c0_8 = arith.constant 0 : index
    %c0_9 = arith.constant 0 : index
    %12 = vector.load %arg6[%c0_8, %c0_9] : memref<128x128xbf16, #tpu.memory_space<vmem>>, vector<128x128xbf16>
    tpu.vector_store %arg6[%c0_8, %c0_9], %11 {strides = array<i32>} : memref<128x128xbf16, #tpu.memory_space<vmem>>, vector<128x128xbf16>,
    return
  }
  func.func @transform_0(%arg0: i32, %arg1: i32) -> (i32, i32) {
    %c0_i32 = arith.constant 0 : i32
    %c0_i32_0 = arith.constant 0 : i32
    return %arg0, %c0_i32 : i32, i32
  }
  func.func @transform_1(%arg0: i32, %arg1: i32) -> (i32, i32) {
    %c0_i32 = arith.constant 0 : i32
    %c0_i32_0 = arith.constant 0 : i32
    return %c0_i32, %arg1 : i32, i32
  }
  func.func @transform_2(%arg0: i32, %arg1: i32) -> (i32, i32) {
    %c0_i32 = arith.constant 0 : i32
    %c0_i32_0 = arith.constant 0 : i32
    return %c0_i32, %arg1 : i32, i32
  }
  func.func @transform_3(%arg0: i32, %arg1: i32) -> (i32, i32) {
    %c0_i32 = arith.constant 0 : i32
    %c0_i32_0 = arith.constant 0 : i32
    return %c0_i32, %arg1 : i32, i32
  }
  func.func @transform_4(%arg0: i32, %arg1: i32) -> (i32, i32) {
    %c0_i32 = arith.constant 0 : i32
    return %arg0, %arg1 : i32, i32
  }
}

module attributes {stable_mosaic.version = 11 : i64} {
  func.func @_bottleneck_cls_resize_kernel(%arg0: i32, %arg1: memref<128x640xbf16, #tpu.memory_space<vmem>>, %arg2: memref<640x128xbf16, #tpu.memory_space<vmem>>, %arg3: memref<1x128xf32, #tpu.memory_space<vmem>>, %arg4: memref<1x128xf32, #tpu.memory_space<vmem>>, %arg5: memref<128x128xbf16, #tpu.memory_space<vmem>>, %arg6: memref<1x128xf32, #tpu.memory_space<vmem>>, %arg7: memref<512x128xf32, #tpu.memory_space<vmem>>, %arg8: memref<512x128xf32, #tpu.memory_space<vmem>>) attributes {dimension_semantics = [#tpu.dimension_semantics<arbitrary>], iteration_bounds = array<i64: 1>, scalar_prefetch = 0 : i64, scratch_operands = 0 : i64, tpu.core_type = #tpu.core_type<tc>, window_params = [{pipeline_mode = #tpu.pipeline_mode<synchronous>, transform_indices = @transform_0, window_bounds = array<i64: 128, 640>}, {pipeline_mode = #tpu.pipeline_mode<synchronous>, transform_indices = @transform_1, window_bounds = array<i64: 640, 128>}, {pipeline_mode = #tpu.pipeline_mode<synchronous>, transform_indices = @transform_2, window_bounds = array<i64: 1, 128>}, {pipeline_mode = #tpu.pipeline_mode<synchronous>, transform_indices = @transform_3, window_bounds = array<i64: 1, 128>}, {pipeline_mode = #tpu.pipeline_mode<synchronous>, transform_indices = @transform_4, window_bounds = array<i64: 128, 128>}, {pipeline_mode = #tpu.pipeline_mode<synchronous>, transform_indices = @transform_5, window_bounds = array<i64: 1, 128>}, {pipeline_mode = #tpu.pipeline_mode<synchronous>, transform_indices = @transform_6, window_bounds = array<i64: 512, 128>}, {pipeline_mode = #tpu.pipeline_mode<synchronous>, transform_indices = @transform_7, window_bounds = array<i64: 512, 128>}]} {
    %c0 = arith.constant 0 : index
    %c0_0 = arith.constant 0 : index
    %0 = vector.load %arg1[%c0, %c0_0] : memref<128x640xbf16, #tpu.memory_space<vmem>>, vector<128x640xbf16>
    %c0_1 = arith.constant 0 : index
    %c0_2 = arith.constant 0 : index
    %1 = vector.load %arg2[%c0_1, %c0_2] : memref<640x128xbf16, #tpu.memory_space<vmem>>, vector<640x128xbf16>
    %cst = arith.constant dense<0.000000e+00> : vector<128x128xf32>
    %2 = tpu.matmul %0, %1, %cst {dimension_numbers = #tpu.dot_dimension_numbers<[1], [0], [0], [1], [0, 0, 1, 1], [], []>} : vector<128x640xbf16>, vector<640x128xbf16>, vector<128x128xf32> -> vector<128x128xf32>
    %c0_3 = arith.constant 0 : index
    %c0_4 = arith.constant 0 : index
    %3 = vector.load %arg3[%c0_3, %c0_4] : memref<1x128xf32, #tpu.memory_space<vmem>>, vector<1x128xf32>
    %4 = vector.broadcast %3 : vector<1x128xf32> to vector<128x128xf32>
    %5 = arith.mulf %2, %4 : vector<128x128xf32>
    %c0_5 = arith.constant 0 : index
    %c0_6 = arith.constant 0 : index
    %6 = vector.load %arg4[%c0_5, %c0_6] : memref<1x128xf32, #tpu.memory_space<vmem>>, vector<1x128xf32>
    %7 = vector.broadcast %6 : vector<1x128xf32> to vector<128x128xf32>
    %8 = arith.addf %5, %7 : vector<128x128xf32>
    %cst_7 = arith.constant 0.000000e+00 : f32
    %9 = vector.broadcast %cst_7 : f32 to vector<128x128xf32>
    %10 = arith.maximumf %8, %9 : vector<128x128xf32>
    %11 = arith.truncf %10 : vector<128x128xf32> to vector<128x128xbf16>
    %c0_8 = arith.constant 0 : index
    %c0_9 = arith.constant 0 : index
    %12 = vector.load %arg5[%c0_8, %c0_9] : memref<128x128xbf16, #tpu.memory_space<vmem>>, vector<128x128xbf16>
    %cst_10 = arith.constant dense<0.000000e+00> : vector<128x128xf32>
    %13 = tpu.matmul %11, %12, %cst_10 {dimension_numbers = #tpu.dot_dimension_numbers<[1], [0], [0], [1], [0, 0, 1, 1], [], []>} : vector<128x128xbf16>, vector<128x128xbf16>, vector<128x128xf32> -> vector<128x128xf32>
    %c0_11 = arith.constant 0 : index
    %c0_12 = arith.constant 0 : index
    %14 = vector.load %arg6[%c0_11, %c0_12] : memref<1x128xf32, #tpu.memory_space<vmem>>, vector<1x128xf32>
    %15 = vector.broadcast %14 : vector<1x128xf32> to vector<128x128xf32>
    %16 = arith.addf %13, %15 : vector<128x128xf32>
    %17 = arith.negf %16 : vector<128x128xf32>
    %18 = math.exp %17 : vector<128x128xf32>
    %cst_13 = arith.constant 1.000000e+00 : f32
    %19 = vector.broadcast %cst_13 : f32 to vector<128x128xf32>
    %20 = arith.addf %19, %18 : vector<128x128xf32>
    %21 = arith.divf %19, %20 : vector<128x128xf32>
    %c0_14 = arith.constant 0 : index
    %c0_15 = arith.constant 0 : index
    %22 = vector.load %arg7[%c0_14, %c0_15] : memref<512x128xf32, #tpu.memory_space<vmem>>, vector<512x128xf32>
    %cst_16 = arith.constant dense<0.000000e+00> : vector<512x128xf32>
    %23 = tpu.matmul %22, %21, %cst_16 {dimension_numbers = #tpu.dot_dimension_numbers<[1], [0], [0], [1], [0, 0, 1, 1], [], []>} : vector<512x128xf32>, vector<128x128xf32>, vector<512x128xf32> -> vector<512x128xf32>
    %c0_17 = arith.constant 0 : index
    %c0_18 = arith.constant 0 : index
    %24 = vector.load %arg8[%c0_17, %c0_18] : memref<512x128xf32, #tpu.memory_space<vmem>>, vector<512x128xf32>
    tpu.vector_store %arg8[%c0_17, %c0_18], %23 {strides = array<i32>} : memref<512x128xf32, #tpu.memory_space<vmem>>, vector<512x128xf32>,
    return
  }
  func.func @transform_0(%arg0: i32) -> (i32, i32) {
    %c0_i32 = arith.constant 0 : i32
    %c0_i32_0 = arith.constant 0 : i32
    %c0_i32_1 = arith.constant 0 : i32
    return %c0_i32, %c0_i32_0 : i32, i32
  }
  func.func @transform_1(%arg0: i32) -> (i32, i32) {
    %c0_i32 = arith.constant 0 : i32
    %c0_i32_0 = arith.constant 0 : i32
    %c0_i32_1 = arith.constant 0 : i32
    return %c0_i32, %c0_i32_0 : i32, i32
  }
  func.func @transform_2(%arg0: i32) -> (i32, i32) {
    %c0_i32 = arith.constant 0 : i32
    %c0_i32_0 = arith.constant 0 : i32
    %c0_i32_1 = arith.constant 0 : i32
    return %c0_i32, %c0_i32_0 : i32, i32
  }
  func.func @transform_3(%arg0: i32) -> (i32, i32) {
    %c0_i32 = arith.constant 0 : i32
    %c0_i32_0 = arith.constant 0 : i32
    %c0_i32_1 = arith.constant 0 : i32
    return %c0_i32, %c0_i32_0 : i32, i32
  }
  func.func @transform_4(%arg0: i32) -> (i32, i32) {
    %c0_i32 = arith.constant 0 : i32
    %c0_i32_0 = arith.constant 0 : i32
    %c0_i32_1 = arith.constant 0 : i32
    return %c0_i32, %c0_i32_0 : i32, i32
  }
  func.func @transform_5(%arg0: i32) -> (i32, i32) {
    %c0_i32 = arith.constant 0 : i32
    %c0_i32_0 = arith.constant 0 : i32
    %c0_i32_1 = arith.constant 0 : i32
    return %c0_i32, %c0_i32_0 : i32, i32
  }
  func.func @transform_6(%arg0: i32) -> (i32, i32) {
    %c0_i32 = arith.constant 0 : i32
    %c0_i32_0 = arith.constant 0 : i32
    %c0_i32_1 = arith.constant 0 : i32
    return %c0_i32, %c0_i32_0 : i32, i32
  }
  func.func @transform_7(%arg0: i32) -> (i32, i32) {
    %c0_i32 = arith.constant 0 : i32
    %c0_i32_0 = arith.constant 0 : i32
    %c0_i32_1 = arith.constant 0 : i32
    return %c0_i32, %c0_i32_0 : i32, i32
  }
}

</mosaic_0001>

<llo_original>
// kernel: _lambda_.8
$region0: #{_lambda_.8}
  #allocation0 [shape = 'u32[]', space=smem, size = 0x4, offset = 0x4, fixed_abs, tag = 'smem constant byte address 0x4 - core index']
  #allocation1 [shape = 'u32[144,128]{1,0:T(1,128)}', space=vmem, size = 0x12000, scoped, tag = 'internal scratch']
  %s0 = inlined_call_operand.vmem [shape: bf16[512,128], index: 0, kind: input, shape index: {}]
  %s1 = inlined_call_operand.vmem [shape: bf16[128,128], index: 1, kind: input, shape index: {}]
  %s2 = inlined_call_operand.vmem [shape: f32[1,128], index: 2, kind: input, shape index: {}]
  %s3 = inlined_call_operand.vmem [shape: f32[1,128], index: 3, kind: input, shape index: {}]
  %s4 = inlined_call_operand.vmem [shape: bf16[512,128], index: 4, kind: output, shape index: {}]
  %s5 = sld [smem:[#allocation0]]
  $region49: #{_lambda_.8} parent=0
    _
  %s7 = ssub.s32 1, %s5
  %s8 = scalar_select 0, %s7, %s5
  loop: start=0, step=1, limit=4
  $region2: #{_lambda_.8} parent=0 // loop_pre_header
    _
  $region3: #{_lambda_.8} parent=0 // loop_header
    %s10 = sphi 0, %s14
    %p11 = scmp.ge.s32.totalorder %s10, 4
    %s17 = sphi 0, %s29
    %s18 = sphi 0, %s25
    %s19 = sphi 0, %s17
    %s20 = sphi 0, %s18
    %s21 = sphi 0, %s19
    %s22 = sphi 0, %s20
    %s32 = sphi 0, %s34
    %s35 = sphi 0, %s32
    %s36 = sphi 0, %s35
    %s52 = sphi 0, %s36
    %s58 = sphi 0, %s60
    %s61 = sphi 0, %s58
    %s62 = sphi 0, %s61
    %s78 = sphi 0, %s62
    %s84 = sphi 0, %s86
    %s87 = sphi 0, %s84
    %s88 = sphi 0, %s87
    %s104 = sphi 0, %s88
    %s110 = sphi 0, %s112
    %s113 = sphi 0, %s110
    %s114 = sphi 0, %s113
    %s130 = sphi 0, %s114
    %s138 = sphi 0, %s140
    %s141 = sphi 0, %s138
    %s142 = sphi 0, %s141
    %s158 = sphi 0, %s142
  $region4: #{_lambda_.8} parent=0 // loop_header_branch
    %13 = sbr.rel (%p11) target = $region8
  $region5: #{_lambda_.8} parent=0 // loop_body
    %s15 = ssub.s32 %s10, 1
    %s16 = ssub.s32 %s10, 2
    %s23 = sadd.s32 1, %s18
    %p24 = scmp.ge.s32.totalorder %s23, 1
    %s25 = scalar_select %p24, 0, %s23
    %s26 = sadd.s32 1, %s17
    %s27 = scalar_select %p24, %s26, %s17
    %p28 = scmp.ge.s32.totalorder %s27, 2
    %s29 = scalar_select %p28, 0, %s27
    %s30 = ssub.s32 %s17, %s29
    %p31 = scmp.eq.s32.totalorder %s30, 0
    %s33 = sadd.s32 %s32, 1
    %s34 = scalar_select %p31, %s32, %s33
    %p37 = pneg %p31
    %p38 = scmp.eq.s32.totalorder %s10, 1
    %p39 = por %p37, %p38
    %p40 = scmp.ne.s32.totalorder %s32, %s35
    %p41 = scmp.eq.s32.totalorder %s10, 0
    %p42 = por %p40, %p41
    %p43 = scmp.ne.s32.totalorder %s32, %s35
    %p44 = scmp.eq.s32.totalorder %s15, 1
    %p45 = por %p43, %p44
    %p46 = scmp.ne.s32.totalorder %s35, %s36
    %p47 = scmp.eq.s32.totalorder %s15, 0
    %p48 = por %p46, %p47
    %p49 = scmp.ne.s32.totalorder %s35, %s36
    %p50 = scmp.eq.s32.totalorder %s16, 1
    %p51 = por %p49, %p50
    %p53 = scmp.ne.s32.totalorder %s36, %s52
    %p54 = scmp.eq.s32.totalorder %s16, 0
    %p55 = por %p53, %p54
    %s56 = ssub.s32 %s18, %s25
    %p57 = scmp.eq.s32.totalorder %s56, 0
    %s59 = sadd.s32 %s58, 1
    %s60 = scalar_select %p57, %s58, %s59
    %p63 = pneg %p57
    %p64 = scmp.eq.s32.totalorder %s10, 1
    %p65 = por %p63, %p64
    %p66 = scmp.ne.s32.totalorder %s58, %s61
    %p67 = scmp.eq.s32.totalorder %s10, 0
    %p68 = por %p66, %p67
    %p69 = scmp.ne.s32.totalorder %s58, %s61
    %p70 = scmp.eq.s32.totalorder %s15, 1
    %p71 = por %p69, %p70
    %p72 = scmp.ne.s32.totalorder %s61, %s62
    %p73 = scmp.eq.s32.totalorder %s15, 0
    %p74 = por %p72, %p73
    %p75 = scmp.ne.s32.totalorder %s61, %s62
    %p76 = scmp.eq.s32.totalorder %s16, 1
    %p77 = por %p75, %p76
    %p79 = scmp.ne.s32.totalorder %s62, %s78
    %p80 = scmp.eq.s32.totalorder %s16, 0
    %p81 = por %p79, %p80
    %s82 = ssub.s32 %s18, %s25
    %p83 = scmp.eq.s32.totalorder %s82, 0
    %s85 = sadd.s32 %s84, 1
    %s86 = scalar_select %p83, %s84, %s85
    %p89 = pneg %p83
    %p90 = scmp.eq.s32.totalorder %s10, 1
    %p91 = por %p89, %p90
    %p92 = scmp.ne.s32.totalorder %s84, %s87
    %p93 = scmp.eq.s32.totalorder %s10, 0
    %p94 = por %p92, %p93
    %p95 = scmp.ne.s32.totalorder %s84, %s87
    %p96 = scmp.eq.s32.totalorder %s15, 1
    %p97 = por %p95, %p96
    %p98 = scmp.ne.s32.totalorder %s87, %s88
    %p99 = scmp.eq.s32.totalorder %s15, 0
    %p100 = por %p98, %p99
    %p101 = scmp.ne.s32.totalorder %s87, %s88
    %p102 = scmp.eq.s32.totalorder %s16, 1
    %p103 = por %p101, %p102
    %p105 = scmp.ne.s32.totalorder %s88, %s104
    %p106 = scmp.eq.s32.totalorder %s16, 0
    %p107 = por %p105, %p106
    %s108 = ssub.s32 %s18, %s25
    %p109 = scmp.eq.s32.totalorder %s108, 0
    %s111 = sadd.s32 %s110, 1
    %s112 = scalar_select %p109, %s110, %s111
    %p115 = pneg %p109
    %p116 = scmp.eq.s32.totalorder %s10, 1
    %p117 = por %p115, %p116
    %p118 = scmp.ne.s32.totalorder %s110, %s113
    %p119 = scmp.eq.s32.totalorder %s10, 0
    %p120 = por %p118, %p119
    %p121 = scmp.ne.s32.totalorder %s110, %s113
    %p122 = scmp.eq.s32.totalorder %s15, 1
    %p123 = por %p121, %p122
    %p124 = scmp.ne.s32.totalorder %s113, %s114
    %p125 = scmp.eq.s32.totalorder %s15, 0
    %p126 = por %p124, %p125
    %p127 = scmp.ne.s32.totalorder %s113, %s114
    %p128 = scmp.eq.s32.totalorder %s16, 1
    %p129 = por %p127, %p128
    %p131 = scmp.ne.s32.totalorder %s114, %s130
    %p132 = scmp.eq.s32.totalorder %s16, 0
    %p133 = por %p131, %p132
    %s134 = ssub.s32 %s17, %s29
    %s135 = ssub.s32 %s18, %s25
    %s136 = sor.u32 %s134, %s135
    %p137 = scmp.eq.s32.totalorder %s136, 0
    %s139 = sadd.s32 %s138, 1
    %s140 = scalar_select %p137, %s138, %s139
    %p143 = pneg %p137
    %p144 = scmp.eq.s32.totalorder %s10, 1
    %p145 = por %p143, %p144
    %p146 = scmp.ne.s32.totalorder %s138, %s141
    %p147 = scmp.eq.s32.totalorder %s10, 0
    %p148 = por %p146, %p147
    %p149 = scmp.ne.s32.totalorder %s138, %s141
    %p150 = scmp.eq.s32.totalorder %s15, 1
    %p151 = por %p149, %p150
    %p152 = scmp.ne.s32.totalorder %s141, %s142
    %p153 = scmp.eq.s32.totalorder %s15, 0
    %p154 = por %p152, %p153
    %p155 = scmp.ne.s32.totalorder %s141, %s142
    %p156 = scmp.eq.s32.totalorder %s16, 1
    %p157 = por %p155, %p156
    %p159 = scmp.ne.s32.totalorder %s142, %s158
    %p160 = scmp.eq.s32.totalorder %s16, 0
    %p161 = por %p159, %p160
    %p162 = scmp.le.s32.totalorder 1, %s10
    %p163 = scmp.lt.s32.totalorder %s10, 3
    %p164 = pnand %p162, %p163
    %p165 = pneg %p164
    // Predicated region
    $region9: #{_lambda_.8} parent=5 // pred_check
      _
    $region10: #{_lambda_.8} parent=5 // pred_check_branch
      %167 = sbr.rel (%p164) target = $region12
    $region11: #{_lambda_.8} parent=5 // pred_region
      %s168 = ssub.s32 %s10, 1
      // Predicated region
      $region13: #{_lambda_.8} parent=11 // pred_check
        %p169 = pneg %p74
      $region14: #{_lambda_.8} parent=11 // pred_check_branch
        %171 = sbr.rel (%p169) target = $region16
      $region15: #{_lambda_.8} parent=11 // pred_region
        %p172 = scmp.lt.s32.totalorder %s20, 0
        %s173 = scalar_select %p172, %s20, 0
        %s174 = smul.addr %s173, 4
        %s175 = scalar_lea.vmem %s1, %s174
      $region16: #{_lambda_.8} parent=11 // pred_fallthru
        _
      // Predicated region
      $region17: #{_lambda_.8} parent=11 // pred_check
        %p176 = pneg %p100
      $region18: #{_lambda_.8} parent=11 // pred_check_branch
        %178 = sbr.rel (%p176) target = $region20
      $region19: #{_lambda_.8} parent=11 // pred_region
        %p179 = scmp.lt.s32.totalorder %s20, 0
        %s180 = scalar_select %p179, %s20, 0
        %s181 = scalar_lea.vmem %s2, %s180
      $region20: #{_lambda_.8} parent=11 // pred_fallthru
        _
      // Predicated region
      $region21: #{_lambda_.8} parent=11 // pred_check
        %p182 = pneg %p126
      $region22: #{_lambda_.8} parent=11 // pred_check_branch
        %184 = sbr.rel (%p182) target = $region24
      $region23: #{_lambda_.8} parent=11 // pred_region
        %p185 = scmp.lt.s32.totalorder %s20, 0
        %s186 = scalar_select %p185, %s20, 0
        %s187 = scalar_lea.vmem %s3, %s186
      $region24: #{_lambda_.8} parent=11 // pred_fallthru
        _
    $region12: #{_lambda_.8} parent=5 // pred_fallthru
      _
    %p188 = scmp.lt.s32.totalorder %s10, 2
    // Predicated region
    $region25: #{_lambda_.8} parent=5 // pred_check
      %p189 = pneg %p188
    $region26: #{_lambda_.8} parent=5 // pred_check_branch
      %191 = sbr.rel (%p189) target = $region28
    $region27: #{_lambda_.8} parent=5 // pred_region
      // Predicated region
      $region29: #{_lambda_.8} parent=27 // pred_check
        %p192 = pneg %p42
      $region30: #{_lambda_.8} parent=27 // pred_check_branch
        %194 = sbr.rel (%p192) target = $region32
      $region31: #{_lambda_.8} parent=27 // pred_region
        %s195 = smul.u32 32, %s17
        %p196 = scmp.lt.s32.totalorder %s195, 63
        %s197 = scalar_select %p196, %s195, 63
        %s198 = smul.addr %s197, 4
        %s199 = scalar_lea.vmem %s0, %s198
        %s200 = smul.u32 32, %s17
      $region32: #{_lambda_.8} parent=27 // pred_fallthru
        _
    $region28: #{_lambda_.8} parent=5 // pred_fallthru
      _
    %p201 = scmp.le.s32.totalorder 1, %s10
    %p202 = scmp.lt.s32.totalorder %s10, 3
    %p203 = pnand %p201, %p202
    %p204 = pneg %p203
    // Predicated region
    $region33: #{_lambda_.8} parent=5 // pred_check
      _
    $region34: #{_lambda_.8} parent=5 // pred_check_branch
      %206 = sbr.rel (%p203) target = $region36
    $region35: #{_lambda_.8} parent=5 // pred_region
      %s207 = ssub.s32 %s10, 1
      %s208 = smul.u32 32, %s19
      %p209 = scmp.lt.s32.totalorder %s208, 63
      %s210 = scalar_select %p209, %s208, 63
      %s211 = smul.addr %s210, 4
      %s212 = scalar_lea.vmem %s0, %s211
      %p213 = pneg %p48
      %p214 = pneg %p45
      %p215 = scmp.lt.s32.totalorder %s20, 0
      %s216 = scalar_select %p215, %s20, 0
      %s217 = smul.addr %s216, 4
      %s218 = scalar_lea.vmem %s1, %s217
      %p219 = pneg %p74
      %p220 = pneg %p71
      %p221 = scmp.lt.s32.totalorder %s20, 0
      %s222 = scalar_select %p221, %s20, 0
      %s223 = scalar_lea.vmem %s2, %s222
      %p224 = pneg %p100
      %p225 = pneg %p97
      %p226 = scmp.lt.s32.totalorder %s20, 0
      %s227 = scalar_select %p226, %s20, 0
      %s228 = scalar_lea.vmem %s3, %s227
      %p229 = pneg %p126
      %p230 = pneg %p123
      %p231 = pneg %p154
      %p232 = pneg %p151
      %s233 = smul.u32 32, %s19
      %p234 = scmp.lt.s32.totalorder %s233, 63
      %s235 = scalar_select %p234, %s233, 63
      %p236 = scmp.lt.s32.totalorder %s20, 0
      %s237 = scalar_select %p236, %s20, 0
      %s238 = sadd.s32 %s237, %s235
      %s239 = smul.addr %s238, 4
      %s240 = scalar_lea.vmem %s4, %s239
      %s241 = smul.u32 32, %s19
      %p242 = scmp.lt.s32.totalorder %s241, 63
      %s243 = scalar_select %p242, %s241, 63
      %s244 = smul.addr %s243, 4
      %s245 = scalar_lea.vmem %s0, %s244
      %s246 = smul.u32 32, %s19
      %p247 = scmp.lt.s32.totalorder %s20, 0
      %s248 = scalar_select %p247, %s20, 0
      %s249 = smul.addr %s248, 4
      %s250 = scalar_lea.vmem %s1, %s249
      %p251 = scmp.lt.s32.totalorder %s20, 0
      %s252 = scalar_select %p251, %s20, 0
      %s253 = scalar_lea.vmem %s2, %s252
      %p254 = scmp.lt.s32.totalorder %s20, 0
      %s255 = scalar_select %p254, %s20, 0
      %s256 = scalar_lea.vmem %s3, %s255
      %s257 = smul.u32 32, %s19
      %p258 = scmp.lt.s32.totalorder %s257, 63
      %s259 = scalar_select %p258, %s257, 63
      %p260 = scmp.lt.s32.totalorder %s20, 0
      %s261 = scalar_select %p260, %s20, 0
      %s262 = sadd.s32 %s261, %s259
      %s263 = smul.addr %s262, 4
      %s264 = scalar_lea.vmem %s4, %s263
      %s265 = smul.u32 32, %s19
      %v267 = vld [vmem:[%s245] sm:$0xf]
      %v268 = vld [vmem:[%s245 + $0x4] sm:$0xf]
      %v269 = vld [vmem:[%s245 + $0x8] sm:$0xf]
      %v270 = vld [vmem:[%s245 + $0xc] sm:$0xf]
      %v271 = vld [vmem:[%s245 + $0x10] sm:$0xf]
      %v272 = vld [vmem:[%s245 + $0x14] sm:$0xf]
      %v273 = vld [vmem:[%s245 + $0x18] sm:$0xf]
      %v274 = vld [vmem:[%s245 + $0x1c] sm:$0xf]
      %v275 = vld [vmem:[%s245 + $0x20] sm:$0xf]
      %v276 = vld [vmem:[%s245 + $0x24] sm:$0xf]
      %v277 = vld [vmem:[%s245 + $0x28] sm:$0xf]
      %v278 = vld [vmem:[%s245 + $0x2c] sm:$0xf]
      %v279 = vld [vmem:[%s245 + $0x30] sm:$0xf]
      %v280 = vld [vmem:[%s245 + $0x34] sm:$0xf]
      %v281 = vld [vmem:[%s245 + $0x38] sm:$0xf]
      %v282 = vld [vmem:[%s245 + $0x3c] sm:$0xf]
      %v283 = vld [vmem:[%s245 + $0x40] sm:$0xf]
      %v284 = vld [vmem:[%s245 + $0x44] sm:$0xf]
      %v285 = vld [vmem:[%s245 + $0x48] sm:$0xf]
      %v286 = vld [vmem:[%s245 + $0x4c] sm:$0xf]
      %v287 = vld [vmem:[%s245 + $0x50] sm:$0xf]
      %v288 = vld [vmem:[%s245 + $0x54] sm:$0xf]
      %v289 = vld [vmem:[%s245 + $0x58] sm:$0xf]
      %v290 = vld [vmem:[%s245 + $0x5c] sm:$0xf]
      %v291 = vld [vmem:[%s245 + $0x60] sm:$0xf]
      %v292 = vld [vmem:[%s245 + $0x64] sm:$0xf]
      %v293 = vld [vmem:[%s245 + $0x68] sm:$0xf]
      %v294 = vld [vmem:[%s245 + $0x6c] sm:$0xf]
      %v295 = vld [vmem:[%s245 + $0x70] sm:$0xf]
      %v296 = vld [vmem:[%s245 + $0x74] sm:$0xf]
      %v297 = vld [vmem:[%s245 + $0x78] sm:$0xf]
      %v298 = vld [vmem:[%s245 + $0x7c] sm:$0xf]
      %v299 = vld [vmem:[%s250] sm:$0xf]
      %v300 = vld [vmem:[%s250 + $0x4] sm:$0xf]
      %v301 = vld [vmem:[%s250 + $0x8] sm:$0xf]
      %v302 = vld [vmem:[%s250 + $0xc] sm:$0xf]
      %v303 = vld [vmem:[%s250 + $0x10] sm:$0xf]
      %v304 = vld [vmem:[%s250 + $0x14] sm:$0xf]
      %v305 = vld [vmem:[%s250 + $0x18] sm:$0xf]
      %v306 = vld [vmem:[%s250 + $0x1c] sm:$0xf]
      %v307 = vld [vmem:[%s250 + $0x20] sm:$0xf]
      %v308 = vld [vmem:[%s250 + $0x24] sm:$0xf]
      %v309 = vld [vmem:[%s250 + $0x28] sm:$0xf]
      %v310 = vld [vmem:[%s250 + $0x2c] sm:$0xf]
      %v311 = vld [vmem:[%s250 + $0x30] sm:$0xf]
      %v312 = vld [vmem:[%s250 + $0x34] sm:$0xf]
      %v313 = vld [vmem:[%s250 + $0x38] sm:$0xf]
      %v314 = vld [vmem:[%s250 + $0x3c] sm:$0xf]
      %v347 = vunpack.c.l.b16 %v267
      %v348 = vunpack.c.l.b16 %v268
      %v349 = vunpack.c.l.b16 %v269
      %v350 = vunpack.c.l.b16 %v270
      %v351 = vunpack.c.l.b16 %v271
      %v352 = vunpack.c.l.b16 %v272
      %v353 = vunpack.c.l.b16 %v273
      %v354 = vunpack.c.l.b16 %v274
      %v355 = vunpack.c.l.b16 %v275
      %v356 = vunpack.c.l.b16 %v276
      %v357 = vunpack.c.l.b16 %v277
      %v358 = vunpack.c.l.b16 %v278
      %v359 = vunpack.c.l.b16 %v279
      %v360 = vunpack.c.l.b16 %v280
      %v361 = vunpack.c.l.b16 %v281
      %v362 = vunpack.c.l.b16 %v282
      %v363 = vunpack.c.l.b16 %v283
      %v364 = vunpack.c.l.b16 %v284
      %v365 = vunpack.c.l.b16 %v285
      %v366 = vunpack.c.l.b16 %v286
      %v367 = vunpack.c.l.b16 %v287
      %v368 = vunpack.c.l.b16 %v288
      %v369 = vunpack.c.l.b16 %v289
      %v370 = vunpack.c.l.b16 %v290
      %v371 = vunpack.c.l.b16 %v291
      %v372 = vunpack.c.l.b16 %v292
      %v373 = vunpack.c.l.b16 %v293
      %v374 = vunpack.c.l.b16 %v294
      %v375 = vunpack.c.l.b16 %v295
      %v376 = vunpack.c.l.b16 %v296
      %v377 = vunpack.c.l.b16 %v297
      %v378 = vunpack.c.l.b16 %v298
      %v379 = vpack.c.b16 %v348, %v347
      %v380 = vpack.c.b16 %v350, %v349
      %v381 = vpack.c.b16 %v352, %v351
      %v382 = vpack.c.b16 %v354, %v353
      %v383 = vpack.c.b16 %v356, %v355
      %v384 = vpack.c.b16 %v358, %v357
      %v385 = vpack.c.b16 %v360, %v359
      %v386 = vpack.c.b16 %v362, %v361
      %v387 = vpack.c.b16 %v364, %v363
      %v388 = vpack.c.b16 %v366, %v365
      %v389 = vpack.c.b16 %v368, %v367
      %v390 = vpack.c.b16 %v370, %v369
      %v391 = vpack.c.b16 %v372, %v371
      %v392 = vpack.c.b16 %v374, %v373
      %v393 = vpack.c.b16 %v376, %v375
      %v394 = vpack.c.b16 %v378, %v377
      %v427 = vunpack.c.l.b16 %v299
      %v428 = vunpack.c.l.b16 %v300
      %v429 = vunpack.c.l.b16 %v301
      %v430 = vunpack.c.l.b16 %v302
      %v431 = vunpack.c.l.b16 %v303
      %v432 = vunpack.c.l.b16 %v304
      %v433 = vunpack.c.l.b16 %v305
      %v434 = vunpack.c.l.b16 %v306
      %v435 = vunpack.c.l.b16 %v307
      %v436 = vunpack.c.l.b16 %v308
      %v437 = vunpack.c.l.b16 %v309
      %v438 = vunpack.c.l.b16 %v310
      %v439 = vunpack.c.l.b16 %v311
      %v440 = vunpack.c.l.b16 %v312
      %v441 = vunpack.c.l.b16 %v313
      %v442 = vunpack.c.l.b16 %v314
      %v443 = vpack.c.b16 %v428, %v427
      %v444 = vpack.c.b16 %v430, %v429
      %v445 = vpack.c.b16 %v432, %v431
      %v446 = vpack.c.b16 %v434, %v433
      %v447 = vpack.c.b16 %v436, %v435
      %v448 = vpack.c.b16 %v438, %v437
      %v449 = vpack.c.b16 %v440, %v439
      %v450 = vpack.c.b16 %v442, %v441
      %459 = vmatprep.subr.bf16.mxu0 0
      %460 = vmatpush1.bf16.msra.mxu0 %v443
      %461 = vmatprep.subr.bf16.mxu0 0
      %462 = vmatpush1.bf16.msra.mxu0 %v444
      %463 = vmatprep.subr.bf16.mxu0 0
      %464 = vmatpush1.bf16.msra.mxu0 %v445
      %465 = vmatprep.subr.bf16.mxu0 0
      %466 = vmatpush1.bf16.msra.mxu0 %v446
      %467 = vmatprep.subr.bf16.mxu0 0
      %468 = vmatpush1.bf16.msra.mxu0 %v447
      %469 = vmatprep.subr.bf16.mxu0 0
      %470 = vmatpush1.bf16.msra.mxu0 %v448
      %471 = vmatprep.subr.bf16.mxu0 0
      %472 = vmatpush1.bf16.msra.mxu0 %v449
      %473 = vmatprep.subr.bf16.mxu0 0
      %474 = vmatpush1.bf16.msra.mxu0 %v450
      %475 = vmatprep.subr.bf16.mxu0 0
      %476 = vmatpush1.bf16.msra.mxu0 0
      %477 = vmatprep.subr.bf16.mxu0 0
      %478 = vmatpush1.bf16.msra.mxu0 0
      %479 = vmatprep.subr.bf16.mxu0 0
      %480 = vmatpush1.bf16.msra.mxu0 0
      %481 = vmatprep.subr.bf16.mxu0 0
      %482 = vmatpush1.bf16.msra.mxu0 0
      %483 = vmatprep.subr.bf16.mxu0 0
      %484 = vmatpush1.bf16.msra.mxu0 0
      %485 = vmatprep.subr.bf16.mxu0 0
      %486 = vmatpush1.bf16.msra.mxu0 0
      %487 = vmatprep.subr.bf16.mxu0 0
      %488 = vmatpush1.bf16.msra.mxu0 0
      %489 = vmatprep.subr.bf16.mxu0 0
      %490 = vmatpush1.bf16.msra.mxu0 0
      %491 = vmatprep.mubr.bf16.mxu0 0
      %492 = vmatmul.mubr.bf16.gmra.mrb[0].mxu0 %v379
      %v493 = vpop.f32.mrb[0].mxu0
      %v494 = vadd.f32 0.0, %v493
      %v495 = vpop.f32.mrb[0].mxu0
      %v496 = vpop.f32.mrb[0].mxu0
      %v497 = vadd.f32 0.0, %v496
      %v498 = vpop.f32.mrb[0].mxu0
      %499 = vmatprep.mubr.bf16.mxu0 0
      %500 = vmatmul.mubr.bf16.gmra.mrb[0].mxu0 %v380
      %v501 = vpop.f32.mrb[0].mxu0
      %v502 = vadd.f32 0.0, %v501
      %v503 = vpop.f32.mrb[0].mxu0
      %v504 = vpop.f32.mrb[0].mxu0
      %v505 = vadd.f32 0.0, %v504
      %v506 = vpop.f32.mrb[0].mxu0
      %507 = vmatprep.mubr.bf16.mxu0 0
      %508 = vmatmul.mubr.bf16.gmra.mrb[0].mxu0 %v381
      %v509 = vpop.f32.mrb[0].mxu0
      %v510 = vadd.f32 0.0, %v509
      %v511 = vpop.f32.mrb[0].mxu0
      %v512 = vpop.f32.mrb[0].mxu0
      %v513 = vadd.f32 0.0, %v512
      %v514 = vpop.f32.mrb[0].mxu0
      %515 = vmatprep.mubr.bf16.mxu0 0
      %516 = vmatmul.mubr.bf16.gmra.mrb[0].mxu0 %v382
      %v517 = vpop.f32.mrb[0].mxu0
      %v518 = vadd.f32 0.0, %v517
      %v519 = vpop.f32.mrb[0].mxu0
      %v520 = vpop.f32.mrb[0].mxu0
      %v521 = vadd.f32 0.0, %v520
      %v522 = vpop.f32.mrb[0].mxu0
      %523 = vmatprep.mubr.bf16.mxu0 0
      %524 = vmatmul.mubr.bf16.gmra.mrb[0].mxu0 %v383
      %v525 = vpop.f32.mrb[0].mxu0
      %v526 = vadd.f32 0.0, %v525
      %v527 = vpop.f32.mrb[0].mxu0
      %v528 = vpop.f32.mrb[0].mxu0
      %v529 = vadd.f32 0.0, %v528
      %v530 = vpop.f32.mrb[0].mxu0
      %531 = vmatprep.mubr.bf16.mxu0 0
      %532 = vmatmul.mubr.bf16.gmra.mrb[0].mxu0 %v384
      %v533 = vpop.f32.mrb[0].mxu0
      %v534 = vadd.f32 0.0, %v533
      %v535 = vpop.f32.mrb[0].mxu0
      %v536 = vpop.f32.mrb[0].mxu0
      %v537 = vadd.f32 0.0, %v536
      %v538 = vpop.f32.mrb[0].mxu0
      %539 = vmatprep.mubr.bf16.mxu0 0
      %540 = vmatmul.mubr.bf16.gmra.mrb[0].mxu0 %v385
      %v541 = vpop.f32.mrb[0].mxu0
      %v542 = vadd.f32 0.0, %v541
      %v543 = vpop.f32.mrb[0].mxu0
      %v544 = vpop.f32.mrb[0].mxu0
      %v545 = vadd.f32 0.0, %v544
      %v546 = vpop.f32.mrb[0].mxu0
      %547 = vmatprep.mubr.bf16.mxu0 0
      %548 = vmatmul.mubr.bf16.gmra.mrb[0].mxu0 %v386
      %v549 = vpop.f32.mrb[0].mxu0
      %v550 = vadd.f32 0.0, %v549
      %v551 = vpop.f32.mrb[0].mxu0
      %v552 = vpop.f32.mrb[0].mxu0
      %v553 = vadd.f32 0.0, %v552
      %v554 = vpop.f32.mrb[0].mxu0
      %555 = vmatprep.mubr.bf16.mxu0 0
      %556 = vmatmul.mubr.bf16.gmra.mrb[0].mxu0 %v387
      %v557 = vpop.f32.mrb[0].mxu0
      %v558 = vadd.f32 0.0, %v557
      %v559 = vpop.f32.mrb[0].mxu0
      %v560 = vpop.f32.mrb[0].mxu0
      %v561 = vadd.f32 0.0, %v560
      %v562 = vpop.f32.mrb[0].mxu0
      %563 = vmatprep.mubr.bf16.mxu0 0
      %564 = vmatmul.mubr.bf16.gmra.mrb[0].mxu0 %v388
      %v565 = vpop.f32.mrb[0].mxu0
      %v566 = vadd.f32 0.0, %v565
      %v567 = vpop.f32.mrb[0].mxu0
      %v568 = vpop.f32.mrb[0].mxu0
      %v569 = vadd.f32 0.0, %v568
      %v570 = vpop.f32.mrb[0].mxu0
      %571 = vmatprep.mubr.bf16.mxu0 0
      %572 = vmatmul.mubr.bf16.gmra.mrb[0].mxu0 %v389
      %v573 = vpop.f32.mrb[0].mxu0
      %v574 = vadd.f32 0.0, %v573
      %v575 = vpop.f32.mrb[0].mxu0
      %v576 = vpop.f32.mrb[0].mxu0
      %v577 = vadd.f32 0.0, %v576
      %v578 = vpop.f32.mrb[0].mxu0
      %579 = vmatprep.mubr.bf16.mxu0 0
      %580 = vmatmul.mubr.bf16.gmra.mrb[0].mxu0 %v390
      %v581 = vpop.f32.mrb[0].mxu0
      %v582 = vadd.f32 0.0, %v581
      %v583 = vpop.f32.mrb[0].mxu0
      %v584 = vpop.f32.mrb[0].mxu0
      %v585 = vadd.f32 0.0, %v584
      %v586 = vpop.f32.mrb[0].mxu0
      %587 = vmatprep.mubr.bf16.mxu0 0
      %588 = vmatmul.mubr.bf16.gmra.mrb[0].mxu0 %v391
      %v589 = vpop.f32.mrb[0].mxu0
      %v590 = vadd.f32 0.0, %v589
      %v591 = vpop.f32.mrb[0].mxu0
      %v592 = vpop.f32.mrb[0].mxu0
      %v593 = vadd.f32 0.0, %v592
      %v594 = vpop.f32.mrb[0].mxu0
      %595 = vmatprep.mubr.bf16.mxu0 0
      %596 = vmatmul.mubr.bf16.gmra.mrb[0].mxu0 %v392
      %v597 = vpop.f32.mrb[0].mxu0
      %v598 = vadd.f32 0.0, %v597
      %v599 = vpop.f32.mrb[0].mxu0
      %v600 = vpop.f32.mrb[0].mxu0
      %v601 = vadd.f32 0.0, %v600
      %v602 = vpop.f32.mrb[0].mxu0
      %603 = vmatprep.mubr.bf16.mxu0 0
      %604 = vmatmul.mubr.bf16.gmra.mrb[0].mxu0 %v393
      %v605 = vpop.f32.mrb[0].mxu0
      %v606 = vadd.f32 0.0, %v605
      %v607 = vpop.f32.mrb[0].mxu0
      %v608 = vpop.f32.mrb[0].mxu0
      %v609 = vadd.f32 0.0, %v608
      %v610 = vpop.f32.mrb[0].mxu0
      %611 = vmatprep.mubr.bf16.mxu0 0
      %612 = vmatmul.mubr.bf16.gmra.mrb[0].mxu0 %v394
      %v613 = vpop.f32.mrb[0].mxu0
      %v614 = vadd.f32 0.0, %v613
      %v615 = vpop.f32.mrb[0].mxu0
      %v616 = vpop.f32.mrb[0].mxu0
      %v617 = vadd.f32 0.0, %v616
      %v618 = vpop.f32.mrb[0].mxu0
      %619 = vdwg.mxu0
      %v620 = vld [vmem:[%s253] sm:$0x1]
      %v622 = vlaneseq
      %v623 = vshrl.u32 %v622, 7
      %v624 = vsub.s32 0, %v623
      %v625 = vrot.slane %v620, %v624
      %v627 = vmul.f32 %v494, %v625
      %v628 = vmul.f32 %v497, %v625
      %v629 = vmul.f32 %v502, %v625
      %v630 = vmul.f32 %v505, %v625
      %v631 = vmul.f32 %v510, %v625
      %v632 = vmul.f32 %v513, %v625
      %v633 = vmul.f32 %v518, %v625
      %v634 = vmul.f32 %v521, %v625
      %v635 = vmul.f32 %v526, %v625
      %v636 = vmul.f32 %v529, %v625
      %v637 = vmul.f32 %v534, %v625
      %v638 = vmul.f32 %v537, %v625
      %v639 = vmul.f32 %v542, %v625
      %v640 = vmul.f32 %v545, %v625
      %v641 = vmul.f32 %v550, %v625
      %v642 = vmul.f32 %v553, %v625
      %v643 = vmul.f32 %v558, %v625
      %v644 = vmul.f32 %v561, %v625
      %v645 = vmul.f32 %v566, %v625
      %v646 = vmul.f32 %v569, %v625
      %v647 = vmul.f32 %v574, %v625
      %v648 = vmul.f32 %v577, %v625
      %v649 = vmul.f32 %v582, %v625
      %v650 = vmul.f32 %v585, %v625
      %v651 = vmul.f32 %v590, %v625
      %v652 = vmul.f32 %v593, %v625
      %v653 = vmul.f32 %v598, %v625
      %v654 = vmul.f32 %v601, %v625
      %v655 = vmul.f32 %v606, %v625
      %v656 = vmul.f32 %v609, %v625
      %v657 = vmul.f32 %v614, %v625
      %v658 = vmul.f32 %v617, %v625
      %v659 = vld [vmem:[%s256] sm:$0x1]
      %v661 = vlaneseq
      %v662 = vshrl.u32 %v661, 7
      %v663 = vsub.s32 0, %v662
      %v664 = vrot.slane %v659, %v663
      %v666 = vadd.f32 %v627, %v664
      %v667 = vadd.f32 %v628, %v664
      %v668 = vadd.f32 %v629, %v664
      %v669 = vadd.f32 %v630, %v664
      %v670 = vadd.f32 %v631, %v664
      %v671 = vadd.f32 %v632, %v664
      %v672 = vadd.f32 %v633, %v664
      %v673 = vadd.f32 %v634, %v664
      %v674 = vadd.f32 %v635, %v664
      %v675 = vadd.f32 %v636, %v664
      %v676 = vadd.f32 %v637, %v664
      %v677 = vadd.f32 %v638, %v664
      %v678 = vadd.f32 %v639, %v664
      %v679 = vadd.f32 %v640, %v664
      %v680 = vadd.f32 %v641, %v664
      %v681 = vadd.f32 %v642, %v664
      %v682 = vadd.f32 %v643, %v664
      %v683 = vadd.f32 %v644, %v664
      %v684 = vadd.f32 %v645, %v664
      %v685 = vadd.f32 %v646, %v664
      %v686 = vadd.f32 %v647, %v664
      %v687 = vadd.f32 %v648, %v664
      %v688 = vadd.f32 %v649, %v664
      %v689 = vadd.f32 %v650, %v664
      %v690 = vadd.f32 %v651, %v664
      %v691 = vadd.f32 %v652, %v664
      %v692 = vadd.f32 %v653, %v664
      %v693 = vadd.f32 %v654, %v664
      %v694 = vadd.f32 %v655, %v664
      %v695 = vadd.f32 %v656, %v664
      %v696 = vadd.f32 %v657, %v664
      %v697 = vadd.f32 %v658, %v664
      %v698 = vmax.f32 %v666, 0.0
      %v699 = vmax.f32 %v667, 0.0
      %v700 = vmax.f32 %v668, 0.0
      %v701 = vmax.f32 %v669, 0.0
      %v702 = vmax.f32 %v670, 0.0
      %v703 = vmax.f32 %v671, 0.0
      %v704 = vmax.f32 %v672, 0.0
      %v705 = vmax.f32 %v673, 0.0
      %v706 = vmax.f32 %v674, 0.0
      %v707 = vmax.f32 %v675, 0.0
      %v708 = vmax.f32 %v676, 0.0
      %v709 = vmax.f32 %v677, 0.0
      %v710 = vmax.f32 %v678, 0.0
      %v711 = vmax.f32 %v679, 0.0
      %v712 = vmax.f32 %v680, 0.0
      %v713 = vmax.f32 %v681, 0.0
      %v714 = vmax.f32 %v682, 0.0
      %v715 = vmax.f32 %v683, 0.0
      %v716 = vmax.f32 %v684, 0.0
      %v717 = vmax.f32 %v685, 0.0
      %v718 = vmax.f32 %v686, 0.0
      %v719 = vmax.f32 %v687, 0.0
      %v720 = vmax.f32 %v688, 0.0
      %v721 = vmax.f32 %v689, 0.0
      %v722 = vmax.f32 %v690, 0.0
      %v723 = vmax.f32 %v691, 0.0
      %v724 = vmax.f32 %v692, 0.0
      %v725 = vmax.f32 %v693, 0.0
      %v726 = vmax.f32 %v694, 0.0
      %v727 = vmax.f32 %v695, 0.0
      %v728 = vmax.f32 %v696, 0.0
      %v729 = vmax.f32 %v697, 0.0
      %v730 = vpack.c.bf16 %v699, %v698
      %v731 = vpack.c.bf16 %v701, %v700
      %v732 = vpack.c.bf16 %v703, %v702
      %v733 = vpack.c.bf16 %v705, %v704
      %v734 = vpack.c.bf16 %v707, %v706
      %v735 = vpack.c.bf16 %v709, %v708
      %v736 = vpack.c.bf16 %v711, %v710
      %v737 = vpack.c.bf16 %v713, %v712
      %v738 = vpack.c.bf16 %v715, %v714
      %v739 = vpack.c.bf16 %v717, %v716
      %v740 = vpack.c.bf16 %v719, %v718
      %v741 = vpack.c.bf16 %v721, %v720
      %v742 = vpack.c.bf16 %v723, %v722
      %v743 = vpack.c.bf16 %v725, %v724
      %v744 = vpack.c.bf16 %v727, %v726
      %v745 = vpack.c.bf16 %v729, %v728
      %v762 = vunpack.c.l.b16 %v730
      %v763 = vunpack.c.h.b16 %v730
      %v764 = vunpack.c.l.b16 %v731
      %v765 = vunpack.c.h.b16 %v731
      %v766 = vunpack.c.l.b16 %v732
      %v767 = vunpack.c.h.b16 %v732
      %v768 = vunpack.c.l.b16 %v733
      %v769 = vunpack.c.h.b16 %v733
      %v770 = vunpack.c.l.b16 %v734
      %v771 = vunpack.c.h.b16 %v734
      %v772 = vunpack.c.l.b16 %v735
      %v773 = vunpack.c.h.b16 %v735
      %v774 = vunpack.c.l.b16 %v736
      %v775 = vunpack.c.h.b16 %v736
      %v776 = vunpack.c.l.b16 %v737
      %v777 = vunpack.c.h.b16 %v737
      %v778 = vunpack.c.l.b16 %v738
      %v779 = vunpack.c.h.b16 %v738
      %v780 = vunpack.c.l.b16 %v739
      %v781 = vunpack.c.h.b16 %v739
      %v782 = vunpack.c.l.b16 %v740
      %v783 = vunpack.c.h.b16 %v740
      %v784 = vunpack.c.l.b16 %v741
      %v785 = vunpack.c.h.b16 %v741
      %v786 = vunpack.c.l.b16 %v742
      %v787 = vunpack.c.h.b16 %v742
      %v788 = vunpack.c.l.b16 %v743
      %v789 = vunpack.c.h.b16 %v743
      %v790 = vunpack.c.l.b16 %v744
      %v791 = vunpack.c.h.b16 %v744
      %v792 = vunpack.c.l.b16 %v745
      %v793 = vunpack.c.h.b16 %v745
      %v794 = vpack.c.b16 %v762, %v762
      %v795 = vpack.c.b16 %v763, %v763
      %v796 = vpack.c.b16 %v764, %v764
      %v797 = vpack.c.b16 %v765, %v765
      %v798 = vpack.c.b16 %v766, %v766
      %v799 = vpack.c.b16 %v767, %v767
      %v800 = vpack.c.b16 %v768, %v768
      %v801 = vpack.c.b16 %v769, %v769
      %v802 = vpack.c.b16 %v770, %v770
      %v803 = vpack.c.b16 %v771, %v771
      %v804 = vpack.c.b16 %v772, %v772
      %v805 = vpack.c.b16 %v773, %v773
      %v806 = vpack.c.b16 %v774, %v774
      %v807 = vpack.c.b16 %v775, %v775
      %v808 = vpack.c.b16 %v776, %v776
      %v809 = vpack.c.b16 %v777, %v777
      %v810 = vpack.c.b16 %v778, %v778
      %v811 = vpack.c.b16 %v779, %v779
      %v812 = vpack.c.b16 %v780, %v780
      %v813 = vpack.c.b16 %v781, %v781
      %v814 = vpack.c.b16 %v782, %v782
      %v815 = vpack.c.b16 %v783, %v783
      %v816 = vpack.c.b16 %v784, %v784
      %v817 = vpack.c.b16 %v785, %v785
      %v818 = vpack.c.b16 %v786, %v786
      %v819 = vpack.c.b16 %v787, %v787
      %v820 = vpack.c.b16 %v788, %v788
      %v821 = vpack.c.b16 %v789, %v789
      %v822 = vpack.c.b16 %v790, %v790
      %v823 = vpack.c.b16 %v791, %v791
      %v824 = vpack.c.b16 %v792, %v792
      %v825 = vpack.c.b16 %v793, %v793
      %858 = vst [vmem:[%s264] sm:$0xf] %v794
      %859 = vst [vmem:[%s264 + $0x4] sm:$0xf] %v795
      %860 = vst [vmem:[%s264 + $0x8] sm:$0xf] %v796
      %861 = vst [vmem:[%s264 + $0xc] sm:$0xf] %v797
      %862 = vst [vmem:[%s264 + $0x10] sm:$0xf] %v798
      %863 = vst [vmem:[%s264 + $0x14] sm:$0xf] %v799
      %864 = vst [vmem:[%s264 + $0x18] sm:$0xf] %v800
      %865 = vst [vmem:[%s264 + $0x1c] sm:$0xf] %v801
      %866 = vst [vmem:[%s264 + $0x20] sm:$0xf] %v802
      %867 = vst [vmem:[%s264 + $0x24] sm:$0xf] %v803
      %868 = vst [vmem:[%s264 + $0x28] sm:$0xf] %v804
      %869 = vst [vmem:[%s264 + $0x2c] sm:$0xf] %v805
      %870 = vst [vmem:[%s264 + $0x30] sm:$0xf] %v806
      %871 = vst [vmem:[%s264 + $0x34] sm:$0xf] %v807
      %872 = vst [vmem:[%s264 + $0x38] sm:$0xf] %v808
      %873 = vst [vmem:[%s264 + $0x3c] sm:$0xf] %v809
      %874 = vst [vmem:[%s264 + $0x40] sm:$0xf] %v810
      %875 = vst [vmem:[%s264 + $0x44] sm:$0xf] %v811
      %876 = vst [vmem:[%s264 + $0x48] sm:$0xf] %v812
      %877 = vst [vmem:[%s264 + $0x4c] sm:$0xf] %v813
      %878 = vst [vmem:[%s264 + $0x50] sm:$0xf] %v814
      %879 = vst [vmem:[%s264 + $0x54] sm:$0xf] %v815
      %880 = vst [vmem:[%s264 + $0x58] sm:$0xf] %v816
      %881 = vst [vmem:[%s264 + $0x5c] sm:$0xf] %v817
      %882 = vst [vmem:[%s264 + $0x60] sm:$0xf] %v818
      %883 = vst [vmem:[%s264 + $0x64] sm:$0xf] %v819
      %884 = vst [vmem:[%s264 + $0x68] sm:$0xf] %v820
      %885 = vst [vmem:[%s264 + $0x6c] sm:$0xf] %v821
      %886 = vst [vmem:[%s264 + $0x70] sm:$0xf] %v822
      %887 = vst [vmem:[%s264 + $0x74] sm:$0xf] %v823
      %888 = vst [vmem:[%s264 + $0x78] sm:$0xf] %v824
      %889 = vst [vmem:[%s264 + $0x7c] sm:$0xf] %v825
      %s890 = smul.u32 32, %s19
      %p891 = scmp.lt.s32.totalorder %s890, 63
      %s892 = scalar_select %p891, %s890, 63
      %p893 = scmp.lt.s32.totalorder %s20, 0
      %s894 = scalar_select %p893, %s20, 0
      %s895 = sadd.s32 %s894, %s892
      %s896 = smul.addr %s895, 4
      %s897 = scalar_lea.vmem %s4, %s896
      // Predicated region
      $region37: #{_lambda_.8} parent=35 // pred_check
        %p898 = pneg %p151
      $region38: #{_lambda_.8} parent=35 // pred_check_branch
        %900 = sbr.rel (%p898) target = $region40
      $region39: #{_lambda_.8} parent=35 // pred_region
        %s901 = smul.u32 32, %s19
      $region40: #{_lambda_.8} parent=35 // pred_fallthru
        _
    $region36: #{_lambda_.8} parent=5 // pred_fallthru
      _
    %p902 = scmp.le.s32.totalorder 2, %s10
    // Predicated region
    $region41: #{_lambda_.8} parent=5 // pred_check
      %p903 = pneg %p902
    $region42: #{_lambda_.8} parent=5 // pred_check_branch
      %905 = sbr.rel (%p903) target = $region44
    $region43: #{_lambda_.8} parent=5 // pred_region
      %s906 = ssub.s32 %s10, 2
      // Predicated region
      $region45: #{_lambda_.8} parent=43 // pred_check
        %p907 = pneg %p157
      $region46: #{_lambda_.8} parent=43 // pred_check_branch
        %909 = sbr.rel (%p907) target = $region48
      $region47: #{_lambda_.8} parent=43 // pred_region
        %s910 = smul.u32 32, %s21
        %p911 = scmp.lt.s32.totalorder %s910, 63
        %s912 = scalar_select %p911, %s910, 63
        %p913 = scmp.lt.s32.totalorder %s22, 0
        %s914 = scalar_select %p913, %s22, 0
        %s915 = sadd.s32 %s914, %s912
        %s916 = smul.addr %s915, 4
        %s917 = scalar_lea.vmem %s4, %s916
      $region48: #{_lambda_.8} parent=43 // pred_fallthru
        _
    $region44: #{_lambda_.8} parent=5 // pred_fallthru
      _
  $region6: #{_lambda_.8} parent=0 // loop_footer
    %s14 = sadd.s32 1, %s10
  $region7: #{_lambda_.8} parent=0 // loop_footer_branch
    %9 = sbr.rel target = $region3
  $region8: #{_lambda_.8} parent=0 // loop_exit
    _

// kernel: _lambda_.9
$region0: #{_lambda_.9}
  #allocation0 [shape = 'u32[]', space=smem, size = 0x4, offset = 0x4, fixed_abs, tag = 'smem constant byte address 0x4 - core index']
  #allocation1 [shape = 'u32[144,128]{1,0:T(1,128)}', space=vmem, size = 0x12000, scoped, tag = 'internal scratch']
  %s0 = inlined_call_operand.vmem [shape: bf16[512,256], index: 0, kind: input, shape index: {}]
  %s1 = inlined_call_operand.vmem [shape: bf16[256,128], index: 1, kind: input, shape index: {}]
  %s2 = inlined_call_operand.vmem [shape: f32[1,128], index: 2, kind: input, shape index: {}]
  %s3 = inlined_call_operand.vmem [shape: f32[1,128], index: 3, kind: input, shape index: {}]
  %s4 = inlined_call_operand.vmem [shape: bf16[512,128], index: 4, kind: output, shape index: {}]
  %s5 = sld [smem:[#allocation0]]
  $region49: #{_lambda_.9} parent=0
    _
  %s7 = ssub.s32 1, %s5
  %s8 = scalar_select 0, %s7, %s5
  loop: start=0, step=1, limit=4
  $region2: #{_lambda_.9} parent=0 // loop_pre_header
    _
  $region3: #{_lambda_.9} parent=0 // loop_header
    %s10 = sphi 0, %s14
    %p11 = scmp.ge.s32.totalorder %s10, 4
    %s17 = sphi 0, %s29
    %s18 = sphi 0, %s25
    %s19 = sphi 0, %s17
    %s20 = sphi 0, %s18
    %s21 = sphi 0, %s19
    %s22 = sphi 0, %s20
    %s32 = sphi 0, %s34
    %s35 = sphi 0, %s32
    %s36 = sphi 0, %s35
    %s52 = sphi 0, %s36
    %s58 = sphi 0, %s60
    %s61 = sphi 0, %s58
    %s62 = sphi 0, %s61
    %s78 = sphi 0, %s62
    %s84 = sphi 0, %s86
    %s87 = sphi 0, %s84
    %s88 = sphi 0, %s87
    %s104 = sphi 0, %s88
    %s110 = sphi 0, %s112
    %s113 = sphi 0, %s110
    %s114 = sphi 0, %s113
    %s130 = sphi 0, %s114
    %s138 = sphi 0, %s140
    %s141 = sphi 0, %s138
    %s142 = sphi 0, %s141
    %s158 = sphi 0, %s142
  $region4: #{_lambda_.9} parent=0 // loop_header_branch
    %13 = sbr.rel (%p11) target = $region8
  $region5: #{_lambda_.9} parent=0 // loop_body
    %s15 = ssub.s32 %s10, 1
    %s16 = ssub.s32 %s10, 2
    %s23 = sadd.s32 1, %s18
    %p24 = scmp.ge.s32.totalorder %s23, 1
    %s25 = scalar_select %p24, 0, %s23
    %s26 = sadd.s32 1, %s17
    %s27 = scalar_select %p24, %s26, %s17
    %p28 = scmp.ge.s32.totalorder %s27, 2
    %s29 = scalar_select %p28, 0, %s27
    %s30 = ssub.s32 %s17, %s29
    %p31 = scmp.eq.s32.totalorder %s30, 0
    %s33 = sadd.s32 %s32, 1
    %s34 = scalar_select %p31, %s32, %s33
    %p37 = pneg %p31
    %p38 = scmp.eq.s32.totalorder %s10, 1
    %p39 = por %p37, %p38
    %p40 = scmp.ne.s32.totalorder %s32, %s35
    %p41 = scmp.eq.s32.totalorder %s10, 0
    %p42 = por %p40, %p41
    %p43 = scmp.ne.s32.totalorder %s32, %s35
    %p44 = scmp.eq.s32.totalorder %s15, 1
    %p45 = por %p43, %p44
    %p46 = scmp.ne.s32.totalorder %s35, %s36
    %p47 = scmp.eq.s32.totalorder %s15, 0
    %p48 = por %p46, %p47
    %p49 = scmp.ne.s32.totalorder %s35, %s36
    %p50 = scmp.eq.s32.totalorder %s16, 1
    %p51 = por %p49, %p50
    %p53 = scmp.ne.s32.totalorder %s36, %s52
    %p54 = scmp.eq.s32.totalorder %s16, 0
    %p55 = por %p53, %p54
    %s56 = ssub.s32 %s18, %s25
    %p57 = scmp.eq.s32.totalorder %s56, 0
    %s59 = sadd.s32 %s58, 1
    %s60 = scalar_select %p57, %s58, %s59
    %p63 = pneg %p57
    %p64 = scmp.eq.s32.totalorder %s10, 1
    %p65 = por %p63, %p64
    %p66 = scmp.ne.s32.totalorder %s58, %s61
    %p67 = scmp.eq.s32.totalorder %s10, 0
    %p68 = por %p66, %p67
    %p69 = scmp.ne.s32.totalorder %s58, %s61
    %p70 = scmp.eq.s32.totalorder %s15, 1
    %p71 = por %p69, %p70
    %p72 = scmp.ne.s32.totalorder %s61, %s62
    %p73 = scmp.eq.s32.totalorder %s15, 0
    %p74 = por %p72, %p73
    %p75 = scmp.ne.s32.totalorder %s61, %s62
    %p76 = scmp.eq.s32.totalorder %s16, 1
    %p77 = por %p75, %p76
    %p79 = scmp.ne.s32.totalorder %s62, %s78
    %p80 = scmp.eq.s32.totalorder %s16, 0
    %p81 = por %p79, %p80
    %s82 = ssub.s32 %s18, %s25
    %p83 = scmp.eq.s32.totalorder %s82, 0
    %s85 = sadd.s32 %s84, 1
    %s86 = scalar_select %p83, %s84, %s85
    %p89 = pneg %p83
    %p90 = scmp.eq.s32.totalorder %s10, 1
    %p91 = por %p89, %p90
    %p92 = scmp.ne.s32.totalorder %s84, %s87
    %p93 = scmp.eq.s32.totalorder %s10, 0
    %p94 = por %p92, %p93
    %p95 = scmp.ne.s32.totalorder %s84, %s87
    %p96 = scmp.eq.s32.totalorder %s15, 1
    %p97 = por %p95, %p96
    %p98 = scmp.ne.s32.totalorder %s87, %s88
    %p99 = scmp.eq.s32.totalorder %s15, 0
    %p100 = por %p98, %p99
    %p101 = scmp.ne.s32.totalorder %s87, %s88
    %p102 = scmp.eq.s32.totalorder %s16, 1
    %p103 = por %p101, %p102
    %p105 = scmp.ne.s32.totalorder %s88, %s104
    %p106 = scmp.eq.s32.totalorder %s16, 0
    %p107 = por %p105, %p106
    %s108 = ssub.s32 %s18, %s25
    %p109 = scmp.eq.s32.totalorder %s108, 0
    %s111 = sadd.s32 %s110, 1
    %s112 = scalar_select %p109, %s110, %s111
    %p115 = pneg %p109
    %p116 = scmp.eq.s32.totalorder %s10, 1
    %p117 = por %p115, %p116
    %p118 = scmp.ne.s32.totalorder %s110, %s113
    %p119 = scmp.eq.s32.totalorder %s10, 0
    %p120 = por %p118, %p119
    %p121 = scmp.ne.s32.totalorder %s110, %s113
    %p122 = scmp.eq.s32.totalorder %s15, 1
    %p123 = por %p121, %p122
    %p124 = scmp.ne.s32.totalorder %s113, %s114
    %p125 = scmp.eq.s32.totalorder %s15, 0
    %p126 = por %p124, %p125
    %p127 = scmp.ne.s32.totalorder %s113, %s114
    %p128 = scmp.eq.s32.totalorder %s16, 1
    %p129 = por %p127, %p128
    %p131 = scmp.ne.s32.totalorder %s114, %s130
    %p132 = scmp.eq.s32.totalorder %s16, 0
    %p133 = por %p131, %p132
    %s134 = ssub.s32 %s17, %s29
    %s135 = ssub.s32 %s18, %s25
    %s136 = sor.u32 %s134, %s135
    %p137 = scmp.eq.s32.totalorder %s136, 0
    %s139 = sadd.s32 %s138, 1
    %s140 = scalar_select %p137, %s138, %s139
    %p143 = pneg %p137
    %p144 = scmp.eq.s32.totalorder %s10, 1
    %p145 = por %p143, %p144
    %p146 = scmp.ne.s32.totalorder %s138, %s141
    %p147 = scmp.eq.s32.totalorder %s10, 0
    %p148 = por %p146, %p147
    %p149 = scmp.ne.s32.totalorder %s138, %s141
    %p150 = scmp.eq.s32.totalorder %s15, 1
    %p151 = por %p149, %p150
    %p152 = scmp.ne.s32.totalorder %s141, %s142
    %p153 = scmp.eq.s32.totalorder %s15, 0
    %p154 = por %p152, %p153
    %p155 = scmp.ne.s32.totalorder %s141, %s142
    %p156 = scmp.eq.s32.totalorder %s16, 1
    %p157 = por %p155, %p156
    %p159 = scmp.ne.s32.totalorder %s142, %s158
    %p160 = scmp.eq.s32.totalorder %s16, 0
    %p161 = por %p159, %p160
    %p162 = scmp.le.s32.totalorder 1, %s10
    %p163 = scmp.lt.s32.totalorder %s10, 3
    %p164 = pnand %p162, %p163
    %p165 = pneg %p164
    // Predicated region
    $region9: #{_lambda_.9} parent=5 // pred_check
      _
    $region10: #{_lambda_.9} parent=5 // pred_check_branch
      %167 = sbr.rel (%p164) target = $region12
    $region11: #{_lambda_.9} parent=5 // pred_region
      %s168 = ssub.s32 %s10, 1
      // Predicated region
      $region13: #{_lambda_.9} parent=11 // pred_check
        %p169 = pneg %p74
      $region14: #{_lambda_.9} parent=11 // pred_check_branch
        %171 = sbr.rel (%p169) target = $region16
      $region15: #{_lambda_.9} parent=11 // pred_region
        %p172 = scmp.lt.s32.totalorder %s20, 0
        %s173 = scalar_select %p172, %s20, 0
        %s174 = smul.addr %s173, 4
        %s175 = scalar_lea.vmem %s1, %s174
      $region16: #{_lambda_.9} parent=11 // pred_fallthru
        _
      // Predicated region
      $region17: #{_lambda_.9} parent=11 // pred_check
        %p176 = pneg %p100
      $region18: #{_lambda_.9} parent=11 // pred_check_branch
        %178 = sbr.rel (%p176) target = $region20
      $region19: #{_lambda_.9} parent=11 // pred_region
        %p179 = scmp.lt.s32.totalorder %s20, 0
        %s180 = scalar_select %p179, %s20, 0
        %s181 = scalar_lea.vmem %s2, %s180
      $region20: #{_lambda_.9} parent=11 // pred_fallthru
        _
      // Predicated region
      $region21: #{_lambda_.9} parent=11 // pred_check
        %p182 = pneg %p126
      $region22: #{_lambda_.9} parent=11 // pred_check_branch
        %184 = sbr.rel (%p182) target = $region24
      $region23: #{_lambda_.9} parent=11 // pred_region
        %p185 = scmp.lt.s32.totalorder %s20, 0
        %s186 = scalar_select %p185, %s20, 0
        %s187 = scalar_lea.vmem %s3, %s186
      $region24: #{_lambda_.9} parent=11 // pred_fallthru
        _
    $region12: #{_lambda_.9} parent=5 // pred_fallthru
      _
    %p188 = scmp.lt.s32.totalorder %s10, 2
    // Predicated region
    $region25: #{_lambda_.9} parent=5 // pred_check
      %p189 = pneg %p188
    $region26: #{_lambda_.9} parent=5 // pred_check_branch
      %191 = sbr.rel (%p189) target = $region28
    $region27: #{_lambda_.9} parent=5 // pred_region
      // Predicated region
      $region29: #{_lambda_.9} parent=27 // pred_check
        %p192 = pneg %p42
      $region30: #{_lambda_.9} parent=27 // pred_check_branch
        %194 = sbr.rel (%p192) target = $region32
      $region31: #{_lambda_.9} parent=27 // pred_region
        %s195 = smul.u32 32, %s17
        %p196 = scmp.lt.s32.totalorder %s195, 63
        %s197 = scalar_select %p196, %s195, 63
        %s198 = smul.addr %s197, 2
        %s199 = smul.addr %s198, 4
        %s200 = scalar_lea.vmem %s0, %s199
        %s201 = smul.u32 32, %s17
      $region32: #{_lambda_.9} parent=27 // pred_fallthru
        _
    $region28: #{_lambda_.9} parent=5 // pred_fallthru
      _
    %p202 = scmp.le.s32.totalorder 1, %s10
    %p203 = scmp.lt.s32.totalorder %s10, 3
    %p204 = pnand %p202, %p203
    %p205 = pneg %p204
    // Predicated region
    $region33: #{_lambda_.9} parent=5 // pred_check
      _
    $region34: #{_lambda_.9} parent=5 // pred_check_branch
      %207 = sbr.rel (%p204) target = $region36
    $region35: #{_lambda_.9} parent=5 // pred_region
      %s208 = ssub.s32 %s10, 1
      %s209 = smul.u32 32, %s19
      %p210 = scmp.lt.s32.totalorder %s209, 63
      %s211 = scalar_select %p210, %s209, 63
      %s212 = smul.addr %s211, 2
      %s213 = smul.addr %s212, 4
      %s214 = scalar_lea.vmem %s0, %s213
      %p215 = pneg %p48
      %p216 = pneg %p45
      %p217 = scmp.lt.s32.totalorder %s20, 0
      %s218 = scalar_select %p217, %s20, 0
      %s219 = smul.addr %s218, 4
      %s220 = scalar_lea.vmem %s1, %s219
      %p221 = pneg %p74
      %p222 = pneg %p71
      %p223 = scmp.lt.s32.totalorder %s20, 0
      %s224 = scalar_select %p223, %s20, 0
      %s225 = scalar_lea.vmem %s2, %s224
      %p226 = pneg %p100
      %p227 = pneg %p97
      %p228 = scmp.lt.s32.totalorder %s20, 0
      %s229 = scalar_select %p228, %s20, 0
      %s230 = scalar_lea.vmem %s3, %s229
      %p231 = pneg %p126
      %p232 = pneg %p123
      %p233 = pneg %p154
      %p234 = pneg %p151
      %s235 = smul.u32 32, %s19
      %p236 = scmp.lt.s32.totalorder %s235, 63
      %s237 = scalar_select %p236, %s235, 63
      %p238 = scmp.lt.s32.totalorder %s20, 0
      %s239 = scalar_select %p238, %s20, 0
      %s240 = sadd.s32 %s239, %s237
      %s241 = smul.addr %s240, 4
      %s242 = scalar_lea.vmem %s4, %s241
      %s243 = smul.u32 32, %s19
      %p244 = scmp.lt.s32.totalorder %s243, 63
      %s245 = scalar_select %p244, %s243, 63
      %s246 = smul.addr %s245, 2
      %s247 = smul.addr %s246, 4
      %s248 = scalar_lea.vmem %s0, %s247
      %s249 = smul.u32 32, %s19
      %p250 = scmp.lt.s32.totalorder %s20, 0
      %s251 = scalar_select %p250, %s20, 0
      %s252 = smul.addr %s251, 4
      %s253 = scalar_lea.vmem %s1, %s252
      %p254 = scmp.lt.s32.totalorder %s20, 0
      %s255 = scalar_select %p254, %s20, 0
      %s256 = scalar_lea.vmem %s2, %s255
      %p257 = scmp.lt.s32.totalorder %s20, 0
      %s258 = scalar_select %p257, %s20, 0
      %s259 = scalar_lea.vmem %s3, %s258
      %s260 = smul.u32 32, %s19
      %p261 = scmp.lt.s32.totalorder %s260, 63
      %s262 = scalar_select %p261, %s260, 63
      %p263 = scmp.lt.s32.totalorder %s20, 0
      %s264 = scalar_select %p263, %s20, 0
      %s265 = sadd.s32 %s264, %s262
      %s266 = smul.addr %s265, 4
      %s267 = scalar_lea.vmem %s4, %s266
      %s268 = smul.u32 32, %s19
      %v270 = vld [vmem:[%s248] sm:$0xff]
      %v271 = vld [vmem:[%s248 + $0x8] sm:$0xff]
      %v272 = vld [vmem:[%s248 + $0x10] sm:$0xff]
      %v273 = vld [vmem:[%s248 + $0x18] sm:$0xff]
      %v274 = vld [vmem:[%s248 + $0x20] sm:$0xff]
      %v275 = vld [vmem:[%s248 + $0x28] sm:$0xff]
      %v276 = vld [vmem:[%s248 + $0x30] sm:$0xff]
      %v277 = vld [vmem:[%s248 + $0x38] sm:$0xff]
      %v278 = vld [vmem:[%s248 + $0x40] sm:$0xff]
      %v279 = vld [vmem:[%s248 + $0x48] sm:$0xff]
      %v280 = vld [vmem:[%s248 + $0x50] sm:$0xff]
      %v281 = vld [vmem:[%s248 + $0x58] sm:$0xff]
      %v282 = vld [vmem:[%s248 + $0x60] sm:$0xff]
      %v283 = vld [vmem:[%s248 + $0x68] sm:$0xff]
      %v284 = vld [vmem:[%s248 + $0x70] sm:$0xff]
      %v285 = vld [vmem:[%s248 + $0x78] sm:$0xff]
      %v286 = vld [vmem:[%s248 + $0x80] sm:$0xff]
      %v287 = vld [vmem:[%s248 + $0x88] sm:$0xff]
      %v288 = vld [vmem:[%s248 + $0x90] sm:$0xff]
      %v289 = vld [vmem:[%s248 + $0x98] sm:$0xff]
      %v290 = vld [vmem:[%s248 + $0xa0] sm:$0xff]
      %v291 = vld [vmem:[%s248 + $0xa8] sm:$0xff]
      %v292 = vld [vmem:[%s248 + $0xb0] sm:$0xff]
      %v293 = vld [vmem:[%s248 + $0xb8] sm:$0xff]
      %v294 = vld [vmem:[%s248 + $0xc0] sm:$0xff]
      %v295 = vld [vmem:[%s248 + $0xc8] sm:$0xff]
      %v296 = vld [vmem:[%s248 + $0xd0] sm:$0xff]
      %v297 = vld [vmem:[%s248 + $0xd8] sm:$0xff]
      %v298 = vld [vmem:[%s248 + $0xe0] sm:$0xff]
      %v299 = vld [vmem:[%s248 + $0xe8] sm:$0xff]
      %v300 = vld [vmem:[%s248 + $0xf0] sm:$0xff]
      %v301 = vld [vmem:[%s248 + $0xf8] sm:$0xff]
      %v302 = vld [vmem:[%s253] sm:$0xf]
      %v303 = vld [vmem:[%s253 + $0x4] sm:$0xf]
      %v304 = vld [vmem:[%s253 + $0x8] sm:$0xf]
      %v305 = vld [vmem:[%s253 + $0xc] sm:$0xf]
      %v306 = vld [vmem:[%s253 + $0x10] sm:$0xf]
      %v307 = vld [vmem:[%s253 + $0x14] sm:$0xf]
      %v308 = vld [vmem:[%s253 + $0x18] sm:$0xf]
      %v309 = vld [vmem:[%s253 + $0x1c] sm:$0xf]
      %v310 = vld [vmem:[%s253 + $0x20] sm:$0xf]
      %v311 = vld [vmem:[%s253 + $0x24] sm:$0xf]
      %v312 = vld [vmem:[%s253 + $0x28] sm:$0xf]
      %v313 = vld [vmem:[%s253 + $0x2c] sm:$0xf]
      %v314 = vld [vmem:[%s253 + $0x30] sm:$0xf]
      %v315 = vld [vmem:[%s253 + $0x34] sm:$0xf]
      %v316 = vld [vmem:[%s253 + $0x38] sm:$0xf]
      %v317 = vld [vmem:[%s253 + $0x3c] sm:$0xf]
      %v318 = vld [vmem:[%s253 + $0x40] sm:$0xf]
      %v319 = vld [vmem:[%s253 + $0x44] sm:$0xf]
      %v320 = vld [vmem:[%s253 + $0x48] sm:$0xf]
      %v321 = vld [vmem:[%s253 + $0x4c] sm:$0xf]
      %v322 = vld [vmem:[%s253 + $0x50] sm:$0xf]
      %v323 = vld [vmem:[%s253 + $0x54] sm:$0xf]
      %v324 = vld [vmem:[%s253 + $0x58] sm:$0xf]
      %v325 = vld [vmem:[%s253 + $0x5c] sm:$0xf]
      %v326 = vld [vmem:[%s253 + $0x60] sm:$0xf]
      %v327 = vld [vmem:[%s253 + $0x64] sm:$0xf]
      %v328 = vld [vmem:[%s253 + $0x68] sm:$0xf]
      %v329 = vld [vmem:[%s253 + $0x6c] sm:$0xf]
      %v330 = vld [vmem:[%s253 + $0x70] sm:$0xf]
      %v331 = vld [vmem:[%s253 + $0x74] sm:$0xf]
      %v332 = vld [vmem:[%s253 + $0x78] sm:$0xf]
      %v333 = vld [vmem:[%s253 + $0x7c] sm:$0xf]
      %v366 = vunpack.c.l.b16 %v270
      %v367 = vunpack.c.h.b16 %v270
      %v368 = vunpack.c.l.b16 %v271
      %v369 = vunpack.c.h.b16 %v271
      %v370 = vunpack.c.l.b16 %v272
      %v371 = vunpack.c.h.b16 %v272
      %v372 = vunpack.c.l.b16 %v273
      %v373 = vunpack.c.h.b16 %v273
      %v374 = vunpack.c.l.b16 %v274
      %v375 = vunpack.c.h.b16 %v274
      %v376 = vunpack.c.l.b16 %v275
      %v377 = vunpack.c.h.b16 %v275
      %v378 = vunpack.c.l.b16 %v276
      %v379 = vunpack.c.h.b16 %v276
      %v380 = vunpack.c.l.b16 %v277
      %v381 = vunpack.c.h.b16 %v277
      %v382 = vunpack.c.l.b16 %v278
      %v383 = vunpack.c.h.b16 %v278
      %v384 = vunpack.c.l.b16 %v279
      %v385 = vunpack.c.h.b16 %v279
      %v386 = vunpack.c.l.b16 %v280
      %v387 = vunpack.c.h.b16 %v280
      %v388 = vunpack.c.l.b16 %v281
      %v389 = vunpack.c.h.b16 %v281
      %v390 = vunpack.c.l.b16 %v282
      %v391 = vunpack.c.h.b16 %v282
      %v392 = vunpack.c.l.b16 %v283
      %v393 = vunpack.c.h.b16 %v283
      %v394 = vunpack.c.l.b16 %v284
      %v395 = vunpack.c.h.b16 %v284
      %v396 = vunpack.c.l.b16 %v285
      %v397 = vunpack.c.h.b16 %v285
      %v398 = vunpack.c.l.b16 %v286
      %v399 = vunpack.c.h.b16 %v286
      %v400 = vunpack.c.l.b16 %v287
      %v401 = vunpack.c.h.b16 %v287
      %v402 = vunpack.c.l.b16 %v288
      %v403 = vunpack.c.h.b16 %v288
      %v404 = vunpack.c.l.b16 %v289
      %v405 = vunpack.c.h.b16 %v289
      %v406 = vunpack.c.l.b16 %v290
      %v407 = vunpack.c.h.b16 %v290
      %v408 = vunpack.c.l.b16 %v291
      %v409 = vunpack.c.h.b16 %v291
      %v410 = vunpack.c.l.b16 %v292
      %v411 = vunpack.c.h.b16 %v292
      %v412 = vunpack.c.l.b16 %v293
      %v413 = vunpack.c.h.b16 %v293
      %v414 = vunpack.c.l.b16 %v294
      %v415 = vunpack.c.h.b16 %v294
      %v416 = vunpack.c.l.b16 %v295
      %v417 = vunpack.c.h.b16 %v295
      %v418 = vunpack.c.l.b16 %v296
      %v419 = vunpack.c.h.b16 %v296
      %v420 = vunpack.c.l.b16 %v297
      %v421 = vunpack.c.h.b16 %v297
      %v422 = vunpack.c.l.b16 %v298
      %v423 = vunpack.c.h.b16 %v298
      %v424 = vunpack.c.l.b16 %v299
      %v425 = vunpack.c.h.b16 %v299
      %v426 = vunpack.c.l.b16 %v300
      %v427 = vunpack.c.h.b16 %v300
      %v428 = vunpack.c.l.b16 %v301
      %v429 = vunpack.c.h.b16 %v301
      %v430 = vpack.c.b16 %v368, %v366
      %v431 = vpack.c.b16 %v369, %v367
      %v432 = vpack.c.b16 %v372, %v370
      %v433 = vpack.c.b16 %v373, %v371
      %v434 = vpack.c.b16 %v376, %v374
      %v435 = vpack.c.b16 %v377, %v375
      %v436 = vpack.c.b16 %v380, %v378
      %v437 = vpack.c.b16 %v381, %v379
      %v438 = vpack.c.b16 %v384, %v382
      %v439 = vpack.c.b16 %v385, %v383
      %v440 = vpack.c.b16 %v388, %v386
      %v441 = vpack.c.b16 %v389, %v387
      %v442 = vpack.c.b16 %v392, %v390
      %v443 = vpack.c.b16 %v393, %v391
      %v444 = vpack.c.b16 %v396, %v394
      %v445 = vpack.c.b16 %v397, %v395
      %v446 = vpack.c.b16 %v400, %v398
      %v447 = vpack.c.b16 %v401, %v399
      %v448 = vpack.c.b16 %v404, %v402
      %v449 = vpack.c.b16 %v405, %v403
      %v450 = vpack.c.b16 %v408, %v406
      %v451 = vpack.c.b16 %v409, %v407
      %v452 = vpack.c.b16 %v412, %v410
      %v453 = vpack.c.b16 %v413, %v411
      %v454 = vpack.c.b16 %v416, %v414
      %v455 = vpack.c.b16 %v417, %v415
      %v456 = vpack.c.b16 %v420, %v418
      %v457 = vpack.c.b16 %v421, %v419
      %v458 = vpack.c.b16 %v424, %v422
      %v459 = vpack.c.b16 %v425, %v423
      %v460 = vpack.c.b16 %v428, %v426
      %v461 = vpack.c.b16 %v429, %v427
      %v526 = vunpack.c.l.b16 %v302
      %v527 = vunpack.c.l.b16 %v303
      %v528 = vunpack.c.l.b16 %v304
      %v529 = vunpack.c.l.b16 %v305
      %v530 = vunpack.c.l.b16 %v306
      %v531 = vunpack.c.l.b16 %v307
      %v532 = vunpack.c.l.b16 %v308
      %v533 = vunpack.c.l.b16 %v309
      %v534 = vunpack.c.l.b16 %v310
      %v535 = vunpack.c.l.b16 %v311
      %v536 = vunpack.c.l.b16 %v312
      %v537 = vunpack.c.l.b16 %v313
      %v538 = vunpack.c.l.b16 %v314
      %v539 = vunpack.c.l.b16 %v315
      %v540 = vunpack.c.l.b16 %v316
      %v541 = vunpack.c.l.b16 %v317
      %v542 = vunpack.c.l.b16 %v318
      %v543 = vunpack.c.l.b16 %v319
      %v544 = vunpack.c.l.b16 %v320
      %v545 = vunpack.c.l.b16 %v321
      %v546 = vunpack.c.l.b16 %v322
      %v547 = vunpack.c.l.b16 %v323
      %v548 = vunpack.c.l.b16 %v324
      %v549 = vunpack.c.l.b16 %v325
      %v550 = vunpack.c.l.b16 %v326
      %v551 = vunpack.c.l.b16 %v327
      %v552 = vunpack.c.l.b16 %v328
      %v553 = vunpack.c.l.b16 %v329
      %v554 = vunpack.c.l.b16 %v330
      %v555 = vunpack.c.l.b16 %v331
      %v556 = vunpack.c.l.b16 %v332
      %v557 = vunpack.c.l.b16 %v333
      %v558 = vpack.c.b16 %v527, %v526
      %v559 = vpack.c.b16 %v529, %v528
      %v560 = vpack.c.b16 %v531, %v530
      %v561 = vpack.c.b16 %v533, %v532
      %v562 = vpack.c.b16 %v535, %v534
      %v563 = vpack.c.b16 %v537, %v536
      %v564 = vpack.c.b16 %v539, %v538
      %v565 = vpack.c.b16 %v541, %v540
      %v566 = vpack.c.b16 %v543, %v542
      %v567 = vpack.c.b16 %v545, %v544
      %v568 = vpack.c.b16 %v547, %v546
      %v569 = vpack.c.b16 %v549, %v548
      %v570 = vpack.c.b16 %v551, %v550
      %v571 = vpack.c.b16 %v553, %v552
      %v572 = vpack.c.b16 %v555, %v554
      %v573 = vpack.c.b16 %v557, %v556
      %590 = vmatprep.subr.bf16.mxu0 0
      %591 = vmatpush1.bf16.msra.mxu0 %v558
      %592 = vmatprep.subr.bf16.mxu0 0
      %593 = vmatpush1.bf16.msra.mxu0 %v559
      %594 = vmatprep.subr.bf16.mxu0 0
      %595 = vmatpush1.bf16.msra.mxu0 %v560
      %596 = vmatprep.subr.bf16.mxu0 0
      %597 = vmatpush1.bf16.msra.mxu0 %v561
      %598 = vmatprep.subr.bf16.mxu0 0
      %599 = vmatpush1.bf16.msra.mxu0 %v562
      %600 = vmatprep.subr.bf16.mxu0 0
      %601 = vmatpush1.bf16.msra.mxu0 %v563
      %602 = vmatprep.subr.bf16.mxu0 0
      %603 = vmatpush1.bf16.msra.mxu0 %v564
      %604 = vmatprep.subr.bf16.mxu0 0
      %605 = vmatpush1.bf16.msra.mxu0 %v565
      %606 = vmatprep.subr.bf16.mxu0 0
      %607 = vmatpush1.bf16.msra.mxu0 %v566
      %608 = vmatprep.subr.bf16.mxu0 0
      %609 = vmatpush1.bf16.msra.mxu0 %v567
      %610 = vmatprep.subr.bf16.mxu0 0
      %611 = vmatpush1.bf16.msra.mxu0 %v568
      %612 = vmatprep.subr.bf16.mxu0 0
      %613 = vmatpush1.bf16.msra.mxu0 %v569
      %614 = vmatprep.subr.bf16.mxu0 0
      %615 = vmatpush1.bf16.msra.mxu0 %v570
      %616 = vmatprep.subr.bf16.mxu0 0
      %617 = vmatpush1.bf16.msra.mxu0 %v571
      %618 = vmatprep.subr.bf16.mxu0 0
      %619 = vmatpush1.bf16.msra.mxu0 %v572
      %620 = vmatprep.subr.bf16.mxu0 0
      %621 = vmatpush1.bf16.msra.mxu0 %v573
      %622 = vmatprep.mubr.bf16.mxu0 %v431
      %623 = vmatmul.mubr.bf16.gmra.mrb[0].mxu0 %v430
      %v624 = vpop.f32.mrb[0].mxu0
      %v625 = vadd.f32 0.0, %v624
      %v626 = vpop.f32.mrb[0].mxu0
      %v627 = vpop.f32.mrb[0].mxu0
      %v628 = vadd.f32 0.0, %v627
      %v629 = vpop.f32.mrb[0].mxu0
      %630 = vmatprep.mubr.bf16.mxu0 %v433
      %631 = vmatmul.mubr.bf16.gmra.mrb[0].mxu0 %v432
      %v632 = vpop.f32.mrb[0].mxu0
      %v633 = vadd.f32 0.0, %v632
      %v634 = vpop.f32.mrb[0].mxu0
      %v635 = vpop.f32.mrb[0].mxu0
      %v636 = vadd.f32 0.0, %v635
      %v637 = vpop.f32.mrb[0].mxu0
      %638 = vmatprep.mubr.bf16.mxu0 %v435
      %639 = vmatmul.mubr.bf16.gmra.mrb[0].mxu0 %v434
      %v640 = vpop.f32.mrb[0].mxu0
      %v641 = vadd.f32 0.0, %v640
      %v642 = vpop.f32.mrb[0].mxu0
      %v643 = vpop.f32.mrb[0].mxu0
      %v644 = vadd.f32 0.0, %v643
      %v645 = vpop.f32.mrb[0].mxu0
      %646 = vmatprep.mubr.bf16.mxu0 %v437
      %647 = vmatmul.mubr.bf16.gmra.mrb[0].mxu0 %v436
      %v648 = vpop.f32.mrb[0].mxu0
      %v649 = vadd.f32 0.0, %v648
      %v650 = vpop.f32.mrb[0].mxu0
      %v651 = vpop.f32.mrb[0].mxu0
      %v652 = vadd.f32 0.0, %v651
      %v653 = vpop.f32.mrb[0].mxu0
      %654 = vmatprep.mubr.bf16.mxu0 %v439
      %655 = vmatmul.mubr.bf16.gmra.mrb[0].mxu0 %v438
      %v656 = vpop.f32.mrb[0].mxu0
      %v657 = vadd.f32 0.0, %v656
      %v658 = vpop.f32.mrb[0].mxu0
      %v659 = vpop.f32.mrb[0].mxu0
      %v660 = vadd.f32 0.0, %v659
      %v661 = vpop.f32.mrb[0].mxu0
      %662 = vmatprep.mubr.bf16.mxu0 %v441
      %663 = vmatmul.mubr.bf16.gmra.mrb[0].mxu0 %v440
      %v664 = vpop.f32.mrb[0].mxu0
      %v665 = vadd.f32 0.0, %v664
      %v666 = vpop.f32.mrb[0].mxu0
      %v667 = vpop.f32.mrb[0].mxu0
      %v668 = vadd.f32 0.0, %v667
      %v669 = vpop.f32.mrb[0].mxu0
      %670 = vmatprep.mubr.bf16.mxu0 %v443
      %671 = vmatmul.mubr.bf16.gmra.mrb[0].mxu0 %v442
      %v672 = vpop.f32.mrb[0].mxu0
      %v673 = vadd.f32 0.0, %v672
      %v674 = vpop.f32.mrb[0].mxu0
      %v675 = vpop.f32.mrb[0].mxu0
      %v676 = vadd.f32 0.0, %v675
      %v677 = vpop.f32.mrb[0].mxu0
      %678 = vmatprep.mubr.bf16.mxu0 %v445
      %679 = vmatmul.mubr.bf16.gmra.mrb[0].mxu0 %v444
      %v680 = vpop.f32.mrb[0].mxu0
      %v681 = vadd.f32 0.0, %v680
      %v682 = vpop.f32.mrb[0].mxu0
      %v683 = vpop.f32.mrb[0].mxu0
      %v684 = vadd.f32 0.0, %v683
      %v685 = vpop.f32.mrb[0].mxu0
      %686 = vmatprep.mubr.bf16.mxu0 %v447
      %687 = vmatmul.mubr.bf16.gmra.mrb[0].mxu0 %v446
      %v688 = vpop.f32.mrb[0].mxu0
      %v689 = vadd.f32 0.0, %v688
      %v690 = vpop.f32.mrb[0].mxu0
      %v691 = vpop.f32.mrb[0].mxu0
      %v692 = vadd.f32 0.0, %v691
      %v693 = vpop.f32.mrb[0].mxu0
      %694 = vmatprep.mubr.bf16.mxu0 %v449
      %695 = vmatmul.mubr.bf16.gmra.mrb[0].mxu0 %v448
      %v696 = vpop.f32.mrb[0].mxu0
      %v697 = vadd.f32 0.0, %v696
      %v698 = vpop.f32.mrb[0].mxu0
      %v699 = vpop.f32.mrb[0].mxu0
      %v700 = vadd.f32 0.0, %v699
      %v701 = vpop.f32.mrb[0].mxu0
      %702 = vmatprep.mubr.bf16.mxu0 %v451
      %703 = vmatmul.mubr.bf16.gmra.mrb[0].mxu0 %v450
      %v704 = vpop.f32.mrb[0].mxu0
      %v705 = vadd.f32 0.0, %v704
      %v706 = vpop.f32.mrb[0].mxu0
      %v707 = vpop.f32.mrb[0].mxu0
      %v708 = vadd.f32 0.0, %v707
      %v709 = vpop.f32.mrb[0].mxu0
      %710 = vmatprep.mubr.bf16.mxu0 %v453
      %711 = vmatmul.mubr.bf16.gmra.mrb[0].mxu0 %v452
      %v712 = vpop.f32.mrb[0].mxu0
      %v713 = vadd.f32 0.0, %v712
      %v714 = vpop.f32.mrb[0].mxu0
      %v715 = vpop.f32.mrb[0].mxu0
      %v716 = vadd.f32 0.0, %v715
      %v717 = vpop.f32.mrb[0].mxu0
      %718 = vmatprep.mubr.bf16.mxu0 %v455
      %719 = vmatmul.mubr.bf16.gmra.mrb[0].mxu0 %v454
      %v720 = vpop.f32.mrb[0].mxu0
      %v721 = vadd.f32 0.0, %v720
      %v722 = vpop.f32.mrb[0].mxu0
      %v723 = vpop.f32.mrb[0].mxu0
      %v724 = vadd.f32 0.0, %v723
      %v725 = vpop.f32.mrb[0].mxu0
      %726 = vmatprep.mubr.bf16.mxu0 %v457
      %727 = vmatmul.mubr.bf16.gmra.mrb[0].mxu0 %v456
      %v728 = vpop.f32.mrb[0].mxu0
      %v729 = vadd.f32 0.0, %v728
      %v730 = vpop.f32.mrb[0].mxu0
      %v731 = vpop.f32.mrb[0].mxu0
      %v732 = vadd.f32 0.0, %v731
      %v733 = vpop.f32.mrb[0].mxu0
      %734 = vmatprep.mubr.bf16.mxu0 %v459
      %735 = vmatmul.mubr.bf16.gmra.mrb[0].mxu0 %v458
      %v736 = vpop.f32.mrb[0].mxu0
      %v737 = vadd.f32 0.0, %v736
      %v738 = vpop.f32.mrb[0].mxu0
      %v739 = vpop.f32.mrb[0].mxu0
      %v740 = vadd.f32 0.0, %v739
      %v741 = vpop.f32.mrb[0].mxu0
      %742 = vmatprep.mubr.bf16.mxu0 %v461
      %743 = vmatmul.mubr.bf16.gmra.mrb[0].mxu0 %v460
      %v744 = vpop.f32.mrb[0].mxu0
      %v745 = vadd.f32 0.0, %v744
      %v746 = vpop.f32.mrb[0].mxu0
      %v747 = vpop.f32.mrb[0].mxu0
      %v748 = vadd.f32 0.0, %v747
      %v749 = vpop.f32.mrb[0].mxu0
      %750 = vdwg.mxu0
      %v751 = vld [vmem:[%s256] sm:$0x1]
      %v753 = vlaneseq
      %v754 = vshrl.u32 %v753, 7
      %v755 = vsub.s32 0, %v754
      %v756 = vrot.slane %v751, %v755
      %v758 = vmul.f32 %v625, %v756
      %v759 = vmul.f32 %v628, %v756
      %v760 = vmul.f32 %v633, %v756
      %v761 = vmul.f32 %v636, %v756
      %v762 = vmul.f32 %v641, %v756
      %v763 = vmul.f32 %v644, %v756
      %v764 = vmul.f32 %v649, %v756
      %v765 = vmul.f32 %v652, %v756
      %v766 = vmul.f32 %v657, %v756
      %v767 = vmul.f32 %v660, %v756
      %v768 = vmul.f32 %v665, %v756
      %v769 = vmul.f32 %v668, %v756
      %v770 = vmul.f32 %v673, %v756
      %v771 = vmul.f32 %v676, %v756
      %v772 = vmul.f32 %v681, %v756
      %v773 = vmul.f32 %v684, %v756
      %v774 = vmul.f32 %v689, %v756
      %v775 = vmul.f32 %v692, %v756
      %v776 = vmul.f32 %v697, %v756
      %v777 = vmul.f32 %v700, %v756
      %v778 = vmul.f32 %v705, %v756
      %v779 = vmul.f32 %v708, %v756
      %v780 = vmul.f32 %v713, %v756
      %v781 = vmul.f32 %v716, %v756
      %v782 = vmul.f32 %v721, %v756
      %v783 = vmul.f32 %v724, %v756
      %v784 = vmul.f32 %v729, %v756
      %v785 = vmul.f32 %v732, %v756
      %v786 = vmul.f32 %v737, %v756
      %v787 = vmul.f32 %v740, %v756
      %v788 = vmul.f32 %v745, %v756
      %v789 = vmul.f32 %v748, %v756
      %v790 = vld [vmem:[%s259] sm:$0x1]
      %v792 = vlaneseq
      %v793 = vshrl.u32 %v792, 7
      %v794 = vsub.s32 0, %v793
      %v795 = vrot.slane %v790, %v794
      %v797 = vadd.f32 %v758, %v795
      %v798 = vadd.f32 %v759, %v795
      %v799 = vadd.f32 %v760, %v795
      %v800 = vadd.f32 %v761, %v795
      %v801 = vadd.f32 %v762, %v795
      %v802 = vadd.f32 %v763, %v795
      %v803 = vadd.f32 %v764, %v795
      %v804 = vadd.f32 %v765, %v795
      %v805 = vadd.f32 %v766, %v795
      %v806 = vadd.f32 %v767, %v795
      %v807 = vadd.f32 %v768, %v795
      %v808 = vadd.f32 %v769, %v795
      %v809 = vadd.f32 %v770, %v795
      %v810 = vadd.f32 %v771, %v795
      %v811 = vadd.f32 %v772, %v795
      %v812 = vadd.f32 %v773, %v795
      %v813 = vadd.f32 %v774, %v795
      %v814 = vadd.f32 %v775, %v795
      %v815 = vadd.f32 %v776, %v795
      %v816 = vadd.f32 %v777, %v795
      %v817 = vadd.f32 %v778, %v795
      %v818 = vadd.f32 %v779, %v795
      %v819 = vadd.f32 %v780, %v795
      %v820 = vadd.f32 %v781, %v795
      %v821 = vadd.f32 %v782, %v795
      %v822 = vadd.f32 %v783, %v795
      %v823 = vadd.f32 %v784, %v795
      %v824 = vadd.f32 %v785, %v795
      %v825 = vadd.f32 %v786, %v795
      %v826 = vadd.f32 %v787, %v795
      %v827 = vadd.f32 %v788, %v795
      %v828 = vadd.f32 %v789, %v795
      %v829 = vmax.f32 %v797, 0.0
      %v830 = vmax.f32 %v798, 0.0
      %v831 = vmax.f32 %v799, 0.0
      %v832 = vmax.f32 %v800, 0.0
      %v833 = vmax.f32 %v801, 0.0
      %v834 = vmax.f32 %v802, 0.0
      %v835 = vmax.f32 %v803, 0.0
      %v836 = vmax.f32 %v804, 0.0
      %v837 = vmax.f32 %v805, 0.0
      %v838 = vmax.f32 %v806, 0.0
      %v839 = vmax.f32 %v807, 0.0
      %v840 = vmax.f32 %v808, 0.0
      %v841 = vmax.f32 %v809, 0.0
      %v842 = vmax.f32 %v810, 0.0
      %v843 = vmax.f32 %v811, 0.0
      %v844 = vmax.f32 %v812, 0.0
      %v845 = vmax.f32 %v813, 0.0
      %v846 = vmax.f32 %v814, 0.0
      %v847 = vmax.f32 %v815, 0.0
      %v848 = vmax.f32 %v816, 0.0
      %v849 = vmax.f32 %v817, 0.0
      %v850 = vmax.f32 %v818, 0.0
      %v851 = vmax.f32 %v819, 0.0
      %v852 = vmax.f32 %v820, 0.0
      %v853 = vmax.f32 %v821, 0.0
      %v854 = vmax.f32 %v822, 0.0
      %v855 = vmax.f32 %v823, 0.0
      %v856 = vmax.f32 %v824, 0.0
      %v857 = vmax.f32 %v825, 0.0
      %v858 = vmax.f32 %v826, 0.0
      %v859 = vmax.f32 %v827, 0.0
      %v860 = vmax.f32 %v828, 0.0
      %v861 = vpack.c.bf16 %v830, %v829
      %v862 = vpack.c.bf16 %v832, %v831
      %v863 = vpack.c.bf16 %v834, %v833
      %v864 = vpack.c.bf16 %v836, %v835
      %v865 = vpack.c.bf16 %v838, %v837
      %v866 = vpack.c.bf16 %v840, %v839
      %v867 = vpack.c.bf16 %v842, %v841
      %v868 = vpack.c.bf16 %v844, %v843
      %v869 = vpack.c.bf16 %v846, %v845
      %v870 = vpack.c.bf16 %v848, %v847
      %v871 = vpack.c.bf16 %v850, %v849
      %v872 = vpack.c.bf16 %v852, %v851
      %v873 = vpack.c.bf16 %v854, %v853
      %v874 = vpack.c.bf16 %v856, %v855
      %v875 = vpack.c.bf16 %v858, %v857
      %v876 = vpack.c.bf16 %v860, %v859
      %v893 = vunpack.c.l.b16 %v861
      %v894 = vunpack.c.h.b16 %v861
      %v895 = vunpack.c.l.b16 %v862
      %v896 = vunpack.c.h.b16 %v862
      %v897 = vunpack.c.l.b16 %v863
      %v898 = vunpack.c.h.b16 %v863
      %v899 = vunpack.c.l.b16 %v864
      %v900 = vunpack.c.h.b16 %v864
      %v901 = vunpack.c.l.b16 %v865
      %v902 = vunpack.c.h.b16 %v865
      %v903 = vunpack.c.l.b16 %v866
      %v904 = vunpack.c.h.b16 %v866
      %v905 = vunpack.c.l.b16 %v867
      %v906 = vunpack.c.h.b16 %v867
      %v907 = vunpack.c.l.b16 %v868
      %v908 = vunpack.c.h.b16 %v868
      %v909 = vunpack.c.l.b16 %v869
      %v910 = vunpack.c.h.b16 %v869
      %v911 = vunpack.c.l.b16 %v870
      %v912 = vunpack.c.h.b16 %v870
      %v913 = vunpack.c.l.b16 %v871
      %v914 = vunpack.c.h.b16 %v871
      %v915 = vunpack.c.l.b16 %v872
      %v916 = vunpack.c.h.b16 %v872
      %v917 = vunpack.c.l.b16 %v873
      %v918 = vunpack.c.h.b16 %v873
      %v919 = vunpack.c.l.b16 %v874
      %v920 = vunpack.c.h.b16 %v874
      %v921 = vunpack.c.l.b16 %v875
      %v922 = vunpack.c.h.b16 %v875
      %v923 = vunpack.c.l.b16 %v876
      %v924 = vunpack.c.h.b16 %v876
      %v925 = vpack.c.b16 %v893, %v893
      %v926 = vpack.c.b16 %v894, %v894
      %v927 = vpack.c.b16 %v895, %v895
      %v928 = vpack.c.b16 %v896, %v896
      %v929 = vpack.c.b16 %v897, %v897
      %v930 = vpack.c.b16 %v898, %v898
      %v931 = vpack.c.b16 %v899, %v899
      %v932 = vpack.c.b16 %v900, %v900
      %v933 = vpack.c.b16 %v901, %v901
      %v934 = vpack.c.b16 %v902, %v902
      %v935 = vpack.c.b16 %v903, %v903
      %v936 = vpack.c.b16 %v904, %v904
      %v937 = vpack.c.b16 %v905, %v905
      %v938 = vpack.c.b16 %v906, %v906
      %v939 = vpack.c.b16 %v907, %v907
      %v940 = vpack.c.b16 %v908, %v908
      %v941 = vpack.c.b16 %v909, %v909
      %v942 = vpack.c.b16 %v910, %v910
      %v943 = vpack.c.b16 %v911, %v911
      %v944 = vpack.c.b16 %v912, %v912
      %v945 = vpack.c.b16 %v913, %v913
      %v946 = vpack.c.b16 %v914, %v914
      %v947 = vpack.c.b16 %v915, %v915
      %v948 = vpack.c.b16 %v916, %v916
      %v949 = vpack.c.b16 %v917, %v917
      %v950 = vpack.c.b16 %v918, %v918
      %v951 = vpack.c.b16 %v919, %v919
      %v952 = vpack.c.b16 %v920, %v920
      %v953 = vpack.c.b16 %v921, %v921
      %v954 = vpack.c.b16 %v922, %v922
      %v955 = vpack.c.b16 %v923, %v923
      %v956 = vpack.c.b16 %v924, %v924
      %989 = vst [vmem:[%s267] sm:$0xf] %v925
      %990 = vst [vmem:[%s267 + $0x4] sm:$0xf] %v926
      %991 = vst [vmem:[%s267 + $0x8] sm:$0xf] %v927
      %992 = vst [vmem:[%s267 + $0xc] sm:$0xf] %v928
      %993 = vst [vmem:[%s267 + $0x10] sm:$0xf] %v929
      %994 = vst [vmem:[%s267 + $0x14] sm:$0xf] %v930
      %995 = vst [vmem:[%s267 + $0x18] sm:$0xf] %v931
      %996 = vst [vmem:[%s267 + $0x1c] sm:$0xf] %v932
      %997 = vst [vmem:[%s267 + $0x20] sm:$0xf] %v933
      %998 = vst [vmem:[%s267 + $0x24] sm:$0xf] %v934
      %999 = vst [vmem:[%s267 + $0x28] sm:$0xf] %v935
      %1000 = vst [vmem:[%s267 + $0x2c] sm:$0xf] %v936
      %1001 = vst [vmem:[%s267 + $0x30] sm:$0xf] %v937
      %1002 = vst [vmem:[%s267 + $0x34] sm:$0xf] %v938
      %1003 = vst [vmem:[%s267 + $0x38] sm:$0xf] %v939
      %1004 = vst [vmem:[%s267 + $0x3c] sm:$0xf] %v940
      %1005 = vst [vmem:[%s267 + $0x40] sm:$0xf] %v941
      %1006 = vst [vmem:[%s267 + $0x44] sm:$0xf] %v942
      %1007 = vst [vmem:[%s267 + $0x48] sm:$0xf] %v943
      %1008 = vst [vmem:[%s267 + $0x4c] sm:$0xf] %v944
      %1009 = vst [vmem:[%s267 + $0x50] sm:$0xf] %v945
      %1010 = vst [vmem:[%s267 + $0x54] sm:$0xf] %v946
      %1011 = vst [vmem:[%s267 + $0x58] sm:$0xf] %v947
      %1012 = vst [vmem:[%s267 + $0x5c] sm:$0xf] %v948
      %1013 = vst [vmem:[%s267 + $0x60] sm:$0xf] %v949
      %1014 = vst [vmem:[%s267 + $0x64] sm:$0xf] %v950
      %1015 = vst [vmem:[%s267 + $0x68] sm:$0xf] %v951
      %1016 = vst [vmem:[%s267 + $0x6c] sm:$0xf] %v952
      %1017 = vst [vmem:[%s267 + $0x70] sm:$0xf] %v953
      %1018 = vst [vmem:[%s267 + $0x74] sm:$0xf] %v954
      %1019 = vst [vmem:[%s267 + $0x78] sm:$0xf] %v955
      %1020 = vst [vmem:[%s267 + $0x7c] sm:$0xf] %v956
      %s1021 = smul.u32 32, %s19
      %p1022 = scmp.lt.s32.totalorder %s1021, 63
      %s1023 = scalar_select %p1022, %s1021, 63
      %p1024 = scmp.lt.s32.totalorder %s20, 0
      %s1025 = scalar_select %p1024, %s20, 0
      %s1026 = sadd.s32 %s1025, %s1023
      %s1027 = smul.addr %s1026, 4
      %s1028 = scalar_lea.vmem %s4, %s1027
      // Predicated region
      $region37: #{_lambda_.9} parent=35 // pred_check
        %p1029 = pneg %p151
      $region38: #{_lambda_.9} parent=35 // pred_check_branch
        %1031 = sbr.rel (%p1029) target = $region40
      $region39: #{_lambda_.9} parent=35 // pred_region
        %s1032 = smul.u32 32, %s19
      $region40: #{_lambda_.9} parent=35 // pred_fallthru
        _
    $region36: #{_lambda_.9} parent=5 // pred_fallthru
      _
    %p1033 = scmp.le.s32.totalorder 2, %s10
    // Predicated region
    $region41: #{_lambda_.9} parent=5 // pred_check
      %p1034 = pneg %p1033
    $region42: #{_lambda_.9} parent=5 // pred_check_branch
      %1036 = sbr.rel (%p1034) target = $region44
    $region43: #{_lambda_.9} parent=5 // pred_region
      %s1037 = ssub.s32 %s10, 2
      // Predicated region
      $region45: #{_lambda_.9} parent=43 // pred_check
        %p1038 = pneg %p157
      $region46: #{_lambda_.9} parent=43 // pred_check_branch
        %1040 = sbr.rel (%p1038) target = $region48
      $region47: #{_lambda_.9} parent=43 // pred_region
        %s1041 = smul.u32 32, %s21
        %p1042 = scmp.lt.s32.totalorder %s1041, 63
        %s1043 = scalar_select %p1042, %s1041, 63
        %p1044 = scmp.lt.s32.totalorder %s22, 0
        %s1045 = scalar_select %p1044, %s22, 0
        %s1046 = sadd.s32 %s1045, %s1043
        %s1047 = smul.addr %s1046, 4
        %s1048 = scalar_lea.vmem %s4, %s1047
      $region48: #{_lambda_.9} parent=43 // pred_fallthru
        _
    $region44: #{_lambda_.9} parent=5 // pred_fallthru
      _
  $region6: #{_lambda_.9} parent=0 // loop_footer
    %s14 = sadd.s32 1, %s10
  $region7: #{_lambda_.9} parent=0 // loop_footer_branch
    %9 = sbr.rel target = $region3
  $region8: #{_lambda_.9} parent=0 // loop_exit
    _

// kernel: _lambda_.10
$region0: #{_lambda_.10}
  #allocation0 [shape = 'u32[]', space=smem, size = 0x4, offset = 0x4, fixed_abs, tag = 'smem constant byte address 0x4 - core index']
  #allocation1 [shape = 'u32[144,128]{1,0:T(1,128)}', space=vmem, size = 0x12000, scoped, tag = 'internal scratch']
  %s0 = inlined_call_operand.vmem [shape: bf16[512,256], index: 0, kind: input, shape index: {}]
  %s1 = inlined_call_operand.vmem [shape: bf16[256,128], index: 1, kind: input, shape index: {}]
  %s2 = inlined_call_operand.vmem [shape: f32[1,128], index: 2, kind: input, shape index: {}]
  %s3 = inlined_call_operand.vmem [shape: f32[1,128], index: 3, kind: input, shape index: {}]
  %s4 = inlined_call_operand.vmem [shape: bf16[512,128], index: 4, kind: input, shape index: {}]
  %s5 = inlined_call_operand.vmem [shape: bf16[512,128], index: 5, kind: output, shape index: {}]
  %s6 = sld [smem:[#allocation0]]
  $region53: #{_lambda_.10} parent=0
    _
  %s8 = ssub.s32 1, %s6
  %s9 = scalar_select 0, %s8, %s6
  loop: start=0, step=1, limit=4
  $region2: #{_lambda_.10} parent=0 // loop_pre_header
    _
  $region3: #{_lambda_.10} parent=0 // loop_header
    %s11 = sphi 0, %s15
    %p12 = scmp.ge.s32.totalorder %s11, 4
    %s18 = sphi 0, %s30
    %s19 = sphi 0, %s26
    %s20 = sphi 0, %s18
    %s21 = sphi 0, %s19
    %s22 = sphi 0, %s20
    %s23 = sphi 0, %s21
    %s33 = sphi 0, %s35
    %s36 = sphi 0, %s33
    %s37 = sphi 0, %s36
    %s53 = sphi 0, %s37
    %s59 = sphi 0, %s61
    %s62 = sphi 0, %s59
    %s63 = sphi 0, %s62
    %s79 = sphi 0, %s63
    %s85 = sphi 0, %s87
    %s88 = sphi 0, %s85
    %s89 = sphi 0, %s88
    %s105 = sphi 0, %s89
    %s111 = sphi 0, %s113
    %s114 = sphi 0, %s111
    %s115 = sphi 0, %s114
    %s131 = sphi 0, %s115
    %s139 = sphi 0, %s141
    %s142 = sphi 0, %s139
    %s143 = sphi 0, %s142
    %s159 = sphi 0, %s143
    %s167 = sphi 0, %s169
    %s170 = sphi 0, %s167
    %s171 = sphi 0, %s170
    %s187 = sphi 0, %s171
  $region4: #{_lambda_.10} parent=0 // loop_header_branch
    %14 = sbr.rel (%p12) target = $region8
  $region5: #{_lambda_.10} parent=0 // loop_body
    %s16 = ssub.s32 %s11, 1
    %s17 = ssub.s32 %s11, 2
    %s24 = sadd.s32 1, %s19
    %p25 = scmp.ge.s32.totalorder %s24, 1
    %s26 = scalar_select %p25, 0, %s24
    %s27 = sadd.s32 1, %s18
    %s28 = scalar_select %p25, %s27, %s18
    %p29 = scmp.ge.s32.totalorder %s28, 2
    %s30 = scalar_select %p29, 0, %s28
    %s31 = ssub.s32 %s18, %s30
    %p32 = scmp.eq.s32.totalorder %s31, 0
    %s34 = sadd.s32 %s33, 1
    %s35 = scalar_select %p32, %s33, %s34
    %p38 = pneg %p32
    %p39 = scmp.eq.s32.totalorder %s11, 1
    %p40 = por %p38, %p39
    %p41 = scmp.ne.s32.totalorder %s33, %s36
    %p42 = scmp.eq.s32.totalorder %s11, 0
    %p43 = por %p41, %p42
    %p44 = scmp.ne.s32.totalorder %s33, %s36
    %p45 = scmp.eq.s32.totalorder %s16, 1
    %p46 = por %p44, %p45
    %p47 = scmp.ne.s32.totalorder %s36, %s37
    %p48 = scmp.eq.s32.totalorder %s16, 0
    %p49 = por %p47, %p48
    %p50 = scmp.ne.s32.totalorder %s36, %s37
    %p51 = scmp.eq.s32.totalorder %s17, 1
    %p52 = por %p50, %p51
    %p54 = scmp.ne.s32.totalorder %s37, %s53
    %p55 = scmp.eq.s32.totalorder %s17, 0
    %p56 = por %p54, %p55
    %s57 = ssub.s32 %s19, %s26
    %p58 = scmp.eq.s32.totalorder %s57, 0
    %s60 = sadd.s32 %s59, 1
    %s61 = scalar_select %p58, %s59, %s60
    %p64 = pneg %p58
    %p65 = scmp.eq.s32.totalorder %s11, 1
    %p66 = por %p64, %p65
    %p67 = scmp.ne.s32.totalorder %s59, %s62
    %p68 = scmp.eq.s32.totalorder %s11, 0
    %p69 = por %p67, %p68
    %p70 = scmp.ne.s32.totalorder %s59, %s62
    %p71 = scmp.eq.s32.totalorder %s16, 1
    %p72 = por %p70, %p71
    %p73 = scmp.ne.s32.totalorder %s62, %s63
    %p74 = scmp.eq.s32.totalorder %s16, 0
    %p75 = por %p73, %p74
    %p76 = scmp.ne.s32.totalorder %s62, %s63
    %p77 = scmp.eq.s32.totalorder %s17, 1
    %p78 = por %p76, %p77
    %p80 = scmp.ne.s32.totalorder %s63, %s79
    %p81 = scmp.eq.s32.totalorder %s17, 0
    %p82 = por %p80, %p81
    %s83 = ssub.s32 %s19, %s26
    %p84 = scmp.eq.s32.totalorder %s83, 0
    %s86 = sadd.s32 %s85, 1
    %s87 = scalar_select %p84, %s85, %s86
    %p90 = pneg %p84
    %p91 = scmp.eq.s32.totalorder %s11, 1
    %p92 = por %p90, %p91
    %p93 = scmp.ne.s32.totalorder %s85, %s88
    %p94 = scmp.eq.s32.totalorder %s11, 0
    %p95 = por %p93, %p94
    %p96 = scmp.ne.s32.totalorder %s85, %s88
    %p97 = scmp.eq.s32.totalorder %s16, 1
    %p98 = por %p96, %p97
    %p99 = scmp.ne.s32.totalorder %s88, %s89
    %p100 = scmp.eq.s32.totalorder %s16, 0
    %p101 = por %p99, %p100
    %p102 = scmp.ne.s32.totalorder %s88, %s89
    %p103 = scmp.eq.s32.totalorder %s17, 1
    %p104 = por %p102, %p103
    %p106 = scmp.ne.s32.totalorder %s89, %s105
    %p107 = scmp.eq.s32.totalorder %s17, 0
    %p108 = por %p106, %p107
    %s109 = ssub.s32 %s19, %s26
    %p110 = scmp.eq.s32.totalorder %s109, 0
    %s112 = sadd.s32 %s111, 1
    %s113 = scalar_select %p110, %s111, %s112
    %p116 = pneg %p110
    %p117 = scmp.eq.s32.totalorder %s11, 1
    %p118 = por %p116, %p117
    %p119 = scmp.ne.s32.totalorder %s111, %s114
    %p120 = scmp.eq.s32.totalorder %s11, 0
    %p121 = por %p119, %p120
    %p122 = scmp.ne.s32.totalorder %s111, %s114
    %p123 = scmp.eq.s32.totalorder %s16, 1
    %p124 = por %p122, %p123
    %p125 = scmp.ne.s32.totalorder %s114, %s115
    %p126 = scmp.eq.s32.totalorder %s16, 0
    %p127 = por %p125, %p126
    %p128 = scmp.ne.s32.totalorder %s114, %s115
    %p129 = scmp.eq.s32.totalorder %s17, 1
    %p130 = por %p128, %p129
    %p132 = scmp.ne.s32.totalorder %s115, %s131
    %p133 = scmp.eq.s32.totalorder %s17, 0
    %p134 = por %p132, %p133
    %s135 = ssub.s32 %s18, %s30
    %s136 = ssub.s32 %s19, %s26
    %s137 = sor.u32 %s135, %s136
    %p138 = scmp.eq.s32.totalorder %s137, 0
    %s140 = sadd.s32 %s139, 1
    %s141 = scalar_select %p138, %s139, %s140
    %p144 = pneg %p138
    %p145 = scmp.eq.s32.totalorder %s11, 1
    %p146 = por %p144, %p145
    %p147 = scmp.ne.s32.totalorder %s139, %s142
    %p148 = scmp.eq.s32.totalorder %s11, 0
    %p149 = por %p147, %p148
    %p150 = scmp.ne.s32.totalorder %s139, %s142
    %p151 = scmp.eq.s32.totalorder %s16, 1
    %p152 = por %p150, %p151
    %p153 = scmp.ne.s32.totalorder %s142, %s143
    %p154 = scmp.eq.s32.totalorder %s16, 0
    %p155 = por %p153, %p154
    %p156 = scmp.ne.s32.totalorder %s142, %s143
    %p157 = scmp.eq.s32.totalorder %s17, 1
    %p158 = por %p156, %p157
    %p160 = scmp.ne.s32.totalorder %s143, %s159
    %p161 = scmp.eq.s32.totalorder %s17, 0
    %p162 = por %p160, %p161
    %s163 = ssub.s32 %s18, %s30
    %s164 = ssub.s32 %s19, %s26
    %s165 = sor.u32 %s163, %s164
    %p166 = scmp.eq.s32.totalorder %s165, 0
    %s168 = sadd.s32 %s167, 1
    %s169 = scalar_select %p166, %s167, %s168
    %p172 = pneg %p166
    %p173 = scmp.eq.s32.totalorder %s11, 1
    %p174 = por %p172, %p173
    %p175 = scmp.ne.s32.totalorder %s167, %s170
    %p176 = scmp.eq.s32.totalorder %s11, 0
    %p177 = por %p175, %p176
    %p178 = scmp.ne.s32.totalorder %s167, %s170
    %p179 = scmp.eq.s32.totalorder %s16, 1
    %p180 = por %p178, %p179
    %p181 = scmp.ne.s32.totalorder %s170, %s171
    %p182 = scmp.eq.s32.totalorder %s16, 0
    %p183 = por %p181, %p182
    %p184 = scmp.ne.s32.totalorder %s170, %s171
    %p185 = scmp.eq.s32.totalorder %s17, 1
    %p186 = por %p184, %p185
    %p188 = scmp.ne.s32.totalorder %s171, %s187
    %p189 = scmp.eq.s32.totalorder %s17, 0
    %p190 = por %p188, %p189
    %p191 = scmp.le.s32.totalorder 1, %s11
    %p192 = scmp.lt.s32.totalorder %s11, 3
    %p193 = pnand %p191, %p192
    %p194 = pneg %p193
    // Predicated region
    $region9: #{_lambda_.10} parent=5 // pred_check
      _
    $region10: #{_lambda_.10} parent=5 // pred_check_branch
      %196 = sbr.rel (%p193) target = $region12
    $region11: #{_lambda_.10} parent=5 // pred_region
      %s197 = ssub.s32 %s11, 1
      // Predicated region
      $region13: #{_lambda_.10} parent=11 // pred_check
        %p198 = pneg %p75
      $region14: #{_lambda_.10} parent=11 // pred_check_branch
        %200 = sbr.rel (%p198) target = $region16
      $region15: #{_lambda_.10} parent=11 // pred_region
        %p201 = scmp.lt.s32.totalorder %s21, 0
        %s202 = scalar_select %p201, %s21, 0
        %s203 = smul.addr %s202, 4
        %s204 = scalar_lea.vmem %s1, %s203
      $region16: #{_lambda_.10} parent=11 // pred_fallthru
        _
      // Predicated region
      $region17: #{_lambda_.10} parent=11 // pred_check
        %p205 = pneg %p101
      $region18: #{_lambda_.10} parent=11 // pred_check_branch
        %207 = sbr.rel (%p205) target = $region20
      $region19: #{_lambda_.10} parent=11 // pred_region
        %p208 = scmp.lt.s32.totalorder %s21, 0
        %s209 = scalar_select %p208, %s21, 0
        %s210 = scalar_lea.vmem %s2, %s209
      $region20: #{_lambda_.10} parent=11 // pred_fallthru
        _
      // Predicated region
      $region21: #{_lambda_.10} parent=11 // pred_check
        %p211 = pneg %p127
      $region22: #{_lambda_.10} parent=11 // pred_check_branch
        %213 = sbr.rel (%p211) target = $region24
      $region23: #{_lambda_.10} parent=11 // pred_region
        %p214 = scmp.lt.s32.totalorder %s21, 0
        %s215 = scalar_select %p214, %s21, 0
        %s216 = scalar_lea.vmem %s3, %s215
      $region24: #{_lambda_.10} parent=11 // pred_fallthru
        _
    $region12: #{_lambda_.10} parent=5 // pred_fallthru
      _
    %p217 = scmp.lt.s32.totalorder %s11, 2
    // Predicated region
    $region25: #{_lambda_.10} parent=5 // pred_check
      %p218 = pneg %p217
    $region26: #{_lambda_.10} parent=5 // pred_check_branch
      %220 = sbr.rel (%p218) target = $region28
    $region27: #{_lambda_.10} parent=5 // pred_region
      // Predicated region
      $region29: #{_lambda_.10} parent=27 // pred_check
        %p221 = pneg %p43
      $region30: #{_lambda_.10} parent=27 // pred_check_branch
        %223 = sbr.rel (%p221) target = $region32
      $region31: #{_lambda_.10} parent=27 // pred_region
        %s224 = smul.u32 32, %s18
        %p225 = scmp.lt.s32.totalorder %s224, 63
        %s226 = scalar_select %p225, %s224, 63
        %s227 = smul.addr %s226, 2
        %s228 = smul.addr %s227, 4
        %s229 = scalar_lea.vmem %s0, %s228
        %s230 = smul.u32 32, %s18
      $region32: #{_lambda_.10} parent=27 // pred_fallthru
        _
      // Predicated region
      $region33: #{_lambda_.10} parent=27 // pred_check
        %p231 = pneg %p149
      $region34: #{_lambda_.10} parent=27 // pred_check_branch
        %233 = sbr.rel (%p231) target = $region36
      $region35: #{_lambda_.10} parent=27 // pred_region
        %s234 = smul.u32 32, %s18
        %p235 = scmp.lt.s32.totalorder %s234, 63
        %s236 = scalar_select %p235, %s234, 63
        %p237 = scmp.lt.s32.totalorder %s19, 0
        %s238 = scalar_select %p237, %s19, 0
        %s239 = sadd.s32 %s238, %s236
        %s240 = smul.addr %s239, 4
        %s241 = scalar_lea.vmem %s4, %s240
        %s242 = smul.u32 32, %s18
      $region36: #{_lambda_.10} parent=27 // pred_fallthru
        _
    $region28: #{_lambda_.10} parent=5 // pred_fallthru
      _
    %p243 = scmp.le.s32.totalorder 1, %s11
    %p244 = scmp.lt.s32.totalorder %s11, 3
    %p245 = pnand %p243, %p244
    %p246 = pneg %p245
    // Predicated region
    $region37: #{_lambda_.10} parent=5 // pred_check
      _
    $region38: #{_lambda_.10} parent=5 // pred_check_branch
      %248 = sbr.rel (%p245) target = $region40
    $region39: #{_lambda_.10} parent=5 // pred_region
      %s249 = ssub.s32 %s11, 1
      %s250 = smul.u32 32, %s20
      %p251 = scmp.lt.s32.totalorder %s250, 63
      %s252 = scalar_select %p251, %s250, 63
      %s253 = smul.addr %s252, 2
      %s254 = smul.addr %s253, 4
      %s255 = scalar_lea.vmem %s0, %s254
      %p256 = pneg %p49
      %p257 = pneg %p46
      %p258 = scmp.lt.s32.totalorder %s21, 0
      %s259 = scalar_select %p258, %s21, 0
      %s260 = smul.addr %s259, 4
      %s261 = scalar_lea.vmem %s1, %s260
      %p262 = pneg %p75
      %p263 = pneg %p72
      %p264 = scmp.lt.s32.totalorder %s21, 0
      %s265 = scalar_select %p264, %s21, 0
      %s266 = scalar_lea.vmem %s2, %s265
      %p267 = pneg %p101
      %p268 = pneg %p98
      %p269 = scmp.lt.s32.totalorder %s21, 0
      %s270 = scalar_select %p269, %s21, 0
      %s271 = scalar_lea.vmem %s3, %s270
      %p272 = pneg %p127
      %p273 = pneg %p124
      %s274 = smul.u32 32, %s20
      %p275 = scmp.lt.s32.totalorder %s274, 63
      %s276 = scalar_select %p275, %s274, 63
      %p277 = scmp.lt.s32.totalorder %s21, 0
      %s278 = scalar_select %p277, %s21, 0
      %s279 = sadd.s32 %s278, %s276
      %s280 = smul.addr %s279, 4
      %s281 = scalar_lea.vmem %s4, %s280
      %p282 = pneg %p155
      %p283 = pneg %p152
      %p284 = pneg %p183
      %p285 = pneg %p180
      %s286 = smul.u32 32, %s20
      %p287 = scmp.lt.s32.totalorder %s286, 63
      %s288 = scalar_select %p287, %s286, 63
      %p289 = scmp.lt.s32.totalorder %s21, 0
      %s290 = scalar_select %p289, %s21, 0
      %s291 = sadd.s32 %s290, %s288
      %s292 = smul.addr %s291, 4
      %s293 = scalar_lea.vmem %s5, %s292
      %s294 = smul.u32 32, %s20
      %p295 = scmp.lt.s32.totalorder %s294, 63
      %s296 = scalar_select %p295, %s294, 63
      %s297 = smul.addr %s296, 2
      %s298 = smul.addr %s297, 4
      %s299 = scalar_lea.vmem %s0, %s298
      %s300 = smul.u32 32, %s20
      %p301 = scmp.lt.s32.totalorder %s21, 0
      %s302 = scalar_select %p301, %s21, 0
      %s303 = smul.addr %s302, 4
      %s304 = scalar_lea.vmem %s1, %s303
      %p305 = scmp.lt.s32.totalorder %s21, 0
      %s306 = scalar_select %p305, %s21, 0
      %s307 = scalar_lea.vmem %s2, %s306
      %p308 = scmp.lt.s32.totalorder %s21, 0
      %s309 = scalar_select %p308, %s21, 0
      %s310 = scalar_lea.vmem %s3, %s309
      %s311 = smul.u32 32, %s20
      %p312 = scmp.lt.s32.totalorder %s311, 63
      %s313 = scalar_select %p312, %s311, 63
      %p314 = scmp.lt.s32.totalorder %s21, 0
      %s315 = scalar_select %p314, %s21, 0
      %s316 = sadd.s32 %s315, %s313
      %s317 = smul.addr %s316, 4
      %s318 = scalar_lea.vmem %s4, %s317
      %s319 = smul.u32 32, %s20
      %s320 = smul.u32 32, %s20
      %p321 = scmp.lt.s32.totalorder %s320, 63
      %s322 = scalar_select %p321, %s320, 63
      %p323 = scmp.lt.s32.totalorder %s21, 0
      %s324 = scalar_select %p323, %s21, 0
      %s325 = sadd.s32 %s324, %s322
      %s326 = smul.addr %s325, 4
      %s327 = scalar_lea.vmem %s5, %s326
      %s328 = smul.u32 32, %s20
      %v330 = vld [vmem:[%s299] sm:$0xff]
      %v331 = vld [vmem:[%s299 + $0x8] sm:$0xff]
      %v332 = vld [vmem:[%s299 + $0x10] sm:$0xff]
      %v333 = vld [vmem:[%s299 + $0x18] sm:$0xff]
      %v334 = vld [vmem:[%s299 + $0x20] sm:$0xff]
      %v335 = vld [vmem:[%s299 + $0x28] sm:$0xff]
      %v336 = vld [vmem:[%s299 + $0x30] sm:$0xff]
      %v337 = vld [vmem:[%s299 + $0x38] sm:$0xff]
      %v338 = vld [vmem:[%s299 + $0x40] sm:$0xff]
      %v339 = vld [vmem:[%s299 + $0x48] sm:$0xff]
      %v340 = vld [vmem:[%s299 + $0x50] sm:$0xff]
      %v341 = vld [vmem:[%s299 + $0x58] sm:$0xff]
      %v342 = vld [vmem:[%s299 + $0x60] sm:$0xff]
      %v343 = vld [vmem:[%s299 + $0x68] sm:$0xff]
      %v344 = vld [vmem:[%s299 + $0x70] sm:$0xff]
      %v345 = vld [vmem:[%s299 + $0x78] sm:$0xff]
      %v346 = vld [vmem:[%s299 + $0x80] sm:$0xff]
      %v347 = vld [vmem:[%s299 + $0x88] sm:$0xff]
      %v348 = vld [vmem:[%s299 + $0x90] sm:$0xff]
      %v349 = vld [vmem:[%s299 + $0x98] sm:$0xff]
      %v350 = vld [vmem:[%s299 + $0xa0] sm:$0xff]
      %v351 = vld [vmem:[%s299 + $0xa8] sm:$0xff]
      %v352 = vld [vmem:[%s299 + $0xb0] sm:$0xff]
      %v353 = vld [vmem:[%s299 + $0xb8] sm:$0xff]
      %v354 = vld [vmem:[%s299 + $0xc0] sm:$0xff]
      %v355 = vld [vmem:[%s299 + $0xc8] sm:$0xff]
      %v356 = vld [vmem:[%s299 + $0xd0] sm:$0xff]
      %v357 = vld [vmem:[%s299 + $0xd8] sm:$0xff]
      %v358 = vld [vmem:[%s299 + $0xe0] sm:$0xff]
      %v359 = vld [vmem:[%s299 + $0xe8] sm:$0xff]
      %v360 = vld [vmem:[%s299 + $0xf0] sm:$0xff]
      %v361 = vld [vmem:[%s299 + $0xf8] sm:$0xff]
      %v362 = vld [vmem:[%s304] sm:$0xf]
      %v363 = vld [vmem:[%s304 + $0x4] sm:$0xf]
      %v364 = vld [vmem:[%s304 + $0x8] sm:$0xf]
      %v365 = vld [vmem:[%s304 + $0xc] sm:$0xf]
      %v366 = vld [vmem:[%s304 + $0x10] sm:$0xf]
      %v367 = vld [vmem:[%s304 + $0x14] sm:$0xf]
      %v368 = vld [vmem:[%s304 + $0x18] sm:$0xf]
      %v369 = vld [vmem:[%s304 + $0x1c] sm:$0xf]
      %v370 = vld [vmem:[%s304 + $0x20] sm:$0xf]
      %v371 = vld [vmem:[%s304 + $0x24] sm:$0xf]
      %v372 = vld [vmem:[%s304 + $0x28] sm:$0xf]
      %v373 = vld [vmem:[%s304 + $0x2c] sm:$0xf]
      %v374 = vld [vmem:[%s304 + $0x30] sm:$0xf]
      %v375 = vld [vmem:[%s304 + $0x34] sm:$0xf]
      %v376 = vld [vmem:[%s304 + $0x38] sm:$0xf]
      %v377 = vld [vmem:[%s304 + $0x3c] sm:$0xf]
      %v378 = vld [vmem:[%s304 + $0x40] sm:$0xf]
      %v379 = vld [vmem:[%s304 + $0x44] sm:$0xf]
      %v380 = vld [vmem:[%s304 + $0x48] sm:$0xf]
      %v381 = vld [vmem:[%s304 + $0x4c] sm:$0xf]
      %v382 = vld [vmem:[%s304 + $0x50] sm:$0xf]
      %v383 = vld [vmem:[%s304 + $0x54] sm:$0xf]
      %v384 = vld [vmem:[%s304 + $0x58] sm:$0xf]
      %v385 = vld [vmem:[%s304 + $0x5c] sm:$0xf]
      %v386 = vld [vmem:[%s304 + $0x60] sm:$0xf]
      %v387 = vld [vmem:[%s304 + $0x64] sm:$0xf]
      %v388 = vld [vmem:[%s304 + $0x68] sm:$0xf]
      %v389 = vld [vmem:[%s304 + $0x6c] sm:$0xf]
      %v390 = vld [vmem:[%s304 + $0x70] sm:$0xf]
      %v391 = vld [vmem:[%s304 + $0x74] sm:$0xf]
      %v392 = vld [vmem:[%s304 + $0x78] sm:$0xf]
      %v393 = vld [vmem:[%s304 + $0x7c] sm:$0xf]
      %v426 = vunpack.c.l.b16 %v330
      %v427 = vunpack.c.h.b16 %v330
      %v428 = vunpack.c.l.b16 %v331
      %v429 = vunpack.c.h.b16 %v331
      %v430 = vunpack.c.l.b16 %v332
      %v431 = vunpack.c.h.b16 %v332
      %v432 = vunpack.c.l.b16 %v333
      %v433 = vunpack.c.h.b16 %v333
      %v434 = vunpack.c.l.b16 %v334
      %v435 = vunpack.c.h.b16 %v334
      %v436 = vunpack.c.l.b16 %v335
      %v437 = vunpack.c.h.b16 %v335
      %v438 = vunpack.c.l.b16 %v336
      %v439 = vunpack.c.h.b16 %v336
      %v440 = vunpack.c.l.b16 %v337
      %v441 = vunpack.c.h.b16 %v337
      %v442 = vunpack.c.l.b16 %v338
      %v443 = vunpack.c.h.b16 %v338
      %v444 = vunpack.c.l.b16 %v339
      %v445 = vunpack.c.h.b16 %v339
      %v446 = vunpack.c.l.b16 %v340
      %v447 = vunpack.c.h.b16 %v340
      %v448 = vunpack.c.l.b16 %v341
      %v449 = vunpack.c.h.b16 %v341
      %v450 = vunpack.c.l.b16 %v342
      %v451 = vunpack.c.h.b16 %v342
      %v452 = vunpack.c.l.b16 %v343
      %v453 = vunpack.c.h.b16 %v343
      %v454 = vunpack.c.l.b16 %v344
      %v455 = vunpack.c.h.b16 %v344
      %v456 = vunpack.c.l.b16 %v345
      %v457 = vunpack.c.h.b16 %v345
      %v458 = vunpack.c.l.b16 %v346
      %v459 = vunpack.c.h.b16 %v346
      %v460 = vunpack.c.l.b16 %v347
      %v461 = vunpack.c.h.b16 %v347
      %v462 = vunpack.c.l.b16 %v348
      %v463 = vunpack.c.h.b16 %v348
      %v464 = vunpack.c.l.b16 %v349
      %v465 = vunpack.c.h.b16 %v349
      %v466 = vunpack.c.l.b16 %v350
      %v467 = vunpack.c.h.b16 %v350
      %v468 = vunpack.c.l.b16 %v351
      %v469 = vunpack.c.h.b16 %v351
      %v470 = vunpack.c.l.b16 %v352
      %v471 = vunpack.c.h.b16 %v352
      %v472 = vunpack.c.l.b16 %v353
      %v473 = vunpack.c.h.b16 %v353
      %v474 = vunpack.c.l.b16 %v354
      %v475 = vunpack.c.h.b16 %v354
      %v476 = vunpack.c.l.b16 %v355
      %v477 = vunpack.c.h.b16 %v355
      %v478 = vunpack.c.l.b16 %v356
      %v479 = vunpack.c.h.b16 %v356
      %v480 = vunpack.c.l.b16 %v357
      %v481 = vunpack.c.h.b16 %v357
      %v482 = vunpack.c.l.b16 %v358
      %v483 = vunpack.c.h.b16 %v358
      %v484 = vunpack.c.l.b16 %v359
      %v485 = vunpack.c.h.b16 %v359
      %v486 = vunpack.c.l.b16 %v360
      %v487 = vunpack.c.h.b16 %v360
      %v488 = vunpack.c.l.b16 %v361
      %v489 = vunpack.c.h.b16 %v361
      %v490 = vpack.c.b16 %v428, %v426
      %v491 = vpack.c.b16 %v429, %v427
      %v492 = vpack.c.b16 %v432, %v430
      %v493 = vpack.c.b16 %v433, %v431
      %v494 = vpack.c.b16 %v436, %v434
      %v495 = vpack.c.b16 %v437, %v435
      %v496 = vpack.c.b16 %v440, %v438
      %v497 = vpack.c.b16 %v441, %v439
      %v498 = vpack.c.b16 %v444, %v442
      %v499 = vpack.c.b16 %v445, %v443
      %v500 = vpack.c.b16 %v448, %v446
      %v501 = vpack.c.b16 %v449, %v447
      %v502 = vpack.c.b16 %v452, %v450
      %v503 = vpack.c.b16 %v453, %v451
      %v504 = vpack.c.b16 %v456, %v454
      %v505 = vpack.c.b16 %v457, %v455
      %v506 = vpack.c.b16 %v460, %v458
      %v507 = vpack.c.b16 %v461, %v459
      %v508 = vpack.c.b16 %v464, %v462
      %v509 = vpack.c.b16 %v465, %v463
      %v510 = vpack.c.b16 %v468, %v466
      %v511 = vpack.c.b16 %v469, %v467
      %v512 = vpack.c.b16 %v472, %v470
      %v513 = vpack.c.b16 %v473, %v471
      %v514 = vpack.c.b16 %v476, %v474
      %v515 = vpack.c.b16 %v477, %v475
      %v516 = vpack.c.b16 %v480, %v478
      %v517 = vpack.c.b16 %v481, %v479
      %v518 = vpack.c.b16 %v484, %v482
      %v519 = vpack.c.b16 %v485, %v483
      %v520 = vpack.c.b16 %v488, %v486
      %v521 = vpack.c.b16 %v489, %v487
      %v586 = vunpack.c.l.b16 %v362
      %v587 = vunpack.c.l.b16 %v363
      %v588 = vunpack.c.l.b16 %v364
      %v589 = vunpack.c.l.b16 %v365
      %v590 = vunpack.c.l.b16 %v366
      %v591 = vunpack.c.l.b16 %v367
      %v592 = vunpack.c.l.b16 %v368
      %v593 = vunpack.c.l.b16 %v369
      %v594 = vunpack.c.l.b16 %v370
      %v595 = vunpack.c.l.b16 %v371
      %v596 = vunpack.c.l.b16 %v372
      %v597 = vunpack.c.l.b16 %v373
      %v598 = vunpack.c.l.b16 %v374
      %v599 = vunpack.c.l.b16 %v375
      %v600 = vunpack.c.l.b16 %v376
      %v601 = vunpack.c.l.b16 %v377
      %v602 = vunpack.c.l.b16 %v378
      %v603 = vunpack.c.l.b16 %v379
      %v604 = vunpack.c.l.b16 %v380
      %v605 = vunpack.c.l.b16 %v381
      %v606 = vunpack.c.l.b16 %v382
      %v607 = vunpack.c.l.b16 %v383
      %v608 = vunpack.c.l.b16 %v384
      %v609 = vunpack.c.l.b16 %v385
      %v610 = vunpack.c.l.b16 %v386
      %v611 = vunpack.c.l.b16 %v387
      %v612 = vunpack.c.l.b16 %v388
      %v613 = vunpack.c.l.b16 %v389
      %v614 = vunpack.c.l.b16 %v390
      %v615 = vunpack.c.l.b16 %v391
      %v616 = vunpack.c.l.b16 %v392
      %v617 = vunpack.c.l.b16 %v393
      %v618 = vpack.c.b16 %v587, %v586
      %v619 = vpack.c.b16 %v589, %v588
      %v620 = vpack.c.b16 %v591, %v590
      %v621 = vpack.c.b16 %v593, %v592
      %v622 = vpack.c.b16 %v595, %v594
      %v623 = vpack.c.b16 %v597, %v596
      %v624 = vpack.c.b16 %v599, %v598
      %v625 = vpack.c.b16 %v601, %v600
      %v626 = vpack.c.b16 %v603, %v602
      %v627 = vpack.c.b16 %v605, %v604
      %v628 = vpack.c.b16 %v607, %v606
      %v629 = vpack.c.b16 %v609, %v608
      %v630 = vpack.c.b16 %v611, %v610
      %v631 = vpack.c.b16 %v613, %v612
      %v632 = vpack.c.b16 %v615, %v614
      %v633 = vpack.c.b16 %v617, %v616
      %650 = vmatprep.subr.bf16.mxu0 0
      %651 = vmatpush1.bf16.msra.mxu0 %v618
      %652 = vmatprep.subr.bf16.mxu0 0
      %653 = vmatpush1.bf16.msra.mxu0 %v619
      %654 = vmatprep.subr.bf16.mxu0 0
      %655 = vmatpush1.bf16.msra.mxu0 %v620
      %656 = vmatprep.subr.bf16.mxu0 0
      %657 = vmatpush1.bf16.msra.mxu0 %v621
      %658 = vmatprep.subr.bf16.mxu0 0
      %659 = vmatpush1.bf16.msra.mxu0 %v622
      %660 = vmatprep.subr.bf16.mxu0 0
      %661 = vmatpush1.bf16.msra.mxu0 %v623
      %662 = vmatprep.subr.bf16.mxu0 0
      %663 = vmatpush1.bf16.msra.mxu0 %v624
      %664 = vmatprep.subr.bf16.mxu0 0
      %665 = vmatpush1.bf16.msra.mxu0 %v625
      %666 = vmatprep.subr.bf16.mxu0 0
      %667 = vmatpush1.bf16.msra.mxu0 %v626
      %668 = vmatprep.subr.bf16.mxu0 0
      %669 = vmatpush1.bf16.msra.mxu0 %v627
      %670 = vmatprep.subr.bf16.mxu0 0
      %671 = vmatpush1.bf16.msra.mxu0 %v628
      %672 = vmatprep.subr.bf16.mxu0 0
      %673 = vmatpush1.bf16.msra.mxu0 %v629
      %674 = vmatprep.subr.bf16.mxu0 0
      %675 = vmatpush1.bf16.msra.mxu0 %v630
      %676 = vmatprep.subr.bf16.mxu0 0
      %677 = vmatpush1.bf16.msra.mxu0 %v631
      %678 = vmatprep.subr.bf16.mxu0 0
      %679 = vmatpush1.bf16.msra.mxu0 %v632
      %680 = vmatprep.subr.bf16.mxu0 0
      %681 = vmatpush1.bf16.msra.mxu0 %v633
      %682 = vmatprep.mubr.bf16.mxu0 %v491
      %683 = vmatmul.mubr.bf16.gmra.mrb[0].mxu0 %v490
      %v684 = vpop.f32.mrb[0].mxu0
      %v685 = vadd.f32 0.0, %v684
      %v686 = vpop.f32.mrb[0].mxu0
      %v687 = vpop.f32.mrb[0].mxu0
      %v688 = vadd.f32 0.0, %v687
      %v689 = vpop.f32.mrb[0].mxu0
      %690 = vmatprep.mubr.bf16.mxu0 %v493
      %691 = vmatmul.mubr.bf16.gmra.mrb[0].mxu0 %v492
      %v692 = vpop.f32.mrb[0].mxu0
      %v693 = vadd.f32 0.0, %v692
      %v694 = vpop.f32.mrb[0].mxu0
      %v695 = vpop.f32.mrb[0].mxu0
      %v696 = vadd.f32 0.0, %v695
      %v697 = vpop.f32.mrb[0].mxu0
      %698 = vmatprep.mubr.bf16.mxu0 %v495
      %699 = vmatmul.mubr.bf16.gmra.mrb[0].mxu0 %v494
      %v700 = vpop.f32.mrb[0].mxu0
      %v701 = vadd.f32 0.0, %v700
      %v702 = vpop.f32.mrb[0].mxu0
      %v703 = vpop.f32.mrb[0].mxu0
      %v704 = vadd.f32 0.0, %v703
      %v705 = vpop.f32.mrb[0].mxu0
      %706 = vmatprep.mubr.bf16.mxu0 %v497
      %707 = vmatmul.mubr.bf16.gmra.mrb[0].mxu0 %v496
      %v708 = vpop.f32.mrb[0].mxu0
      %v709 = vadd.f32 0.0, %v708
      %v710 = vpop.f32.mrb[0].mxu0
      %v711 = vpop.f32.mrb[0].mxu0
      %v712 = vadd.f32 0.0, %v711
      %v713 = vpop.f32.mrb[0].mxu0
      %714 = vmatprep.mubr.bf16.mxu0 %v499
      %715 = vmatmul.mubr.bf16.gmra.mrb[0].mxu0 %v498
      %v716 = vpop.f32.mrb[0].mxu0
      %v717 = vadd.f32 0.0, %v716
      %v718 = vpop.f32.mrb[0].mxu0
      %v719 = vpop.f32.mrb[0].mxu0
      %v720 = vadd.f32 0.0, %v719
      %v721 = vpop.f32.mrb[0].mxu0
      %722 = vmatprep.mubr.bf16.mxu0 %v501
      %723 = vmatmul.mubr.bf16.gmra.mrb[0].mxu0 %v500
      %v724 = vpop.f32.mrb[0].mxu0
      %v725 = vadd.f32 0.0, %v724
      %v726 = vpop.f32.mrb[0].mxu0
      %v727 = vpop.f32.mrb[0].mxu0
      %v728 = vadd.f32 0.0, %v727
      %v729 = vpop.f32.mrb[0].mxu0
      %730 = vmatprep.mubr.bf16.mxu0 %v503
      %731 = vmatmul.mubr.bf16.gmra.mrb[0].mxu0 %v502
      %v732 = vpop.f32.mrb[0].mxu0
      %v733 = vadd.f32 0.0, %v732
      %v734 = vpop.f32.mrb[0].mxu0
      %v735 = vpop.f32.mrb[0].mxu0
      %v736 = vadd.f32 0.0, %v735
      %v737 = vpop.f32.mrb[0].mxu0
      %738 = vmatprep.mubr.bf16.mxu0 %v505
      %739 = vmatmul.mubr.bf16.gmra.mrb[0].mxu0 %v504
      %v740 = vpop.f32.mrb[0].mxu0
      %v741 = vadd.f32 0.0, %v740
      %v742 = vpop.f32.mrb[0].mxu0
      %v743 = vpop.f32.mrb[0].mxu0
      %v744 = vadd.f32 0.0, %v743
      %v745 = vpop.f32.mrb[0].mxu0
      %746 = vmatprep.mubr.bf16.mxu0 %v507
      %747 = vmatmul.mubr.bf16.gmra.mrb[0].mxu0 %v506
      %v748 = vpop.f32.mrb[0].mxu0
      %v749 = vadd.f32 0.0, %v748
      %v750 = vpop.f32.mrb[0].mxu0
      %v751 = vpop.f32.mrb[0].mxu0
      %v752 = vadd.f32 0.0, %v751
      %v753 = vpop.f32.mrb[0].mxu0
      %754 = vmatprep.mubr.bf16.mxu0 %v509
      %755 = vmatmul.mubr.bf16.gmra.mrb[0].mxu0 %v508
      %v756 = vpop.f32.mrb[0].mxu0
      %v757 = vadd.f32 0.0, %v756
      %v758 = vpop.f32.mrb[0].mxu0
      %v759 = vpop.f32.mrb[0].mxu0
      %v760 = vadd.f32 0.0, %v759
      %v761 = vpop.f32.mrb[0].mxu0
      %762 = vmatprep.mubr.bf16.mxu0 %v511
      %763 = vmatmul.mubr.bf16.gmra.mrb[0].mxu0 %v510
      %v764 = vpop.f32.mrb[0].mxu0
      %v765 = vadd.f32 0.0, %v764
      %v766 = vpop.f32.mrb[0].mxu0
      %v767 = vpop.f32.mrb[0].mxu0
      %v768 = vadd.f32 0.0, %v767
      %v769 = vpop.f32.mrb[0].mxu0
      %770 = vmatprep.mubr.bf16.mxu0 %v513
      %771 = vmatmul.mubr.bf16.gmra.mrb[0].mxu0 %v512
      %v772 = vpop.f32.mrb[0].mxu0
      %v773 = vadd.f32 0.0, %v772
      %v774 = vpop.f32.mrb[0].mxu0
      %v775 = vpop.f32.mrb[0].mxu0
      %v776 = vadd.f32 0.0, %v775
      %v777 = vpop.f32.mrb[0].mxu0
      %778 = vmatprep.mubr.bf16.mxu0 %v515
      %779 = vmatmul.mubr.bf16.gmra.mrb[0].mxu0 %v514
      %v780 = vpop.f32.mrb[0].mxu0
      %v781 = vadd.f32 0.0, %v780
      %v782 = vpop.f32.mrb[0].mxu0
      %v783 = vpop.f32.mrb[0].mxu0
      %v784 = vadd.f32 0.0, %v783
      %v785 = vpop.f32.mrb[0].mxu0
      %786 = vmatprep.mubr.bf16.mxu0 %v517
      %787 = vmatmul.mubr.bf16.gmra.mrb[0].mxu0 %v516
      %v788 = vpop.f32.mrb[0].mxu0
      %v789 = vadd.f32 0.0, %v788
      %v790 = vpop.f32.mrb[0].mxu0
      %v791 = vpop.f32.mrb[0].mxu0
      %v792 = vadd.f32 0.0, %v791
      %v793 = vpop.f32.mrb[0].mxu0
      %794 = vmatprep.mubr.bf16.mxu0 %v519
      %795 = vmatmul.mubr.bf16.gmra.mrb[0].mxu0 %v518
      %v796 = vpop.f32.mrb[0].mxu0
      %v797 = vadd.f32 0.0, %v796
      %v798 = vpop.f32.mrb[0].mxu0
      %v799 = vpop.f32.mrb[0].mxu0
      %v800 = vadd.f32 0.0, %v799
      %v801 = vpop.f32.mrb[0].mxu0
      %802 = vmatprep.mubr.bf16.mxu0 %v521
      %803 = vmatmul.mubr.bf16.gmra.mrb[0].mxu0 %v520
      %v804 = vpop.f32.mrb[0].mxu0
      %v805 = vadd.f32 0.0, %v804
      %v806 = vpop.f32.mrb[0].mxu0
      %v807 = vpop.f32.mrb[0].mxu0
      %v808 = vadd.f32 0.0, %v807
      %v809 = vpop.f32.mrb[0].mxu0
      %810 = vdwg.mxu0
      %v811 = vld [vmem:[%s307] sm:$0x1]
      %v813 = vlaneseq
      %v814 = vshrl.u32 %v813, 7
      %v815 = vsub.s32 0, %v814
      %v816 = vrot.slane %v811, %v815
      %v818 = vmul.f32 %v685, %v816
      %v819 = vmul.f32 %v688, %v816
      %v820 = vmul.f32 %v693, %v816
      %v821 = vmul.f32 %v696, %v816
      %v822 = vmul.f32 %v701, %v816
      %v823 = vmul.f32 %v704, %v816
      %v824 = vmul.f32 %v709, %v816
      %v825 = vmul.f32 %v712, %v816
      %v826 = vmul.f32 %v717, %v816
      %v827 = vmul.f32 %v720, %v816
      %v828 = vmul.f32 %v725, %v816
      %v829 = vmul.f32 %v728, %v816
      %v830 = vmul.f32 %v733, %v816
      %v831 = vmul.f32 %v736, %v816
      %v832 = vmul.f32 %v741, %v816
      %v833 = vmul.f32 %v744, %v816
      %v834 = vmul.f32 %v749, %v816
      %v835 = vmul.f32 %v752, %v816
      %v836 = vmul.f32 %v757, %v816
      %v837 = vmul.f32 %v760, %v816
      %v838 = vmul.f32 %v765, %v816
      %v839 = vmul.f32 %v768, %v816
      %v840 = vmul.f32 %v773, %v816
      %v841 = vmul.f32 %v776, %v816
      %v842 = vmul.f32 %v781, %v816
      %v843 = vmul.f32 %v784, %v816
      %v844 = vmul.f32 %v789, %v816
      %v845 = vmul.f32 %v792, %v816
      %v846 = vmul.f32 %v797, %v816
      %v847 = vmul.f32 %v800, %v816
      %v848 = vmul.f32 %v805, %v816
      %v849 = vmul.f32 %v808, %v816
      %v850 = vld [vmem:[%s310] sm:$0x1]
      %v852 = vlaneseq
      %v853 = vshrl.u32 %v852, 7
      %v854 = vsub.s32 0, %v853
      %v855 = vrot.slane %v850, %v854
      %v857 = vadd.f32 %v818, %v855
      %v858 = vadd.f32 %v819, %v855
      %v859 = vadd.f32 %v820, %v855
      %v860 = vadd.f32 %v821, %v855
      %v861 = vadd.f32 %v822, %v855
      %v862 = vadd.f32 %v823, %v855
      %v863 = vadd.f32 %v824, %v855
      %v864 = vadd.f32 %v825, %v855
      %v865 = vadd.f32 %v826, %v855
      %v866 = vadd.f32 %v827, %v855
      %v867 = vadd.f32 %v828, %v855
      %v868 = vadd.f32 %v829, %v855
      %v869 = vadd.f32 %v830, %v855
      %v870 = vadd.f32 %v831, %v855
      %v871 = vadd.f32 %v832, %v855
      %v872 = vadd.f32 %v833, %v855
      %v873 = vadd.f32 %v834, %v855
      %v874 = vadd.f32 %v835, %v855
      %v875 = vadd.f32 %v836, %v855
      %v876 = vadd.f32 %v837, %v855
      %v877 = vadd.f32 %v838, %v855
      %v878 = vadd.f32 %v839, %v855
      %v879 = vadd.f32 %v840, %v855
      %v880 = vadd.f32 %v841, %v855
      %v881 = vadd.f32 %v842, %v855
      %v882 = vadd.f32 %v843, %v855
      %v883 = vadd.f32 %v844, %v855
      %v884 = vadd.f32 %v845, %v855
      %v885 = vadd.f32 %v846, %v855
      %v886 = vadd.f32 %v847, %v855
      %v887 = vadd.f32 %v848, %v855
      %v888 = vadd.f32 %v849, %v855
      %v889 = vld [vmem:[%s318] sm:$0xf]
      %v890 = vld [vmem:[%s318 + $0x4] sm:$0xf]
      %v891 = vld [vmem:[%s318 + $0x8] sm:$0xf]
      %v892 = vld [vmem:[%s318 + $0xc] sm:$0xf]
      %v893 = vld [vmem:[%s318 + $0x10] sm:$0xf]
      %v894 = vld [vmem:[%s318 + $0x14] sm:$0xf]
      %v895 = vld [vmem:[%s318 + $0x18] sm:$0xf]
      %v896 = vld [vmem:[%s318 + $0x1c] sm:$0xf]
      %v897 = vld [vmem:[%s318 + $0x20] sm:$0xf]
      %v898 = vld [vmem:[%s318 + $0x24] sm:$0xf]
      %v899 = vld [vmem:[%s318 + $0x28] sm:$0xf]
      %v900 = vld [vmem:[%s318 + $0x2c] sm:$0xf]
      %v901 = vld [vmem:[%s318 + $0x30] sm:$0xf]
      %v902 = vld [vmem:[%s318 + $0x34] sm:$0xf]
      %v903 = vld [vmem:[%s318 + $0x38] sm:$0xf]
      %v904 = vld [vmem:[%s318 + $0x3c] sm:$0xf]
      %v905 = vld [vmem:[%s318 + $0x40] sm:$0xf]
      %v906 = vld [vmem:[%s318 + $0x44] sm:$0xf]
      %v907 = vld [vmem:[%s318 + $0x48] sm:$0xf]
      %v908 = vld [vmem:[%s318 + $0x4c] sm:$0xf]
      %v909 = vld [vmem:[%s318 + $0x50] sm:$0xf]
      %v910 = vld [vmem:[%s318 + $0x54] sm:$0xf]
      %v911 = vld [vmem:[%s318 + $0x58] sm:$0xf]
      %v912 = vld [vmem:[%s318 + $0x5c] sm:$0xf]
      %v913 = vld [vmem:[%s318 + $0x60] sm:$0xf]
      %v914 = vld [vmem:[%s318 + $0x64] sm:$0xf]
      %v915 = vld [vmem:[%s318 + $0x68] sm:$0xf]
      %v916 = vld [vmem:[%s318 + $0x6c] sm:$0xf]
      %v917 = vld [vmem:[%s318 + $0x70] sm:$0xf]
      %v918 = vld [vmem:[%s318 + $0x74] sm:$0xf]
      %v919 = vld [vmem:[%s318 + $0x78] sm:$0xf]
      %v920 = vld [vmem:[%s318 + $0x7c] sm:$0xf]
      %v921 = vunpack.c.l.bf16 %v889
      %v922 = vunpack.c.l.bf16 %v890
      %v923 = vunpack.c.l.bf16 %v891
      %v924 = vunpack.c.l.bf16 %v892
      %v925 = vunpack.c.l.bf16 %v893
      %v926 = vunpack.c.l.bf16 %v894
      %v927 = vunpack.c.l.bf16 %v895
      %v928 = vunpack.c.l.bf16 %v896
      %v929 = vunpack.c.l.bf16 %v897
      %v930 = vunpack.c.l.bf16 %v898
      %v931 = vunpack.c.l.bf16 %v899
      %v932 = vunpack.c.l.bf16 %v900
      %v933 = vunpack.c.l.bf16 %v901
      %v934 = vunpack.c.l.bf16 %v902
      %v935 = vunpack.c.l.bf16 %v903
      %v936 = vunpack.c.l.bf16 %v904
      %v937 = vunpack.c.l.bf16 %v905
      %v938 = vunpack.c.l.bf16 %v906
      %v939 = vunpack.c.l.bf16 %v907
      %v940 = vunpack.c.l.bf16 %v908
      %v941 = vunpack.c.l.bf16 %v909
      %v942 = vunpack.c.l.bf16 %v910
      %v943 = vunpack.c.l.bf16 %v911
      %v944 = vunpack.c.l.bf16 %v912
      %v945 = vunpack.c.l.bf16 %v913
      %v946 = vunpack.c.l.bf16 %v914
      %v947 = vunpack.c.l.bf16 %v915
      %v948 = vunpack.c.l.bf16 %v916
      %v949 = vunpack.c.l.bf16 %v917
      %v950 = vunpack.c.l.bf16 %v918
      %v951 = vunpack.c.l.bf16 %v919
      %v952 = vunpack.c.l.bf16 %v920
      %v953 = vadd.f32 %v857, %v921
      %v954 = vadd.f32 %v858, %v922
      %v955 = vadd.f32 %v859, %v923
      %v956 = vadd.f32 %v860, %v924
      %v957 = vadd.f32 %v861, %v925
      %v958 = vadd.f32 %v862, %v926
      %v959 = vadd.f32 %v863, %v927
      %v960 = vadd.f32 %v864, %v928
      %v961 = vadd.f32 %v865, %v929
      %v962 = vadd.f32 %v866, %v930
      %v963 = vadd.f32 %v867, %v931
      %v964 = vadd.f32 %v868, %v932
      %v965 = vadd.f32 %v869, %v933
      %v966 = vadd.f32 %v870, %v934
      %v967 = vadd.f32 %v871, %v935
      %v968 = vadd.f32 %v872, %v936
      %v969 = vadd.f32 %v873, %v937
      %v970 = vadd.f32 %v874, %v938
      %v971 = vadd.f32 %v875, %v939
      %v972 = vadd.f32 %v876, %v940
      %v973 = vadd.f32 %v877, %v941
      %v974 = vadd.f32 %v878, %v942
      %v975 = vadd.f32 %v879, %v943
      %v976 = vadd.f32 %v880, %v944
      %v977 = vadd.f32 %v881, %v945
      %v978 = vadd.f32 %v882, %v946
      %v979 = vadd.f32 %v883, %v947
      %v980 = vadd.f32 %v884, %v948
      %v981 = vadd.f32 %v885, %v949
      %v982 = vadd.f32 %v886, %v950
      %v983 = vadd.f32 %v887, %v951
      %v984 = vadd.f32 %v888, %v952
      %v985 = vmax.f32 %v953, 0.0
      %v986 = vmax.f32 %v954, 0.0
      %v987 = vmax.f32 %v955, 0.0
      %v988 = vmax.f32 %v956, 0.0
      %v989 = vmax.f32 %v957, 0.0
      %v990 = vmax.f32 %v958, 0.0
      %v991 = vmax.f32 %v959, 0.0
      %v992 = vmax.f32 %v960, 0.0
      %v993 = vmax.f32 %v961, 0.0
      %v994 = vmax.f32 %v962, 0.0
      %v995 = vmax.f32 %v963, 0.0
      %v996 = vmax.f32 %v964, 0.0
      %v997 = vmax.f32 %v965, 0.0
      %v998 = vmax.f32 %v966, 0.0
      %v999 = vmax.f32 %v967, 0.0
      %v1000 = vmax.f32 %v968, 0.0
      %v1001 = vmax.f32 %v969, 0.0
      %v1002 = vmax.f32 %v970, 0.0
      %v1003 = vmax.f32 %v971, 0.0
      %v1004 = vmax.f32 %v972, 0.0
      %v1005 = vmax.f32 %v973, 0.0
      %v1006 = vmax.f32 %v974, 0.0
      %v1007 = vmax.f32 %v975, 0.0
      %v1008 = vmax.f32 %v976, 0.0
      %v1009 = vmax.f32 %v977, 0.0
      %v1010 = vmax.f32 %v978, 0.0
      %v1011 = vmax.f32 %v979, 0.0
      %v1012 = vmax.f32 %v980, 0.0
      %v1013 = vmax.f32 %v981, 0.0
      %v1014 = vmax.f32 %v982, 0.0
      %v1015 = vmax.f32 %v983, 0.0
      %v1016 = vmax.f32 %v984, 0.0
      %v1017 = vpack.c.bf16 %v986, %v985
      %v1018 = vpack.c.bf16 %v988, %v987
      %v1019 = vpack.c.bf16 %v990, %v989
      %v1020 = vpack.c.bf16 %v992, %v991
      %v1021 = vpack.c.bf16 %v994, %v993
      %v1022 = vpack.c.bf16 %v996, %v995
      %v1023 = vpack.c.bf16 %v998, %v997
      %v1024 = vpack.c.bf16 %v1000, %v999
      %v1025 = vpack.c.bf16 %v1002, %v1001
      %v1026 = vpack.c.bf16 %v1004, %v1003
      %v1027 = vpack.c.bf16 %v1006, %v1005
      %v1028 = vpack.c.bf16 %v1008, %v1007
      %v1029 = vpack.c.bf16 %v1010, %v1009
      %v1030 = vpack.c.bf16 %v1012, %v1011
      %v1031 = vpack.c.bf16 %v1014, %v1013
      %v1032 = vpack.c.bf16 %v1016, %v1015
      %v1049 = vunpack.c.l.b16 %v1017
      %v1050 = vunpack.c.h.b16 %v1017
      %v1051 = vunpack.c.l.b16 %v1018
      %v1052 = vunpack.c.h.b16 %v1018
      %v1053 = vunpack.c.l.b16 %v1019
      %v1054 = vunpack.c.h.b16 %v1019
      %v1055 = vunpack.c.l.b16 %v1020
      %v1056 = vunpack.c.h.b16 %v1020
      %v1057 = vunpack.c.l.b16 %v1021
      %v1058 = vunpack.c.h.b16 %v1021
      %v1059 = vunpack.c.l.b16 %v1022
      %v1060 = vunpack.c.h.b16 %v1022
      %v1061 = vunpack.c.l.b16 %v1023
      %v1062 = vunpack.c.h.b16 %v1023
      %v1063 = vunpack.c.l.b16 %v1024
      %v1064 = vunpack.c.h.b16 %v1024
      %v1065 = vunpack.c.l.b16 %v1025
      %v1066 = vunpack.c.h.b16 %v1025
      %v1067 = vunpack.c.l.b16 %v1026
      %v1068 = vunpack.c.h.b16 %v1026
      %v1069 = vunpack.c.l.b16 %v1027
      %v1070 = vunpack.c.h.b16 %v1027
      %v1071 = vunpack.c.l.b16 %v1028
      %v1072 = vunpack.c.h.b16 %v1028
      %v1073 = vunpack.c.l.b16 %v1029
      %v1074 = vunpack.c.h.b16 %v1029
      %v1075 = vunpack.c.l.b16 %v1030
      %v1076 = vunpack.c.h.b16 %v1030
      %v1077 = vunpack.c.l.b16 %v1031
      %v1078 = vunpack.c.h.b16 %v1031
      %v1079 = vunpack.c.l.b16 %v1032
      %v1080 = vunpack.c.h.b16 %v1032
      %v1081 = vpack.c.b16 %v1049, %v1049
      %v1082 = vpack.c.b16 %v1050, %v1050
      %v1083 = vpack.c.b16 %v1051, %v1051
      %v1084 = vpack.c.b16 %v1052, %v1052
      %v1085 = vpack.c.b16 %v1053, %v1053
      %v1086 = vpack.c.b16 %v1054, %v1054
      %v1087 = vpack.c.b16 %v1055, %v1055
      %v1088 = vpack.c.b16 %v1056, %v1056
      %v1089 = vpack.c.b16 %v1057, %v1057
      %v1090 = vpack.c.b16 %v1058, %v1058
      %v1091 = vpack.c.b16 %v1059, %v1059
      %v1092 = vpack.c.b16 %v1060, %v1060
      %v1093 = vpack.c.b16 %v1061, %v1061
      %v1094 = vpack.c.b16 %v1062, %v1062
      %v1095 = vpack.c.b16 %v1063, %v1063
      %v1096 = vpack.c.b16 %v1064, %v1064
      %v1097 = vpack.c.b16 %v1065, %v1065
      %v1098 = vpack.c.b16 %v1066, %v1066
      %v1099 = vpack.c.b16 %v1067, %v1067
      %v1100 = vpack.c.b16 %v1068, %v1068
      %v1101 = vpack.c.b16 %v1069, %v1069
      %v1102 = vpack.c.b16 %v1070, %v1070
      %v1103 = vpack.c.b16 %v1071, %v1071
      %v1104 = vpack.c.b16 %v1072, %v1072
      %v1105 = vpack.c.b16 %v1073, %v1073
      %v1106 = vpack.c.b16 %v1074, %v1074
      %v1107 = vpack.c.b16 %v1075, %v1075
      %v1108 = vpack.c.b16 %v1076, %v1076
      %v1109 = vpack.c.b16 %v1077, %v1077
      %v1110 = vpack.c.b16 %v1078, %v1078
      %v1111 = vpack.c.b16 %v1079, %v1079
      %v1112 = vpack.c.b16 %v1080, %v1080
      %1145 = vst [vmem:[%s327] sm:$0xf] %v1081
      %1146 = vst [vmem:[%s327 + $0x4] sm:$0xf] %v1082
      %1147 = vst [vmem:[%s327 + $0x8] sm:$0xf] %v1083
      %1148 = vst [vmem:[%s327 + $0xc] sm:$0xf] %v1084
      %1149 = vst [vmem:[%s327 + $0x10] sm:$0xf] %v1085
      %1150 = vst [vmem:[%s327 + $0x14] sm:$0xf] %v1086
      %1151 = vst [vmem:[%s327 + $0x18] sm:$0xf] %v1087
      %1152 = vst [vmem:[%s327 + $0x1c] sm:$0xf] %v1088
      %1153 = vst [vmem:[%s327 + $0x20] sm:$0xf] %v1089
      %1154 = vst [vmem:[%s327 + $0x24] sm:$0xf] %v1090
      %1155 = vst [vmem:[%s327 + $0x28] sm:$0xf] %v1091
      %1156 = vst [vmem:[%s327 + $0x2c] sm:$0xf] %v1092
      %1157 = vst [vmem:[%s327 + $0x30] sm:$0xf] %v1093
      %1158 = vst [vmem:[%s327 + $0x34] sm:$0xf] %v1094
      %1159 = vst [vmem:[%s327 + $0x38] sm:$0xf] %v1095
      %1160 = vst [vmem:[%s327 + $0x3c] sm:$0xf] %v1096
      %1161 = vst [vmem:[%s327 + $0x40] sm:$0xf] %v1097
      %1162 = vst [vmem:[%s327 + $0x44] sm:$0xf] %v1098
      %1163 = vst [vmem:[%s327 + $0x48] sm:$0xf] %v1099
      %1164 = vst [vmem:[%s327 + $0x4c] sm:$0xf] %v1100
      %1165 = vst [vmem:[%s327 + $0x50] sm:$0xf] %v1101
      %1166 = vst [vmem:[%s327 + $0x54] sm:$0xf] %v1102
      %1167 = vst [vmem:[%s327 + $0x58] sm:$0xf] %v1103
      %1168 = vst [vmem:[%s327 + $0x5c] sm:$0xf] %v1104
      %1169 = vst [vmem:[%s327 + $0x60] sm:$0xf] %v1105
      %1170 = vst [vmem:[%s327 + $0x64] sm:$0xf] %v1106
      %1171 = vst [vmem:[%s327 + $0x68] sm:$0xf] %v1107
      %1172 = vst [vmem:[%s327 + $0x6c] sm:$0xf] %v1108
      %1173 = vst [vmem:[%s327 + $0x70] sm:$0xf] %v1109
      %1174 = vst [vmem:[%s327 + $0x74] sm:$0xf] %v1110
      %1175 = vst [vmem:[%s327 + $0x78] sm:$0xf] %v1111
      %1176 = vst [vmem:[%s327 + $0x7c] sm:$0xf] %v1112
      %s1177 = smul.u32 32, %s20
      %p1178 = scmp.lt.s32.totalorder %s1177, 63
      %s1179 = scalar_select %p1178, %s1177, 63
      %p1180 = scmp.lt.s32.totalorder %s21, 0
      %s1181 = scalar_select %p1180, %s21, 0
      %s1182 = sadd.s32 %s1181, %s1179
      %s1183 = smul.addr %s1182, 4
      %s1184 = scalar_lea.vmem %s5, %s1183
      // Predicated region
      $region41: #{_lambda_.10} parent=39 // pred_check
        %p1185 = pneg %p180
      $region42: #{_lambda_.10} parent=39 // pred_check_branch
        %1187 = sbr.rel (%p1185) target = $region44
      $region43: #{_lambda_.10} parent=39 // pred_region
        %s1188 = smul.u32 32, %s20
      $region44: #{_lambda_.10} parent=39 // pred_fallthru
        _
    $region40: #{_lambda_.10} parent=5 // pred_fallthru
      _
    %p1189 = scmp.le.s32.totalorder 2, %s11
    // Predicated region
    $region45: #{_lambda_.10} parent=5 // pred_check
      %p1190 = pneg %p1189
    $region46: #{_lambda_.10} parent=5 // pred_check_branch
      %1192 = sbr.rel (%p1190) target = $region48
    $region47: #{_lambda_.10} parent=5 // pred_region
      %s1193 = ssub.s32 %s11, 2
      // Predicated region
      $region49: #{_lambda_.10} parent=47 // pred_check
        %p1194 = pneg %p186
      $region50: #{_lambda_.10} parent=47 // pred_check_branch
        %1196 = sbr.rel (%p1194) target = $region52
      $region51: #{_lambda_.10} parent=47 // pred_region
        %s1197 = smul.u32 32, %s22
        %p1198 = scmp.lt.s32.totalorder %s1197, 63
        %s1199 = scalar_select %p1198, %s1197, 63
        %p1200 = scmp.lt.s32.totalorder %s23, 0
        %s1201 = scalar_select %p1200, %s23, 0
        %s1202 = sadd.s32 %s1201, %s1199
        %s1203 = smul.addr %s1202, 4
        %s1204 = scalar_lea.vmem %s5, %s1203
      $region52: #{_lambda_.10} parent=47 // pred_fallthru
        _
    $region48: #{_lambda_.10} parent=5 // pred_fallthru
      _
  $region6: #{_lambda_.10} parent=0 // loop_footer
    %s15 = sadd.s32 1, %s11
  $region7: #{_lambda_.10} parent=0 // loop_footer_branch
    %10 = sbr.rel target = $region3
  $region8: #{_lambda_.10} parent=0 // loop_exit
    _

// kernel: _lambda_.11
$region0: #{_lambda_.11}
  #allocation0 [shape = 'u32[]', space=smem, size = 0x4, offset = 0x4, fixed_abs, tag = 'smem constant byte address 0x4 - core index']
  #allocation1 [shape = 'u32[144,128]{1,0:T(1,128)}', space=vmem, size = 0x12000, scoped, tag = 'internal scratch']
  %s0 = inlined_call_operand.vmem [shape: bf16[128,256], index: 0, kind: input, shape index: {}]
  %s1 = inlined_call_operand.vmem [shape: bf16[256,128], index: 1, kind: input, shape index: {}]
  %s2 = inlined_call_operand.vmem [shape: f32[1,128], index: 2, kind: input, shape index: {}]
  %s3 = inlined_call_operand.vmem [shape: f32[1,128], index: 3, kind: input, shape index: {}]
  %s4 = inlined_call_operand.vmem [shape: f32[1,128], index: 4, kind: input, shape index: {}]
  %s5 = inlined_call_operand.vmem [shape: bf16[128,128], index: 5, kind: output, shape index: {}]
  %s6 = sld [smem:[#allocation0]]
  $region30: #{_lambda_.11} parent=0
    _
  %s8 = ssub.s32 1, %s6
  %s9 = scalar_select 0, %s8, %s6
  // Predicated region
  $region2: #{_lambda_.11} parent=0 // pred_check
    _
  $region3: #{_lambda_.11} parent=0 // pred_check_branch
    %11 = sbr.rel (0) target = $region5
  $region4: #{_lambda_.11} parent=0 // pred_region
    _
  $region5: #{_lambda_.11} parent=0 // pred_fallthru
    _
  // Predicated region
  $region6: #{_lambda_.11} parent=0 // pred_check
    _
  $region7: #{_lambda_.11} parent=0 // pred_check_branch
    %13 = sbr.rel (0) target = $region9
  $region8: #{_lambda_.11} parent=0 // pred_region
    _
  $region9: #{_lambda_.11} parent=0 // pred_fallthru
    _
  // Predicated region
  $region10: #{_lambda_.11} parent=0 // pred_check
    _
  $region11: #{_lambda_.11} parent=0 // pred_check_branch
    %15 = sbr.rel (0) target = $region13
  $region12: #{_lambda_.11} parent=0 // pred_region
    _
  $region13: #{_lambda_.11} parent=0 // pred_fallthru
    _
  // Predicated region
  $region14: #{_lambda_.11} parent=0 // pred_check
    _
  $region15: #{_lambda_.11} parent=0 // pred_check_branch
    %17 = sbr.rel (0) target = $region17
  $region16: #{_lambda_.11} parent=0 // pred_region
    _
  $region17: #{_lambda_.11} parent=0 // pred_fallthru
    _
  // Predicated region
  $region18: #{_lambda_.11} parent=0 // pred_check
    _
  $region19: #{_lambda_.11} parent=0 // pred_check_branch
    %19 = sbr.rel (0) target = $region21
  $region20: #{_lambda_.11} parent=0 // pred_region
    _
  $region21: #{_lambda_.11} parent=0 // pred_fallthru
    _
  %v21 = vld [vmem:[%s0] sm:$0xff]
  %v22 = vld [vmem:[%s0 + $0x8] sm:$0xff]
  %v23 = vld [vmem:[%s0 + $0x10] sm:$0xff]
  %v24 = vld [vmem:[%s0 + $0x18] sm:$0xff]
  %v25 = vld [vmem:[%s0 + $0x20] sm:$0xff]
  %v26 = vld [vmem:[%s0 + $0x28] sm:$0xff]
  %v27 = vld [vmem:[%s0 + $0x30] sm:$0xff]
  %v28 = vld [vmem:[%s0 + $0x38] sm:$0xff]
  %v29 = vld [vmem:[%s0 + $0x40] sm:$0xff]
  %v30 = vld [vmem:[%s0 + $0x48] sm:$0xff]
  %v31 = vld [vmem:[%s0 + $0x50] sm:$0xff]
  %v32 = vld [vmem:[%s0 + $0x58] sm:$0xff]
  %v33 = vld [vmem:[%s0 + $0x60] sm:$0xff]
  %v34 = vld [vmem:[%s0 + $0x68] sm:$0xff]
  %v35 = vld [vmem:[%s0 + $0x70] sm:$0xff]
  %v36 = vld [vmem:[%s0 + $0x78] sm:$0xff]
  %v37 = vld [vmem:[%s1] sm:$0xf]
  %v38 = vld [vmem:[%s1 + $0x4] sm:$0xf]
  %v39 = vld [vmem:[%s1 + $0x8] sm:$0xf]
  %v40 = vld [vmem:[%s1 + $0xc] sm:$0xf]
  %v41 = vld [vmem:[%s1 + $0x10] sm:$0xf]
  %v42 = vld [vmem:[%s1 + $0x14] sm:$0xf]
  %v43 = vld [vmem:[%s1 + $0x18] sm:$0xf]
  %v44 = vld [vmem:[%s1 + $0x1c] sm:$0xf]
  %v45 = vld [vmem:[%s1 + $0x20] sm:$0xf]
  %v46 = vld [vmem:[%s1 + $0x24] sm:$0xf]
  %v47 = vld [vmem:[%s1 + $0x28] sm:$0xf]
  %v48 = vld [vmem:[%s1 + $0x2c] sm:$0xf]
  %v49 = vld [vmem:[%s1 + $0x30] sm:$0xf]
  %v50 = vld [vmem:[%s1 + $0x34] sm:$0xf]
  %v51 = vld [vmem:[%s1 + $0x38] sm:$0xf]
  %v52 = vld [vmem:[%s1 + $0x3c] sm:$0xf]
  %v53 = vld [vmem:[%s1 + $0x40] sm:$0xf]
  %v54 = vld [vmem:[%s1 + $0x44] sm:$0xf]
  %v55 = vld [vmem:[%s1 + $0x48] sm:$0xf]
  %v56 = vld [vmem:[%s1 + $0x4c] sm:$0xf]
  %v57 = vld [vmem:[%s1 + $0x50] sm:$0xf]
  %v58 = vld [vmem:[%s1 + $0x54] sm:$0xf]
  %v59 = vld [vmem:[%s1 + $0x58] sm:$0xf]
  %v60 = vld [vmem:[%s1 + $0x5c] sm:$0xf]
  %v61 = vld [vmem:[%s1 + $0x60] sm:$0xf]
  %v62 = vld [vmem:[%s1 + $0x64] sm:$0xf]
  %v63 = vld [vmem:[%s1 + $0x68] sm:$0xf]
  %v64 = vld [vmem:[%s1 + $0x6c] sm:$0xf]
  %v65 = vld [vmem:[%s1 + $0x70] sm:$0xf]
  %v66 = vld [vmem:[%s1 + $0x74] sm:$0xf]
  %v67 = vld [vmem:[%s1 + $0x78] sm:$0xf]
  %v68 = vld [vmem:[%s1 + $0x7c] sm:$0xf]
  %v85 = vunpack.c.l.b16 %v21
  %v86 = vunpack.c.h.b16 %v21
  %v87 = vunpack.c.l.b16 %v22
  %v88 = vunpack.c.h.b16 %v22
  %v89 = vunpack.c.l.b16 %v23
  %v90 = vunpack.c.h.b16 %v23
  %v91 = vunpack.c.l.b16 %v24
  %v92 = vunpack.c.h.b16 %v24
  %v93 = vunpack.c.l.b16 %v25
  %v94 = vunpack.c.h.b16 %v25
  %v95 = vunpack.c.l.b16 %v26
  %v96 = vunpack.c.h.b16 %v26
  %v97 = vunpack.c.l.b16 %v27
  %v98 = vunpack.c.h.b16 %v27
  %v99 = vunpack.c.l.b16 %v28
  %v100 = vunpack.c.h.b16 %v28
  %v101 = vunpack.c.l.b16 %v29
  %v102 = vunpack.c.h.b16 %v29
  %v103 = vunpack.c.l.b16 %v30
  %v104 = vunpack.c.h.b16 %v30
  %v105 = vunpack.c.l.b16 %v31
  %v106 = vunpack.c.h.b16 %v31
  %v107 = vunpack.c.l.b16 %v32
  %v108 = vunpack.c.h.b16 %v32
  %v109 = vunpack.c.l.b16 %v33
  %v110 = vunpack.c.h.b16 %v33
  %v111 = vunpack.c.l.b16 %v34
  %v112 = vunpack.c.h.b16 %v34
  %v113 = vunpack.c.l.b16 %v35
  %v114 = vunpack.c.h.b16 %v35
  %v115 = vunpack.c.l.b16 %v36
  %v116 = vunpack.c.h.b16 %v36
  %v117 = vpack.c.b16 %v87, %v85
  %v118 = vpack.c.b16 %v88, %v86
  %v119 = vpack.c.b16 %v91, %v89
  %v120 = vpack.c.b16 %v92, %v90
  %v121 = vpack.c.b16 %v95, %v93
  %v122 = vpack.c.b16 %v96, %v94
  %v123 = vpack.c.b16 %v99, %v97
  %v124 = vpack.c.b16 %v100, %v98
  %v125 = vpack.c.b16 %v103, %v101
  %v126 = vpack.c.b16 %v104, %v102
  %v127 = vpack.c.b16 %v107, %v105
  %v128 = vpack.c.b16 %v108, %v106
  %v129 = vpack.c.b16 %v111, %v109
  %v130 = vpack.c.b16 %v112, %v110
  %v131 = vpack.c.b16 %v115, %v113
  %v132 = vpack.c.b16 %v116, %v114
  %v181 = vunpack.c.l.b16 %v37
  %v182 = vunpack.c.l.b16 %v38
  %v183 = vunpack.c.l.b16 %v39
  %v184 = vunpack.c.l.b16 %v40
  %v185 = vunpack.c.l.b16 %v41
  %v186 = vunpack.c.l.b16 %v42
  %v187 = vunpack.c.l.b16 %v43
  %v188 = vunpack.c.l.b16 %v44
  %v189 = vunpack.c.l.b16 %v45
  %v190 = vunpack.c.l.b16 %v46
  %v191 = vunpack.c.l.b16 %v47
  %v192 = vunpack.c.l.b16 %v48
  %v193 = vunpack.c.l.b16 %v49
  %v194 = vunpack.c.l.b16 %v50
  %v195 = vunpack.c.l.b16 %v51
  %v196 = vunpack.c.l.b16 %v52
  %v197 = vunpack.c.l.b16 %v53
  %v198 = vunpack.c.l.b16 %v54
  %v199 = vunpack.c.l.b16 %v55
  %v200 = vunpack.c.l.b16 %v56
  %v201 = vunpack.c.l.b16 %v57
  %v202 = vunpack.c.l.b16 %v58
  %v203 = vunpack.c.l.b16 %v59
  %v204 = vunpack.c.l.b16 %v60
  %v205 = vunpack.c.l.b16 %v61
  %v206 = vunpack.c.l.b16 %v62
  %v207 = vunpack.c.l.b16 %v63
  %v208 = vunpack.c.l.b16 %v64
  %v209 = vunpack.c.l.b16 %v65
  %v210 = vunpack.c.l.b16 %v66
  %v211 = vunpack.c.l.b16 %v67
  %v212 = vunpack.c.l.b16 %v68
  %v213 = vpack.c.b16 %v182, %v181
  %v214 = vpack.c.b16 %v184, %v183
  %v215 = vpack.c.b16 %v186, %v185
  %v216 = vpack.c.b16 %v188, %v187
  %v217 = vpack.c.b16 %v190, %v189
  %v218 = vpack.c.b16 %v192, %v191
  %v219 = vpack.c.b16 %v194, %v193
  %v220 = vpack.c.b16 %v196, %v195
  %v221 = vpack.c.b16 %v198, %v197
  %v222 = vpack.c.b16 %v200, %v199
  %v223 = vpack.c.b16 %v202, %v201
  %v224 = vpack.c.b16 %v204, %v203
  %v225 = vpack.c.b16 %v206, %v205
  %v226 = vpack.c.b16 %v208, %v207
  %v227 = vpack.c.b16 %v210, %v209
  %v228 = vpack.c.b16 %v212, %v211
  %245 = vmatprep.subr.bf16.mxu0 0
  %246 = vmatpush1.bf16.msra.mxu0 %v213
  %247 = vmatprep.subr.bf16.mxu0 0
  %248 = vmatpush1.bf16.msra.mxu0 %v214
  %249 = vmatprep.subr.bf16.mxu0 0
  %250 = vmatpush1.bf16.msra.mxu0 %v215
  %251 = vmatprep.subr.bf16.mxu0 0
  %252 = vmatpush1.bf16.msra.mxu0 %v216
  %253 = vmatprep.subr.bf16.mxu0 0
  %254 = vmatpush1.bf16.msra.mxu0 %v217
  %255 = vmatprep.subr.bf16.mxu0 0
  %256 = vmatpush1.bf16.msra.mxu0 %v218
  %257 = vmatprep.subr.bf16.mxu0 0
  %258 = vmatpush1.bf16.msra.mxu0 %v219
  %259 = vmatprep.subr.bf16.mxu0 0
  %260 = vmatpush1.bf16.msra.mxu0 %v220
  %261 = vmatprep.subr.bf16.mxu0 0
  %262 = vmatpush1.bf16.msra.mxu0 %v221
  %263 = vmatprep.subr.bf16.mxu0 0
  %264 = vmatpush1.bf16.msra.mxu0 %v222
  %265 = vmatprep.subr.bf16.mxu0 0
  %266 = vmatpush1.bf16.msra.mxu0 %v223
  %267 = vmatprep.subr.bf16.mxu0 0
  %268 = vmatpush1.bf16.msra.mxu0 %v224
  %269 = vmatprep.subr.bf16.mxu0 0
  %270 = vmatpush1.bf16.msra.mxu0 %v225
  %271 = vmatprep.subr.bf16.mxu0 0
  %272 = vmatpush1.bf16.msra.mxu0 %v226
  %273 = vmatprep.subr.bf16.mxu0 0
  %274 = vmatpush1.bf16.msra.mxu0 %v227
  %275 = vmatprep.subr.bf16.mxu0 0
  %276 = vmatpush1.bf16.msra.mxu0 %v228
  %277 = vmatprep.mubr.bf16.mxu0 %v118
  %278 = vmatmul.mubr.bf16.gmra.mrb[0].mxu0 %v117
  %v279 = vpop.f32.mrb[0].mxu0
  %v280 = vadd.f32 0.0, %v279
  %v281 = vpop.f32.mrb[0].mxu0
  %v282 = vpop.f32.mrb[0].mxu0
  %v283 = vadd.f32 0.0, %v282
  %v284 = vpop.f32.mrb[0].mxu0
  %285 = vmatprep.mubr.bf16.mxu0 %v120
  %286 = vmatmul.mubr.bf16.gmra.mrb[0].mxu0 %v119
  %v287 = vpop.f32.mrb[0].mxu0
  %v288 = vadd.f32 0.0, %v287
  %v289 = vpop.f32.mrb[0].mxu0
  %v290 = vpop.f32.mrb[0].mxu0
  %v291 = vadd.f32 0.0, %v290
  %v292 = vpop.f32.mrb[0].mxu0
  %293 = vmatprep.mubr.bf16.mxu0 %v122
  %294 = vmatmul.mubr.bf16.gmra.mrb[0].mxu0 %v121
  %v295 = vpop.f32.mrb[0].mxu0
  %v296 = vadd.f32 0.0, %v295
  %v297 = vpop.f32.mrb[0].mxu0
  %v298 = vpop.f32.mrb[0].mxu0
  %v299 = vadd.f32 0.0, %v298
  %v300 = vpop.f32.mrb[0].mxu0
  %301 = vmatprep.mubr.bf16.mxu0 %v124
  %302 = vmatmul.mubr.bf16.gmra.mrb[0].mxu0 %v123
  %v303 = vpop.f32.mrb[0].mxu0
  %v304 = vadd.f32 0.0, %v303
  %v305 = vpop.f32.mrb[0].mxu0
  %v306 = vpop.f32.mrb[0].mxu0
  %v307 = vadd.f32 0.0, %v306
  %v308 = vpop.f32.mrb[0].mxu0
  %309 = vmatprep.mubr.bf16.mxu0 %v126
  %310 = vmatmul.mubr.bf16.gmra.mrb[0].mxu0 %v125
  %v311 = vpop.f32.mrb[0].mxu0
  %v312 = vadd.f32 0.0, %v311
  %v313 = vpop.f32.mrb[0].mxu0
  %v314 = vpop.f32.mrb[0].mxu0
  %v315 = vadd.f32 0.0, %v314
  %v316 = vpop.f32.mrb[0].mxu0
  %317 = vmatprep.mubr.bf16.mxu0 %v128
  %318 = vmatmul.mubr.bf16.gmra.mrb[0].mxu0 %v127
  %v319 = vpop.f32.mrb[0].mxu0
  %v320 = vadd.f32 0.0, %v319
  %v321 = vpop.f32.mrb[0].mxu0
  %v322 = vpop.f32.mrb[0].mxu0
  %v323 = vadd.f32 0.0, %v322
  %v324 = vpop.f32.mrb[0].mxu0
  %325 = vmatprep.mubr.bf16.mxu0 %v130
  %326 = vmatmul.mubr.bf16.gmra.mrb[0].mxu0 %v129
  %v327 = vpop.f32.mrb[0].mxu0
  %v328 = vadd.f32 0.0, %v327
  %v329 = vpop.f32.mrb[0].mxu0
  %v330 = vpop.f32.mrb[0].mxu0
  %v331 = vadd.f32 0.0, %v330
  %v332 = vpop.f32.mrb[0].mxu0
  %333 = vmatprep.mubr.bf16.mxu0 %v132
  %334 = vmatmul.mubr.bf16.gmra.mrb[0].mxu0 %v131
  %v335 = vpop.f32.mrb[0].mxu0
  %v336 = vadd.f32 0.0, %v335
  %v337 = vpop.f32.mrb[0].mxu0
  %v338 = vpop.f32.mrb[0].mxu0
  %v339 = vadd.f32 0.0, %v338
  %v340 = vpop.f32.mrb[0].mxu0
  %341 = vdwg.mxu0
  %v342 = vld [vmem:[%s2] sm:$0x1]
  %v344 = vlaneseq
  %v345 = vshrl.u32 %v344, 7
  %v346 = vsub.s32 0, %v345
  %v347 = vrot.slane %v342, %v346
  %v349 = vmul.f32 %v280, %v347
  %v350 = vmul.f32 %v283, %v347
  %v351 = vmul.f32 %v288, %v347
  %v352 = vmul.f32 %v291, %v347
  %v353 = vmul.f32 %v296, %v347
  %v354 = vmul.f32 %v299, %v347
  %v355 = vmul.f32 %v304, %v347
  %v356 = vmul.f32 %v307, %v347
  %v357 = vmul.f32 %v312, %v347
  %v358 = vmul.f32 %v315, %v347
  %v359 = vmul.f32 %v320, %v347
  %v360 = vmul.f32 %v323, %v347
  %v361 = vmul.f32 %v328, %v347
  %v362 = vmul.f32 %v331, %v347
  %v363 = vmul.f32 %v336, %v347
  %v364 = vmul.f32 %v339, %v347
  %v365 = vld [vmem:[%s3] sm:$0x1]
  %v367 = vlaneseq
  %v368 = vshrl.u32 %v367, 7
  %v369 = vsub.s32 0, %v368
  %v370 = vrot.slane %v365, %v369
  %v372 = vadd.f32 %v349, %v370
  %v373 = vadd.f32 %v350, %v370
  %v374 = vadd.f32 %v351, %v370
  %v375 = vadd.f32 %v352, %v370
  %v376 = vadd.f32 %v353, %v370
  %v377 = vadd.f32 %v354, %v370
  %v378 = vadd.f32 %v355, %v370
  %v379 = vadd.f32 %v356, %v370
  %v380 = vadd.f32 %v357, %v370
  %v381 = vadd.f32 %v358, %v370
  %v382 = vadd.f32 %v359, %v370
  %v383 = vadd.f32 %v360, %v370
  %v384 = vadd.f32 %v361, %v370
  %v385 = vadd.f32 %v362, %v370
  %v386 = vadd.f32 %v363, %v370
  %v387 = vadd.f32 %v364, %v370
  %v388 = vld [vmem:[%s4] sm:$0x1]
  %v389 = vmax.f32 %v372, 0.0
  %v390 = vmax.f32 %v373, 0.0
  %v391 = vmax.f32 %v374, 0.0
  %v392 = vmax.f32 %v375, 0.0
  %v393 = vmax.f32 %v376, 0.0
  %v394 = vmax.f32 %v377, 0.0
  %v395 = vmax.f32 %v378, 0.0
  %v396 = vmax.f32 %v379, 0.0
  %v397 = vmax.f32 %v380, 0.0
  %v398 = vmax.f32 %v381, 0.0
  %v399 = vmax.f32 %v382, 0.0
  %v400 = vmax.f32 %v383, 0.0
  %v401 = vmax.f32 %v384, 0.0
  %v402 = vmax.f32 %v385, 0.0
  %v403 = vmax.f32 %v386, 0.0
  %v404 = vmax.f32 %v387, 0.0
  %v406 = vlaneseq
  %v407 = vshrl.u32 %v406, 7
  %v408 = vsub.s32 0, %v407
  %v409 = vrot.slane %v388, %v408
  %v411 = vmul.f32 %v389, %v409
  %v412 = vmul.f32 %v390, %v409
  %v413 = vmul.f32 %v391, %v409
  %v414 = vmul.f32 %v392, %v409
  %v415 = vmul.f32 %v393, %v409
  %v416 = vmul.f32 %v394, %v409
  %v417 = vmul.f32 %v395, %v409
  %v418 = vmul.f32 %v396, %v409
  %v419 = vmul.f32 %v397, %v409
  %v420 = vmul.f32 %v398, %v409
  %v421 = vmul.f32 %v399, %v409
  %v422 = vmul.f32 %v400, %v409
  %v423 = vmul.f32 %v401, %v409
  %v424 = vmul.f32 %v402, %v409
  %v425 = vmul.f32 %v403, %v409
  %v426 = vmul.f32 %v404, %v409
  %v427 = vsub.f32 1.0, %v388
  %v429 = vlaneseq
  %v430 = vshrl.u32 %v429, 7
  %v431 = vsub.s32 0, %v430
  %v432 = vrot.slane %v427, %v431
  %v434 = vmul.f32 %v372, %v432
  %v435 = vmul.f32 %v373, %v432
  %v436 = vmul.f32 %v374, %v432
  %v437 = vmul.f32 %v375, %v432
  %v438 = vmul.f32 %v376, %v432
  %v439 = vmul.f32 %v377, %v432
  %v440 = vmul.f32 %v378, %v432
  %v441 = vmul.f32 %v379, %v432
  %v442 = vmul.f32 %v380, %v432
  %v443 = vmul.f32 %v381, %v432
  %v444 = vmul.f32 %v382, %v432
  %v445 = vmul.f32 %v383, %v432
  %v446 = vmul.f32 %v384, %v432
  %v447 = vmul.f32 %v385, %v432
  %v448 = vmul.f32 %v386, %v432
  %v449 = vmul.f32 %v387, %v432
  %v450 = vadd.f32 %v411, %v434
  %v451 = vadd.f32 %v412, %v435
  %v452 = vadd.f32 %v413, %v436
  %v453 = vadd.f32 %v414, %v437
  %v454 = vadd.f32 %v415, %v438
  %v455 = vadd.f32 %v416, %v439
  %v456 = vadd.f32 %v417, %v440
  %v457 = vadd.f32 %v418, %v441
  %v458 = vadd.f32 %v419, %v442
  %v459 = vadd.f32 %v420, %v443
  %v460 = vadd.f32 %v421, %v444
  %v461 = vadd.f32 %v422, %v445
  %v462 = vadd.f32 %v423, %v446
  %v463 = vadd.f32 %v424, %v447
  %v464 = vadd.f32 %v425, %v448
  %v465 = vadd.f32 %v426, %v449
  %v466 = vpack.c.bf16 %v451, %v450
  %v467 = vpack.c.bf16 %v453, %v452
  %v468 = vpack.c.bf16 %v455, %v454
  %v469 = vpack.c.bf16 %v457, %v456
  %v470 = vpack.c.bf16 %v459, %v458
  %v471 = vpack.c.bf16 %v461, %v460
  %v472 = vpack.c.bf16 %v463, %v462
  %v473 = vpack.c.bf16 %v465, %v464
  %v482 = vunpack.c.l.b16 %v466
  %v483 = vunpack.c.h.b16 %v466
  %v484 = vunpack.c.l.b16 %v467
  %v485 = vunpack.c.h.b16 %v467
  %v486 = vunpack.c.l.b16 %v468
  %v487 = vunpack.c.h.b16 %v468
  %v488 = vunpack.c.l.b16 %v469
  %v489 = vunpack.c.h.b16 %v469
  %v490 = vunpack.c.l.b16 %v470
  %v491 = vunpack.c.h.b16 %v470
  %v492 = vunpack.c.l.b16 %v471
  %v493 = vunpack.c.h.b16 %v471
  %v494 = vunpack.c.l.b16 %v472
  %v495 = vunpack.c.h.b16 %v472
  %v496 = vunpack.c.l.b16 %v473
  %v497 = vunpack.c.h.b16 %v473
  %v498 = vpack.c.b16 %v482, %v482
  %v499 = vpack.c.b16 %v483, %v483
  %v500 = vpack.c.b16 %v484, %v484
  %v501 = vpack.c.b16 %v485, %v485
  %v502 = vpack.c.b16 %v486, %v486
  %v503 = vpack.c.b16 %v487, %v487
  %v504 = vpack.c.b16 %v488, %v488
  %v505 = vpack.c.b16 %v489, %v489
  %v506 = vpack.c.b16 %v490, %v490
  %v507 = vpack.c.b16 %v491, %v491
  %v508 = vpack.c.b16 %v492, %v492
  %v509 = vpack.c.b16 %v493, %v493
  %v510 = vpack.c.b16 %v494, %v494
  %v511 = vpack.c.b16 %v495, %v495
  %v512 = vpack.c.b16 %v496, %v496
  %v513 = vpack.c.b16 %v497, %v497
  %530 = vst [vmem:[%s5] sm:$0xf] %v498
  %531 = vst [vmem:[%s5 + $0x4] sm:$0xf] %v499
  %532 = vst [vmem:[%s5 + $0x8] sm:$0xf] %v500
  %533 = vst [vmem:[%s5 + $0xc] sm:$0xf] %v501
  %534 = vst [vmem:[%s5 + $0x10] sm:$0xf] %v502
  %535 = vst [vmem:[%s5 + $0x14] sm:$0xf] %v503
  %536 = vst [vmem:[%s5 + $0x18] sm:$0xf] %v504
  %537 = vst [vmem:[%s5 + $0x1c] sm:$0xf] %v505
  %538 = vst [vmem:[%s5 + $0x20] sm:$0xf] %v506
  %539 = vst [vmem:[%s5 + $0x24] sm:$0xf] %v507
  %540 = vst [vmem:[%s5 + $0x28] sm:$0xf] %v508
  %541 = vst [vmem:[%s5 + $0x2c] sm:$0xf] %v509
  %542 = vst [vmem:[%s5 + $0x30] sm:$0xf] %v510
  %543 = vst [vmem:[%s5 + $0x34] sm:$0xf] %v511
  %544 = vst [vmem:[%s5 + $0x38] sm:$0xf] %v512
  %545 = vst [vmem:[%s5 + $0x3c] sm:$0xf] %v513
  // Predicated region
  $region22: #{_lambda_.11} parent=0 // pred_check
    _
  $region23: #{_lambda_.11} parent=0 // pred_check_branch
    %547 = sbr.rel (0) target = $region25
  $region24: #{_lambda_.11} parent=0 // pred_region
    _
  $region25: #{_lambda_.11} parent=0 // pred_fallthru
    _
  // Predicated region
  $region26: #{_lambda_.11} parent=0 // pred_check
    _
  $region27: #{_lambda_.11} parent=0 // pred_check_branch
    %549 = sbr.rel (0) target = $region29
  $region28: #{_lambda_.11} parent=0 // pred_region
    _
  $region29: #{_lambda_.11} parent=0 // pred_fallthru
    _

// kernel: _lambda_.13
$region0: #{_lambda_.13}
  #allocation0 [shape = 'u32[]', space=smem, size = 0x4, offset = 0x4, fixed_abs, tag = 'smem constant byte address 0x4 - core index']
  #allocation1 [shape = 'u32[144,128]{1,0:T(1,128)}', space=vmem, size = 0x12000, scoped, tag = 'internal scratch']
  %s0 = inlined_call_operand.vmem [shape: bf16[16,128], index: 0, kind: input, shape index: {}]
  %s1 = inlined_call_operand.vmem [shape: bf16[128,128], index: 1, kind: input, shape index: {}]
  %s2 = inlined_call_operand.vmem [shape: f32[1,128], index: 2, kind: input, shape index: {}]
  %s3 = inlined_call_operand.vmem [shape: f32[1,128], index: 3, kind: input, shape index: {}]
  %s4 = inlined_call_operand.vmem [shape: bf16[16,128], index: 4, kind: output, shape index: {}]
  %s5 = sld [smem:[#allocation0]]
  $region26: #{_lambda_.13} parent=0
    _
  %s7 = ssub.s32 1, %s5
  %s8 = scalar_select 0, %s7, %s5
  // Predicated region
  $region2: #{_lambda_.13} parent=0 // pred_check
    _
  $region3: #{_lambda_.13} parent=0 // pred_check_branch
    %10 = sbr.rel (0) target = $region5
  $region4: #{_lambda_.13} parent=0 // pred_region
    _
  $region5: #{_lambda_.13} parent=0 // pred_fallthru
    _
  // Predicated region
  $region6: #{_lambda_.13} parent=0 // pred_check
    _
  $region7: #{_lambda_.13} parent=0 // pred_check_branch
    %12 = sbr.rel (0) target = $region9
  $region8: #{_lambda_.13} parent=0 // pred_region
    _
  $region9: #{_lambda_.13} parent=0 // pred_fallthru
    _
  // Predicated region
  $region10: #{_lambda_.13} parent=0 // pred_check
    _
  $region11: #{_lambda_.13} parent=0 // pred_check_branch
    %14 = sbr.rel (0) target = $region13
  $region12: #{_lambda_.13} parent=0 // pred_region
    _
  $region13: #{_lambda_.13} parent=0 // pred_fallthru
    _
  // Predicated region
  $region14: #{_lambda_.13} parent=0 // pred_check
    _
  $region15: #{_lambda_.13} parent=0 // pred_check_branch
    %16 = sbr.rel (0) target = $region17
  $region16: #{_lambda_.13} parent=0 // pred_region
    _
  $region17: #{_lambda_.13} parent=0 // pred_fallthru
    _
  %v18 = vld [vmem:[%s0] sm:$0xf]
  %v19 = vld [vmem:[%s0 + $0x4] sm:$0xf]
  %v20 = vld [vmem:[%s1] sm:$0xf]
  %v21 = vld [vmem:[%s1 + $0x4] sm:$0xf]
  %v22 = vld [vmem:[%s1 + $0x8] sm:$0xf]
  %v23 = vld [vmem:[%s1 + $0xc] sm:$0xf]
  %v24 = vld [vmem:[%s1 + $0x10] sm:$0xf]
  %v25 = vld [vmem:[%s1 + $0x14] sm:$0xf]
  %v26 = vld [vmem:[%s1 + $0x18] sm:$0xf]
  %v27 = vld [vmem:[%s1 + $0x1c] sm:$0xf]
  %v28 = vld [vmem:[%s1 + $0x20] sm:$0xf]
  %v29 = vld [vmem:[%s1 + $0x24] sm:$0xf]
  %v30 = vld [vmem:[%s1 + $0x28] sm:$0xf]
  %v31 = vld [vmem:[%s1 + $0x2c] sm:$0xf]
  %v32 = vld [vmem:[%s1 + $0x30] sm:$0xf]
  %v33 = vld [vmem:[%s1 + $0x34] sm:$0xf]
  %v34 = vld [vmem:[%s1 + $0x38] sm:$0xf]
  %v35 = vld [vmem:[%s1 + $0x3c] sm:$0xf]
  %v38 = vunpack.c.l.b16 %v18
  %v39 = vunpack.c.l.b16 %v19
  %v40 = vpack.c.b16 %v39, %v38
  %v58 = vunpack.c.l.b16 %v20
  %v59 = vunpack.c.l.b16 %v21
  %v60 = vunpack.c.l.b16 %v22
  %v61 = vunpack.c.l.b16 %v23
  %v62 = vunpack.c.l.b16 %v24
  %v63 = vunpack.c.l.b16 %v25
  %v64 = vunpack.c.l.b16 %v26
  %v65 = vunpack.c.l.b16 %v27
  %v66 = vunpack.c.l.b16 %v28
  %v67 = vunpack.c.l.b16 %v29
  %v68 = vunpack.c.l.b16 %v30
  %v69 = vunpack.c.l.b16 %v31
  %v70 = vunpack.c.l.b16 %v32
  %v71 = vunpack.c.l.b16 %v33
  %v72 = vunpack.c.l.b16 %v34
  %v73 = vunpack.c.l.b16 %v35
  %v74 = vpack.c.b16 %v59, %v58
  %v75 = vpack.c.b16 %v61, %v60
  %v76 = vpack.c.b16 %v63, %v62
  %v77 = vpack.c.b16 %v65, %v64
  %v78 = vpack.c.b16 %v67, %v66
  %v79 = vpack.c.b16 %v69, %v68
  %v80 = vpack.c.b16 %v71, %v70
  %v81 = vpack.c.b16 %v73, %v72
  %90 = vmatprep.subr.bf16.mxu0 0
  %91 = vmatpush1.bf16.msra.mxu0 %v74
  %92 = vmatprep.subr.bf16.mxu0 0
  %93 = vmatpush1.bf16.msra.mxu0 %v75
  %94 = vmatprep.subr.bf16.mxu0 0
  %95 = vmatpush1.bf16.msra.mxu0 %v76
  %96 = vmatprep.subr.bf16.mxu0 0
  %97 = vmatpush1.bf16.msra.mxu0 %v77
  %98 = vmatprep.subr.bf16.mxu0 0
  %99 = vmatpush1.bf16.msra.mxu0 %v78
  %100 = vmatprep.subr.bf16.mxu0 0
  %101 = vmatpush1.bf16.msra.mxu0 %v79
  %102 = vmatprep.subr.bf16.mxu0 0
  %103 = vmatpush1.bf16.msra.mxu0 %v80
  %104 = vmatprep.subr.bf16.mxu0 0
  %105 = vmatpush1.bf16.msra.mxu0 %v81
  %106 = vmatprep.subr.bf16.mxu0 0
  %107 = vmatpush1.bf16.msra.mxu0 0
  %108 = vmatprep.subr.bf16.mxu0 0
  %109 = vmatpush1.bf16.msra.mxu0 0
  %110 = vmatprep.subr.bf16.mxu0 0
  %111 = vmatpush1.bf16.msra.mxu0 0
  %112 = vmatprep.subr.bf16.mxu0 0
  %113 = vmatpush1.bf16.msra.mxu0 0
  %114 = vmatprep.subr.bf16.mxu0 0
  %115 = vmatpush1.bf16.msra.mxu0 0
  %116 = vmatprep.subr.bf16.mxu0 0
  %117 = vmatpush1.bf16.msra.mxu0 0
  %118 = vmatprep.subr.bf16.mxu0 0
  %119 = vmatpush1.bf16.msra.mxu0 0
  %120 = vmatprep.subr.bf16.mxu0 0
  %121 = vmatpush1.bf16.msra.mxu0 0
  %122 = vmatprep.mubr.bf16.mxu0 0
  %123 = vmatmul.mubr.bf16.gmra.mrb[0].mxu0 %v40
  %v124 = vpop.f32.mrb[0].mxu0
  %v125 = vadd.f32 0.0, %v124
  %v126 = vpop.f32.mrb[0].mxu0
  %v127 = vpop.f32.mrb[0].mxu0
  %v128 = vadd.f32 0.0, %v127
  %v129 = vpop.f32.mrb[0].mxu0
  %130 = vdwg.mxu0
  %v131 = vld [vmem:[%s2] sm:$0x1]
  %v133 = vlaneseq
  %v134 = vshrl.u32 %v133, 7
  %v135 = vsub.s32 0, %v134
  %v136 = vrot.slane %v131, %v135
  %v138 = vmul.f32 %v125, %v136
  %v139 = vmul.f32 %v128, %v136
  %v140 = vld [vmem:[%s3] sm:$0x1]
  %v142 = vlaneseq
  %v143 = vshrl.u32 %v142, 7
  %v144 = vsub.s32 0, %v143
  %v145 = vrot.slane %v140, %v144
  %v147 = vadd.f32 %v138, %v145
  %v148 = vadd.f32 %v139, %v145
  %v149 = vmax.f32 %v147, 0.0
  %v150 = vmax.f32 %v148, 0.0
  %v151 = vpack.c.bf16 %v150, %v149
  %v153 = vunpack.c.l.b16 %v151
  %v154 = vunpack.c.h.b16 %v151
  %v155 = vpack.c.b16 %v153, %v153
  %v156 = vpack.c.b16 %v154, %v154
  %159 = vst [vmem:[%s4] sm:$0xf] %v155
  %160 = vst [vmem:[%s4 + $0x4] sm:$0xf] %v156
  // Predicated region
  $region18: #{_lambda_.13} parent=0 // pred_check
    _
  $region19: #{_lambda_.13} parent=0 // pred_check_branch
    %162 = sbr.rel (0) target = $region21
  $region20: #{_lambda_.13} parent=0 // pred_region
    _
  $region21: #{_lambda_.13} parent=0 // pred_fallthru
    _
  // Predicated region
  $region22: #{_lambda_.13} parent=0 // pred_check
    _
  $region23: #{_lambda_.13} parent=0 // pred_check_branch
    %164 = sbr.rel (0) target = $region25
  $region24: #{_lambda_.13} parent=0 // pred_region
    _
  $region25: #{_lambda_.13} parent=0 // pred_fallthru
    _

// kernel: _lambda_.12
$region0: #{_lambda_.12}
  #allocation0 [shape = 'u32[]', space=smem, size = 0x4, offset = 0x4, fixed_abs, tag = 'smem constant byte address 0x4 - core index']
  #allocation1 [shape = 'u32[144,128]{1,0:T(1,128)}', space=vmem, size = 0x12000, scoped, tag = 'internal scratch']
  %s0 = inlined_call_operand.vmem [shape: bf16[128,384], index: 0, kind: input, shape index: {}]
  %s1 = inlined_call_operand.vmem [shape: bf16[384,128], index: 1, kind: input, shape index: {}]
  %s2 = inlined_call_operand.vmem [shape: f32[1,128], index: 2, kind: input, shape index: {}]
  %s3 = inlined_call_operand.vmem [shape: f32[1,128], index: 3, kind: input, shape index: {}]
  %s4 = inlined_call_operand.vmem [shape: bf16[128,128], index: 4, kind: input, shape index: {}]
  %s5 = inlined_call_operand.vmem [shape: bf16[128,128], index: 5, kind: output, shape index: {}]
  %s6 = sld [smem:[#allocation0]]
  $region30: #{_lambda_.12} parent=0
    _
  %s8 = ssub.s32 1, %s6
  %s9 = scalar_select 0, %s8, %s6
  // Predicated region
  $region2: #{_lambda_.12} parent=0 // pred_check
    _
  $region3: #{_lambda_.12} parent=0 // pred_check_branch
    %11 = sbr.rel (0) target = $region5
  $region4: #{_lambda_.12} parent=0 // pred_region
    _
  $region5: #{_lambda_.12} parent=0 // pred_fallthru
    _
  // Predicated region
  $region6: #{_lambda_.12} parent=0 // pred_check
    _
  $region7: #{_lambda_.12} parent=0 // pred_check_branch
    %13 = sbr.rel (0) target = $region9
  $region8: #{_lambda_.12} parent=0 // pred_region
    _
  $region9: #{_lambda_.12} parent=0 // pred_fallthru
    _
  // Predicated region
  $region10: #{_lambda_.12} parent=0 // pred_check
    _
  $region11: #{_lambda_.12} parent=0 // pred_check_branch
    %15 = sbr.rel (0) target = $region13
  $region12: #{_lambda_.12} parent=0 // pred_region
    _
  $region13: #{_lambda_.12} parent=0 // pred_fallthru
    _
  // Predicated region
  $region14: #{_lambda_.12} parent=0 // pred_check
    _
  $region15: #{_lambda_.12} parent=0 // pred_check_branch
    %17 = sbr.rel (0) target = $region17
  $region16: #{_lambda_.12} parent=0 // pred_region
    _
  $region17: #{_lambda_.12} parent=0 // pred_fallthru
    _
  // Predicated region
  $region18: #{_lambda_.12} parent=0 // pred_check
    _
  $region19: #{_lambda_.12} parent=0 // pred_check_branch
    %19 = sbr.rel (0) target = $region21
  $region20: #{_lambda_.12} parent=0 // pred_region
    _
  $region21: #{_lambda_.12} parent=0 // pred_fallthru
    _
  %v21 = vld [vmem:[%s0] sm:$0xff]
  %v22 = vld [vmem:[%s0 + $0x8] sm:$0xf]
  %v23 = vld [vmem:[%s0 + $0xc] sm:$0xff]
  %v24 = vld [vmem:[%s0 + $0x14] sm:$0xf]
  %v25 = vld [vmem:[%s0 + $0x18] sm:$0xff]
  %v26 = vld [vmem:[%s0 + $0x20] sm:$0xf]
  %v27 = vld [vmem:[%s0 + $0x24] sm:$0xff]
  %v28 = vld [vmem:[%s0 + $0x2c] sm:$0xf]
  %v29 = vld [vmem:[%s0 + $0x30] sm:$0xff]
  %v30 = vld [vmem:[%s0 + $0x38] sm:$0xf]
  %v31 = vld [vmem:[%s0 + $0x3c] sm:$0xff]
  %v32 = vld [vmem:[%s0 + $0x44] sm:$0xf]
  %v33 = vld [vmem:[%s0 + $0x48] sm:$0xff]
  %v34 = vld [vmem:[%s0 + $0x50] sm:$0xf]
  %v35 = vld [vmem:[%s0 + $0x54] sm:$0xff]
  %v36 = vld [vmem:[%s0 + $0x5c] sm:$0xf]
  %v37 = vld [vmem:[%s0 + $0x60] sm:$0xff]
  %v38 = vld [vmem:[%s0 + $0x68] sm:$0xf]
  %v39 = vld [vmem:[%s0 + $0x6c] sm:$0xff]
  %v40 = vld [vmem:[%s0 + $0x74] sm:$0xf]
  %v41 = vld [vmem:[%s0 + $0x78] sm:$0xff]
  %v42 = vld [vmem:[%s0 + $0x80] sm:$0xf]
  %v43 = vld [vmem:[%s0 + $0x84] sm:$0xff]
  %v44 = vld [vmem:[%s0 + $0x8c] sm:$0xf]
  %v45 = vld [vmem:[%s0 + $0x90] sm:$0xff]
  %v46 = vld [vmem:[%s0 + $0x98] sm:$0xf]
  %v47 = vld [vmem:[%s0 + $0x9c] sm:$0xff]
  %v48 = vld [vmem:[%s0 + $0xa4] sm:$0xf]
  %v49 = vld [vmem:[%s0 + $0xa8] sm:$0xff]
  %v50 = vld [vmem:[%s0 + $0xb0] sm:$0xf]
  %v51 = vld [vmem:[%s0 + $0xb4] sm:$0xff]
  %v52 = vld [vmem:[%s0 + $0xbc] sm:$0xf]
  %v53 = vld [vmem:[%s1] sm:$0xf]
  %v54 = vld [vmem:[%s1 + $0x4] sm:$0xf]
  %v55 = vld [vmem:[%s1 + $0x8] sm:$0xf]
  %v56 = vld [vmem:[%s1 + $0xc] sm:$0xf]
  %v57 = vld [vmem:[%s1 + $0x10] sm:$0xf]
  %v58 = vld [vmem:[%s1 + $0x14] sm:$0xf]
  %v59 = vld [vmem:[%s1 + $0x18] sm:$0xf]
  %v60 = vld [vmem:[%s1 + $0x1c] sm:$0xf]
  %v61 = vld [vmem:[%s1 + $0x20] sm:$0xf]
  %v62 = vld [vmem:[%s1 + $0x24] sm:$0xf]
  %v63 = vld [vmem:[%s1 + $0x28] sm:$0xf]
  %v64 = vld [vmem:[%s1 + $0x2c] sm:$0xf]
  %v65 = vld [vmem:[%s1 + $0x30] sm:$0xf]
  %v66 = vld [vmem:[%s1 + $0x34] sm:$0xf]
  %v67 = vld [vmem:[%s1 + $0x38] sm:$0xf]
  %v68 = vld [vmem:[%s1 + $0x3c] sm:$0xf]
  %v69 = vld [vmem:[%s1 + $0x40] sm:$0xf]
  %v70 = vld [vmem:[%s1 + $0x44] sm:$0xf]
  %v71 = vld [vmem:[%s1 + $0x48] sm:$0xf]
  %v72 = vld [vmem:[%s1 + $0x4c] sm:$0xf]
  %v73 = vld [vmem:[%s1 + $0x50] sm:$0xf]
  %v74 = vld [vmem:[%s1 + $0x54] sm:$0xf]
  %v75 = vld [vmem:[%s1 + $0x58] sm:$0xf]
  %v76 = vld [vmem:[%s1 + $0x5c] sm:$0xf]
  %v77 = vld [vmem:[%s1 + $0x60] sm:$0xf]
  %v78 = vld [vmem:[%s1 + $0x64] sm:$0xf]
  %v79 = vld [vmem:[%s1 + $0x68] sm:$0xf]
  %v80 = vld [vmem:[%s1 + $0x6c] sm:$0xf]
  %v81 = vld [vmem:[%s1 + $0x70] sm:$0xf]
  %v82 = vld [vmem:[%s1 + $0x74] sm:$0xf]
  %v83 = vld [vmem:[%s1 + $0x78] sm:$0xf]
  %v84 = vld [vmem:[%s1 + $0x7c] sm:$0xf]
  %v85 = vld [vmem:[%s1 + $0x80] sm:$0xf]
  %v86 = vld [vmem:[%s1 + $0x84] sm:$0xf]
  %v87 = vld [vmem:[%s1 + $0x88] sm:$0xf]
  %v88 = vld [vmem:[%s1 + $0x8c] sm:$0xf]
  %v89 = vld [vmem:[%s1 + $0x90] sm:$0xf]
  %v90 = vld [vmem:[%s1 + $0x94] sm:$0xf]
  %v91 = vld [vmem:[%s1 + $0x98] sm:$0xf]
  %v92 = vld [vmem:[%s1 + $0x9c] sm:$0xf]
  %v93 = vld [vmem:[%s1 + $0xa0] sm:$0xf]
  %v94 = vld [vmem:[%s1 + $0xa4] sm:$0xf]
  %v95 = vld [vmem:[%s1 + $0xa8] sm:$0xf]
  %v96 = vld [vmem:[%s1 + $0xac] sm:$0xf]
  %v97 = vld [vmem:[%s1 + $0xb0] sm:$0xf]
  %v98 = vld [vmem:[%s1 + $0xb4] sm:$0xf]
  %v99 = vld [vmem:[%s1 + $0xb8] sm:$0xf]
  %v100 = vld [vmem:[%s1 + $0xbc] sm:$0xf]
  %v133 = vunpack.c.l.b16 %v21
  %v134 = vunpack.c.h.b16 %v21
  %v135 = vunpack.c.l.b16 %v22
  %v136 = vunpack.c.l.b16 %v23
  %v137 = vunpack.c.h.b16 %v23
  %v138 = vunpack.c.l.b16 %v24
  %v139 = vunpack.c.l.b16 %v25
  %v140 = vunpack.c.h.b16 %v25
  %v141 = vunpack.c.l.b16 %v26
  %v142 = vunpack.c.l.b16 %v27
  %v143 = vunpack.c.h.b16 %v27
  %v144 = vunpack.c.l.b16 %v28
  %v145 = vunpack.c.l.b16 %v29
  %v146 = vunpack.c.h.b16 %v29
  %v147 = vunpack.c.l.b16 %v30
  %v148 = vunpack.c.l.b16 %v31
  %v149 = vunpack.c.h.b16 %v31
  %v150 = vunpack.c.l.b16 %v32
  %v151 = vunpack.c.l.b16 %v33
  %v152 = vunpack.c.h.b16 %v33
  %v153 = vunpack.c.l.b16 %v34
  %v154 = vunpack.c.l.b16 %v35
  %v155 = vunpack.c.h.b16 %v35
  %v156 = vunpack.c.l.b16 %v36
  %v157 = vunpack.c.l.b16 %v37
  %v158 = vunpack.c.h.b16 %v37
  %v159 = vunpack.c.l.b16 %v38
  %v160 = vunpack.c.l.b16 %v39
  %v161 = vunpack.c.h.b16 %v39
  %v162 = vunpack.c.l.b16 %v40
  %v163 = vunpack.c.l.b16 %v41
  %v164 = vunpack.c.h.b16 %v41
  %v165 = vunpack.c.l.b16 %v42
  %v166 = vunpack.c.l.b16 %v43
  %v167 = vunpack.c.h.b16 %v43
  %v168 = vunpack.c.l.b16 %v44
  %v169 = vunpack.c.l.b16 %v45
  %v170 = vunpack.c.h.b16 %v45
  %v171 = vunpack.c.l.b16 %v46
  %v172 = vunpack.c.l.b16 %v47
  %v173 = vunpack.c.h.b16 %v47
  %v174 = vunpack.c.l.b16 %v48
  %v175 = vunpack.c.l.b16 %v49
  %v176 = vunpack.c.h.b16 %v49
  %v177 = vunpack.c.l.b16 %v50
  %v178 = vunpack.c.l.b16 %v51
  %v179 = vunpack.c.h.b16 %v51
  %v180 = vunpack.c.l.b16 %v52
  %v181 = vpack.c.b16 %v136, %v133
  %v182 = vpack.c.b16 %v137, %v134
  %v183 = vpack.c.b16 %v138, %v135
  %v184 = vpack.c.b16 %v142, %v139
  %v185 = vpack.c.b16 %v143, %v140
  %v186 = vpack.c.b16 %v144, %v141
  %v187 = vpack.c.b16 %v148, %v145
  %v188 = vpack.c.b16 %v149, %v146
  %v189 = vpack.c.b16 %v150, %v147
  %v190 = vpack.c.b16 %v154, %v151
  %v191 = vpack.c.b16 %v155, %v152
  %v192 = vpack.c.b16 %v156, %v153
  %v193 = vpack.c.b16 %v160, %v157
  %v194 = vpack.c.b16 %v161, %v158
  %v195 = vpack.c.b16 %v162, %v159
  %v196 = vpack.c.b16 %v166, %v163
  %v197 = vpack.c.b16 %v167, %v164
  %v198 = vpack.c.b16 %v168, %v165
  %v199 = vpack.c.b16 %v172, %v169
  %v200 = vpack.c.b16 %v173, %v170
  %v201 = vpack.c.b16 %v174, %v171
  %v202 = vpack.c.b16 %v178, %v175
  %v203 = vpack.c.b16 %v179, %v176
  %v204 = vpack.c.b16 %v180, %v177
  %v277 = vunpack.c.l.b16 %v53
  %v278 = vunpack.c.l.b16 %v54
  %v279 = vunpack.c.l.b16 %v55
  %v280 = vunpack.c.l.b16 %v56
  %v281 = vunpack.c.l.b16 %v57
  %v282 = vunpack.c.l.b16 %v58
  %v283 = vunpack.c.l.b16 %v59
  %v284 = vunpack.c.l.b16 %v60
  %v285 = vunpack.c.l.b16 %v61
  %v286 = vunpack.c.l.b16 %v62
  %v287 = vunpack.c.l.b16 %v63
  %v288 = vunpack.c.l.b16 %v64
  %v289 = vunpack.c.l.b16 %v65
  %v290 = vunpack.c.l.b16 %v66
  %v291 = vunpack.c.l.b16 %v67
  %v292 = vunpack.c.l.b16 %v68
  %v293 = vunpack.c.l.b16 %v69
  %v294 = vunpack.c.l.b16 %v70
  %v295 = vunpack.c.l.b16 %v71
  %v296 = vunpack.c.l.b16 %v72
  %v297 = vunpack.c.l.b16 %v73
  %v298 = vunpack.c.l.b16 %v74
  %v299 = vunpack.c.l.b16 %v75
  %v300 = vunpack.c.l.b16 %v76
  %v301 = vunpack.c.l.b16 %v77
  %v302 = vunpack.c.l.b16 %v78
  %v303 = vunpack.c.l.b16 %v79
  %v304 = vunpack.c.l.b16 %v80
  %v305 = vunpack.c.l.b16 %v81
  %v306 = vunpack.c.l.b16 %v82
  %v307 = vunpack.c.l.b16 %v83
  %v308 = vunpack.c.l.b16 %v84
  %v309 = vunpack.c.l.b16 %v85
  %v310 = vunpack.c.l.b16 %v86
  %v311 = vunpack.c.l.b16 %v87
  %v312 = vunpack.c.l.b16 %v88
  %v313 = vunpack.c.l.b16 %v89
  %v314 = vunpack.c.l.b16 %v90
  %v315 = vunpack.c.l.b16 %v91
  %v316 = vunpack.c.l.b16 %v92
  %v317 = vunpack.c.l.b16 %v93
  %v318 = vunpack.c.l.b16 %v94
  %v319 = vunpack.c.l.b16 %v95
  %v320 = vunpack.c.l.b16 %v96
  %v321 = vunpack.c.l.b16 %v97
  %v322 = vunpack.c.l.b16 %v98
  %v323 = vunpack.c.l.b16 %v99
  %v324 = vunpack.c.l.b16 %v100
  %v325 = vpack.c.b16 %v278, %v277
  %v326 = vpack.c.b16 %v280, %v279
  %v327 = vpack.c.b16 %v282, %v281
  %v328 = vpack.c.b16 %v284, %v283
  %v329 = vpack.c.b16 %v286, %v285
  %v330 = vpack.c.b16 %v288, %v287
  %v331 = vpack.c.b16 %v290, %v289
  %v332 = vpack.c.b16 %v292, %v291
  %v333 = vpack.c.b16 %v294, %v293
  %v334 = vpack.c.b16 %v296, %v295
  %v335 = vpack.c.b16 %v298, %v297
  %v336 = vpack.c.b16 %v300, %v299
  %v337 = vpack.c.b16 %v302, %v301
  %v338 = vpack.c.b16 %v304, %v303
  %v339 = vpack.c.b16 %v306, %v305
  %v340 = vpack.c.b16 %v308, %v307
  %v341 = vpack.c.b16 %v310, %v309
  %v342 = vpack.c.b16 %v312, %v311
  %v343 = vpack.c.b16 %v314, %v313
  %v344 = vpack.c.b16 %v316, %v315
  %v345 = vpack.c.b16 %v318, %v317
  %v346 = vpack.c.b16 %v320, %v319
  %v347 = vpack.c.b16 %v322, %v321
  %v348 = vpack.c.b16 %v324, %v323
  %373 = vmatprep.subr.bf16.mxu0 0
  %374 = vmatpush1.bf16.msra.mxu0 %v325
  %375 = vmatprep.subr.bf16.mxu0 0
  %376 = vmatpush1.bf16.msra.mxu0 %v326
  %377 = vmatprep.subr.bf16.mxu0 0
  %378 = vmatpush1.bf16.msra.mxu0 %v327
  %379 = vmatprep.subr.bf16.mxu0 0
  %380 = vmatpush1.bf16.msra.mxu0 %v328
  %381 = vmatprep.subr.bf16.mxu0 0
  %382 = vmatpush1.bf16.msra.mxu0 %v329
  %383 = vmatprep.subr.bf16.mxu0 0
  %384 = vmatpush1.bf16.msra.mxu0 %v330
  %385 = vmatprep.subr.bf16.mxu0 0
  %386 = vmatpush1.bf16.msra.mxu0 %v331
  %387 = vmatprep.subr.bf16.mxu0 0
  %388 = vmatpush1.bf16.msra.mxu0 %v332
  %389 = vmatprep.subr.bf16.mxu0 0
  %390 = vmatpush1.bf16.msra.mxu0 %v333
  %391 = vmatprep.subr.bf16.mxu0 0
  %392 = vmatpush1.bf16.msra.mxu0 %v334
  %393 = vmatprep.subr.bf16.mxu0 0
  %394 = vmatpush1.bf16.msra.mxu0 %v335
  %395 = vmatprep.subr.bf16.mxu0 0
  %396 = vmatpush1.bf16.msra.mxu0 %v336
  %397 = vmatprep.subr.bf16.mxu0 0
  %398 = vmatpush1.bf16.msra.mxu0 %v337
  %399 = vmatprep.subr.bf16.mxu0 0
  %400 = vmatpush1.bf16.msra.mxu0 %v338
  %401 = vmatprep.subr.bf16.mxu0 0
  %402 = vmatpush1.bf16.msra.mxu0 %v339
  %403 = vmatprep.subr.bf16.mxu0 0
  %404 = vmatpush1.bf16.msra.mxu0 %v340
  %405 = vmatprep.mubr.bf16.mxu0 %v182
  %406 = vmatmul.mubr.bf16.gmra.mrb[0].mxu0 %v181
  %v407 = vpop.f32.mrb[0].mxu0
  %v408 = vadd.f32 0.0, %v407
  %v409 = vpop.f32.mrb[0].mxu0
  %v410 = vpop.f32.mrb[0].mxu0
  %v411 = vadd.f32 0.0, %v410
  %v412 = vpop.f32.mrb[0].mxu0
  %413 = vmatprep.mubr.bf16.mxu0 %v185
  %414 = vmatmul.mubr.bf16.gmra.mrb[0].mxu0 %v184
  %v415 = vpop.f32.mrb[0].mxu0
  %v416 = vadd.f32 0.0, %v415
  %v417 = vpop.f32.mrb[0].mxu0
  %v418 = vpop.f32.mrb[0].mxu0
  %v419 = vadd.f32 0.0, %v418
  %v420 = vpop.f32.mrb[0].mxu0
  %421 = vmatprep.mubr.bf16.mxu0 %v188
  %422 = vmatmul.mubr.bf16.gmra.mrb[0].mxu0 %v187
  %v423 = vpop.f32.mrb[0].mxu0
  %v424 = vadd.f32 0.0, %v423
  %v425 = vpop.f32.mrb[0].mxu0
  %v426 = vpop.f32.mrb[0].mxu0
  %v427 = vadd.f32 0.0, %v426
  %v428 = vpop.f32.mrb[0].mxu0
  %429 = vmatprep.mubr.bf16.mxu0 %v191
  %430 = vmatmul.mubr.bf16.gmra.mrb[0].mxu0 %v190
  %v431 = vpop.f32.mrb[0].mxu0
  %v432 = vadd.f32 0.0, %v431
  %v433 = vpop.f32.mrb[0].mxu0
  %v434 = vpop.f32.mrb[0].mxu0
  %v435 = vadd.f32 0.0, %v434
  %v436 = vpop.f32.mrb[0].mxu0
  %437 = vmatprep.mubr.bf16.mxu0 %v194
  %438 = vmatmul.mubr.bf16.gmra.mrb[0].mxu0 %v193
  %v439 = vpop.f32.mrb[0].mxu0
  %v440 = vadd.f32 0.0, %v439
  %v441 = vpop.f32.mrb[0].mxu0
  %v442 = vpop.f32.mrb[0].mxu0
  %v443 = vadd.f32 0.0, %v442
  %v444 = vpop.f32.mrb[0].mxu0
  %445 = vmatprep.mubr.bf16.mxu0 %v197
  %446 = vmatmul.mubr.bf16.gmra.mrb[0].mxu0 %v196
  %v447 = vpop.f32.mrb[0].mxu0
  %v448 = vadd.f32 0.0, %v447
  %v449 = vpop.f32.mrb[0].mxu0
  %v450 = vpop.f32.mrb[0].mxu0
  %v451 = vadd.f32 0.0, %v450
  %v452 = vpop.f32.mrb[0].mxu0
  %453 = vmatprep.mubr.bf16.mxu0 %v200
  %454 = vmatmul.mubr.bf16.gmra.mrb[0].mxu0 %v199
  %v455 = vpop.f32.mrb[0].mxu0
  %v456 = vadd.f32 0.0, %v455
  %v457 = vpop.f32.mrb[0].mxu0
  %v458 = vpop.f32.mrb[0].mxu0
  %v459 = vadd.f32 0.0, %v458
  %v460 = vpop.f32.mrb[0].mxu0
  %461 = vmatprep.mubr.bf16.mxu0 %v203
  %462 = vmatmul.mubr.bf16.gmra.mrb[0].mxu0 %v202
  %v463 = vpop.f32.mrb[0].mxu0
  %v464 = vadd.f32 0.0, %v463
  %v465 = vpop.f32.mrb[0].mxu0
  %v466 = vpop.f32.mrb[0].mxu0
  %v467 = vadd.f32 0.0, %v466
  %v468 = vpop.f32.mrb[0].mxu0
  %469 = vdwg.mxu0
  %470 = vmatprep.subr.bf16.mxu0 0
  %471 = vmatpush1.bf16.msra.mxu0 %v341
  %472 = vmatprep.subr.bf16.mxu0 0
  %473 = vmatpush1.bf16.msra.mxu0 %v342
  %474 = vmatprep.subr.bf16.mxu0 0
  %475 = vmatpush1.bf16.msra.mxu0 %v343
  %476 = vmatprep.subr.bf16.mxu0 0
  %477 = vmatpush1.bf16.msra.mxu0 %v344
  %478 = vmatprep.subr.bf16.mxu0 0
  %479 = vmatpush1.bf16.msra.mxu0 %v345
  %480 = vmatprep.subr.bf16.mxu0 0
  %481 = vmatpush1.bf16.msra.mxu0 %v346
  %482 = vmatprep.subr.bf16.mxu0 0
  %483 = vmatpush1.bf16.msra.mxu0 %v347
  %484 = vmatprep.subr.bf16.mxu0 0
  %485 = vmatpush1.bf16.msra.mxu0 %v348
  %486 = vmatprep.subr.bf16.mxu0 0
  %487 = vmatpush1.bf16.msra.mxu0 0
  %488 = vmatprep.subr.bf16.mxu0 0
  %489 = vmatpush1.bf16.msra.mxu0 0
  %490 = vmatprep.subr.bf16.mxu0 0
  %491 = vmatpush1.bf16.msra.mxu0 0
  %492 = vmatprep.subr.bf16.mxu0 0
  %493 = vmatpush1.bf16.msra.mxu0 0
  %494 = vmatprep.subr.bf16.mxu0 0
  %495 = vmatpush1.bf16.msra.mxu0 0
  %496 = vmatprep.subr.bf16.mxu0 0
  %497 = vmatpush1.bf16.msra.mxu0 0
  %498 = vmatprep.subr.bf16.mxu0 0
  %499 = vmatpush1.bf16.msra.mxu0 0
  %500 = vmatprep.subr.bf16.mxu0 0
  %501 = vmatpush1.bf16.msra.mxu0 0
  %502 = vmatprep.mubr.bf16.mxu0 0
  %503 = vmatmul.mubr.bf16.gmra.mrb[0].mxu0 %v183
  %v504 = vpop.f32.mrb[0].mxu0
  %v505 = vadd.f32 %v408, %v504
  %v506 = vpop.f32.mrb[0].mxu0
  %v507 = vpop.f32.mrb[0].mxu0
  %v508 = vadd.f32 %v411, %v507
  %v509 = vpop.f32.mrb[0].mxu0
  %510 = vmatprep.mubr.bf16.mxu0 0
  %511 = vmatmul.mubr.bf16.gmra.mrb[0].mxu0 %v186
  %v512 = vpop.f32.mrb[0].mxu0
  %v513 = vadd.f32 %v416, %v512
  %v514 = vpop.f32.mrb[0].mxu0
  %v515 = vpop.f32.mrb[0].mxu0
  %v516 = vadd.f32 %v419, %v515
  %v517 = vpop.f32.mrb[0].mxu0
  %518 = vmatprep.mubr.bf16.mxu0 0
  %519 = vmatmul.mubr.bf16.gmra.mrb[0].mxu0 %v189
  %v520 = vpop.f32.mrb[0].mxu0
  %v521 = vadd.f32 %v424, %v520
  %v522 = vpop.f32.mrb[0].mxu0
  %v523 = vpop.f32.mrb[0].mxu0
  %v524 = vadd.f32 %v427, %v523
  %v525 = vpop.f32.mrb[0].mxu0
  %526 = vmatprep.mubr.bf16.mxu0 0
  %527 = vmatmul.mubr.bf16.gmra.mrb[0].mxu0 %v192
  %v528 = vpop.f32.mrb[0].mxu0
  %v529 = vadd.f32 %v432, %v528
  %v530 = vpop.f32.mrb[0].mxu0
  %v531 = vpop.f32.mrb[0].mxu0
  %v532 = vadd.f32 %v435, %v531
  %v533 = vpop.f32.mrb[0].mxu0
  %534 = vmatprep.mubr.bf16.mxu0 0
  %535 = vmatmul.mubr.bf16.gmra.mrb[0].mxu0 %v195
  %v536 = vpop.f32.mrb[0].mxu0
  %v537 = vadd.f32 %v440, %v536
  %v538 = vpop.f32.mrb[0].mxu0
  %v539 = vpop.f32.mrb[0].mxu0
  %v540 = vadd.f32 %v443, %v539
  %v541 = vpop.f32.mrb[0].mxu0
  %542 = vmatprep.mubr.bf16.mxu0 0
  %543 = vmatmul.mubr.bf16.gmra.mrb[0].mxu0 %v198
  %v544 = vpop.f32.mrb[0].mxu0
  %v545 = vadd.f32 %v448, %v544
  %v546 = vpop.f32.mrb[0].mxu0
  %v547 = vpop.f32.mrb[0].mxu0
  %v548 = vadd.f32 %v451, %v547
  %v549 = vpop.f32.mrb[0].mxu0
  %550 = vmatprep.mubr.bf16.mxu0 0
  %551 = vmatmul.mubr.bf16.gmra.mrb[0].mxu0 %v201
  %v552 = vpop.f32.mrb[0].mxu0
  %v553 = vadd.f32 %v456, %v552
  %v554 = vpop.f32.mrb[0].mxu0
  %v555 = vpop.f32.mrb[0].mxu0
  %v556 = vadd.f32 %v459, %v555
  %v557 = vpop.f32.mrb[0].mxu0
  %558 = vmatprep.mubr.bf16.mxu0 0
  %559 = vmatmul.mubr.bf16.gmra.mrb[0].mxu0 %v204
  %v560 = vpop.f32.mrb[0].mxu0
  %v561 = vadd.f32 %v464, %v560
  %v562 = vpop.f32.mrb[0].mxu0
  %v563 = vpop.f32.mrb[0].mxu0
  %v564 = vadd.f32 %v467, %v563
  %v565 = vpop.f32.mrb[0].mxu0
  %566 = vdwg.mxu0
  %v567 = vld [vmem:[%s2] sm:$0x1]
  %v569 = vlaneseq
  %v570 = vshrl.u32 %v569, 7
  %v571 = vsub.s32 0, %v570
  %v572 = vrot.slane %v567, %v571
  %v574 = vmul.f32 %v505, %v572
  %v575 = vmul.f32 %v508, %v572
  %v576 = vmul.f32 %v513, %v572
  %v577 = vmul.f32 %v516, %v572
  %v578 = vmul.f32 %v521, %v572
  %v579 = vmul.f32 %v524, %v572
  %v580 = vmul.f32 %v529, %v572
  %v581 = vmul.f32 %v532, %v572
  %v582 = vmul.f32 %v537, %v572
  %v583 = vmul.f32 %v540, %v572
  %v584 = vmul.f32 %v545, %v572
  %v585 = vmul.f32 %v548, %v572
  %v586 = vmul.f32 %v553, %v572
  %v587 = vmul.f32 %v556, %v572
  %v588 = vmul.f32 %v561, %v572
  %v589 = vmul.f32 %v564, %v572
  %v590 = vld [vmem:[%s3] sm:$0x1]
  %v592 = vlaneseq
  %v593 = vshrl.u32 %v592, 7
  %v594 = vsub.s32 0, %v593
  %v595 = vrot.slane %v590, %v594
  %v597 = vadd.f32 %v574, %v595
  %v598 = vadd.f32 %v575, %v595
  %v599 = vadd.f32 %v576, %v595
  %v600 = vadd.f32 %v577, %v595
  %v601 = vadd.f32 %v578, %v595
  %v602 = vadd.f32 %v579, %v595
  %v603 = vadd.f32 %v580, %v595
  %v604 = vadd.f32 %v581, %v595
  %v605 = vadd.f32 %v582, %v595
  %v606 = vadd.f32 %v583, %v595
  %v607 = vadd.f32 %v584, %v595
  %v608 = vadd.f32 %v585, %v595
  %v609 = vadd.f32 %v586, %v595
  %v610 = vadd.f32 %v587, %v595
  %v611 = vadd.f32 %v588, %v595
  %v612 = vadd.f32 %v589, %v595
  %v613 = vld [vmem:[%s4] sm:$0xf]
  %v614 = vld [vmem:[%s4 + $0x4] sm:$0xf]
  %v615 = vld [vmem:[%s4 + $0x8] sm:$0xf]
  %v616 = vld [vmem:[%s4 + $0xc] sm:$0xf]
  %v617 = vld [vmem:[%s4 + $0x10] sm:$0xf]
  %v618 = vld [vmem:[%s4 + $0x14] sm:$0xf]
  %v619 = vld [vmem:[%s4 + $0x18] sm:$0xf]
  %v620 = vld [vmem:[%s4 + $0x1c] sm:$0xf]
  %v621 = vld [vmem:[%s4 + $0x20] sm:$0xf]
  %v622 = vld [vmem:[%s4 + $0x24] sm:$0xf]
  %v623 = vld [vmem:[%s4 + $0x28] sm:$0xf]
  %v624 = vld [vmem:[%s4 + $0x2c] sm:$0xf]
  %v625 = vld [vmem:[%s4 + $0x30] sm:$0xf]
  %v626 = vld [vmem:[%s4 + $0x34] sm:$0xf]
  %v627 = vld [vmem:[%s4 + $0x38] sm:$0xf]
  %v628 = vld [vmem:[%s4 + $0x3c] sm:$0xf]
  %v629 = vunpack.c.l.bf16 %v613
  %v630 = vunpack.c.l.bf16 %v614
  %v631 = vunpack.c.l.bf16 %v615
  %v632 = vunpack.c.l.bf16 %v616
  %v633 = vunpack.c.l.bf16 %v617
  %v634 = vunpack.c.l.bf16 %v618
  %v635 = vunpack.c.l.bf16 %v619
  %v636 = vunpack.c.l.bf16 %v620
  %v637 = vunpack.c.l.bf16 %v621
  %v638 = vunpack.c.l.bf16 %v622
  %v639 = vunpack.c.l.bf16 %v623
  %v640 = vunpack.c.l.bf16 %v624
  %v641 = vunpack.c.l.bf16 %v625
  %v642 = vunpack.c.l.bf16 %v626
  %v643 = vunpack.c.l.bf16 %v627
  %v644 = vunpack.c.l.bf16 %v628
  %v645 = vadd.f32 %v597, %v629
  %v646 = vadd.f32 %v598, %v630
  %v647 = vadd.f32 %v599, %v631
  %v648 = vadd.f32 %v600, %v632
  %v649 = vadd.f32 %v601, %v633
  %v650 = vadd.f32 %v602, %v634
  %v651 = vadd.f32 %v603, %v635
  %v652 = vadd.f32 %v604, %v636
  %v653 = vadd.f32 %v605, %v637
  %v654 = vadd.f32 %v606, %v638
  %v655 = vadd.f32 %v607, %v639
  %v656 = vadd.f32 %v608, %v640
  %v657 = vadd.f32 %v609, %v641
  %v658 = vadd.f32 %v610, %v642
  %v659 = vadd.f32 %v611, %v643
  %v660 = vadd.f32 %v612, %v644
  %v661 = vmax.f32 %v645, 0.0
  %v662 = vmax.f32 %v646, 0.0
  %v663 = vmax.f32 %v647, 0.0
  %v664 = vmax.f32 %v648, 0.0
  %v665 = vmax.f32 %v649, 0.0
  %v666 = vmax.f32 %v650, 0.0
  %v667 = vmax.f32 %v651, 0.0
  %v668 = vmax.f32 %v652, 0.0
  %v669 = vmax.f32 %v653, 0.0
  %v670 = vmax.f32 %v654, 0.0
  %v671 = vmax.f32 %v655, 0.0
  %v672 = vmax.f32 %v656, 0.0
  %v673 = vmax.f32 %v657, 0.0
  %v674 = vmax.f32 %v658, 0.0
  %v675 = vmax.f32 %v659, 0.0
  %v676 = vmax.f32 %v660, 0.0
  %v677 = vpack.c.bf16 %v662, %v661
  %v678 = vpack.c.bf16 %v664, %v663
  %v679 = vpack.c.bf16 %v666, %v665
  %v680 = vpack.c.bf16 %v668, %v667
  %v681 = vpack.c.bf16 %v670, %v669
  %v682 = vpack.c.bf16 %v672, %v671
  %v683 = vpack.c.bf16 %v674, %v673
  %v684 = vpack.c.bf16 %v676, %v675
  %v693 = vunpack.c.l.b16 %v677
  %v694 = vunpack.c.h.b16 %v677
  %v695 = vunpack.c.l.b16 %v678
  %v696 = vunpack.c.h.b16 %v678
  %v697 = vunpack.c.l.b16 %v679
  %v698 = vunpack.c.h.b16 %v679
  %v699 = vunpack.c.l.b16 %v680
  %v700 = vunpack.c.h.b16 %v680
  %v701 = vunpack.c.l.b16 %v681
  %v702 = vunpack.c.h.b16 %v681
  %v703 = vunpack.c.l.b16 %v682
  %v704 = vunpack.c.h.b16 %v682
  %v705 = vunpack.c.l.b16 %v683
  %v706 = vunpack.c.h.b16 %v683
  %v707 = vunpack.c.l.b16 %v684
  %v708 = vunpack.c.h.b16 %v684
  %v709 = vpack.c.b16 %v693, %v693
  %v710 = vpack.c.b16 %v694, %v694
  %v711 = vpack.c.b16 %v695, %v695
  %v712 = vpack.c.b16 %v696, %v696
  %v713 = vpack.c.b16 %v697, %v697
  %v714 = vpack.c.b16 %v698, %v698
  %v715 = vpack.c.b16 %v699, %v699
  %v716 = vpack.c.b16 %v700, %v700
  %v717 = vpack.c.b16 %v701, %v701
  %v718 = vpack.c.b16 %v702, %v702
  %v719 = vpack.c.b16 %v703, %v703
  %v720 = vpack.c.b16 %v704, %v704
  %v721 = vpack.c.b16 %v705, %v705
  %v722 = vpack.c.b16 %v706, %v706
  %v723 = vpack.c.b16 %v707, %v707
  %v724 = vpack.c.b16 %v708, %v708
  %741 = vst [vmem:[%s5] sm:$0xf] %v709
  %742 = vst [vmem:[%s5 + $0x4] sm:$0xf] %v710
  %743 = vst [vmem:[%s5 + $0x8] sm:$0xf] %v711
  %744 = vst [vmem:[%s5 + $0xc] sm:$0xf] %v712
  %745 = vst [vmem:[%s5 + $0x10] sm:$0xf] %v713
  %746 = vst [vmem:[%s5 + $0x14] sm:$0xf] %v714
  %747 = vst [vmem:[%s5 + $0x18] sm:$0xf] %v715
  %748 = vst [vmem:[%s5 + $0x1c] sm:$0xf] %v716
  %749 = vst [vmem:[%s5 + $0x20] sm:$0xf] %v717
  %750 = vst [vmem:[%s5 + $0x24] sm:$0xf] %v718
  %751 = vst [vmem:[%s5 + $0x28] sm:$0xf] %v719
  %752 = vst [vmem:[%s5 + $0x2c] sm:$0xf] %v720
  %753 = vst [vmem:[%s5 + $0x30] sm:$0xf] %v721
  %754 = vst [vmem:[%s5 + $0x34] sm:$0xf] %v722
  %755 = vst [vmem:[%s5 + $0x38] sm:$0xf] %v723
  %756 = vst [vmem:[%s5 + $0x3c] sm:$0xf] %v724
  // Predicated region
  $region22: #{_lambda_.12} parent=0 // pred_check
    _
  $region23: #{_lambda_.12} parent=0 // pred_check_branch
    %758 = sbr.rel (0) target = $region25
  $region24: #{_lambda_.12} parent=0 // pred_region
    _
  $region25: #{_lambda_.12} parent=0 // pred_fallthru
    _
  // Predicated region
  $region26: #{_lambda_.12} parent=0 // pred_check
    _
  $region27: #{_lambda_.12} parent=0 // pred_check_branch
    %760 = sbr.rel (0) target = $region29
  $region28: #{_lambda_.12} parent=0 // pred_region
    _
  $region29: #{_lambda_.12} parent=0 // pred_fallthru
    _

// kernel: _lambda_.14
$region0: #{_lambda_.14}
  #allocation0 [shape = 'u32[]', space=smem, size = 0x4, offset = 0x4, fixed_abs, tag = 'smem constant byte address 0x4 - core index']
  #allocation1 [shape = 'u32[144,128]{1,0:T(1,128)}', space=vmem, size = 0x12000, scoped, tag = 'internal scratch']
  %s0 = inlined_call_operand.vmem [shape: bf16[128,640], index: 0, kind: input, shape index: {}]
  %s1 = inlined_call_operand.vmem [shape: bf16[640,128], index: 1, kind: input, shape index: {}]
  %s2 = inlined_call_operand.vmem [shape: f32[1,128], index: 2, kind: input, shape index: {}]
  %s3 = inlined_call_operand.vmem [shape: f32[1,128], index: 3, kind: input, shape index: {}]
  %s4 = inlined_call_operand.vmem [shape: bf16[128,128], index: 4, kind: output, shape index: {}]
  %s5 = sld [smem:[#allocation0]]
  $region26: #{_lambda_.14} parent=0
    _
  %s7 = ssub.s32 1, %s5
  %s8 = scalar_select 0, %s7, %s5
  // Predicated region
  $region2: #{_lambda_.14} parent=0 // pred_check
    _
  $region3: #{_lambda_.14} parent=0 // pred_check_branch
    %10 = sbr.rel (0) target = $region5
  $region4: #{_lambda_.14} parent=0 // pred_region
    _
  $region5: #{_lambda_.14} parent=0 // pred_fallthru
    _
  // Predicated region
  $region6: #{_lambda_.14} parent=0 // pred_check
    _
  $region7: #{_lambda_.14} parent=0 // pred_check_branch
    %12 = sbr.rel (0) target = $region9
  $region8: #{_lambda_.14} parent=0 // pred_region
    _
  $region9: #{_lambda_.14} parent=0 // pred_fallthru
    _
  // Predicated region
  $region10: #{_lambda_.14} parent=0 // pred_check
    _
  $region11: #{_lambda_.14} parent=0 // pred_check_branch
    %14 = sbr.rel (0) target = $region13
  $region12: #{_lambda_.14} parent=0 // pred_region
    _
  $region13: #{_lambda_.14} parent=0 // pred_fallthru
    _
  // Predicated region
  $region14: #{_lambda_.14} parent=0 // pred_check
    _
  $region15: #{_lambda_.14} parent=0 // pred_check_branch
    %16 = sbr.rel (0) target = $region17
  $region16: #{_lambda_.14} parent=0 // pred_region
    _
  $region17: #{_lambda_.14} parent=0 // pred_fallthru
    _
  %v18 = vld [vmem:[%s0] sm:$0xff]
  %v19 = vld [vmem:[%s0 + $0x8] sm:$0xff]
  %v20 = vld [vmem:[%s0 + $0x10] sm:$0xf]
  %v21 = vld [vmem:[%s0 + $0x14] sm:$0xff]
  %v22 = vld [vmem:[%s0 + $0x1c] sm:$0xff]
  %v23 = vld [vmem:[%s0 + $0x24] sm:$0xf]
  %v24 = vld [vmem:[%s0 + $0x28] sm:$0xff]
  %v25 = vld [vmem:[%s0 + $0x30] sm:$0xff]
  %v26 = vld [vmem:[%s0 + $0x38] sm:$0xf]
  %v27 = vld [vmem:[%s0 + $0x3c] sm:$0xff]
  %v28 = vld [vmem:[%s0 + $0x44] sm:$0xff]
  %v29 = vld [vmem:[%s0 + $0x4c] sm:$0xf]
  %v30 = vld [vmem:[%s0 + $0x50] sm:$0xff]
  %v31 = vld [vmem:[%s0 + $0x58] sm:$0xff]
  %v32 = vld [vmem:[%s0 + $0x60] sm:$0xf]
  %v33 = vld [vmem:[%s0 + $0x64] sm:$0xff]
  %v34 = vld [vmem:[%s0 + $0x6c] sm:$0xff]
  %v35 = vld [vmem:[%s0 + $0x74] sm:$0xf]
  %v36 = vld [vmem:[%s0 + $0x78] sm:$0xff]
  %v37 = vld [vmem:[%s0 + $0x80] sm:$0xff]
  %v38 = vld [vmem:[%s0 + $0x88] sm:$0xf]
  %v39 = vld [vmem:[%s0 + $0x8c] sm:$0xff]
  %v40 = vld [vmem:[%s0 + $0x94] sm:$0xff]
  %v41 = vld [vmem:[%s0 + $0x9c] sm:$0xf]
  %v42 = vld [vmem:[%s0 + $0xa0] sm:$0xff]
  %v43 = vld [vmem:[%s0 + $0xa8] sm:$0xff]
  %v44 = vld [vmem:[%s0 + $0xb0] sm:$0xf]
  %v45 = vld [vmem:[%s0 + $0xb4] sm:$0xff]
  %v46 = vld [vmem:[%s0 + $0xbc] sm:$0xff]
  %v47 = vld [vmem:[%s0 + $0xc4] sm:$0xf]
  %v48 = vld [vmem:[%s0 + $0xc8] sm:$0xff]
  %v49 = vld [vmem:[%s0 + $0xd0] sm:$0xff]
  %v50 = vld [vmem:[%s0 + $0xd8] sm:$0xf]
  %v51 = vld [vmem:[%s0 + $0xdc] sm:$0xff]
  %v52 = vld [vmem:[%s0 + $0xe4] sm:$0xff]
  %v53 = vld [vmem:[%s0 + $0xec] sm:$0xf]
  %v54 = vld [vmem:[%s0 + $0xf0] sm:$0xff]
  %v55 = vld [vmem:[%s0 + $0xf8] sm:$0xff]
  %v56 = vld [vmem:[%s0 + $0x100] sm:$0xf]
  %v57 = vld [vmem:[%s0 + $0x104] sm:$0xff]
  %v58 = vld [vmem:[%s0 + $0x10c] sm:$0xff]
  %v59 = vld [vmem:[%s0 + $0x114] sm:$0xf]
  %v60 = vld [vmem:[%s0 + $0x118] sm:$0xff]
  %v61 = vld [vmem:[%s0 + $0x120] sm:$0xff]
  %v62 = vld [vmem:[%s0 + $0x128] sm:$0xf]
  %v63 = vld [vmem:[%s0 + $0x12c] sm:$0xff]
  %v64 = vld [vmem:[%s0 + $0x134] sm:$0xff]
  %v65 = vld [vmem:[%s0 + $0x13c] sm:$0xf]
  %v66 = vld [vmem:[%s1] sm:$0xf]
  %v67 = vld [vmem:[%s1 + $0x4] sm:$0xf]
  %v68 = vld [vmem:[%s1 + $0x8] sm:$0xf]
  %v69 = vld [vmem:[%s1 + $0xc] sm:$0xf]
  %v70 = vld [vmem:[%s1 + $0x10] sm:$0xf]
  %v71 = vld [vmem:[%s1 + $0x14] sm:$0xf]
  %v72 = vld [vmem:[%s1 + $0x18] sm:$0xf]
  %v73 = vld [vmem:[%s1 + $0x1c] sm:$0xf]
  %v74 = vld [vmem:[%s1 + $0x20] sm:$0xf]
  %v75 = vld [vmem:[%s1 + $0x24] sm:$0xf]
  %v76 = vld [vmem:[%s1 + $0x28] sm:$0xf]
  %v77 = vld [vmem:[%s1 + $0x2c] sm:$0xf]
  %v78 = vld [vmem:[%s1 + $0x30] sm:$0xf]
  %v79 = vld [vmem:[%s1 + $0x34] sm:$0xf]
  %v80 = vld [vmem:[%s1 + $0x38] sm:$0xf]
  %v81 = vld [vmem:[%s1 + $0x3c] sm:$0xf]
  %v82 = vld [vmem:[%s1 + $0x40] sm:$0xf]
  %v83 = vld [vmem:[%s1 + $0x44] sm:$0xf]
  %v84 = vld [vmem:[%s1 + $0x48] sm:$0xf]
  %v85 = vld [vmem:[%s1 + $0x4c] sm:$0xf]
  %v86 = vld [vmem:[%s1 + $0x50] sm:$0xf]
  %v87 = vld [vmem:[%s1 + $0x54] sm:$0xf]
  %v88 = vld [vmem:[%s1 + $0x58] sm:$0xf]
  %v89 = vld [vmem:[%s1 + $0x5c] sm:$0xf]
  %v90 = vld [vmem:[%s1 + $0x60] sm:$0xf]
  %v91 = vld [vmem:[%s1 + $0x64] sm:$0xf]
  %v92 = vld [vmem:[%s1 + $0x68] sm:$0xf]
  %v93 = vld [vmem:[%s1 + $0x6c] sm:$0xf]
  %v94 = vld [vmem:[%s1 + $0x70] sm:$0xf]
  %v95 = vld [vmem:[%s1 + $0x74] sm:$0xf]
  %v96 = vld [vmem:[%s1 + $0x78] sm:$0xf]
  %v97 = vld [vmem:[%s1 + $0x7c] sm:$0xf]
  %v98 = vld [vmem:[%s1 + $0x80] sm:$0xf]
  %v99 = vld [vmem:[%s1 + $0x84] sm:$0xf]
  %v100 = vld [vmem:[%s1 + $0x88] sm:$0xf]
  %v101 = vld [vmem:[%s1 + $0x8c] sm:$0xf]
  %v102 = vld [vmem:[%s1 + $0x90] sm:$0xf]
  %v103 = vld [vmem:[%s1 + $0x94] sm:$0xf]
  %v104 = vld [vmem:[%s1 + $0x98] sm:$0xf]
  %v105 = vld [vmem:[%s1 + $0x9c] sm:$0xf]
  %v106 = vld [vmem:[%s1 + $0xa0] sm:$0xf]
  %v107 = vld [vmem:[%s1 + $0xa4] sm:$0xf]
  %v108 = vld [vmem:[%s1 + $0xa8] sm:$0xf]
  %v109 = vld [vmem:[%s1 + $0xac] sm:$0xf]
  %v110 = vld [vmem:[%s1 + $0xb0] sm:$0xf]
  %v111 = vld [vmem:[%s1 + $0xb4] sm:$0xf]
  %v112 = vld [vmem:[%s1 + $0xb8] sm:$0xf]
  %v113 = vld [vmem:[%s1 + $0xbc] sm:$0xf]
  %v114 = vld [vmem:[%s1 + $0xc0] sm:$0xf]
  %v115 = vld [vmem:[%s1 + $0xc4] sm:$0xf]
  %v116 = vld [vmem:[%s1 + $0xc8] sm:$0xf]
  %v117 = vld [vmem:[%s1 + $0xcc] sm:$0xf]
  %v118 = vld [vmem:[%s1 + $0xd0] sm:$0xf]
  %v119 = vld [vmem:[%s1 + $0xd4] sm:$0xf]
  %v120 = vld [vmem:[%s1 + $0xd8] sm:$0xf]
  %v121 = vld [vmem:[%s1 + $0xdc] sm:$0xf]
  %v122 = vld [vmem:[%s1 + $0xe0] sm:$0xf]
  %v123 = vld [vmem:[%s1 + $0xe4] sm:$0xf]
  %v124 = vld [vmem:[%s1 + $0xe8] sm:$0xf]
  %v125 = vld [vmem:[%s1 + $0xec] sm:$0xf]
  %v126 = vld [vmem:[%s1 + $0xf0] sm:$0xf]
  %v127 = vld [vmem:[%s1 + $0xf4] sm:$0xf]
  %v128 = vld [vmem:[%s1 + $0xf8] sm:$0xf]
  %v129 = vld [vmem:[%s1 + $0xfc] sm:$0xf]
  %v130 = vld [vmem:[%s1 + $0x100] sm:$0xf]
  %v131 = vld [vmem:[%s1 + $0x104] sm:$0xf]
  %v132 = vld [vmem:[%s1 + $0x108] sm:$0xf]
  %v133 = vld [vmem:[%s1 + $0x10c] sm:$0xf]
  %v134 = vld [vmem:[%s1 + $0x110] sm:$0xf]
  %v135 = vld [vmem:[%s1 + $0x114] sm:$0xf]
  %v136 = vld [vmem:[%s1 + $0x118] sm:$0xf]
  %v137 = vld [vmem:[%s1 + $0x11c] sm:$0xf]
  %v138 = vld [vmem:[%s1 + $0x120] sm:$0xf]
  %v139 = vld [vmem:[%s1 + $0x124] sm:$0xf]
  %v140 = vld [vmem:[%s1 + $0x128] sm:$0xf]
  %v141 = vld [vmem:[%s1 + $0x12c] sm:$0xf]
  %v142 = vld [vmem:[%s1 + $0x130] sm:$0xf]
  %v143 = vld [vmem:[%s1 + $0x134] sm:$0xf]
  %v144 = vld [vmem:[%s1 + $0x138] sm:$0xf]
  %v145 = vld [vmem:[%s1 + $0x13c] sm:$0xf]
  %v194 = vunpack.c.l.b16 %v18
  %v195 = vunpack.c.h.b16 %v18
  %v196 = vunpack.c.l.b16 %v19
  %v197 = vunpack.c.h.b16 %v19
  %v198 = vunpack.c.l.b16 %v20
  %v199 = vunpack.c.l.b16 %v21
  %v200 = vunpack.c.h.b16 %v21
  %v201 = vunpack.c.l.b16 %v22
  %v202 = vunpack.c.h.b16 %v22
  %v203 = vunpack.c.l.b16 %v23
  %v204 = vunpack.c.l.b16 %v24
  %v205 = vunpack.c.h.b16 %v24
  %v206 = vunpack.c.l.b16 %v25
  %v207 = vunpack.c.h.b16 %v25
  %v208 = vunpack.c.l.b16 %v26
  %v209 = vunpack.c.l.b16 %v27
  %v210 = vunpack.c.h.b16 %v27
  %v211 = vunpack.c.l.b16 %v28
  %v212 = vunpack.c.h.b16 %v28
  %v213 = vunpack.c.l.b16 %v29
  %v214 = vunpack.c.l.b16 %v30
  %v215 = vunpack.c.h.b16 %v30
  %v216 = vunpack.c.l.b16 %v31
  %v217 = vunpack.c.h.b16 %v31
  %v218 = vunpack.c.l.b16 %v32
  %v219 = vunpack.c.l.b16 %v33
  %v220 = vunpack.c.h.b16 %v33
  %v221 = vunpack.c.l.b16 %v34
  %v222 = vunpack.c.h.b16 %v34
  %v223 = vunpack.c.l.b16 %v35
  %v224 = vunpack.c.l.b16 %v36
  %v225 = vunpack.c.h.b16 %v36
  %v226 = vunpack.c.l.b16 %v37
  %v227 = vunpack.c.h.b16 %v37
  %v228 = vunpack.c.l.b16 %v38
  %v229 = vunpack.c.l.b16 %v39
  %v230 = vunpack.c.h.b16 %v39
  %v231 = vunpack.c.l.b16 %v40
  %v232 = vunpack.c.h.b16 %v40
  %v233 = vunpack.c.l.b16 %v41
  %v234 = vunpack.c.l.b16 %v42
  %v235 = vunpack.c.h.b16 %v42
  %v236 = vunpack.c.l.b16 %v43
  %v237 = vunpack.c.h.b16 %v43
  %v238 = vunpack.c.l.b16 %v44
  %v239 = vunpack.c.l.b16 %v45
  %v240 = vunpack.c.h.b16 %v45
  %v241 = vunpack.c.l.b16 %v46
  %v242 = vunpack.c.h.b16 %v46
  %v243 = vunpack.c.l.b16 %v47
  %v244 = vunpack.c.l.b16 %v48
  %v245 = vunpack.c.h.b16 %v48
  %v246 = vunpack.c.l.b16 %v49
  %v247 = vunpack.c.h.b16 %v49
  %v248 = vunpack.c.l.b16 %v50
  %v249 = vunpack.c.l.b16 %v51
  %v250 = vunpack.c.h.b16 %v51
  %v251 = vunpack.c.l.b16 %v52
  %v252 = vunpack.c.h.b16 %v52
  %v253 = vunpack.c.l.b16 %v53
  %v254 = vunpack.c.l.b16 %v54
  %v255 = vunpack.c.h.b16 %v54
  %v256 = vunpack.c.l.b16 %v55
  %v257 = vunpack.c.h.b16 %v55
  %v258 = vunpack.c.l.b16 %v56
  %v259 = vunpack.c.l.b16 %v57
  %v260 = vunpack.c.h.b16 %v57
  %v261 = vunpack.c.l.b16 %v58
  %v262 = vunpack.c.h.b16 %v58
  %v263 = vunpack.c.l.b16 %v59
  %v264 = vunpack.c.l.b16 %v60
  %v265 = vunpack.c.h.b16 %v60
  %v266 = vunpack.c.l.b16 %v61
  %v267 = vunpack.c.h.b16 %v61
  %v268 = vunpack.c.l.b16 %v62
  %v269 = vunpack.c.l.b16 %v63
  %v270 = vunpack.c.h.b16 %v63
  %v271 = vunpack.c.l.b16 %v64
  %v272 = vunpack.c.h.b16 %v64
  %v273 = vunpack.c.l.b16 %v65
  %v274 = vpack.c.b16 %v199, %v194
  %v275 = vpack.c.b16 %v200, %v195
  %v276 = vpack.c.b16 %v201, %v196
  %v277 = vpack.c.b16 %v202, %v197
  %v278 = vpack.c.b16 %v203, %v198
  %v279 = vpack.c.b16 %v209, %v204
  %v280 = vpack.c.b16 %v210, %v205
  %v281 = vpack.c.b16 %v211, %v206
  %v282 = vpack.c.b16 %v212, %v207
  %v283 = vpack.c.b16 %v213, %v208
  %v284 = vpack.c.b16 %v219, %v214
  %v285 = vpack.c.b16 %v220, %v215
  %v286 = vpack.c.b16 %v221, %v216
  %v287 = vpack.c.b16 %v222, %v217
  %v288 = vpack.c.b16 %v223, %v218
  %v289 = vpack.c.b16 %v229, %v224
  %v290 = vpack.c.b16 %v230, %v225
  %v291 = vpack.c.b16 %v231, %v226
  %v292 = vpack.c.b16 %v232, %v227
  %v293 = vpack.c.b16 %v233, %v228
  %v294 = vpack.c.b16 %v239, %v234
  %v295 = vpack.c.b16 %v240, %v235
  %v296 = vpack.c.b16 %v241, %v236
  %v297 = vpack.c.b16 %v242, %v237
  %v298 = vpack.c.b16 %v243, %v238
  %v299 = vpack.c.b16 %v249, %v244
  %v300 = vpack.c.b16 %v250, %v245
  %v301 = vpack.c.b16 %v251, %v246
  %v302 = vpack.c.b16 %v252, %v247
  %v303 = vpack.c.b16 %v253, %v248
  %v304 = vpack.c.b16 %v259, %v254
  %v305 = vpack.c.b16 %v260, %v255
  %v306 = vpack.c.b16 %v261, %v256
  %v307 = vpack.c.b16 %v262, %v257
  %v308 = vpack.c.b16 %v263, %v258
  %v309 = vpack.c.b16 %v269, %v264
  %v310 = vpack.c.b16 %v270, %v265
  %v311 = vpack.c.b16 %v271, %v266
  %v312 = vpack.c.b16 %v272, %v267
  %v313 = vpack.c.b16 %v273, %v268
  %v434 = vunpack.c.l.b16 %v66
  %v435 = vunpack.c.l.b16 %v67
  %v436 = vunpack.c.l.b16 %v68
  %v437 = vunpack.c.l.b16 %v69
  %v438 = vunpack.c.l.b16 %v70
  %v439 = vunpack.c.l.b16 %v71
  %v440 = vunpack.c.l.b16 %v72
  %v441 = vunpack.c.l.b16 %v73
  %v442 = vunpack.c.l.b16 %v74
  %v443 = vunpack.c.l.b16 %v75
  %v444 = vunpack.c.l.b16 %v76
  %v445 = vunpack.c.l.b16 %v77
  %v446 = vunpack.c.l.b16 %v78
  %v447 = vunpack.c.l.b16 %v79
  %v448 = vunpack.c.l.b16 %v80
  %v449 = vunpack.c.l.b16 %v81
  %v450 = vunpack.c.l.b16 %v82
  %v451 = vunpack.c.l.b16 %v83
  %v452 = vunpack.c.l.b16 %v84
  %v453 = vunpack.c.l.b16 %v85
  %v454 = vunpack.c.l.b16 %v86
  %v455 = vunpack.c.l.b16 %v87
  %v456 = vunpack.c.l.b16 %v88
  %v457 = vunpack.c.l.b16 %v89
  %v458 = vunpack.c.l.b16 %v90
  %v459 = vunpack.c.l.b16 %v91
  %v460 = vunpack.c.l.b16 %v92
  %v461 = vunpack.c.l.b16 %v93
  %v462 = vunpack.c.l.b16 %v94
  %v463 = vunpack.c.l.b16 %v95
  %v464 = vunpack.c.l.b16 %v96
  %v465 = vunpack.c.l.b16 %v97
  %v466 = vunpack.c.l.b16 %v98
  %v467 = vunpack.c.l.b16 %v99
  %v468 = vunpack.c.l.b16 %v100
  %v469 = vunpack.c.l.b16 %v101
  %v470 = vunpack.c.l.b16 %v102
  %v471 = vunpack.c.l.b16 %v103
  %v472 = vunpack.c.l.b16 %v104
  %v473 = vunpack.c.l.b16 %v105
  %v474 = vunpack.c.l.b16 %v106
  %v475 = vunpack.c.l.b16 %v107
  %v476 = vunpack.c.l.b16 %v108
  %v477 = vunpack.c.l.b16 %v109
  %v478 = vunpack.c.l.b16 %v110
  %v479 = vunpack.c.l.b16 %v111
  %v480 = vunpack.c.l.b16 %v112
  %v481 = vunpack.c.l.b16 %v113
  %v482 = vunpack.c.l.b16 %v114
  %v483 = vunpack.c.l.b16 %v115
  %v484 = vunpack.c.l.b16 %v116
  %v485 = vunpack.c.l.b16 %v117
  %v486 = vunpack.c.l.b16 %v118
  %v487 = vunpack.c.l.b16 %v119
  %v488 = vunpack.c.l.b16 %v120
  %v489 = vunpack.c.l.b16 %v121
  %v490 = vunpack.c.l.b16 %v122
  %v491 = vunpack.c.l.b16 %v123
  %v492 = vunpack.c.l.b16 %v124
  %v493 = vunpack.c.l.b16 %v125
  %v494 = vunpack.c.l.b16 %v126
  %v495 = vunpack.c.l.b16 %v127
  %v496 = vunpack.c.l.b16 %v128
  %v497 = vunpack.c.l.b16 %v129
  %v498 = vunpack.c.l.b16 %v130
  %v499 = vunpack.c.l.b16 %v131
  %v500 = vunpack.c.l.b16 %v132
  %v501 = vunpack.c.l.b16 %v133
  %v502 = vunpack.c.l.b16 %v134
  %v503 = vunpack.c.l.b16 %v135
  %v504 = vunpack.c.l.b16 %v136
  %v505 = vunpack.c.l.b16 %v137
  %v506 = vunpack.c.l.b16 %v138
  %v507 = vunpack.c.l.b16 %v139
  %v508 = vunpack.c.l.b16 %v140
  %v509 = vunpack.c.l.b16 %v141
  %v510 = vunpack.c.l.b16 %v142
  %v511 = vunpack.c.l.b16 %v143
  %v512 = vunpack.c.l.b16 %v144
  %v513 = vunpack.c.l.b16 %v145
  %v514 = vpack.c.b16 %v435, %v434
  %v515 = vpack.c.b16 %v437, %v436
  %v516 = vpack.c.b16 %v439, %v438
  %v517 = vpack.c.b16 %v441, %v440
  %v518 = vpack.c.b16 %v443, %v442
  %v519 = vpack.c.b16 %v445, %v444
  %v520 = vpack.c.b16 %v447, %v446
  %v521 = vpack.c.b16 %v449, %v448
  %v522 = vpack.c.b16 %v451, %v450
  %v523 = vpack.c.b16 %v453, %v452
  %v524 = vpack.c.b16 %v455, %v454
  %v525 = vpack.c.b16 %v457, %v456
  %v526 = vpack.c.b16 %v459, %v458
  %v527 = vpack.c.b16 %v461, %v460
  %v528 = vpack.c.b16 %v463, %v462
  %v529 = vpack.c.b16 %v465, %v464
  %v530 = vpack.c.b16 %v467, %v466
  %v531 = vpack.c.b16 %v469, %v468
  %v532 = vpack.c.b16 %v471, %v470
  %v533 = vpack.c.b16 %v473, %v472
  %v534 = vpack.c.b16 %v475, %v474
  %v535 = vpack.c.b16 %v477, %v476
  %v536 = vpack.c.b16 %v479, %v478
  %v537 = vpack.c.b16 %v481, %v480
  %v538 = vpack.c.b16 %v483, %v482
  %v539 = vpack.c.b16 %v485, %v484
  %v540 = vpack.c.b16 %v487, %v486
  %v541 = vpack.c.b16 %v489, %v488
  %v542 = vpack.c.b16 %v491, %v490
  %v543 = vpack.c.b16 %v493, %v492
  %v544 = vpack.c.b16 %v495, %v494
  %v545 = vpack.c.b16 %v497, %v496
  %v546 = vpack.c.b16 %v499, %v498
  %v547 = vpack.c.b16 %v501, %v500
  %v548 = vpack.c.b16 %v503, %v502
  %v549 = vpack.c.b16 %v505, %v504
  %v550 = vpack.c.b16 %v507, %v506
  %v551 = vpack.c.b16 %v509, %v508
  %v552 = vpack.c.b16 %v511, %v510
  %v553 = vpack.c.b16 %v513, %v512
  %594 = vmatprep.subr.bf16.mxu0 0
  %595 = vmatpush1.bf16.msra.mxu0 %v514
  %596 = vmatprep.subr.bf16.mxu0 0
  %597 = vmatpush1.bf16.msra.mxu0 %v515
  %598 = vmatprep.subr.bf16.mxu0 0
  %599 = vmatpush1.bf16.msra.mxu0 %v516
  %600 = vmatprep.subr.bf16.mxu0 0
  %601 = vmatpush1.bf16.msra.mxu0 %v517
  %602 = vmatprep.subr.bf16.mxu0 0
  %603 = vmatpush1.bf16.msra.mxu0 %v518
  %604 = vmatprep.subr.bf16.mxu0 0
  %605 = vmatpush1.bf16.msra.mxu0 %v519
  %606 = vmatprep.subr.bf16.mxu0 0
  %607 = vmatpush1.bf16.msra.mxu0 %v520
  %608 = vmatprep.subr.bf16.mxu0 0
  %609 = vmatpush1.bf16.msra.mxu0 %v521
  %610 = vmatprep.subr.bf16.mxu0 0
  %611 = vmatpush1.bf16.msra.mxu0 %v522
  %612 = vmatprep.subr.bf16.mxu0 0
  %613 = vmatpush1.bf16.msra.mxu0 %v523
  %614 = vmatprep.subr.bf16.mxu0 0
  %615 = vmatpush1.bf16.msra.mxu0 %v524
  %616 = vmatprep.subr.bf16.mxu0 0
  %617 = vmatpush1.bf16.msra.mxu0 %v525
  %618 = vmatprep.subr.bf16.mxu0 0
  %619 = vmatpush1.bf16.msra.mxu0 %v526
  %620 = vmatprep.subr.bf16.mxu0 0
  %621 = vmatpush1.bf16.msra.mxu0 %v527
  %622 = vmatprep.subr.bf16.mxu0 0
  %623 = vmatpush1.bf16.msra.mxu0 %v528
  %624 = vmatprep.subr.bf16.mxu0 0
  %625 = vmatpush1.bf16.msra.mxu0 %v529
  %626 = vmatprep.mubr.bf16.mxu0 %v275
  %627 = vmatmul.mubr.bf16.gmra.mrb[0].mxu0 %v274
  %v628 = vpop.f32.mrb[0].mxu0
  %v629 = vadd.f32 0.0, %v628
  %v630 = vpop.f32.mrb[0].mxu0
  %v631 = vpop.f32.mrb[0].mxu0
  %v632 = vadd.f32 0.0, %v631
  %v633 = vpop.f32.mrb[0].mxu0
  %634 = vmatprep.mubr.bf16.mxu0 %v280
  %635 = vmatmul.mubr.bf16.gmra.mrb[0].mxu0 %v279
  %v636 = vpop.f32.mrb[0].mxu0
  %v637 = vadd.f32 0.0, %v636
  %v638 = vpop.f32.mrb[0].mxu0
  %v639 = vpop.f32.mrb[0].mxu0
  %v640 = vadd.f32 0.0, %v639
  %v641 = vpop.f32.mrb[0].mxu0
  %642 = vmatprep.mubr.bf16.mxu0 %v285
  %643 = vmatmul.mubr.bf16.gmra.mrb[0].mxu0 %v284
  %v644 = vpop.f32.mrb[0].mxu0
  %v645 = vadd.f32 0.0, %v644
  %v646 = vpop.f32.mrb[0].mxu0
  %v647 = vpop.f32.mrb[0].mxu0
  %v648 = vadd.f32 0.0, %v647
  %v649 = vpop.f32.mrb[0].mxu0
  %650 = vmatprep.mubr.bf16.mxu0 %v290
  %651 = vmatmul.mubr.bf16.gmra.mrb[0].mxu0 %v289
  %v652 = vpop.f32.mrb[0].mxu0
  %v653 = vadd.f32 0.0, %v652
  %v654 = vpop.f32.mrb[0].mxu0
  %v655 = vpop.f32.mrb[0].mxu0
  %v656 = vadd.f32 0.0, %v655
  %v657 = vpop.f32.mrb[0].mxu0
  %658 = vmatprep.mubr.bf16.mxu0 %v295
  %659 = vmatmul.mubr.bf16.gmra.mrb[0].mxu0 %v294
  %v660 = vpop.f32.mrb[0].mxu0
  %v661 = vadd.f32 0.0, %v660
  %v662 = vpop.f32.mrb[0].mxu0
  %v663 = vpop.f32.mrb[0].mxu0
  %v664 = vadd.f32 0.0, %v663
  %v665 = vpop.f32.mrb[0].mxu0
  %666 = vmatprep.mubr.bf16.mxu0 %v300
  %667 = vmatmul.mubr.bf16.gmra.mrb[0].mxu0 %v299
  %v668 = vpop.f32.mrb[0].mxu0
  %v669 = vadd.f32 0.0, %v668
  %v670 = vpop.f32.mrb[0].mxu0
  %v671 = vpop.f32.mrb[0].mxu0
  %v672 = vadd.f32 0.0, %v671
  %v673 = vpop.f32.mrb[0].mxu0
  %674 = vmatprep.mubr.bf16.mxu0 %v305
  %675 = vmatmul.mubr.bf16.gmra.mrb[0].mxu0 %v304
  %v676 = vpop.f32.mrb[0].mxu0
  %v677 = vadd.f32 0.0, %v676
  %v678 = vpop.f32.mrb[0].mxu0
  %v679 = vpop.f32.mrb[0].mxu0
  %v680 = vadd.f32 0.0, %v679
  %v681 = vpop.f32.mrb[0].mxu0
  %682 = vmatprep.mubr.bf16.mxu0 %v310
  %683 = vmatmul.mubr.bf16.gmra.mrb[0].mxu0 %v309
  %v684 = vpop.f32.mrb[0].mxu0
  %v685 = vadd.f32 0.0, %v684
  %v686 = vpop.f32.mrb[0].mxu0
  %v687 = vpop.f32.mrb[0].mxu0
  %v688 = vadd.f32 0.0, %v687
  %v689 = vpop.f32.mrb[0].mxu0
  %690 = vdwg.mxu0
  %691 = vmatprep.subr.bf16.mxu0 0
  %692 = vmatpush1.bf16.msra.mxu0 %v530
  %693 = vmatprep.subr.bf16.mxu0 0
  %694 = vmatpush1.bf16.msra.mxu0 %v531
  %695 = vmatprep.subr.bf16.mxu0 0
  %696 = vmatpush1.bf16.msra.mxu0 %v532
  %697 = vmatprep.subr.bf16.mxu0 0
  %698 = vmatpush1.bf16.msra.mxu0 %v533
  %699 = vmatprep.subr.bf16.mxu0 0
  %700 = vmatpush1.bf16.msra.mxu0 %v534
  %701 = vmatprep.subr.bf16.mxu0 0
  %702 = vmatpush1.bf16.msra.mxu0 %v535
  %703 = vmatprep.subr.bf16.mxu0 0
  %704 = vmatpush1.bf16.msra.mxu0 %v536
  %705 = vmatprep.subr.bf16.mxu0 0
  %706 = vmatpush1.bf16.msra.mxu0 %v537
  %707 = vmatprep.subr.bf16.mxu0 0
  %708 = vmatpush1.bf16.msra.mxu0 %v538
  %709 = vmatprep.subr.bf16.mxu0 0
  %710 = vmatpush1.bf16.msra.mxu0 %v539
  %711 = vmatprep.subr.bf16.mxu0 0
  %712 = vmatpush1.bf16.msra.mxu0 %v540
  %713 = vmatprep.subr.bf16.mxu0 0
  %714 = vmatpush1.bf16.msra.mxu0 %v541
  %715 = vmatprep.subr.bf16.mxu0 0
  %716 = vmatpush1.bf16.msra.mxu0 %v542
  %717 = vmatprep.subr.bf16.mxu0 0
  %718 = vmatpush1.bf16.msra.mxu0 %v543
  %719 = vmatprep.subr.bf16.mxu0 0
  %720 = vmatpush1.bf16.msra.mxu0 %v544
  %721 = vmatprep.subr.bf16.mxu0 0
  %722 = vmatpush1.bf16.msra.mxu0 %v545
  %723 = vmatprep.mubr.bf16.mxu0 %v277
  %724 = vmatmul.mubr.bf16.gmra.mrb[0].mxu0 %v276
  %v725 = vpop.f32.mrb[0].mxu0
  %v726 = vadd.f32 %v629, %v725
  %v727 = vpop.f32.mrb[0].mxu0
  %v728 = vpop.f32.mrb[0].mxu0
  %v729 = vadd.f32 %v632, %v728
  %v730 = vpop.f32.mrb[0].mxu0
  %731 = vmatprep.mubr.bf16.mxu0 %v282
  %732 = vmatmul.mubr.bf16.gmra.mrb[0].mxu0 %v281
  %v733 = vpop.f32.mrb[0].mxu0
  %v734 = vadd.f32 %v637, %v733
  %v735 = vpop.f32.mrb[0].mxu0
  %v736 = vpop.f32.mrb[0].mxu0
  %v737 = vadd.f32 %v640, %v736
  %v738 = vpop.f32.mrb[0].mxu0
  %739 = vmatprep.mubr.bf16.mxu0 %v287
  %740 = vmatmul.mubr.bf16.gmra.mrb[0].mxu0 %v286
  %v741 = vpop.f32.mrb[0].mxu0
  %v742 = vadd.f32 %v645, %v741
  %v743 = vpop.f32.mrb[0].mxu0
  %v744 = vpop.f32.mrb[0].mxu0
  %v745 = vadd.f32 %v648, %v744
  %v746 = vpop.f32.mrb[0].mxu0
  %747 = vmatprep.mubr.bf16.mxu0 %v292
  %748 = vmatmul.mubr.bf16.gmra.mrb[0].mxu0 %v291
  %v749 = vpop.f32.mrb[0].mxu0
  %v750 = vadd.f32 %v653, %v749
  %v751 = vpop.f32.mrb[0].mxu0
  %v752 = vpop.f32.mrb[0].mxu0
  %v753 = vadd.f32 %v656, %v752
  %v754 = vpop.f32.mrb[0].mxu0
  %755 = vmatprep.mubr.bf16.mxu0 %v297
  %756 = vmatmul.mubr.bf16.gmra.mrb[0].mxu0 %v296
  %v757 = vpop.f32.mrb[0].mxu0
  %v758 = vadd.f32 %v661, %v757
  %v759 = vpop.f32.mrb[0].mxu0
  %v760 = vpop.f32.mrb[0].mxu0
  %v761 = vadd.f32 %v664, %v760
  %v762 = vpop.f32.mrb[0].mxu0
  %763 = vmatprep.mubr.bf16.mxu0 %v302
  %764 = vmatmul.mubr.bf16.gmra.mrb[0].mxu0 %v301
  %v765 = vpop.f32.mrb[0].mxu0
  %v766 = vadd.f32 %v669, %v765
  %v767 = vpop.f32.mrb[0].mxu0
  %v768 = vpop.f32.mrb[0].mxu0
  %v769 = vadd.f32 %v672, %v768
  %v770 = vpop.f32.mrb[0].mxu0
  %771 = vmatprep.mubr.bf16.mxu0 %v307
  %772 = vmatmul.mubr.bf16.gmra.mrb[0].mxu0 %v306
  %v773 = vpop.f32.mrb[0].mxu0
  %v774 = vadd.f32 %v677, %v773
  %v775 = vpop.f32.mrb[0].mxu0
  %v776 = vpop.f32.mrb[0].mxu0
  %v777 = vadd.f32 %v680, %v776
  %v778 = vpop.f32.mrb[0].mxu0
  %779 = vmatprep.mubr.bf16.mxu0 %v312
  %780 = vmatmul.mubr.bf16.gmra.mrb[0].mxu0 %v311
  %v781 = vpop.f32.mrb[0].mxu0
  %v782 = vadd.f32 %v685, %v781
  %v783 = vpop.f32.mrb[0].mxu0
  %v784 = vpop.f32.mrb[0].mxu0
  %v785 = vadd.f32 %v688, %v784
  %v786 = vpop.f32.mrb[0].mxu0
  %787 = vdwg.mxu0
  %788 = vmatprep.subr.bf16.mxu0 0
  %789 = vmatpush1.bf16.msra.mxu0 %v546
  %790 = vmatprep.subr.bf16.mxu0 0
  %791 = vmatpush1.bf16.msra.mxu0 %v547
  %792 = vmatprep.subr.bf16.mxu0 0
  %793 = vmatpush1.bf16.msra.mxu0 %v548
  %794 = vmatprep.subr.bf16.mxu0 0
  %795 = vmatpush1.bf16.msra.mxu0 %v549
  %796 = vmatprep.subr.bf16.mxu0 0
  %797 = vmatpush1.bf16.msra.mxu0 %v550
  %798 = vmatprep.subr.bf16.mxu0 0
  %799 = vmatpush1.bf16.msra.mxu0 %v551
  %800 = vmatprep.subr.bf16.mxu0 0
  %801 = vmatpush1.bf16.msra.mxu0 %v552
  %802 = vmatprep.subr.bf16.mxu0 0
  %803 = vmatpush1.bf16.msra.mxu0 %v553
  %804 = vmatprep.subr.bf16.mxu0 0
  %805 = vmatpush1.bf16.msra.mxu0 0
  %806 = vmatprep.subr.bf16.mxu0 0
  %807 = vmatpush1.bf16.msra.mxu0 0
  %808 = vmatprep.subr.bf16.mxu0 0
  %809 = vmatpush1.bf16.msra.mxu0 0
  %810 = vmatprep.subr.bf16.mxu0 0
  %811 = vmatpush1.bf16.msra.mxu0 0
  %812 = vmatprep.subr.bf16.mxu0 0
  %813 = vmatpush1.bf16.msra.mxu0 0
  %814 = vmatprep.subr.bf16.mxu0 0
  %815 = vmatpush1.bf16.msra.mxu0 0
  %816 = vmatprep.subr.bf16.mxu0 0
  %817 = vmatpush1.bf16.msra.mxu0 0
  %818 = vmatprep.subr.bf16.mxu0 0
  %819 = vmatpush1.bf16.msra.mxu0 0
  %820 = vmatprep.mubr.bf16.mxu0 0
  %821 = vmatmul.mubr.bf16.gmra.mrb[0].mxu0 %v278
  %v822 = vpop.f32.mrb[0].mxu0
  %v823 = vadd.f32 %v726, %v822
  %v824 = vpop.f32.mrb[0].mxu0
  %v825 = vpop.f32.mrb[0].mxu0
  %v826 = vadd.f32 %v729, %v825
  %v827 = vpop.f32.mrb[0].mxu0
  %828 = vmatprep.mubr.bf16.mxu0 0
  %829 = vmatmul.mubr.bf16.gmra.mrb[0].mxu0 %v283
  %v830 = vpop.f32.mrb[0].mxu0
  %v831 = vadd.f32 %v734, %v830
  %v832 = vpop.f32.mrb[0].mxu0
  %v833 = vpop.f32.mrb[0].mxu0
  %v834 = vadd.f32 %v737, %v833
  %v835 = vpop.f32.mrb[0].mxu0
  %836 = vmatprep.mubr.bf16.mxu0 0
  %837 = vmatmul.mubr.bf16.gmra.mrb[0].mxu0 %v288
  %v838 = vpop.f32.mrb[0].mxu0
  %v839 = vadd.f32 %v742, %v838
  %v840 = vpop.f32.mrb[0].mxu0
  %v841 = vpop.f32.mrb[0].mxu0
  %v842 = vadd.f32 %v745, %v841
  %v843 = vpop.f32.mrb[0].mxu0
  %844 = vmatprep.mubr.bf16.mxu0 0
  %845 = vmatmul.mubr.bf16.gmra.mrb[0].mxu0 %v293
  %v846 = vpop.f32.mrb[0].mxu0
  %v847 = vadd.f32 %v750, %v846
  %v848 = vpop.f32.mrb[0].mxu0
  %v849 = vpop.f32.mrb[0].mxu0
  %v850 = vadd.f32 %v753, %v849
  %v851 = vpop.f32.mrb[0].mxu0
  %852 = vmatprep.mubr.bf16.mxu0 0
  %853 = vmatmul.mubr.bf16.gmra.mrb[0].mxu0 %v298
  %v854 = vpop.f32.mrb[0].mxu0
  %v855 = vadd.f32 %v758, %v854
  %v856 = vpop.f32.mrb[0].mxu0
  %v857 = vpop.f32.mrb[0].mxu0
  %v858 = vadd.f32 %v761, %v857
  %v859 = vpop.f32.mrb[0].mxu0
  %860 = vmatprep.mubr.bf16.mxu0 0
  %861 = vmatmul.mubr.bf16.gmra.mrb[0].mxu0 %v303
  %v862 = vpop.f32.mrb[0].mxu0
  %v863 = vadd.f32 %v766, %v862
  %v864 = vpop.f32.mrb[0].mxu0
  %v865 = vpop.f32.mrb[0].mxu0
  %v866 = vadd.f32 %v769, %v865
  %v867 = vpop.f32.mrb[0].mxu0
  %868 = vmatprep.mubr.bf16.mxu0 0
  %869 = vmatmul.mubr.bf16.gmra.mrb[0].mxu0 %v308
  %v870 = vpop.f32.mrb[0].mxu0
  %v871 = vadd.f32 %v774, %v870
  %v872 = vpop.f32.mrb[0].mxu0
  %v873 = vpop.f32.mrb[0].mxu0
  %v874 = vadd.f32 %v777, %v873
  %v875 = vpop.f32.mrb[0].mxu0
  %876 = vmatprep.mubr.bf16.mxu0 0
  %877 = vmatmul.mubr.bf16.gmra.mrb[0].mxu0 %v313
  %v878 = vpop.f32.mrb[0].mxu0
  %v879 = vadd.f32 %v782, %v878
  %v880 = vpop.f32.mrb[0].mxu0
  %v881 = vpop.f32.mrb[0].mxu0
  %v882 = vadd.f32 %v785, %v881
  %v883 = vpop.f32.mrb[0].mxu0
  %884 = vdwg.mxu0
  %v885 = vld [vmem:[%s2] sm:$0x1]
  %v887 = vlaneseq
  %v888 = vshrl.u32 %v887, 7
  %v889 = vsub.s32 0, %v888
  %v890 = vrot.slane %v885, %v889
  %v892 = vmul.f32 %v823, %v890
  %v893 = vmul.f32 %v826, %v890
  %v894 = vmul.f32 %v831, %v890
  %v895 = vmul.f32 %v834, %v890
  %v896 = vmul.f32 %v839, %v890
  %v897 = vmul.f32 %v842, %v890
  %v898 = vmul.f32 %v847, %v890
  %v899 = vmul.f32 %v850, %v890
  %v900 = vmul.f32 %v855, %v890
  %v901 = vmul.f32 %v858, %v890
  %v902 = vmul.f32 %v863, %v890
  %v903 = vmul.f32 %v866, %v890
  %v904 = vmul.f32 %v871, %v890
  %v905 = vmul.f32 %v874, %v890
  %v906 = vmul.f32 %v879, %v890
  %v907 = vmul.f32 %v882, %v890
  %v908 = vld [vmem:[%s3] sm:$0x1]
  %v910 = vlaneseq
  %v911 = vshrl.u32 %v910, 7
  %v912 = vsub.s32 0, %v911
  %v913 = vrot.slane %v908, %v912
  %v915 = vadd.f32 %v892, %v913
  %v916 = vadd.f32 %v893, %v913
  %v917 = vadd.f32 %v894, %v913
  %v918 = vadd.f32 %v895, %v913
  %v919 = vadd.f32 %v896, %v913
  %v920 = vadd.f32 %v897, %v913
  %v921 = vadd.f32 %v898, %v913
  %v922 = vadd.f32 %v899, %v913
  %v923 = vadd.f32 %v900, %v913
  %v924 = vadd.f32 %v901, %v913
  %v925 = vadd.f32 %v902, %v913
  %v926 = vadd.f32 %v903, %v913
  %v927 = vadd.f32 %v904, %v913
  %v928 = vadd.f32 %v905, %v913
  %v929 = vadd.f32 %v906, %v913
  %v930 = vadd.f32 %v907, %v913
  %v931 = vmax.f32 %v915, 0.0
  %v932 = vmax.f32 %v916, 0.0
  %v933 = vmax.f32 %v917, 0.0
  %v934 = vmax.f32 %v918, 0.0
  %v935 = vmax.f32 %v919, 0.0
  %v936 = vmax.f32 %v920, 0.0
  %v937 = vmax.f32 %v921, 0.0
  %v938 = vmax.f32 %v922, 0.0
  %v939 = vmax.f32 %v923, 0.0
  %v940 = vmax.f32 %v924, 0.0
  %v941 = vmax.f32 %v925, 0.0
  %v942 = vmax.f32 %v926, 0.0
  %v943 = vmax.f32 %v927, 0.0
  %v944 = vmax.f32 %v928, 0.0
  %v945 = vmax.f32 %v929, 0.0
  %v946 = vmax.f32 %v930, 0.0
  %v947 = vpack.c.bf16 %v932, %v931
  %v948 = vpack.c.bf16 %v934, %v933
  %v949 = vpack.c.bf16 %v936, %v935
  %v950 = vpack.c.bf16 %v938, %v937
  %v951 = vpack.c.bf16 %v940, %v939
  %v952 = vpack.c.bf16 %v942, %v941
  %v953 = vpack.c.bf16 %v944, %v943
  %v954 = vpack.c.bf16 %v946, %v945
  %v963 = vunpack.c.l.b16 %v947
  %v964 = vunpack.c.h.b16 %v947
  %v965 = vunpack.c.l.b16 %v948
  %v966 = vunpack.c.h.b16 %v948
  %v967 = vunpack.c.l.b16 %v949
  %v968 = vunpack.c.h.b16 %v949
  %v969 = vunpack.c.l.b16 %v950
  %v970 = vunpack.c.h.b16 %v950
  %v971 = vunpack.c.l.b16 %v951
  %v972 = vunpack.c.h.b16 %v951
  %v973 = vunpack.c.l.b16 %v952
  %v974 = vunpack.c.h.b16 %v952
  %v975 = vunpack.c.l.b16 %v953
  %v976 = vunpack.c.h.b16 %v953
  %v977 = vunpack.c.l.b16 %v954
  %v978 = vunpack.c.h.b16 %v954
  %v979 = vpack.c.b16 %v963, %v963
  %v980 = vpack.c.b16 %v964, %v964
  %v981 = vpack.c.b16 %v965, %v965
  %v982 = vpack.c.b16 %v966, %v966
  %v983 = vpack.c.b16 %v967, %v967
  %v984 = vpack.c.b16 %v968, %v968
  %v985 = vpack.c.b16 %v969, %v969
  %v986 = vpack.c.b16 %v970, %v970
  %v987 = vpack.c.b16 %v971, %v971
  %v988 = vpack.c.b16 %v972, %v972
  %v989 = vpack.c.b16 %v973, %v973
  %v990 = vpack.c.b16 %v974, %v974
  %v991 = vpack.c.b16 %v975, %v975
  %v992 = vpack.c.b16 %v976, %v976
  %v993 = vpack.c.b16 %v977, %v977
  %v994 = vpack.c.b16 %v978, %v978
  %1011 = vst [vmem:[%s4] sm:$0xf] %v979
  %1012 = vst [vmem:[%s4 + $0x4] sm:$0xf] %v980
  %1013 = vst [vmem:[%s4 + $0x8] sm:$0xf] %v981
  %1014 = vst [vmem:[%s4 + $0xc] sm:$0xf] %v982
  %1015 = vst [vmem:[%s4 + $0x10] sm:$0xf] %v983
  %1016 = vst [vmem:[%s4 + $0x14] sm:$0xf] %v984
  %1017 = vst [vmem:[%s4 + $0x18] sm:$0xf] %v985
  %1018 = vst [vmem:[%s4 + $0x1c] sm:$0xf] %v986
  %1019 = vst [vmem:[%s4 + $0x20] sm:$0xf] %v987
  %1020 = vst [vmem:[%s4 + $0x24] sm:$0xf] %v988
  %1021 = vst [vmem:[%s4 + $0x28] sm:$0xf] %v989
  %1022 = vst [vmem:[%s4 + $0x2c] sm:$0xf] %v990
  %1023 = vst [vmem:[%s4 + $0x30] sm:$0xf] %v991
  %1024 = vst [vmem:[%s4 + $0x34] sm:$0xf] %v992
  %1025 = vst [vmem:[%s4 + $0x38] sm:$0xf] %v993
  %1026 = vst [vmem:[%s4 + $0x3c] sm:$0xf] %v994
  // Predicated region
  $region18: #{_lambda_.14} parent=0 // pred_check
    _
  $region19: #{_lambda_.14} parent=0 // pred_check_branch
    %1028 = sbr.rel (0) target = $region21
  $region20: #{_lambda_.14} parent=0 // pred_region
    _
  $region21: #{_lambda_.14} parent=0 // pred_fallthru
    _
  // Predicated region
  $region22: #{_lambda_.14} parent=0 // pred_check
    _
  $region23: #{_lambda_.14} parent=0 // pred_check_branch
    %1030 = sbr.rel (0) target = $region25
  $region24: #{_lambda_.14} parent=0 // pred_region
    _
  $region25: #{_lambda_.14} parent=0 // pred_fallthru
    _

// kernel: _lambda_.15
$region0: #{_lambda_.15}
  #allocation0 [shape = 'u32[]', space=smem, size = 0x4, offset = 0x4, fixed_abs, tag = 'smem constant byte address 0x4 - core index']
  #allocation1 [shape = 'u32[144,128]{1,0:T(1,128)}', space=vmem, size = 0x12000, scoped, tag = 'internal scratch']
  %s0 = inlined_call_operand.vmem [shape: bf16[128,640], index: 0, kind: input, shape index: {}]
  %s1 = inlined_call_operand.vmem [shape: bf16[640,128], index: 1, kind: input, shape index: {}]
  %s2 = inlined_call_operand.vmem [shape: f32[1,128], index: 2, kind: input, shape index: {}]
  %s3 = inlined_call_operand.vmem [shape: f32[1,128], index: 3, kind: input, shape index: {}]
  %s4 = inlined_call_operand.vmem [shape: bf16[128,128], index: 4, kind: input, shape index: {}]
  %s5 = inlined_call_operand.vmem [shape: f32[1,128], index: 5, kind: input, shape index: {}]
  %s6 = inlined_call_operand.vmem [shape: f32[512,128], index: 6, kind: input, shape index: {}]
  %s7 = inlined_call_operand.vmem [shape: f32[512,128], index: 7, kind: output, shape index: {}]
  %s8 = sld [smem:[#allocation0]]
  $region38: #{_lambda_.15} parent=0
    _
  %s10 = ssub.s32 1, %s8
  %s11 = scalar_select 0, %s10, %s8
  // Predicated region
  $region2: #{_lambda_.15} parent=0 // pred_check
    _
  $region3: #{_lambda_.15} parent=0 // pred_check_branch
    %13 = sbr.rel (0) target = $region5
  $region4: #{_lambda_.15} parent=0 // pred_region
    _
  $region5: #{_lambda_.15} parent=0 // pred_fallthru
    _
  // Predicated region
  $region6: #{_lambda_.15} parent=0 // pred_check
    _
  $region7: #{_lambda_.15} parent=0 // pred_check_branch
    %15 = sbr.rel (0) target = $region9
  $region8: #{_lambda_.15} parent=0 // pred_region
    _
  $region9: #{_lambda_.15} parent=0 // pred_fallthru
    _
  // Predicated region
  $region10: #{_lambda_.15} parent=0 // pred_check
    _
  $region11: #{_lambda_.15} parent=0 // pred_check_branch
    %17 = sbr.rel (0) target = $region13
  $region12: #{_lambda_.15} parent=0 // pred_region
    _
  $region13: #{_lambda_.15} parent=0 // pred_fallthru
    _
  // Predicated region
  $region14: #{_lambda_.15} parent=0 // pred_check
    _
  $region15: #{_lambda_.15} parent=0 // pred_check_branch
    %19 = sbr.rel (0) target = $region17
  $region16: #{_lambda_.15} parent=0 // pred_region
    _
  $region17: #{_lambda_.15} parent=0 // pred_fallthru
    _
  // Predicated region
  $region18: #{_lambda_.15} parent=0 // pred_check
    _
  $region19: #{_lambda_.15} parent=0 // pred_check_branch
    %21 = sbr.rel (0) target = $region21
  $region20: #{_lambda_.15} parent=0 // pred_region
    _
  $region21: #{_lambda_.15} parent=0 // pred_fallthru
    _
  // Predicated region
  $region22: #{_lambda_.15} parent=0 // pred_check
    _
  $region23: #{_lambda_.15} parent=0 // pred_check_branch
    %23 = sbr.rel (0) target = $region25
  $region24: #{_lambda_.15} parent=0 // pred_region
    _
  $region25: #{_lambda_.15} parent=0 // pred_fallthru
    _
  // Predicated region
  $region26: #{_lambda_.15} parent=0 // pred_check
    _
  $region27: #{_lambda_.15} parent=0 // pred_check_branch
    %25 = sbr.rel (0) target = $region29
  $region28: #{_lambda_.15} parent=0 // pred_region
    _
  $region29: #{_lambda_.15} parent=0 // pred_fallthru
    _
  %v27 = vld [vmem:[%s0] sm:$0xff]
  %v28 = vld [vmem:[%s0 + $0x8] sm:$0xff]
  %v29 = vld [vmem:[%s0 + $0x10] sm:$0xf]
  %v30 = vld [vmem:[%s0 + $0x14] sm:$0xff]
  %v31 = vld [vmem:[%s0 + $0x1c] sm:$0xff]
  %v32 = vld [vmem:[%s0 + $0x24] sm:$0xf]
  %v33 = vld [vmem:[%s0 + $0x28] sm:$0xff]
  %v34 = vld [vmem:[%s0 + $0x30] sm:$0xff]
  %v35 = vld [vmem:[%s0 + $0x38] sm:$0xf]
  %v36 = vld [vmem:[%s0 + $0x3c] sm:$0xff]
  %v37 = vld [vmem:[%s0 + $0x44] sm:$0xff]
  %v38 = vld [vmem:[%s0 + $0x4c] sm:$0xf]
  %v39 = vld [vmem:[%s0 + $0x50] sm:$0xff]
  %v40 = vld [vmem:[%s0 + $0x58] sm:$0xff]
  %v41 = vld [vmem:[%s0 + $0x60] sm:$0xf]
  %v42 = vld [vmem:[%s0 + $0x64] sm:$0xff]
  %v43 = vld [vmem:[%s0 + $0x6c] sm:$0xff]
  %v44 = vld [vmem:[%s0 + $0x74] sm:$0xf]
  %v45 = vld [vmem:[%s0 + $0x78] sm:$0xff]
  %v46 = vld [vmem:[%s0 + $0x80] sm:$0xff]
  %v47 = vld [vmem:[%s0 + $0x88] sm:$0xf]
  %v48 = vld [vmem:[%s0 + $0x8c] sm:$0xff]
  %v49 = vld [vmem:[%s0 + $0x94] sm:$0xff]
  %v50 = vld [vmem:[%s0 + $0x9c] sm:$0xf]
  %v51 = vld [vmem:[%s0 + $0xa0] sm:$0xff]
  %v52 = vld [vmem:[%s0 + $0xa8] sm:$0xff]
  %v53 = vld [vmem:[%s0 + $0xb0] sm:$0xf]
  %v54 = vld [vmem:[%s0 + $0xb4] sm:$0xff]
  %v55 = vld [vmem:[%s0 + $0xbc] sm:$0xff]
  %v56 = vld [vmem:[%s0 + $0xc4] sm:$0xf]
  %v57 = vld [vmem:[%s0 + $0xc8] sm:$0xff]
  %v58 = vld [vmem:[%s0 + $0xd0] sm:$0xff]
  %v59 = vld [vmem:[%s0 + $0xd8] sm:$0xf]
  %v60 = vld [vmem:[%s0 + $0xdc] sm:$0xff]
  %v61 = vld [vmem:[%s0 + $0xe4] sm:$0xff]
  %v62 = vld [vmem:[%s0 + $0xec] sm:$0xf]
  %v63 = vld [vmem:[%s0 + $0xf0] sm:$0xff]
  %v64 = vld [vmem:[%s0 + $0xf8] sm:$0xff]
  %v65 = vld [vmem:[%s0 + $0x100] sm:$0xf]
  %v66 = vld [vmem:[%s0 + $0x104] sm:$0xff]
  %v67 = vld [vmem:[%s0 + $0x10c] sm:$0xff]
  %v68 = vld [vmem:[%s0 + $0x114] sm:$0xf]
  %v69 = vld [vmem:[%s0 + $0x118] sm:$0xff]
  %v70 = vld [vmem:[%s0 + $0x120] sm:$0xff]
  %v71 = vld [vmem:[%s0 + $0x128] sm:$0xf]
  %v72 = vld [vmem:[%s0 + $0x12c] sm:$0xff]
  %v73 = vld [vmem:[%s0 + $0x134] sm:$0xff]
  %v74 = vld [vmem:[%s0 + $0x13c] sm:$0xf]
  %v75 = vld [vmem:[%s1] sm:$0xf]
  %v76 = vld [vmem:[%s1 + $0x4] sm:$0xf]
  %v77 = vld [vmem:[%s1 + $0x8] sm:$0xf]
  %v78 = vld [vmem:[%s1 + $0xc] sm:$0xf]
  %v79 = vld [vmem:[%s1 + $0x10] sm:$0xf]
  %v80 = vld [vmem:[%s1 + $0x14] sm:$0xf]
  %v81 = vld [vmem:[%s1 + $0x18] sm:$0xf]
  %v82 = vld [vmem:[%s1 + $0x1c] sm:$0xf]
  %v83 = vld [vmem:[%s1 + $0x20] sm:$0xf]
  %v84 = vld [vmem:[%s1 + $0x24] sm:$0xf]
  %v85 = vld [vmem:[%s1 + $0x28] sm:$0xf]
  %v86 = vld [vmem:[%s1 + $0x2c] sm:$0xf]
  %v87 = vld [vmem:[%s1 + $0x30] sm:$0xf]
  %v88 = vld [vmem:[%s1 + $0x34] sm:$0xf]
  %v89 = vld [vmem:[%s1 + $0x38] sm:$0xf]
  %v90 = vld [vmem:[%s1 + $0x3c] sm:$0xf]
  %v91 = vld [vmem:[%s1 + $0x40] sm:$0xf]
  %v92 = vld [vmem:[%s1 + $0x44] sm:$0xf]
  %v93 = vld [vmem:[%s1 + $0x48] sm:$0xf]
  %v94 = vld [vmem:[%s1 + $0x4c] sm:$0xf]
  %v95 = vld [vmem:[%s1 + $0x50] sm:$0xf]
  %v96 = vld [vmem:[%s1 + $0x54] sm:$0xf]
  %v97 = vld [vmem:[%s1 + $0x58] sm:$0xf]
  %v98 = vld [vmem:[%s1 + $0x5c] sm:$0xf]
  %v99 = vld [vmem:[%s1 + $0x60] sm:$0xf]
  %v100 = vld [vmem:[%s1 + $0x64] sm:$0xf]
  %v101 = vld [vmem:[%s1 + $0x68] sm:$0xf]
  %v102 = vld [vmem:[%s1 + $0x6c] sm:$0xf]
  %v103 = vld [vmem:[%s1 + $0x70] sm:$0xf]
  %v104 = vld [vmem:[%s1 + $0x74] sm:$0xf]
  %v105 = vld [vmem:[%s1 + $0x78] sm:$0xf]
  %v106 = vld [vmem:[%s1 + $0x7c] sm:$0xf]
  %v107 = vld [vmem:[%s1 + $0x80] sm:$0xf]
  %v108 = vld [vmem:[%s1 + $0x84] sm:$0xf]
  %v109 = vld [vmem:[%s1 + $0x88] sm:$0xf]
  %v110 = vld [vmem:[%s1 + $0x8c] sm:$0xf]
  %v111 = vld [vmem:[%s1 + $0x90] sm:$0xf]
  %v112 = vld [vmem:[%s1 + $0x94] sm:$0xf]
  %v113 = vld [vmem:[%s1 + $0x98] sm:$0xf]
  %v114 = vld [vmem:[%s1 + $0x9c] sm:$0xf]
  %v115 = vld [vmem:[%s1 + $0xa0] sm:$0xf]
  %v116 = vld [vmem:[%s1 + $0xa4] sm:$0xf]
  %v117 = vld [vmem:[%s1 + $0xa8] sm:$0xf]
  %v118 = vld [vmem:[%s1 + $0xac] sm:$0xf]
  %v119 = vld [vmem:[%s1 + $0xb0] sm:$0xf]
  %v120 = vld [vmem:[%s1 + $0xb4] sm:$0xf]
  %v121 = vld [vmem:[%s1 + $0xb8] sm:$0xf]
  %v122 = vld [vmem:[%s1 + $0xbc] sm:$0xf]
  %v123 = vld [vmem:[%s1 + $0xc0] sm:$0xf]
  %v124 = vld [vmem:[%s1 + $0xc4] sm:$0xf]
  %v125 = vld [vmem:[%s1 + $0xc8] sm:$0xf]
  %v126 = vld [vmem:[%s1 + $0xcc] sm:$0xf]
  %v127 = vld [vmem:[%s1 + $0xd0] sm:$0xf]
  %v128 = vld [vmem:[%s1 + $0xd4] sm:$0xf]
  %v129 = vld [vmem:[%s1 + $0xd8] sm:$0xf]
  %v130 = vld [vmem:[%s1 + $0xdc] sm:$0xf]
  %v131 = vld [vmem:[%s1 + $0xe0] sm:$0xf]
  %v132 = vld [vmem:[%s1 + $0xe4] sm:$0xf]
  %v133 = vld [vmem:[%s1 + $0xe8] sm:$0xf]
  %v134 = vld [vmem:[%s1 + $0xec] sm:$0xf]
  %v135 = vld [vmem:[%s1 + $0xf0] sm:$0xf]
  %v136 = vld [vmem:[%s1 + $0xf4] sm:$0xf]
  %v137 = vld [vmem:[%s1 + $0xf8] sm:$0xf]
  %v138 = vld [vmem:[%s1 + $0xfc] sm:$0xf]
  %v139 = vld [vmem:[%s1 + $0x100] sm:$0xf]
  %v140 = vld [vmem:[%s1 + $0x104] sm:$0xf]
  %v141 = vld [vmem:[%s1 + $0x108] sm:$0xf]
  %v142 = vld [vmem:[%s1 + $0x10c] sm:$0xf]
  %v143 = vld [vmem:[%s1 + $0x110] sm:$0xf]
  %v144 = vld [vmem:[%s1 + $0x114] sm:$0xf]
  %v145 = vld [vmem:[%s1 + $0x118] sm:$0xf]
  %v146 = vld [vmem:[%s1 + $0x11c] sm:$0xf]
  %v147 = vld [vmem:[%s1 + $0x120] sm:$0xf]
  %v148 = vld [vmem:[%s1 + $0x124] sm:$0xf]
  %v149 = vld [vmem:[%s1 + $0x128] sm:$0xf]
  %v150 = vld [vmem:[%s1 + $0x12c] sm:$0xf]
  %v151 = vld [vmem:[%s1 + $0x130] sm:$0xf]
  %v152 = vld [vmem:[%s1 + $0x134] sm:$0xf]
  %v153 = vld [vmem:[%s1 + $0x138] sm:$0xf]
  %v154 = vld [vmem:[%s1 + $0x13c] sm:$0xf]
  %v203 = vunpack.c.l.b16 %v27
  %v204 = vunpack.c.h.b16 %v27
  %v205 = vunpack.c.l.b16 %v28
  %v206 = vunpack.c.h.b16 %v28
  %v207 = vunpack.c.l.b16 %v29
  %v208 = vunpack.c.l.b16 %v30
  %v209 = vunpack.c.h.b16 %v30
  %v210 = vunpack.c.l.b16 %v31
  %v211 = vunpack.c.h.b16 %v31
  %v212 = vunpack.c.l.b16 %v32
  %v213 = vunpack.c.l.b16 %v33
  %v214 = vunpack.c.h.b16 %v33
  %v215 = vunpack.c.l.b16 %v34
  %v216 = vunpack.c.h.b16 %v34
  %v217 = vunpack.c.l.b16 %v35
  %v218 = vunpack.c.l.b16 %v36
  %v219 = vunpack.c.h.b16 %v36
  %v220 = vunpack.c.l.b16 %v37
  %v221 = vunpack.c.h.b16 %v37
  %v222 = vunpack.c.l.b16 %v38
  %v223 = vunpack.c.l.b16 %v39
  %v224 = vunpack.c.h.b16 %v39
  %v225 = vunpack.c.l.b16 %v40
  %v226 = vunpack.c.h.b16 %v40
  %v227 = vunpack.c.l.b16 %v41
  %v228 = vunpack.c.l.b16 %v42
  %v229 = vunpack.c.h.b16 %v42
  %v230 = vunpack.c.l.b16 %v43
  %v231 = vunpack.c.h.b16 %v43
  %v232 = vunpack.c.l.b16 %v44
  %v233 = vunpack.c.l.b16 %v45
  %v234 = vunpack.c.h.b16 %v45
  %v235 = vunpack.c.l.b16 %v46
  %v236 = vunpack.c.h.b16 %v46
  %v237 = vunpack.c.l.b16 %v47
  %v238 = vunpack.c.l.b16 %v48
  %v239 = vunpack.c.h.b16 %v48
  %v240 = vunpack.c.l.b16 %v49
  %v241 = vunpack.c.h.b16 %v49
  %v242 = vunpack.c.l.b16 %v50
  %v243 = vunpack.c.l.b16 %v51
  %v244 = vunpack.c.h.b16 %v51
  %v245 = vunpack.c.l.b16 %v52
  %v246 = vunpack.c.h.b16 %v52
  %v247 = vunpack.c.l.b16 %v53
  %v248 = vunpack.c.l.b16 %v54
  %v249 = vunpack.c.h.b16 %v54
  %v250 = vunpack.c.l.b16 %v55
  %v251 = vunpack.c.h.b16 %v55
  %v252 = vunpack.c.l.b16 %v56
  %v253 = vunpack.c.l.b16 %v57
  %v254 = vunpack.c.h.b16 %v57
  %v255 = vunpack.c.l.b16 %v58
  %v256 = vunpack.c.h.b16 %v58
  %v257 = vunpack.c.l.b16 %v59
  %v258 = vunpack.c.l.b16 %v60
  %v259 = vunpack.c.h.b16 %v60
  %v260 = vunpack.c.l.b16 %v61
  %v261 = vunpack.c.h.b16 %v61
  %v262 = vunpack.c.l.b16 %v62
  %v263 = vunpack.c.l.b16 %v63
  %v264 = vunpack.c.h.b16 %v63
  %v265 = vunpack.c.l.b16 %v64
  %v266 = vunpack.c.h.b16 %v64
  %v267 = vunpack.c.l.b16 %v65
  %v268 = vunpack.c.l.b16 %v66
  %v269 = vunpack.c.h.b16 %v66
  %v270 = vunpack.c.l.b16 %v67
  %v271 = vunpack.c.h.b16 %v67
  %v272 = vunpack.c.l.b16 %v68
  %v273 = vunpack.c.l.b16 %v69
  %v274 = vunpack.c.h.b16 %v69
  %v275 = vunpack.c.l.b16 %v70
  %v276 = vunpack.c.h.b16 %v70
  %v277 = vunpack.c.l.b16 %v71
  %v278 = vunpack.c.l.b16 %v72
  %v279 = vunpack.c.h.b16 %v72
  %v280 = vunpack.c.l.b16 %v73
  %v281 = vunpack.c.h.b16 %v73
  %v282 = vunpack.c.l.b16 %v74
  %v283 = vpack.c.b16 %v208, %v203
  %v284 = vpack.c.b16 %v209, %v204
  %v285 = vpack.c.b16 %v210, %v205
  %v286 = vpack.c.b16 %v211, %v206
  %v287 = vpack.c.b16 %v212, %v207
  %v288 = vpack.c.b16 %v218, %v213
  %v289 = vpack.c.b16 %v219, %v214
  %v290 = vpack.c.b16 %v220, %v215
  %v291 = vpack.c.b16 %v221, %v216
  %v292 = vpack.c.b16 %v222, %v217
  %v293 = vpack.c.b16 %v228, %v223
  %v294 = vpack.c.b16 %v229, %v224
  %v295 = vpack.c.b16 %v230, %v225
  %v296 = vpack.c.b16 %v231, %v226
  %v297 = vpack.c.b16 %v232, %v227
  %v298 = vpack.c.b16 %v238, %v233
  %v299 = vpack.c.b16 %v239, %v234
  %v300 = vpack.c.b16 %v240, %v235
  %v301 = vpack.c.b16 %v241, %v236
  %v302 = vpack.c.b16 %v242, %v237
  %v303 = vpack.c.b16 %v248, %v243
  %v304 = vpack.c.b16 %v249, %v244
  %v305 = vpack.c.b16 %v250, %v245
  %v306 = vpack.c.b16 %v251, %v246
  %v307 = vpack.c.b16 %v252, %v247
  %v308 = vpack.c.b16 %v258, %v253
  %v309 = vpack.c.b16 %v259, %v254
  %v310 = vpack.c.b16 %v260, %v255
  %v311 = vpack.c.b16 %v261, %v256
  %v312 = vpack.c.b16 %v262, %v257
  %v313 = vpack.c.b16 %v268, %v263
  %v314 = vpack.c.b16 %v269, %v264
  %v315 = vpack.c.b16 %v270, %v265
  %v316 = vpack.c.b16 %v271, %v266
  %v317 = vpack.c.b16 %v272, %v267
  %v318 = vpack.c.b16 %v278, %v273
  %v319 = vpack.c.b16 %v279, %v274
  %v320 = vpack.c.b16 %v280, %v275
  %v321 = vpack.c.b16 %v281, %v276
  %v322 = vpack.c.b16 %v282, %v277
  %v443 = vunpack.c.l.b16 %v75
  %v444 = vunpack.c.l.b16 %v76
  %v445 = vunpack.c.l.b16 %v77
  %v446 = vunpack.c.l.b16 %v78
  %v447 = vunpack.c.l.b16 %v79
  %v448 = vunpack.c.l.b16 %v80
  %v449 = vunpack.c.l.b16 %v81
  %v450 = vunpack.c.l.b16 %v82
  %v451 = vunpack.c.l.b16 %v83
  %v452 = vunpack.c.l.b16 %v84
  %v453 = vunpack.c.l.b16 %v85
  %v454 = vunpack.c.l.b16 %v86
  %v455 = vunpack.c.l.b16 %v87
  %v456 = vunpack.c.l.b16 %v88
  %v457 = vunpack.c.l.b16 %v89
  %v458 = vunpack.c.l.b16 %v90
  %v459 = vunpack.c.l.b16 %v91
  %v460 = vunpack.c.l.b16 %v92
  %v461 = vunpack.c.l.b16 %v93
  %v462 = vunpack.c.l.b16 %v94
  %v463 = vunpack.c.l.b16 %v95
  %v464 = vunpack.c.l.b16 %v96
  %v465 = vunpack.c.l.b16 %v97
  %v466 = vunpack.c.l.b16 %v98
  %v467 = vunpack.c.l.b16 %v99
  %v468 = vunpack.c.l.b16 %v100
  %v469 = vunpack.c.l.b16 %v101
  %v470 = vunpack.c.l.b16 %v102
  %v471 = vunpack.c.l.b16 %v103
  %v472 = vunpack.c.l.b16 %v104
  %v473 = vunpack.c.l.b16 %v105
  %v474 = vunpack.c.l.b16 %v106
  %v475 = vunpack.c.l.b16 %v107
  %v476 = vunpack.c.l.b16 %v108
  %v477 = vunpack.c.l.b16 %v109
  %v478 = vunpack.c.l.b16 %v110
  %v479 = vunpack.c.l.b16 %v111
  %v480 = vunpack.c.l.b16 %v112
  %v481 = vunpack.c.l.b16 %v113
  %v482 = vunpack.c.l.b16 %v114
  %v483 = vunpack.c.l.b16 %v115
  %v484 = vunpack.c.l.b16 %v116
  %v485 = vunpack.c.l.b16 %v117
  %v486 = vunpack.c.l.b16 %v118
  %v487 = vunpack.c.l.b16 %v119
  %v488 = vunpack.c.l.b16 %v120
  %v489 = vunpack.c.l.b16 %v121
  %v490 = vunpack.c.l.b16 %v122
  %v491 = vunpack.c.l.b16 %v123
  %v492 = vunpack.c.l.b16 %v124
  %v493 = vunpack.c.l.b16 %v125
  %v494 = vunpack.c.l.b16 %v126
  %v495 = vunpack.c.l.b16 %v127
  %v496 = vunpack.c.l.b16 %v128
  %v497 = vunpack.c.l.b16 %v129
  %v498 = vunpack.c.l.b16 %v130
  %v499 = vunpack.c.l.b16 %v131
  %v500 = vunpack.c.l.b16 %v132
  %v501 = vunpack.c.l.b16 %v133
  %v502 = vunpack.c.l.b16 %v134
  %v503 = vunpack.c.l.b16 %v135
  %v504 = vunpack.c.l.b16 %v136
  %v505 = vunpack.c.l.b16 %v137
  %v506 = vunpack.c.l.b16 %v138
  %v507 = vunpack.c.l.b16 %v139
  %v508 = vunpack.c.l.b16 %v140
  %v509 = vunpack.c.l.b16 %v141
  %v510 = vunpack.c.l.b16 %v142
  %v511 = vunpack.c.l.b16 %v143
  %v512 = vunpack.c.l.b16 %v144
  %v513 = vunpack.c.l.b16 %v145
  %v514 = vunpack.c.l.b16 %v146
  %v515 = vunpack.c.l.b16 %v147
  %v516 = vunpack.c.l.b16 %v148
  %v517 = vunpack.c.l.b16 %v149
  %v518 = vunpack.c.l.b16 %v150
  %v519 = vunpack.c.l.b16 %v151
  %v520 = vunpack.c.l.b16 %v152
  %v521 = vunpack.c.l.b16 %v153
  %v522 = vunpack.c.l.b16 %v154
  %v523 = vpack.c.b16 %v444, %v443
  %v524 = vpack.c.b16 %v446, %v445
  %v525 = vpack.c.b16 %v448, %v447
  %v526 = vpack.c.b16 %v450, %v449
  %v527 = vpack.c.b16 %v452, %v451
  %v528 = vpack.c.b16 %v454, %v453
  %v529 = vpack.c.b16 %v456, %v455
  %v530 = vpack.c.b16 %v458, %v457
  %v531 = vpack.c.b16 %v460, %v459
  %v532 = vpack.c.b16 %v462, %v461
  %v533 = vpack.c.b16 %v464, %v463
  %v534 = vpack.c.b16 %v466, %v465
  %v535 = vpack.c.b16 %v468, %v467
  %v536 = vpack.c.b16 %v470, %v469
  %v537 = vpack.c.b16 %v472, %v471
  %v538 = vpack.c.b16 %v474, %v473
  %v539 = vpack.c.b16 %v476, %v475
  %v540 = vpack.c.b16 %v478, %v477
  %v541 = vpack.c.b16 %v480, %v479
  %v542 = vpack.c.b16 %v482, %v481
  %v543 = vpack.c.b16 %v484, %v483
  %v544 = vpack.c.b16 %v486, %v485
  %v545 = vpack.c.b16 %v488, %v487
  %v546 = vpack.c.b16 %v490, %v489
  %v547 = vpack.c.b16 %v492, %v491
  %v548 = vpack.c.b16 %v494, %v493
  %v549 = vpack.c.b16 %v496, %v495
  %v550 = vpack.c.b16 %v498, %v497
  %v551 = vpack.c.b16 %v500, %v499
  %v552 = vpack.c.b16 %v502, %v501
  %v553 = vpack.c.b16 %v504, %v503
  %v554 = vpack.c.b16 %v506, %v505
  %v555 = vpack.c.b16 %v508, %v507
  %v556 = vpack.c.b16 %v510, %v509
  %v557 = vpack.c.b16 %v512, %v511
  %v558 = vpack.c.b16 %v514, %v513
  %v559 = vpack.c.b16 %v516, %v515
  %v560 = vpack.c.b16 %v518, %v517
  %v561 = vpack.c.b16 %v520, %v519
  %v562 = vpack.c.b16 %v522, %v521
  %603 = vmatprep.subr.bf16.mxu0 0
  %604 = vmatpush1.bf16.msra.mxu0 %v523
  %605 = vmatprep.subr.bf16.mxu0 0
  %606 = vmatpush1.bf16.msra.mxu0 %v524
  %607 = vmatprep.subr.bf16.mxu0 0
  %608 = vmatpush1.bf16.msra.mxu0 %v525
  %609 = vmatprep.subr.bf16.mxu0 0
  %610 = vmatpush1.bf16.msra.mxu0 %v526
  %611 = vmatprep.subr.bf16.mxu0 0
  %612 = vmatpush1.bf16.msra.mxu0 %v527
  %613 = vmatprep.subr.bf16.mxu0 0
  %614 = vmatpush1.bf16.msra.mxu0 %v528
  %615 = vmatprep.subr.bf16.mxu0 0
  %616 = vmatpush1.bf16.msra.mxu0 %v529
  %617 = vmatprep.subr.bf16.mxu0 0
  %618 = vmatpush1.bf16.msra.mxu0 %v530
  %619 = vmatprep.subr.bf16.mxu0 0
  %620 = vmatpush1.bf16.msra.mxu0 %v531
  %621 = vmatprep.subr.bf16.mxu0 0
  %622 = vmatpush1.bf16.msra.mxu0 %v532
  %623 = vmatprep.subr.bf16.mxu0 0
  %624 = vmatpush1.bf16.msra.mxu0 %v533
  %625 = vmatprep.subr.bf16.mxu0 0
  %626 = vmatpush1.bf16.msra.mxu0 %v534
  %627 = vmatprep.subr.bf16.mxu0 0
  %628 = vmatpush1.bf16.msra.mxu0 %v535
  %629 = vmatprep.subr.bf16.mxu0 0
  %630 = vmatpush1.bf16.msra.mxu0 %v536
  %631 = vmatprep.subr.bf16.mxu0 0
  %632 = vmatpush1.bf16.msra.mxu0 %v537
  %633 = vmatprep.subr.bf16.mxu0 0
  %634 = vmatpush1.bf16.msra.mxu0 %v538
  %635 = vmatprep.mubr.bf16.mxu0 %v284
  %636 = vmatmul.mubr.bf16.gmra.mrb[0].mxu0 %v283
  %v637 = vpop.f32.mrb[0].mxu0
  %v638 = vadd.f32 0.0, %v637
  %v639 = vpop.f32.mrb[0].mxu0
  %v640 = vpop.f32.mrb[0].mxu0
  %v641 = vadd.f32 0.0, %v640
  %v642 = vpop.f32.mrb[0].mxu0
  %643 = vmatprep.mubr.bf16.mxu0 %v289
  %644 = vmatmul.mubr.bf16.gmra.mrb[0].mxu0 %v288
  %v645 = vpop.f32.mrb[0].mxu0
  %v646 = vadd.f32 0.0, %v645
  %v647 = vpop.f32.mrb[0].mxu0
  %v648 = vpop.f32.mrb[0].mxu0
  %v649 = vadd.f32 0.0, %v648
  %v650 = vpop.f32.mrb[0].mxu0
  %651 = vmatprep.mubr.bf16.mxu0 %v294
  %652 = vmatmul.mubr.bf16.gmra.mrb[0].mxu0 %v293
  %v653 = vpop.f32.mrb[0].mxu0
  %v654 = vadd.f32 0.0, %v653
  %v655 = vpop.f32.mrb[0].mxu0
  %v656 = vpop.f32.mrb[0].mxu0
  %v657 = vadd.f32 0.0, %v656
  %v658 = vpop.f32.mrb[0].mxu0
  %659 = vmatprep.mubr.bf16.mxu0 %v299
  %660 = vmatmul.mubr.bf16.gmra.mrb[0].mxu0 %v298
  %v661 = vpop.f32.mrb[0].mxu0
  %v662 = vadd.f32 0.0, %v661
  %v663 = vpop.f32.mrb[0].mxu0
  %v664 = vpop.f32.mrb[0].mxu0
  %v665 = vadd.f32 0.0, %v664
  %v666 = vpop.f32.mrb[0].mxu0
  %667 = vmatprep.mubr.bf16.mxu0 %v304
  %668 = vmatmul.mubr.bf16.gmra.mrb[0].mxu0 %v303
  %v669 = vpop.f32.mrb[0].mxu0
  %v670 = vadd.f32 0.0, %v669
  %v671 = vpop.f32.mrb[0].mxu0
  %v672 = vpop.f32.mrb[0].mxu0
  %v673 = vadd.f32 0.0, %v672
  %v674 = vpop.f32.mrb[0].mxu0
  %675 = vmatprep.mubr.bf16.mxu0 %v309
  %676 = vmatmul.mubr.bf16.gmra.mrb[0].mxu0 %v308
  %v677 = vpop.f32.mrb[0].mxu0
  %v678 = vadd.f32 0.0, %v677
  %v679 = vpop.f32.mrb[0].mxu0
  %v680 = vpop.f32.mrb[0].mxu0
  %v681 = vadd.f32 0.0, %v680
  %v682 = vpop.f32.mrb[0].mxu0
  %683 = vmatprep.mubr.bf16.mxu0 %v314
  %684 = vmatmul.mubr.bf16.gmra.mrb[0].mxu0 %v313
  %v685 = vpop.f32.mrb[0].mxu0
  %v686 = vadd.f32 0.0, %v685
  %v687 = vpop.f32.mrb[0].mxu0
  %v688 = vpop.f32.mrb[0].mxu0
  %v689 = vadd.f32 0.0, %v688
  %v690 = vpop.f32.mrb[0].mxu0
  %691 = vmatprep.mubr.bf16.mxu0 %v319
  %692 = vmatmul.mubr.bf16.gmra.mrb[0].mxu0 %v318
  %v693 = vpop.f32.mrb[0].mxu0
  %v694 = vadd.f32 0.0, %v693
  %v695 = vpop.f32.mrb[0].mxu0
  %v696 = vpop.f32.mrb[0].mxu0
  %v697 = vadd.f32 0.0, %v696
  %v698 = vpop.f32.mrb[0].mxu0
  %699 = vdwg.mxu0
  %700 = vmatprep.subr.bf16.mxu0 0
  %701 = vmatpush1.bf16.msra.mxu0 %v539
  %702 = vmatprep.subr.bf16.mxu0 0
  %703 = vmatpush1.bf16.msra.mxu0 %v540
  %704 = vmatprep.subr.bf16.mxu0 0
  %705 = vmatpush1.bf16.msra.mxu0 %v541
  %706 = vmatprep.subr.bf16.mxu0 0
  %707 = vmatpush1.bf16.msra.mxu0 %v542
  %708 = vmatprep.subr.bf16.mxu0 0
  %709 = vmatpush1.bf16.msra.mxu0 %v543
  %710 = vmatprep.subr.bf16.mxu0 0
  %711 = vmatpush1.bf16.msra.mxu0 %v544
  %712 = vmatprep.subr.bf16.mxu0 0
  %713 = vmatpush1.bf16.msra.mxu0 %v545
  %714 = vmatprep.subr.bf16.mxu0 0
  %715 = vmatpush1.bf16.msra.mxu0 %v546
  %716 = vmatprep.subr.bf16.mxu0 0
  %717 = vmatpush1.bf16.msra.mxu0 %v547
  %718 = vmatprep.subr.bf16.mxu0 0
  %719 = vmatpush1.bf16.msra.mxu0 %v548
  %720 = vmatprep.subr.bf16.mxu0 0
  %721 = vmatpush1.bf16.msra.mxu0 %v549
  %722 = vmatprep.subr.bf16.mxu0 0
  %723 = vmatpush1.bf16.msra.mxu0 %v550
  %724 = vmatprep.subr.bf16.mxu0 0
  %725 = vmatpush1.bf16.msra.mxu0 %v551
  %726 = vmatprep.subr.bf16.mxu0 0
  %727 = vmatpush1.bf16.msra.mxu0 %v552
  %728 = vmatprep.subr.bf16.mxu0 0
  %729 = vmatpush1.bf16.msra.mxu0 %v553
  %730 = vmatprep.subr.bf16.mxu0 0
  %731 = vmatpush1.bf16.msra.mxu0 %v554
  %732 = vmatprep.mubr.bf16.mxu0 %v286
  %733 = vmatmul.mubr.bf16.gmra.mrb[0].mxu0 %v285
  %v734 = vpop.f32.mrb[0].mxu0
  %v735 = vadd.f32 %v638, %v734
  %v736 = vpop.f32.mrb[0].mxu0
  %v737 = vpop.f32.mrb[0].mxu0
  %v738 = vadd.f32 %v641, %v737
  %v739 = vpop.f32.mrb[0].mxu0
  %740 = vmatprep.mubr.bf16.mxu0 %v291
  %741 = vmatmul.mubr.bf16.gmra.mrb[0].mxu0 %v290
  %v742 = vpop.f32.mrb[0].mxu0
  %v743 = vadd.f32 %v646, %v742
  %v744 = vpop.f32.mrb[0].mxu0
  %v745 = vpop.f32.mrb[0].mxu0
  %v746 = vadd.f32 %v649, %v745
  %v747 = vpop.f32.mrb[0].mxu0
  %748 = vmatprep.mubr.bf16.mxu0 %v296
  %749 = vmatmul.mubr.bf16.gmra.mrb[0].mxu0 %v295
  %v750 = vpop.f32.mrb[0].mxu0
  %v751 = vadd.f32 %v654, %v750
  %v752 = vpop.f32.mrb[0].mxu0
  %v753 = vpop.f32.mrb[0].mxu0
  %v754 = vadd.f32 %v657, %v753
  %v755 = vpop.f32.mrb[0].mxu0
  %756 = vmatprep.mubr.bf16.mxu0 %v301
  %757 = vmatmul.mubr.bf16.gmra.mrb[0].mxu0 %v300
  %v758 = vpop.f32.mrb[0].mxu0
  %v759 = vadd.f32 %v662, %v758
  %v760 = vpop.f32.mrb[0].mxu0
  %v761 = vpop.f32.mrb[0].mxu0
  %v762 = vadd.f32 %v665, %v761
  %v763 = vpop.f32.mrb[0].mxu0
  %764 = vmatprep.mubr.bf16.mxu0 %v306
  %765 = vmatmul.mubr.bf16.gmra.mrb[0].mxu0 %v305
  %v766 = vpop.f32.mrb[0].mxu0
  %v767 = vadd.f32 %v670, %v766
  %v768 = vpop.f32.mrb[0].mxu0
  %v769 = vpop.f32.mrb[0].mxu0
  %v770 = vadd.f32 %v673, %v769
  %v771 = vpop.f32.mrb[0].mxu0
  %772 = vmatprep.mubr.bf16.mxu0 %v311
  %773 = vmatmul.mubr.bf16.gmra.mrb[0].mxu0 %v310
  %v774 = vpop.f32.mrb[0].mxu0
  %v775 = vadd.f32 %v678, %v774
  %v776 = vpop.f32.mrb[0].mxu0
  %v777 = vpop.f32.mrb[0].mxu0
  %v778 = vadd.f32 %v681, %v777
  %v779 = vpop.f32.mrb[0].mxu0
  %780 = vmatprep.mubr.bf16.mxu0 %v316
  %781 = vmatmul.mubr.bf16.gmra.mrb[0].mxu0 %v315
  %v782 = vpop.f32.mrb[0].mxu0
  %v783 = vadd.f32 %v686, %v782
  %v784 = vpop.f32.mrb[0].mxu0
  %v785 = vpop.f32.mrb[0].mxu0
  %v786 = vadd.f32 %v689, %v785
  %v787 = vpop.f32.mrb[0].mxu0
  %788 = vmatprep.mubr.bf16.mxu0 %v321
  %789 = vmatmul.mubr.bf16.gmra.mrb[0].mxu0 %v320
  %v790 = vpop.f32.mrb[0].mxu0
  %v791 = vadd.f32 %v694, %v790
  %v792 = vpop.f32.mrb[0].mxu0
  %v793 = vpop.f32.mrb[0].mxu0
  %v794 = vadd.f32 %v697, %v793
  %v795 = vpop.f32.mrb[0].mxu0
  %796 = vdwg.mxu0
  %797 = vmatprep.subr.bf16.mxu0 0
  %798 = vmatpush1.bf16.msra.mxu0 %v555
  %799 = vmatprep.subr.bf16.mxu0 0
  %800 = vmatpush1.bf16.msra.mxu0 %v556
  %801 = vmatprep.subr.bf16.mxu0 0
  %802 = vmatpush1.bf16.msra.mxu0 %v557
  %803 = vmatprep.subr.bf16.mxu0 0
  %804 = vmatpush1.bf16.msra.mxu0 %v558
  %805 = vmatprep.subr.bf16.mxu0 0
  %806 = vmatpush1.bf16.msra.mxu0 %v559
  %807 = vmatprep.subr.bf16.mxu0 0
  %808 = vmatpush1.bf16.msra.mxu0 %v560
  %809 = vmatprep.subr.bf16.mxu0 0
  %810 = vmatpush1.bf16.msra.mxu0 %v561
  %811 = vmatprep.subr.bf16.mxu0 0
  %812 = vmatpush1.bf16.msra.mxu0 %v562
  %813 = vmatprep.subr.bf16.mxu0 0
  %814 = vmatpush1.bf16.msra.mxu0 0
  %815 = vmatprep.subr.bf16.mxu0 0
  %816 = vmatpush1.bf16.msra.mxu0 0
  %817 = vmatprep.subr.bf16.mxu0 0
  %818 = vmatpush1.bf16.msra.mxu0 0
  %819 = vmatprep.subr.bf16.mxu0 0
  %820 = vmatpush1.bf16.msra.mxu0 0
  %821 = vmatprep.subr.bf16.mxu0 0
  %822 = vmatpush1.bf16.msra.mxu0 0
  %823 = vmatprep.subr.bf16.mxu0 0
  %824 = vmatpush1.bf16.msra.mxu0 0
  %825 = vmatprep.subr.bf16.mxu0 0
  %826 = vmatpush1.bf16.msra.mxu0 0
  %827 = vmatprep.subr.bf16.mxu0 0
  %828 = vmatpush1.bf16.msra.mxu0 0
  %829 = vmatprep.mubr.bf16.mxu0 0
  %830 = vmatmul.mubr.bf16.gmra.mrb[0].mxu0 %v287
  %v831 = vpop.f32.mrb[0].mxu0
  %v832 = vadd.f32 %v735, %v831
  %v833 = vpop.f32.mrb[0].mxu0
  %v834 = vpop.f32.mrb[0].mxu0
  %v835 = vadd.f32 %v738, %v834
  %v836 = vpop.f32.mrb[0].mxu0
  %837 = vmatprep.mubr.bf16.mxu0 0
  %838 = vmatmul.mubr.bf16.gmra.mrb[0].mxu0 %v292
  %v839 = vpop.f32.mrb[0].mxu0
  %v840 = vadd.f32 %v743, %v839
  %v841 = vpop.f32.mrb[0].mxu0
  %v842 = vpop.f32.mrb[0].mxu0
  %v843 = vadd.f32 %v746, %v842
  %v844 = vpop.f32.mrb[0].mxu0
  %845 = vmatprep.mubr.bf16.mxu0 0
  %846 = vmatmul.mubr.bf16.gmra.mrb[0].mxu0 %v297
  %v847 = vpop.f32.mrb[0].mxu0
  %v848 = vadd.f32 %v751, %v847
  %v849 = vpop.f32.mrb[0].mxu0
  %v850 = vpop.f32.mrb[0].mxu0
  %v851 = vadd.f32 %v754, %v850
  %v852 = vpop.f32.mrb[0].mxu0
  %853 = vmatprep.mubr.bf16.mxu0 0
  %854 = vmatmul.mubr.bf16.gmra.mrb[0].mxu0 %v302
  %v855 = vpop.f32.mrb[0].mxu0
  %v856 = vadd.f32 %v759, %v855
  %v857 = vpop.f32.mrb[0].mxu0
  %v858 = vpop.f32.mrb[0].mxu0
  %v859 = vadd.f32 %v762, %v858
  %v860 = vpop.f32.mrb[0].mxu0
  %861 = vmatprep.mubr.bf16.mxu0 0
  %862 = vmatmul.mubr.bf16.gmra.mrb[0].mxu0 %v307
  %v863 = vpop.f32.mrb[0].mxu0
  %v864 = vadd.f32 %v767, %v863
  %v865 = vpop.f32.mrb[0].mxu0
  %v866 = vpop.f32.mrb[0].mxu0
  %v867 = vadd.f32 %v770, %v866
  %v868 = vpop.f32.mrb[0].mxu0
  %869 = vmatprep.mubr.bf16.mxu0 0
  %870 = vmatmul.mubr.bf16.gmra.mrb[0].mxu0 %v312
  %v871 = vpop.f32.mrb[0].mxu0
  %v872 = vadd.f32 %v775, %v871
  %v873 = vpop.f32.mrb[0].mxu0
  %v874 = vpop.f32.mrb[0].mxu0
  %v875 = vadd.f32 %v778, %v874
  %v876 = vpop.f32.mrb[0].mxu0
  %877 = vmatprep.mubr.bf16.mxu0 0
  %878 = vmatmul.mubr.bf16.gmra.mrb[0].mxu0 %v317
  %v879 = vpop.f32.mrb[0].mxu0
  %v880 = vadd.f32 %v783, %v879
  %v881 = vpop.f32.mrb[0].mxu0
  %v882 = vpop.f32.mrb[0].mxu0
  %v883 = vadd.f32 %v786, %v882
  %v884 = vpop.f32.mrb[0].mxu0
  %885 = vmatprep.mubr.bf16.mxu0 0
  %886 = vmatmul.mubr.bf16.gmra.mrb[0].mxu0 %v322
  %v887 = vpop.f32.mrb[0].mxu0
  %v888 = vadd.f32 %v791, %v887
  %v889 = vpop.f32.mrb[0].mxu0
  %v890 = vpop.f32.mrb[0].mxu0
  %v891 = vadd.f32 %v794, %v890
  %v892 = vpop.f32.mrb[0].mxu0
  %893 = vdwg.mxu0
  %v894 = vld [vmem:[%s2] sm:$0x1]
  %v896 = vlaneseq
  %v897 = vshrl.u32 %v896, 7
  %v898 = vsub.s32 0, %v897
  %v899 = vrot.slane %v894, %v898
  %v901 = vmul.f32 %v832, %v899
  %v902 = vmul.f32 %v835, %v899
  %v903 = vmul.f32 %v840, %v899
  %v904 = vmul.f32 %v843, %v899
  %v905 = vmul.f32 %v848, %v899
  %v906 = vmul.f32 %v851, %v899
  %v907 = vmul.f32 %v856, %v899
  %v908 = vmul.f32 %v859, %v899
  %v909 = vmul.f32 %v864, %v899
  %v910 = vmul.f32 %v867, %v899
  %v911 = vmul.f32 %v872, %v899
  %v912 = vmul.f32 %v875, %v899
  %v913 = vmul.f32 %v880, %v899
  %v914 = vmul.f32 %v883, %v899
  %v915 = vmul.f32 %v888, %v899
  %v916 = vmul.f32 %v891, %v899
  %v917 = vld [vmem:[%s3] sm:$0x1]
  %v919 = vlaneseq
  %v920 = vshrl.u32 %v919, 7
  %v921 = vsub.s32 0, %v920
  %v922 = vrot.slane %v917, %v921
  %v924 = vadd.f32 %v901, %v922
  %v925 = vadd.f32 %v902, %v922
  %v926 = vadd.f32 %v903, %v922
  %v927 = vadd.f32 %v904, %v922
  %v928 = vadd.f32 %v905, %v922
  %v929 = vadd.f32 %v906, %v922
  %v930 = vadd.f32 %v907, %v922
  %v931 = vadd.f32 %v908, %v922
  %v932 = vadd.f32 %v909, %v922
  %v933 = vadd.f32 %v910, %v922
  %v934 = vadd.f32 %v911, %v922
  %v935 = vadd.f32 %v912, %v922
  %v936 = vadd.f32 %v913, %v922
  %v937 = vadd.f32 %v914, %v922
  %v938 = vadd.f32 %v915, %v922
  %v939 = vadd.f32 %v916, %v922
  %v940 = vmax.f32 %v924, 0.0
  %v941 = vmax.f32 %v925, 0.0
  %v942 = vmax.f32 %v926, 0.0
  %v943 = vmax.f32 %v927, 0.0
  %v944 = vmax.f32 %v928, 0.0
  %v945 = vmax.f32 %v929, 0.0
  %v946 = vmax.f32 %v930, 0.0
  %v947 = vmax.f32 %v931, 0.0
  %v948 = vmax.f32 %v932, 0.0
  %v949 = vmax.f32 %v933, 0.0
  %v950 = vmax.f32 %v934, 0.0
  %v951 = vmax.f32 %v935, 0.0
  %v952 = vmax.f32 %v936, 0.0
  %v953 = vmax.f32 %v937, 0.0
  %v954 = vmax.f32 %v938, 0.0
  %v955 = vmax.f32 %v939, 0.0
  %v956 = vpack.c.bf16 %v941, %v940
  %v957 = vpack.c.bf16 %v943, %v942
  %v958 = vpack.c.bf16 %v945, %v944
  %v959 = vpack.c.bf16 %v947, %v946
  %v960 = vpack.c.bf16 %v949, %v948
  %v961 = vpack.c.bf16 %v951, %v950
  %v962 = vpack.c.bf16 %v953, %v952
  %v963 = vpack.c.bf16 %v955, %v954
  %v964 = vld [vmem:[%s4] sm:$0xf]
  %v965 = vld [vmem:[%s4 + $0x4] sm:$0xf]
  %v966 = vld [vmem:[%s4 + $0x8] sm:$0xf]
  %v967 = vld [vmem:[%s4 + $0xc] sm:$0xf]
  %v968 = vld [vmem:[%s4 + $0x10] sm:$0xf]
  %v969 = vld [vmem:[%s4 + $0x14] sm:$0xf]
  %v970 = vld [vmem:[%s4 + $0x18] sm:$0xf]
  %v971 = vld [vmem:[%s4 + $0x1c] sm:$0xf]
  %v972 = vld [vmem:[%s4 + $0x20] sm:$0xf]
  %v973 = vld [vmem:[%s4 + $0x24] sm:$0xf]
  %v974 = vld [vmem:[%s4 + $0x28] sm:$0xf]
  %v975 = vld [vmem:[%s4 + $0x2c] sm:$0xf]
  %v976 = vld [vmem:[%s4 + $0x30] sm:$0xf]
  %v977 = vld [vmem:[%s4 + $0x34] sm:$0xf]
  %v978 = vld [vmem:[%s4 + $0x38] sm:$0xf]
  %v979 = vld [vmem:[%s4 + $0x3c] sm:$0xf]
  %v980 = vld [vmem:[%s5] sm:$0x1]
  %v982 = vlaneseq
  %v983 = vshrl.u32 %v982, 7
  %v984 = vsub.s32 0, %v983
  %v985 = vrot.slane %v980, %v984
  %v1003 = vunpack.c.l.b16 %v964
  %v1004 = vunpack.c.l.b16 %v965
  %v1005 = vunpack.c.l.b16 %v966
  %v1006 = vunpack.c.l.b16 %v967
  %v1007 = vunpack.c.l.b16 %v968
  %v1008 = vunpack.c.l.b16 %v969
  %v1009 = vunpack.c.l.b16 %v970
  %v1010 = vunpack.c.l.b16 %v971
  %v1011 = vunpack.c.l.b16 %v972
  %v1012 = vunpack.c.l.b16 %v973
  %v1013 = vunpack.c.l.b16 %v974
  %v1014 = vunpack.c.l.b16 %v975
  %v1015 = vunpack.c.l.b16 %v976
  %v1016 = vunpack.c.l.b16 %v977
  %v1017 = vunpack.c.l.b16 %v978
  %v1018 = vunpack.c.l.b16 %v979
  %v1019 = vpack.c.b16 %v1004, %v1003
  %v1020 = vpack.c.b16 %v1006, %v1005
  %v1021 = vpack.c.b16 %v1008, %v1007
  %v1022 = vpack.c.b16 %v1010, %v1009
  %v1023 = vpack.c.b16 %v1012, %v1011
  %v1024 = vpack.c.b16 %v1014, %v1013
  %v1025 = vpack.c.b16 %v1016, %v1015
  %v1026 = vpack.c.b16 %v1018, %v1017
  %1035 = vmatprep.subr.bf16.mxu0 0
  %1036 = vmatpush1.bf16.msra.mxu0 %v1019
  %1037 = vmatprep.subr.bf16.mxu0 0
  %1038 = vmatpush1.bf16.msra.mxu0 %v1020
  %1039 = vmatprep.subr.bf16.mxu0 0
  %1040 = vmatpush1.bf16.msra.mxu0 %v1021
  %1041 = vmatprep.subr.bf16.mxu0 0
  %1042 = vmatpush1.bf16.msra.mxu0 %v1022
  %1043 = vmatprep.subr.bf16.mxu0 0
  %1044 = vmatpush1.bf16.msra.mxu0 %v1023
  %1045 = vmatprep.subr.bf16.mxu0 0
  %1046 = vmatpush1.bf16.msra.mxu0 %v1024
  %1047 = vmatprep.subr.bf16.mxu0 0
  %1048 = vmatpush1.bf16.msra.mxu0 %v1025
  %1049 = vmatprep.subr.bf16.mxu0 0
  %1050 = vmatpush1.bf16.msra.mxu0 %v1026
  %1051 = vmatprep.subr.bf16.mxu0 0
  %1052 = vmatpush1.bf16.msra.mxu0 0
  %1053 = vmatprep.subr.bf16.mxu0 0
  %1054 = vmatpush1.bf16.msra.mxu0 0
  %1055 = vmatprep.subr.bf16.mxu0 0
  %1056 = vmatpush1.bf16.msra.mxu0 0
  %1057 = vmatprep.subr.bf16.mxu0 0
  %1058 = vmatpush1.bf16.msra.mxu0 0
  %1059 = vmatprep.subr.bf16.mxu0 0
  %1060 = vmatpush1.bf16.msra.mxu0 0
  %1061 = vmatprep.subr.bf16.mxu0 0
  %1062 = vmatpush1.bf16.msra.mxu0 0
  %1063 = vmatprep.subr.bf16.mxu0 0
  %1064 = vmatpush1.bf16.msra.mxu0 0
  %1065 = vmatprep.subr.bf16.mxu0 0
  %1066 = vmatpush1.bf16.msra.mxu0 0
  %1067 = vmatprep.mubr.bf16.mxu0 0
  %1068 = vmatmul.mubr.bf16.gmra.mrb[0].mxu0 %v956
  %v1069 = vpop.f32.mrb[0].mxu0
  %v1070 = vadd.f32 %v985, %v1069
  %v1071 = vpop.f32.mrb[0].mxu0
  %v1072 = vpop.f32.mrb[0].mxu0
  %v1073 = vadd.f32 %v985, %v1072
  %v1074 = vpop.f32.mrb[0].mxu0
  %1075 = vmatprep.mubr.bf16.mxu0 0
  %1076 = vmatmul.mubr.bf16.gmra.mrb[0].mxu0 %v957
  %v1077 = vpop.f32.mrb[0].mxu0
  %v1078 = vadd.f32 %v985, %v1077
  %v1079 = vpop.f32.mrb[0].mxu0
  %v1080 = vpop.f32.mrb[0].mxu0
  %v1081 = vadd.f32 %v985, %v1080
  %v1082 = vpop.f32.mrb[0].mxu0
  %1083 = vmatprep.mubr.bf16.mxu0 0
  %1084 = vmatmul.mubr.bf16.gmra.mrb[0].mxu0 %v958
  %v1085 = vpop.f32.mrb[0].mxu0
  %v1086 = vadd.f32 %v985, %v1085
  %v1087 = vpop.f32.mrb[0].mxu0
  %v1088 = vpop.f32.mrb[0].mxu0
  %v1089 = vadd.f32 %v985, %v1088
  %v1090 = vpop.f32.mrb[0].mxu0
  %1091 = vmatprep.mubr.bf16.mxu0 0
  %1092 = vmatmul.mubr.bf16.gmra.mrb[0].mxu0 %v959
  %v1093 = vpop.f32.mrb[0].mxu0
  %v1094 = vadd.f32 %v985, %v1093
  %v1095 = vpop.f32.mrb[0].mxu0
  %v1096 = vpop.f32.mrb[0].mxu0
  %v1097 = vadd.f32 %v985, %v1096
  %v1098 = vpop.f32.mrb[0].mxu0
  %1099 = vmatprep.mubr.bf16.mxu0 0
  %1100 = vmatmul.mubr.bf16.gmra.mrb[0].mxu0 %v960
  %v1101 = vpop.f32.mrb[0].mxu0
  %v1102 = vadd.f32 %v985, %v1101
  %v1103 = vpop.f32.mrb[0].mxu0
  %v1104 = vpop.f32.mrb[0].mxu0
  %v1105 = vadd.f32 %v985, %v1104
  %v1106 = vpop.f32.mrb[0].mxu0
  %1107 = vmatprep.mubr.bf16.mxu0 0
  %1108 = vmatmul.mubr.bf16.gmra.mrb[0].mxu0 %v961
  %v1109 = vpop.f32.mrb[0].mxu0
  %v1110 = vadd.f32 %v985, %v1109
  %v1111 = vpop.f32.mrb[0].mxu0
  %v1112 = vpop.f32.mrb[0].mxu0
  %v1113 = vadd.f32 %v985, %v1112
  %v1114 = vpop.f32.mrb[0].mxu0
  %1115 = vmatprep.mubr.bf16.mxu0 0
  %1116 = vmatmul.mubr.bf16.gmra.mrb[0].mxu0 %v962
  %v1117 = vpop.f32.mrb[0].mxu0
  %v1118 = vadd.f32 %v985, %v1117
  %v1119 = vpop.f32.mrb[0].mxu0
  %v1120 = vpop.f32.mrb[0].mxu0
  %v1121 = vadd.f32 %v985, %v1120
  %v1122 = vpop.f32.mrb[0].mxu0
  %1123 = vmatprep.mubr.bf16.mxu0 0
  %1124 = vmatmul.mubr.bf16.gmra.mrb[0].mxu0 %v963
  %v1125 = vpop.f32.mrb[0].mxu0
  %v1126 = vadd.f32 %v985, %v1125
  %v1127 = vpop.f32.mrb[0].mxu0
  %v1128 = vpop.f32.mrb[0].mxu0
  %v1129 = vadd.f32 %v985, %v1128
  %v1130 = vpop.f32.mrb[0].mxu0
  %1131 = vdwg.mxu0
  %v1132 = vxor.u32 %v1070, 2147483648
  %v1133 = vxor.u32 %v1073, 2147483648
  %v1134 = vxor.u32 %v1078, 2147483648
  %v1135 = vxor.u32 %v1081, 2147483648
  %v1136 = vxor.u32 %v1086, 2147483648
  %v1137 = vxor.u32 %v1089, 2147483648
  %v1138 = vxor.u32 %v1094, 2147483648
  %v1139 = vxor.u32 %v1097, 2147483648
  %v1140 = vxor.u32 %v1102, 2147483648
  %v1141 = vxor.u32 %v1105, 2147483648
  %v1142 = vxor.u32 %v1110, 2147483648
  %v1143 = vxor.u32 %v1113, 2147483648
  %v1144 = vxor.u32 %v1118, 2147483648
  %v1145 = vxor.u32 %v1121, 2147483648
  %v1146 = vxor.u32 %v1126, 2147483648
  %v1147 = vxor.u32 %v1129, 2147483648
  %v1148 = vmul.f32 %v1132, 1.442695
  %v1149 = vpow.pop %v1148
  %v1150 = vmul.f32 %v1133, 1.442695
  %v1151 = vpow.pop %v1150
  %v1152 = vmul.f32 %v1134, 1.442695
  %v1153 = vpow.pop %v1152
  %v1154 = vmul.f32 %v1135, 1.442695
  %v1155 = vpow.pop %v1154
  %v1156 = vmul.f32 %v1136, 1.442695
  %v1157 = vpow.pop %v1156
  %v1158 = vmul.f32 %v1137, 1.442695
  %v1159 = vpow.pop %v1158
  %v1160 = vmul.f32 %v1138, 1.442695
  %v1161 = vpow.pop %v1160
  %v1162 = vmul.f32 %v1139, 1.442695
  %v1163 = vpow.pop %v1162
  %v1164 = vmul.f32 %v1140, 1.442695
  %v1165 = vpow.pop %v1164
  %v1166 = vmul.f32 %v1141, 1.442695
  %v1167 = vpow.pop %v1166
  %v1168 = vmul.f32 %v1142, 1.442695
  %v1169 = vpow.pop %v1168
  %v1170 = vmul.f32 %v1143, 1.442695
  %v1171 = vpow.pop %v1170
  %v1172 = vmul.f32 %v1144, 1.442695
  %v1173 = vpow.pop %v1172
  %v1174 = vmul.f32 %v1145, 1.442695
  %v1175 = vpow.pop %v1174
  %v1176 = vmul.f32 %v1146, 1.442695
  %v1177 = vpow.pop %v1176
  %v1178 = vmul.f32 %v1147, 1.442695
  %v1179 = vpow.pop %v1178
  %v1180 = vadd.f32 %v1149, 1.0
  %v1181 = vadd.f32 %v1151, 1.0
  %v1182 = vadd.f32 %v1153, 1.0
  %v1183 = vadd.f32 %v1155, 1.0
  %v1184 = vadd.f32 %v1157, 1.0
  %v1185 = vadd.f32 %v1159, 1.0
  %v1186 = vadd.f32 %v1161, 1.0
  %v1187 = vadd.f32 %v1163, 1.0
  %v1188 = vadd.f32 %v1165, 1.0
  %v1189 = vadd.f32 %v1167, 1.0
  %v1190 = vadd.f32 %v1169, 1.0
  %v1191 = vadd.f32 %v1171, 1.0
  %v1192 = vadd.f32 %v1173, 1.0
  %v1193 = vadd.f32 %v1175, 1.0
  %v1194 = vadd.f32 %v1177, 1.0
  %v1195 = vadd.f32 %v1179, 1.0
  %v1196 = vrcp.pop %v1180
  %v1197 = vmul.f32 1.0, %v1196
  %v1198 = vrcp.pop %v1181
  %v1199 = vmul.f32 1.0, %v1198
  %v1200 = vrcp.pop %v1182
  %v1201 = vmul.f32 1.0, %v1200
  %v1202 = vrcp.pop %v1183
  %v1203 = vmul.f32 1.0, %v1202
  %v1204 = vrcp.pop %v1184
  %v1205 = vmul.f32 1.0, %v1204
  %v1206 = vrcp.pop %v1185
  %v1207 = vmul.f32 1.0, %v1206
  %v1208 = vrcp.pop %v1186
  %v1209 = vmul.f32 1.0, %v1208
  %v1210 = vrcp.pop %v1187
  %v1211 = vmul.f32 1.0, %v1210
  %v1212 = vrcp.pop %v1188
  %v1213 = vmul.f32 1.0, %v1212
  %v1214 = vrcp.pop %v1189
  %v1215 = vmul.f32 1.0, %v1214
  %v1216 = vrcp.pop %v1190
  %v1217 = vmul.f32 1.0, %v1216
  %v1218 = vrcp.pop %v1191
  %v1219 = vmul.f32 1.0, %v1218
  %v1220 = vrcp.pop %v1192
  %v1221 = vmul.f32 1.0, %v1220
  %v1222 = vrcp.pop %v1193
  %v1223 = vmul.f32 1.0, %v1222
  %v1224 = vrcp.pop %v1194
  %v1225 = vmul.f32 1.0, %v1224
  %v1226 = vrcp.pop %v1195
  %v1227 = vmul.f32 1.0, %v1226
  %v1228 = vld [vmem:[%s6] sm:$0xff]
  %v1229 = vld [vmem:[%s6 + $0x8] sm:$0xff]
  %v1230 = vld [vmem:[%s6 + $0x10] sm:$0xff]
  %v1231 = vld [vmem:[%s6 + $0x18] sm:$0xff]
  %v1232 = vld [vmem:[%s6 + $0x20] sm:$0xff]
  %v1233 = vld [vmem:[%s6 + $0x28] sm:$0xff]
  %v1234 = vld [vmem:[%s6 + $0x30] sm:$0xff]
  %v1235 = vld [vmem:[%s6 + $0x38] sm:$0xff]
  %v1236 = vld [vmem:[%s6 + $0x40] sm:$0xff]
  %v1237 = vld [vmem:[%s6 + $0x48] sm:$0xff]
  %v1238 = vld [vmem:[%s6 + $0x50] sm:$0xff]
  %v1239 = vld [vmem:[%s6 + $0x58] sm:$0xff]
  %v1240 = vld [vmem:[%s6 + $0x60] sm:$0xff]
  %v1241 = vld [vmem:[%s6 + $0x68] sm:$0xff]
  %v1242 = vld [vmem:[%s6 + $0x70] sm:$0xff]
  %v1243 = vld [vmem:[%s6 + $0x78] sm:$0xff]
  %v1244 = vld [vmem:[%s6 + $0x80] sm:$0xff]
  %v1245 = vld [vmem:[%s6 + $0x88] sm:$0xff]
  %v1246 = vld [vmem:[%s6 + $0x90] sm:$0xff]
  %v1247 = vld [vmem:[%s6 + $0x98] sm:$0xff]
  %v1248 = vld [vmem:[%s6 + $0xa0] sm:$0xff]
  %v1249 = vld [vmem:[%s6 + $0xa8] sm:$0xff]
  %v1250 = vld [vmem:[%s6 + $0xb0] sm:$0xff]
  %v1251 = vld [vmem:[%s6 + $0xb8] sm:$0xff]
  %v1252 = vld [vmem:[%s6 + $0xc0] sm:$0xff]
  %v1253 = vld [vmem:[%s6 + $0xc8] sm:$0xff]
  %v1254 = vld [vmem:[%s6 + $0xd0] sm:$0xff]
  %v1255 = vld [vmem:[%s6 + $0xd8] sm:$0xff]
  %v1256 = vld [vmem:[%s6 + $0xe0] sm:$0xff]
  %v1257 = vld [vmem:[%s6 + $0xe8] sm:$0xff]
  %v1258 = vld [vmem:[%s6 + $0xf0] sm:$0xff]
  %v1259 = vld [vmem:[%s6 + $0xf8] sm:$0xff]
  %v1260 = vld [vmem:[%s6 + $0x100] sm:$0xff]
  %v1261 = vld [vmem:[%s6 + $0x108] sm:$0xff]
  %v1262 = vld [vmem:[%s6 + $0x110] sm:$0xff]
  %v1263 = vld [vmem:[%s6 + $0x118] sm:$0xff]
  %v1264 = vld [vmem:[%s6 + $0x120] sm:$0xff]
  %v1265 = vld [vmem:[%s6 + $0x128] sm:$0xff]
  %v1266 = vld [vmem:[%s6 + $0x130] sm:$0xff]
  %v1267 = vld [vmem:[%s6 + $0x138] sm:$0xff]
  %v1268 = vld [vmem:[%s6 + $0x140] sm:$0xff]
  %v1269 = vld [vmem:[%s6 + $0x148] sm:$0xff]
  %v1270 = vld [vmem:[%s6 + $0x150] sm:$0xff]
  %v1271 = vld [vmem:[%s6 + $0x158] sm:$0xff]
  %v1272 = vld [vmem:[%s6 + $0x160] sm:$0xff]
  %v1273 = vld [vmem:[%s6 + $0x168] sm:$0xff]
  %v1274 = vld [vmem:[%s6 + $0x170] sm:$0xff]
  %v1275 = vld [vmem:[%s6 + $0x178] sm:$0xff]
  %v1276 = vld [vmem:[%s6 + $0x180] sm:$0xff]
  %v1277 = vld [vmem:[%s6 + $0x188] sm:$0xff]
  %v1278 = vld [vmem:[%s6 + $0x190] sm:$0xff]
  %v1279 = vld [vmem:[%s6 + $0x198] sm:$0xff]
  %v1280 = vld [vmem:[%s6 + $0x1a0] sm:$0xff]
  %v1281 = vld [vmem:[%s6 + $0x1a8] sm:$0xff]
  %v1282 = vld [vmem:[%s6 + $0x1b0] sm:$0xff]
  %v1283 = vld [vmem:[%s6 + $0x1b8] sm:$0xff]
  %v1284 = vld [vmem:[%s6 + $0x1c0] sm:$0xff]
  %v1285 = vld [vmem:[%s6 + $0x1c8] sm:$0xff]
  %v1286 = vld [vmem:[%s6 + $0x1d0] sm:$0xff]
  %v1287 = vld [vmem:[%s6 + $0x1d8] sm:$0xff]
  %v1288 = vld [vmem:[%s6 + $0x1e0] sm:$0xff]
  %v1289 = vld [vmem:[%s6 + $0x1e8] sm:$0xff]
  %v1290 = vld [vmem:[%s6 + $0x1f0] sm:$0xff]
  %v1291 = vld [vmem:[%s6 + $0x1f8] sm:$0xff]
  %1292 = vmatprep.subr.mxu0 0.0
  %1293 = vmatpush1.msra.mxu0 %v1197
  %1294 = vmatprep.subr.mxu0 0.0
  %1295 = vmatpush1.msra.mxu0 %v1199
  %1296 = vmatprep.subr.mxu0 0.0
  %1297 = vmatpush1.msra.mxu0 %v1201
  %1298 = vmatprep.subr.mxu0 0.0
  %1299 = vmatpush1.msra.mxu0 %v1203
  %1300 = vmatprep.subr.mxu0 0.0
  %1301 = vmatpush1.msra.mxu0 %v1205
  %1302 = vmatprep.subr.mxu0 0.0
  %1303 = vmatpush1.msra.mxu0 %v1207
  %1304 = vmatprep.subr.mxu0 0.0
  %1305 = vmatpush1.msra.mxu0 %v1209
  %1306 = vmatprep.subr.mxu0 0.0
  %1307 = vmatpush1.msra.mxu0 %v1211
  %1308 = vmatprep.subr.mxu0 0.0
  %1309 = vmatpush1.msra.mxu0 %v1213
  %1310 = vmatprep.subr.mxu0 0.0
  %1311 = vmatpush1.msra.mxu0 %v1215
  %1312 = vmatprep.subr.mxu0 0.0
  %1313 = vmatpush1.msra.mxu0 %v1217
  %1314 = vmatprep.subr.mxu0 0.0
  %1315 = vmatpush1.msra.mxu0 %v1219
  %1316 = vmatprep.subr.mxu0 0.0
  %1317 = vmatpush1.msra.mxu0 %v1221
  %1318 = vmatprep.subr.mxu0 0.0
  %1319 = vmatpush1.msra.mxu0 %v1223
  %1320 = vmatprep.subr.mxu0 0.0
  %1321 = vmatpush1.msra.mxu0 %v1225
  %1322 = vmatprep.subr.mxu0 0.0
  %1323 = vmatpush1.msra.mxu0 %v1227
  %1324 = vmatprep.subr.mxu0 0.0
  %1325 = vmatpush1.msra.mxu0 0.0
  %1326 = vmatprep.subr.mxu0 0.0
  %1327 = vmatpush1.msra.mxu0 0.0
  %1328 = vmatprep.subr.mxu0 0.0
  %1329 = vmatpush1.msra.mxu0 0.0
  %1330 = vmatprep.subr.mxu0 0.0
  %1331 = vmatpush1.msra.mxu0 0.0
  %1332 = vmatprep.subr.mxu0 0.0
  %1333 = vmatpush1.msra.mxu0 0.0
  %1334 = vmatprep.subr.mxu0 0.0
  %1335 = vmatpush1.msra.mxu0 0.0
  %1336 = vmatprep.subr.mxu0 0.0
  %1337 = vmatpush1.msra.mxu0 0.0
  %1338 = vmatprep.subr.mxu0 0.0
  %1339 = vmatpush1.msra.mxu0 0.0
  %1340 = vmatprep.subr.mxu0 0.0
  %1341 = vmatpush1.msra.mxu0 0.0
  %1342 = vmatprep.subr.mxu0 0.0
  %1343 = vmatpush1.msra.mxu0 0.0
  %1344 = vmatprep.subr.mxu0 0.0
  %1345 = vmatpush1.msra.mxu0 0.0
  %1346 = vmatprep.subr.mxu0 0.0
  %1347 = vmatpush1.msra.mxu0 0.0
  %1348 = vmatprep.subr.mxu0 0.0
  %1349 = vmatpush1.msra.mxu0 0.0
  %1350 = vmatprep.subr.mxu0 0.0
  %1351 = vmatpush1.msra.mxu0 0.0
  %1352 = vmatprep.subr.mxu0 0.0
  %1353 = vmatpush1.msra.mxu0 0.0
  %1354 = vmatprep.subr.mxu0 0.0
  %1355 = vmatpush1.msra.mxu0 0.0
  %1356 = vmatprep.mubr.f32.mxu0 0.0
  %1357 = vmatmul.mubr.f32.gmra.mrb[0].mxu0 %v1228
  %v1358 = vpop.f32.mrb[0].mxu0
  %v1359 = vadd.f32 0.0, %v1358
  %v1360 = vpop.f32.mrb[0].mxu0
  %1361 = vmatprep.mubr.f32.mxu0 0.0
  %1362 = vmatmul.mubr.f32.gmra.mrb[0].mxu0 %v1229
  %v1363 = vpop.f32.mrb[0].mxu0
  %v1364 = vadd.f32 0.0, %v1363
  %v1365 = vpop.f32.mrb[0].mxu0
  %1366 = vmatprep.mubr.f32.mxu0 0.0
  %1367 = vmatmul.mubr.f32.gmra.mrb[0].mxu0 %v1230
  %v1368 = vpop.f32.mrb[0].mxu0
  %v1369 = vadd.f32 0.0, %v1368
  %v1370 = vpop.f32.mrb[0].mxu0
  %1371 = vmatprep.mubr.f32.mxu0 0.0
  %1372 = vmatmul.mubr.f32.gmra.mrb[0].mxu0 %v1231
  %v1373 = vpop.f32.mrb[0].mxu0
  %v1374 = vadd.f32 0.0, %v1373
  %v1375 = vpop.f32.mrb[0].mxu0
  %1376 = vmatprep.mubr.f32.mxu0 0.0
  %1377 = vmatmul.mubr.f32.gmra.mrb[0].mxu0 %v1232
  %v1378 = vpop.f32.mrb[0].mxu0
  %v1379 = vadd.f32 0.0, %v1378
  %v1380 = vpop.f32.mrb[0].mxu0
  %1381 = vmatprep.mubr.f32.mxu0 0.0
  %1382 = vmatmul.mubr.f32.gmra.mrb[0].mxu0 %v1233
  %v1383 = vpop.f32.mrb[0].mxu0
  %v1384 = vadd.f32 0.0, %v1383
  %v1385 = vpop.f32.mrb[0].mxu0
  %1386 = vmatprep.mubr.f32.mxu0 0.0
  %1387 = vmatmul.mubr.f32.gmra.mrb[0].mxu0 %v1234
  %v1388 = vpop.f32.mrb[0].mxu0
  %v1389 = vadd.f32 0.0, %v1388
  %v1390 = vpop.f32.mrb[0].mxu0
  %1391 = vmatprep.mubr.f32.mxu0 0.0
  %1392 = vmatmul.mubr.f32.gmra.mrb[0].mxu0 %v1235
  %v1393 = vpop.f32.mrb[0].mxu0
  %v1394 = vadd.f32 0.0, %v1393
  %v1395 = vpop.f32.mrb[0].mxu0
  %1396 = vmatprep.mubr.f32.mxu0 0.0
  %1397 = vmatmul.mubr.f32.gmra.mrb[0].mxu0 %v1236
  %v1398 = vpop.f32.mrb[0].mxu0
  %v1399 = vadd.f32 0.0, %v1398
  %v1400 = vpop.f32.mrb[0].mxu0
  %1401 = vmatprep.mubr.f32.mxu0 0.0
  %1402 = vmatmul.mubr.f32.gmra.mrb[0].mxu0 %v1237
  %v1403 = vpop.f32.mrb[0].mxu0
  %v1404 = vadd.f32 0.0, %v1403
  %v1405 = vpop.f32.mrb[0].mxu0
  %1406 = vmatprep.mubr.f32.mxu0 0.0
  %1407 = vmatmul.mubr.f32.gmra.mrb[0].mxu0 %v1238
  %v1408 = vpop.f32.mrb[0].mxu0
  %v1409 = vadd.f32 0.0, %v1408
  %v1410 = vpop.f32.mrb[0].mxu0
  %1411 = vmatprep.mubr.f32.mxu0 0.0
  %1412 = vmatmul.mubr.f32.gmra.mrb[0].mxu0 %v1239
  %v1413 = vpop.f32.mrb[0].mxu0
  %v1414 = vadd.f32 0.0, %v1413
  %v1415 = vpop.f32.mrb[0].mxu0
  %1416 = vmatprep.mubr.f32.mxu0 0.0
  %1417 = vmatmul.mubr.f32.gmra.mrb[0].mxu0 %v1240
  %v1418 = vpop.f32.mrb[0].mxu0
  %v1419 = vadd.f32 0.0, %v1418
  %v1420 = vpop.f32.mrb[0].mxu0
  %1421 = vmatprep.mubr.f32.mxu0 0.0
  %1422 = vmatmul.mubr.f32.gmra.mrb[0].mxu0 %v1241
  %v1423 = vpop.f32.mrb[0].mxu0
  %v1424 = vadd.f32 0.0, %v1423
  %v1425 = vpop.f32.mrb[0].mxu0
  %1426 = vmatprep.mubr.f32.mxu0 0.0
  %1427 = vmatmul.mubr.f32.gmra.mrb[0].mxu0 %v1242
  %v1428 = vpop.f32.mrb[0].mxu0
  %v1429 = vadd.f32 0.0, %v1428
  %v1430 = vpop.f32.mrb[0].mxu0
  %1431 = vmatprep.mubr.f32.mxu0 0.0
  %1432 = vmatmul.mubr.f32.gmra.mrb[0].mxu0 %v1243
  %v1433 = vpop.f32.mrb[0].mxu0
  %v1434 = vadd.f32 0.0, %v1433
  %v1435 = vpop.f32.mrb[0].mxu0
  %1436 = vmatprep.mubr.f32.mxu0 0.0
  %1437 = vmatmul.mubr.f32.gmra.mrb[0].mxu0 %v1244
  %v1438 = vpop.f32.mrb[0].mxu0
  %v1439 = vadd.f32 0.0, %v1438
  %v1440 = vpop.f32.mrb[0].mxu0
  %1441 = vmatprep.mubr.f32.mxu0 0.0
  %1442 = vmatmul.mubr.f32.gmra.mrb[0].mxu0 %v1245
  %v1443 = vpop.f32.mrb[0].mxu0
  %v1444 = vadd.f32 0.0, %v1443
  %v1445 = vpop.f32.mrb[0].mxu0
  %1446 = vmatprep.mubr.f32.mxu0 0.0
  %1447 = vmatmul.mubr.f32.gmra.mrb[0].mxu0 %v1246
  %v1448 = vpop.f32.mrb[0].mxu0
  %v1449 = vadd.f32 0.0, %v1448
  %v1450 = vpop.f32.mrb[0].mxu0
  %1451 = vmatprep.mubr.f32.mxu0 0.0
  %1452 = vmatmul.mubr.f32.gmra.mrb[0].mxu0 %v1247
  %v1453 = vpop.f32.mrb[0].mxu0
  %v1454 = vadd.f32 0.0, %v1453
  %v1455 = vpop.f32.mrb[0].mxu0
  %1456 = vmatprep.mubr.f32.mxu0 0.0
  %1457 = vmatmul.mubr.f32.gmra.mrb[0].mxu0 %v1248
  %v1458 = vpop.f32.mrb[0].mxu0
  %v1459 = vadd.f32 0.0, %v1458
  %v1460 = vpop.f32.mrb[0].mxu0
  %1461 = vmatprep.mubr.f32.mxu0 0.0
  %1462 = vmatmul.mubr.f32.gmra.mrb[0].mxu0 %v1249
  %v1463 = vpop.f32.mrb[0].mxu0
  %v1464 = vadd.f32 0.0, %v1463
  %v1465 = vpop.f32.mrb[0].mxu0
  %1466 = vmatprep.mubr.f32.mxu0 0.0
  %1467 = vmatmul.mubr.f32.gmra.mrb[0].mxu0 %v1250
  %v1468 = vpop.f32.mrb[0].mxu0
  %v1469 = vadd.f32 0.0, %v1468
  %v1470 = vpop.f32.mrb[0].mxu0
  %1471 = vmatprep.mubr.f32.mxu0 0.0
  %1472 = vmatmul.mubr.f32.gmra.mrb[0].mxu0 %v1251
  %v1473 = vpop.f32.mrb[0].mxu0
  %v1474 = vadd.f32 0.0, %v1473
  %v1475 = vpop.f32.mrb[0].mxu0
  %1476 = vmatprep.mubr.f32.mxu0 0.0
  %1477 = vmatmul.mubr.f32.gmra.mrb[0].mxu0 %v1252
  %v1478 = vpop.f32.mrb[0].mxu0
  %v1479 = vadd.f32 0.0, %v1478
  %v1480 = vpop.f32.mrb[0].mxu0
  %1481 = vmatprep.mubr.f32.mxu0 0.0
  %1482 = vmatmul.mubr.f32.gmra.mrb[0].mxu0 %v1253
  %v1483 = vpop.f32.mrb[0].mxu0
  %v1484 = vadd.f32 0.0, %v1483
  %v1485 = vpop.f32.mrb[0].mxu0
  %1486 = vmatprep.mubr.f32.mxu0 0.0
  %1487 = vmatmul.mubr.f32.gmra.mrb[0].mxu0 %v1254
  %v1488 = vpop.f32.mrb[0].mxu0
  %v1489 = vadd.f32 0.0, %v1488
  %v1490 = vpop.f32.mrb[0].mxu0
  %1491 = vmatprep.mubr.f32.mxu0 0.0
  %1492 = vmatmul.mubr.f32.gmra.mrb[0].mxu0 %v1255
  %v1493 = vpop.f32.mrb[0].mxu0
  %v1494 = vadd.f32 0.0, %v1493
  %v1495 = vpop.f32.mrb[0].mxu0
  %1496 = vmatprep.mubr.f32.mxu0 0.0
  %1497 = vmatmul.mubr.f32.gmra.mrb[0].mxu0 %v1256
  %v1498 = vpop.f32.mrb[0].mxu0
  %v1499 = vadd.f32 0.0, %v1498
  %v1500 = vpop.f32.mrb[0].mxu0
  %1501 = vmatprep.mubr.f32.mxu0 0.0
  %1502 = vmatmul.mubr.f32.gmra.mrb[0].mxu0 %v1257
  %v1503 = vpop.f32.mrb[0].mxu0
  %v1504 = vadd.f32 0.0, %v1503
  %v1505 = vpop.f32.mrb[0].mxu0
  %1506 = vmatprep.mubr.f32.mxu0 0.0
  %1507 = vmatmul.mubr.f32.gmra.mrb[0].mxu0 %v1258
  %v1508 = vpop.f32.mrb[0].mxu0
  %v1509 = vadd.f32 0.0, %v1508
  %v1510 = vpop.f32.mrb[0].mxu0
  %1511 = vmatprep.mubr.f32.mxu0 0.0
  %1512 = vmatmul.mubr.f32.gmra.mrb[0].mxu0 %v1259
  %v1513 = vpop.f32.mrb[0].mxu0
  %v1514 = vadd.f32 0.0, %v1513
  %v1515 = vpop.f32.mrb[0].mxu0
  %1516 = vmatprep.mubr.f32.mxu0 0.0
  %1517 = vmatmul.mubr.f32.gmra.mrb[0].mxu0 %v1260
  %v1518 = vpop.f32.mrb[0].mxu0
  %v1519 = vadd.f32 0.0, %v1518
  %v1520 = vpop.f32.mrb[0].mxu0
  %1521 = vmatprep.mubr.f32.mxu0 0.0
  %1522 = vmatmul.mubr.f32.gmra.mrb[0].mxu0 %v1261
  %v1523 = vpop.f32.mrb[0].mxu0
  %v1524 = vadd.f32 0.0, %v1523
  %v1525 = vpop.f32.mrb[0].mxu0
  %1526 = vmatprep.mubr.f32.mxu0 0.0
  %1527 = vmatmul.mubr.f32.gmra.mrb[0].mxu0 %v1262
  %v1528 = vpop.f32.mrb[0].mxu0
  %v1529 = vadd.f32 0.0, %v1528
  %v1530 = vpop.f32.mrb[0].mxu0
  %1531 = vmatprep.mubr.f32.mxu0 0.0
  %1532 = vmatmul.mubr.f32.gmra.mrb[0].mxu0 %v1263
  %v1533 = vpop.f32.mrb[0].mxu0
  %v1534 = vadd.f32 0.0, %v1533
  %v1535 = vpop.f32.mrb[0].mxu0
  %1536 = vmatprep.mubr.f32.mxu0 0.0
  %1537 = vmatmul.mubr.f32.gmra.mrb[0].mxu0 %v1264
  %v1538 = vpop.f32.mrb[0].mxu0
  %v1539 = vadd.f32 0.0, %v1538
  %v1540 = vpop.f32.mrb[0].mxu0
  %1541 = vmatprep.mubr.f32.mxu0 0.0
  %1542 = vmatmul.mubr.f32.gmra.mrb[0].mxu0 %v1265
  %v1543 = vpop.f32.mrb[0].mxu0
  %v1544 = vadd.f32 0.0, %v1543
  %v1545 = vpop.f32.mrb[0].mxu0
  %1546 = vmatprep.mubr.f32.mxu0 0.0
  %1547 = vmatmul.mubr.f32.gmra.mrb[0].mxu0 %v1266
  %v1548 = vpop.f32.mrb[0].mxu0
  %v1549 = vadd.f32 0.0, %v1548
  %v1550 = vpop.f32.mrb[0].mxu0
  %1551 = vmatprep.mubr.f32.mxu0 0.0
  %1552 = vmatmul.mubr.f32.gmra.mrb[0].mxu0 %v1267
  %v1553 = vpop.f32.mrb[0].mxu0
  %v1554 = vadd.f32 0.0, %v1553
  %v1555 = vpop.f32.mrb[0].mxu0
  %1556 = vmatprep.mubr.f32.mxu0 0.0
  %1557 = vmatmul.mubr.f32.gmra.mrb[0].mxu0 %v1268
  %v1558 = vpop.f32.mrb[0].mxu0
  %v1559 = vadd.f32 0.0, %v1558
  %v1560 = vpop.f32.mrb[0].mxu0
  %1561 = vmatprep.mubr.f32.mxu0 0.0
  %1562 = vmatmul.mubr.f32.gmra.mrb[0].mxu0 %v1269
  %v1563 = vpop.f32.mrb[0].mxu0
  %v1564 = vadd.f32 0.0, %v1563
  %v1565 = vpop.f32.mrb[0].mxu0
  %1566 = vmatprep.mubr.f32.mxu0 0.0
  %1567 = vmatmul.mubr.f32.gmra.mrb[0].mxu0 %v1270
  %v1568 = vpop.f32.mrb[0].mxu0
  %v1569 = vadd.f32 0.0, %v1568
  %v1570 = vpop.f32.mrb[0].mxu0
  %1571 = vmatprep.mubr.f32.mxu0 0.0
  %1572 = vmatmul.mubr.f32.gmra.mrb[0].mxu0 %v1271
  %v1573 = vpop.f32.mrb[0].mxu0
  %v1574 = vadd.f32 0.0, %v1573
  %v1575 = vpop.f32.mrb[0].mxu0
  %1576 = vmatprep.mubr.f32.mxu0 0.0
  %1577 = vmatmul.mubr.f32.gmra.mrb[0].mxu0 %v1272
  %v1578 = vpop.f32.mrb[0].mxu0
  %v1579 = vadd.f32 0.0, %v1578
  %v1580 = vpop.f32.mrb[0].mxu0
  %1581 = vmatprep.mubr.f32.mxu0 0.0
  %1582 = vmatmul.mubr.f32.gmra.mrb[0].mxu0 %v1273
  %v1583 = vpop.f32.mrb[0].mxu0
  %v1584 = vadd.f32 0.0, %v1583
  %v1585 = vpop.f32.mrb[0].mxu0
  %1586 = vmatprep.mubr.f32.mxu0 0.0
  %1587 = vmatmul.mubr.f32.gmra.mrb[0].mxu0 %v1274
  %v1588 = vpop.f32.mrb[0].mxu0
  %v1589 = vadd.f32 0.0, %v1588
  %v1590 = vpop.f32.mrb[0].mxu0
  %1591 = vmatprep.mubr.f32.mxu0 0.0
  %1592 = vmatmul.mubr.f32.gmra.mrb[0].mxu0 %v1275
  %v1593 = vpop.f32.mrb[0].mxu0
  %v1594 = vadd.f32 0.0, %v1593
  %v1595 = vpop.f32.mrb[0].mxu0
  %1596 = vmatprep.mubr.f32.mxu0 0.0
  %1597 = vmatmul.mubr.f32.gmra.mrb[0].mxu0 %v1276
  %v1598 = vpop.f32.mrb[0].mxu0
  %v1599 = vadd.f32 0.0, %v1598
  %v1600 = vpop.f32.mrb[0].mxu0
  %1601 = vmatprep.mubr.f32.mxu0 0.0
  %1602 = vmatmul.mubr.f32.gmra.mrb[0].mxu0 %v1277
  %v1603 = vpop.f32.mrb[0].mxu0
  %v1604 = vadd.f32 0.0, %v1603
  %v1605 = vpop.f32.mrb[0].mxu0
  %1606 = vmatprep.mubr.f32.mxu0 0.0
  %1607 = vmatmul.mubr.f32.gmra.mrb[0].mxu0 %v1278
  %v1608 = vpop.f32.mrb[0].mxu0
  %v1609 = vadd.f32 0.0, %v1608
  %v1610 = vpop.f32.mrb[0].mxu0
  %1611 = vmatprep.mubr.f32.mxu0 0.0
  %1612 = vmatmul.mubr.f32.gmra.mrb[0].mxu0 %v1279
  %v1613 = vpop.f32.mrb[0].mxu0
  %v1614 = vadd.f32 0.0, %v1613
  %v1615 = vpop.f32.mrb[0].mxu0
  %1616 = vmatprep.mubr.f32.mxu0 0.0
  %1617 = vmatmul.mubr.f32.gmra.mrb[0].mxu0 %v1280
  %v1618 = vpop.f32.mrb[0].mxu0
  %v1619 = vadd.f32 0.0, %v1618
  %v1620 = vpop.f32.mrb[0].mxu0
  %1621 = vmatprep.mubr.f32.mxu0 0.0
  %1622 = vmatmul.mubr.f32.gmra.mrb[0].mxu0 %v1281
  %v1623 = vpop.f32.mrb[0].mxu0
  %v1624 = vadd.f32 0.0, %v1623
  %v1625 = vpop.f32.mrb[0].mxu0
  %1626 = vmatprep.mubr.f32.mxu0 0.0
  %1627 = vmatmul.mubr.f32.gmra.mrb[0].mxu0 %v1282
  %v1628 = vpop.f32.mrb[0].mxu0
  %v1629 = vadd.f32 0.0, %v1628
  %v1630 = vpop.f32.mrb[0].mxu0
  %1631 = vmatprep.mubr.f32.mxu0 0.0
  %1632 = vmatmul.mubr.f32.gmra.mrb[0].mxu0 %v1283
  %v1633 = vpop.f32.mrb[0].mxu0
  %v1634 = vadd.f32 0.0, %v1633
  %v1635 = vpop.f32.mrb[0].mxu0
  %1636 = vmatprep.mubr.f32.mxu0 0.0
  %1637 = vmatmul.mubr.f32.gmra.mrb[0].mxu0 %v1284
  %v1638 = vpop.f32.mrb[0].mxu0
  %v1639 = vadd.f32 0.0, %v1638
  %v1640 = vpop.f32.mrb[0].mxu0
  %1641 = vmatprep.mubr.f32.mxu0 0.0
  %1642 = vmatmul.mubr.f32.gmra.mrb[0].mxu0 %v1285
  %v1643 = vpop.f32.mrb[0].mxu0
  %v1644 = vadd.f32 0.0, %v1643
  %v1645 = vpop.f32.mrb[0].mxu0
  %1646 = vmatprep.mubr.f32.mxu0 0.0
  %1647 = vmatmul.mubr.f32.gmra.mrb[0].mxu0 %v1286
  %v1648 = vpop.f32.mrb[0].mxu0
  %v1649 = vadd.f32 0.0, %v1648
  %v1650 = vpop.f32.mrb[0].mxu0
  %1651 = vmatprep.mubr.f32.mxu0 0.0
  %1652 = vmatmul.mubr.f32.gmra.mrb[0].mxu0 %v1287
  %v1653 = vpop.f32.mrb[0].mxu0
  %v1654 = vadd.f32 0.0, %v1653
  %v1655 = vpop.f32.mrb[0].mxu0
  %1656 = vmatprep.mubr.f32.mxu0 0.0
  %1657 = vmatmul.mubr.f32.gmra.mrb[0].mxu0 %v1288
  %v1658 = vpop.f32.mrb[0].mxu0
  %v1659 = vadd.f32 0.0, %v1658
  %v1660 = vpop.f32.mrb[0].mxu0
  %1661 = vmatprep.mubr.f32.mxu0 0.0
  %1662 = vmatmul.mubr.f32.gmra.mrb[0].mxu0 %v1289
  %v1663 = vpop.f32.mrb[0].mxu0
  %v1664 = vadd.f32 0.0, %v1663
  %v1665 = vpop.f32.mrb[0].mxu0
  %1666 = vmatprep.mubr.f32.mxu0 0.0
  %1667 = vmatmul.mubr.f32.gmra.mrb[0].mxu0 %v1290
  %v1668 = vpop.f32.mrb[0].mxu0
  %v1669 = vadd.f32 0.0, %v1668
  %v1670 = vpop.f32.mrb[0].mxu0
  %1671 = vmatprep.mubr.f32.mxu0 0.0
  %1672 = vmatmul.mubr.f32.gmra.mrb[0].mxu0 %v1291
  %v1673 = vpop.f32.mrb[0].mxu0
  %v1674 = vadd.f32 0.0, %v1673
  %v1675 = vpop.f32.mrb[0].mxu0
  %1676 = vdwg.mxu0
  %1677 = vst [vmem:[%s7] sm:$0xff] %v1359
  %1678 = vst [vmem:[%s7 + $0x8] sm:$0xff] %v1364
  %1679 = vst [vmem:[%s7 + $0x10] sm:$0xff] %v1369
  %1680 = vst [vmem:[%s7 + $0x18] sm:$0xff] %v1374
  %1681 = vst [vmem:[%s7 + $0x20] sm:$0xff] %v1379
  %1682 = vst [vmem:[%s7 + $0x28] sm:$0xff] %v1384
  %1683 = vst [vmem:[%s7 + $0x30] sm:$0xff] %v1389
  %1684 = vst [vmem:[%s7 + $0x38] sm:$0xff] %v1394
  %1685 = vst [vmem:[%s7 + $0x40] sm:$0xff] %v1399
  %1686 = vst [vmem:[%s7 + $0x48] sm:$0xff] %v1404
  %1687 = vst [vmem:[%s7 + $0x50] sm:$0xff] %v1409
  %1688 = vst [vmem:[%s7 + $0x58] sm:$0xff] %v1414
  %1689 = vst [vmem:[%s7 + $0x60] sm:$0xff] %v1419
  %1690 = vst [vmem:[%s7 + $0x68] sm:$0xff] %v1424
  %1691 = vst [vmem:[%s7 + $0x70] sm:$0xff] %v1429
  %1692 = vst [vmem:[%s7 + $0x78] sm:$0xff] %v1434
  %1693 = vst [vmem:[%s7 + $0x80] sm:$0xff] %v1439
  %1694 = vst [vmem:[%s7 + $0x88] sm:$0xff] %v1444
  %1695 = vst [vmem:[%s7 + $0x90] sm:$0xff] %v1449
  %1696 = vst [vmem:[%s7 + $0x98] sm:$0xff] %v1454
  %1697 = vst [vmem:[%s7 + $0xa0] sm:$0xff] %v1459
  %1698 = vst [vmem:[%s7 + $0xa8] sm:$0xff] %v1464
  %1699 = vst [vmem:[%s7 + $0xb0] sm:$0xff] %v1469
  %1700 = vst [vmem:[%s7 + $0xb8] sm:$0xff] %v1474
  %1701 = vst [vmem:[%s7 + $0xc0] sm:$0xff] %v1479
  %1702 = vst [vmem:[%s7 + $0xc8] sm:$0xff] %v1484
  %1703 = vst [vmem:[%s7 + $0xd0] sm:$0xff] %v1489
  %1704 = vst [vmem:[%s7 + $0xd8] sm:$0xff] %v1494
  %1705 = vst [vmem:[%s7 + $0xe0] sm:$0xff] %v1499
  %1706 = vst [vmem:[%s7 + $0xe8] sm:$0xff] %v1504
  %1707 = vst [vmem:[%s7 + $0xf0] sm:$0xff] %v1509
  %1708 = vst [vmem:[%s7 + $0xf8] sm:$0xff] %v1514
  %1709 = vst [vmem:[%s7 + $0x100] sm:$0xff] %v1519
  %1710 = vst [vmem:[%s7 + $0x108] sm:$0xff] %v1524
  %1711 = vst [vmem:[%s7 + $0x110] sm:$0xff] %v1529
  %1712 = vst [vmem:[%s7 + $0x118] sm:$0xff] %v1534
  %1713 = vst [vmem:[%s7 + $0x120] sm:$0xff] %v1539
  %1714 = vst [vmem:[%s7 + $0x128] sm:$0xff] %v1544
  %1715 = vst [vmem:[%s7 + $0x130] sm:$0xff] %v1549
  %1716 = vst [vmem:[%s7 + $0x138] sm:$0xff] %v1554
  %1717 = vst [vmem:[%s7 + $0x140] sm:$0xff] %v1559
  %1718 = vst [vmem:[%s7 + $0x148] sm:$0xff] %v1564
  %1719 = vst [vmem:[%s7 + $0x150] sm:$0xff] %v1569
  %1720 = vst [vmem:[%s7 + $0x158] sm:$0xff] %v1574
  %1721 = vst [vmem:[%s7 + $0x160] sm:$0xff] %v1579
  %1722 = vst [vmem:[%s7 + $0x168] sm:$0xff] %v1584
  %1723 = vst [vmem:[%s7 + $0x170] sm:$0xff] %v1589
  %1724 = vst [vmem:[%s7 + $0x178] sm:$0xff] %v1594
  %1725 = vst [vmem:[%s7 + $0x180] sm:$0xff] %v1599
  %1726 = vst [vmem:[%s7 + $0x188] sm:$0xff] %v1604
  %1727 = vst [vmem:[%s7 + $0x190] sm:$0xff] %v1609
  %1728 = vst [vmem:[%s7 + $0x198] sm:$0xff] %v1614
  %1729 = vst [vmem:[%s7 + $0x1a0] sm:$0xff] %v1619
  %1730 = vst [vmem:[%s7 + $0x1a8] sm:$0xff] %v1624
  %1731 = vst [vmem:[%s7 + $0x1b0] sm:$0xff] %v1629
  %1732 = vst [vmem:[%s7 + $0x1b8] sm:$0xff] %v1634
  %1733 = vst [vmem:[%s7 + $0x1c0] sm:$0xff] %v1639
  %1734 = vst [vmem:[%s7 + $0x1c8] sm:$0xff] %v1644
  %1735 = vst [vmem:[%s7 + $0x1d0] sm:$0xff] %v1649
  %1736 = vst [vmem:[%s7 + $0x1d8] sm:$0xff] %v1654
  %1737 = vst [vmem:[%s7 + $0x1e0] sm:$0xff] %v1659
  %1738 = vst [vmem:[%s7 + $0x1e8] sm:$0xff] %v1664
  %1739 = vst [vmem:[%s7 + $0x1f0] sm:$0xff] %v1669
  %1740 = vst [vmem:[%s7 + $0x1f8] sm:$0xff] %v1674
  // Predicated region
  $region30: #{_lambda_.15} parent=0 // pred_check
    _
  $region31: #{_lambda_.15} parent=0 // pred_check_branch
    %1742 = sbr.rel (0) target = $region33
  $region32: #{_lambda_.15} parent=0 // pred_region
    _
  $region33: #{_lambda_.15} parent=0 // pred_fallthru
    _
  // Predicated region
  $region34: #{_lambda_.15} parent=0 // pred_check
    _
  $region35: #{_lambda_.15} parent=0 // pred_check_branch
    %1744 = sbr.rel (0) target = $region37
  $region36: #{_lambda_.15} parent=0 // pred_region
    _
  $region37: #{_lambda_.15} parent=0 // pred_fallthru
    _

</llo_original>
